<compile_context>
chip_gen: v7x
topology: tpu7x:2x2x1
jax: 0.10.0
libtpu: 0.0.40
codegen_flags: <defaults>
</compile_context>

<pallas_src>
import functools

import jax
import jax.numpy as jnp
import numpy as np
from jax import lax
from jax.experimental import pallas as pl
from jax.experimental.pallas import tpu as pltpu

_EPS = 1e-5


def _bn_silu(v, gamma, beta, inv_n):
    """Training-mode BatchNorm over axis 0 (one-pass stats) followed by SiLU."""
    s1 = jnp.sum(v, axis=0, keepdims=True)
    s2 = jnp.sum(v * v, axis=0, keepdims=True)
    mean = s1 * inv_n
    var = s2 * inv_n - mean * mean          # biased variance, single pass
    scale = gamma * lax.rsqrt(var + _EPS)
    shift = beta - mean * scale
    y = v * scale + shift
    # SiLU: y * sigmoid(y); exp + approx reciprocal both live on the EUP slot.
    return y * pl.reciprocal(1.0 + jnp.exp(-y), approx=True)


def _conv3x3_im2col(pad_ref, w_ref, b_ref, B, H, W, C):
    """3x3 'same' conv as a single im2col matmul: (B*H*W, 9C) @ (9C, Cout)."""
    taps = []
    for dy in range(3):
        for dx in range(3):
            taps.append(
                pad_ref[:, dy:dy + H, dx:dx + W, :].reshape(B * H * W, C))
    patches = jnp.concatenate(taps, axis=1).astype(jnp.bfloat16)
    acc = jnp.dot(patches, w_ref[...], preferred_element_type=jnp.float32)
    # Note: under training-mode BN the conv bias is cancelled by the mean
    # subtraction; it is kept (one cheap add) for parameter fidelity.
    return acc + b_ref[...]


def middle_layer_kernel(x_ref, t_ref, wt_ref, bt_ref,
                        w1_ref, b1_ref, g1_ref, be1_ref,
                        w2_ref, b2_ref, g2_ref, be2_ref,
                        wr_ref, br_ref,
                        out_ref, pad1_ref, pad2_ref, *, has_residual):
    B, H, W, Cin = x_ref.shape
    Cout = out_ref.shape[-1]
    inv_n = 1.0 / float(B * H * W)

    x = x_ref[...]                                           # f32 (B,H,W,Cin)

    # ---- time-embedding projection: (B,T)@(T,Cin) + b, bf16 MXU / f32 acc ----
    t = jnp.dot(t_ref[...], wt_ref[...], preferred_element_type=jnp.float32)
    t = t + bt_ref[...]                                      # (B, Cin) f32
    h = x + t[:, None, None, :]                              # broadcast H, W

    # ---- conv1 (3x3, pad 1) + BN + SiLU ----
    # Zero only the 1-pixel halo of the padded scratch; interior written once.
    zrow1 = jnp.zeros((B, 1, W + 2, Cin), jnp.float32)
    zcol1 = jnp.zeros((B, H, 1, Cin), jnp.float32)
    pad1_ref[:, 0:1, :, :] = zrow1
    pad1_ref[:, H + 1:H + 2, :, :] = zrow1
    pad1_ref[:, 1:H + 1, 0:1, :] = zcol1
    pad1_ref[:, 1:H + 1, W + 1:W + 2, :] = zcol1
    pad1_ref[:, 1:H + 1, 1:W + 1, :] = h
    a1 = _conv3x3_im2col(pad1_ref, w1_ref, b1_ref, B, H, W, Cin)
    a1 = _bn_silu(a1, g1_ref[...], be1_ref[...], inv_n)      # (B*H*W, Cout) f32

    # ---- conv2 (3x3, pad 1) + BN + SiLU ----
    zrow2 = jnp.zeros((B, 1, W + 2, Cout), jnp.float32)
    zcol2 = jnp.zeros((B, H, 1, Cout), jnp.float32)
    pad2_ref[:, 0:1, :, :] = zrow2
    pad2_ref[:, H + 1:H + 2, :, :] = zrow2
    pad2_ref[:, 1:H + 1, 0:1, :] = zcol2
    pad2_ref[:, 1:H + 1, W + 1:W + 2, :] = zcol2
    pad2_ref[:, 1:H + 1, 1:W + 1, :] = a1.reshape(B, H, W, Cout)
    a2 = _conv3x3_im2col(pad2_ref, w2_ref, b2_ref, B, H, W, Cout)
    a2 = _bn_silu(a2, g2_ref[...], be2_ref[...], inv_n)

    # ---- residual branch (1x1 conv == channel matmul) ----
    x_flat = x.reshape(B * H * W, Cin)
    if has_residual:
        res = jnp.dot(x_flat.astype(jnp.bfloat16), wr_ref[...],
                      preferred_element_type=jnp.float32)
        res = res + br_ref[...]
    else:
        res = x_flat

    out_ref[...] = a2 + res


def middle_layer_forward(x_nchw, t_emb, params, has_residual):
    B, Cin, H, W = x_nchw.shape
    Cout = params["w1"].shape[-1]
    x_nhwc = jnp.transpose(x_nchw, (0, 2, 3, 1)).astype(jnp.float32)

    # Layout plumbing outside the kernel: im2col weight reshape + bf16 cast of
    # everything that feeds the MXU (biases / BN affine params stay f32).
    w1_flat = params["w1"].reshape(9 * Cin, Cout).astype(jnp.bfloat16)
    w2_flat = params["w2"].reshape(9 * Cout, Cout).astype(jnp.bfloat16)
    wt_b = params["wt"].astype(jnp.bfloat16)
    wr_b = params["wr"].astype(jnp.bfloat16)
    t_b = t_emb.astype(jnp.bfloat16)

    kernel = functools.partial(middle_layer_kernel, has_residual=has_residual)
    n_in = 14
    out_flat = pl.pallas_call(
        kernel,
        out_shape=jax.ShapeDtypeStruct((B * H * W, Cout), jnp.float32),
        in_specs=[pl.BlockSpec(memory_space=pltpu.MemorySpace.VMEM)] * n_in,
        out_specs=pl.BlockSpec(memory_space=pltpu.MemorySpace.VMEM),
        scratch_shapes=[
            pltpu.VMEM((B, H + 2, W + 2, Cin), jnp.float32),   # conv1 padded in
            pltpu.VMEM((B, H + 2, W + 2, Cout), jnp.float32),  # conv2 padded in
        ],
        compiler_params=pltpu.CompilerParams(
            vmem_limit_bytes=32 * 1024 * 1024),
    )(x_nhwc, t_b,
      wt_b, params["bt"],
      w1_flat, params["b1"], params["g1"], params["be1"],
      w2_flat, params["b2"], params["g2"], params["be2"],
      wr_b, params["br"])

    return out_flat.reshape(B, H, W, Cout).transpose(0, 3, 1, 2)  # back to NCHW


def reference_nchw(x_nchw, t_emb, params, has_residual):
    """Pure-JAX f32 reference matching PyTorch semantics (for validation)."""
    x = jnp.transpose(x_nchw, (0, 2, 3, 1))
    t = t_emb @ params["wt"] + params["bt"]
    h = x + t[:, None, None, :]

    def conv(v, w, b):
        y = lax.conv_general_dilated(
            v, w, (1, 1), "SAME",
            dimension_numbers=("NHWC", "HWIO", "NHWC"),
            precision=lax.Precision.HIGHEST)
        return y + b.reshape(1, 1, 1, -1)

    def bn(v, g, be):
        mean = v.mean(axis=(0, 1, 2), keepdims=True)
        var = ((v - mean) ** 2).mean(axis=(0, 1, 2), keepdims=True)
        return (v - mean) / jnp.sqrt(var + _EPS) * g.reshape(1, 1, 1, -1) \
            + be.reshape(1, 1, 1, -1)

    def silu(v):
        return v * jax.nn.sigmoid(v)

    a = silu(bn(conv(h, params["w1"], params["b1"]), params["g1"], params["be1"]))
    a = silu(bn(conv(a, params["w2"], params["b2"]), params["g2"], params["be2"]))
    if has_residual:
        res = jnp.einsum("bhwc,cd->bhwd", x, params["wr"]) \
            + params["br"].reshape(1, 1, 1, -1)
    else:
        res = x
    return jnp.transpose(a + res, (0, 3, 1, 2))


def init_params(key, in_dim, out_dim, time_embed_dim):
    ks = jax.random.split(key, 8)
    s = 0.1
    p = {
        "wt": jax.random.normal(ks[0], (time_embed_dim, in_dim), jnp.float32) * s,
        "bt": jax.random.normal(ks[1], (1, in_dim), jnp.float32) * s,
        "w1": jax.random.normal(ks[2], (3, 3, in_dim, out_dim), jnp.float32) * s,
        "b1": jax.random.normal(ks[3], (1, out_dim), jnp.float32) * s,
        "g1": jnp.ones((1, out_dim), jnp.float32),   # BatchNorm affine defaults
        "be1": jnp.zeros((1, out_dim), jnp.float32),
        "w2": jax.random.normal(ks[4], (3, 3, out_dim, out_dim), jnp.float32) * s,
        "b2": jax.random.normal(ks[5], (1, out_dim), jnp.float32) * s,
        "g2": jnp.ones((1, out_dim), jnp.float32),
        "be2": jnp.zeros((1, out_dim), jnp.float32),
    }
    if in_dim != out_dim:
        p["wr"] = jax.random.normal(ks[6], (in_dim, out_dim), jnp.float32) * s
        p["br"] = jax.random.normal(ks[7], (1, out_dim), jnp.float32) * s
    else:
        # Dummy (unused) residual params so the kernel signature stays fixed.
        p["wr"] = jnp.zeros((in_dim, out_dim), jnp.float32)
        p["br"] = jnp.zeros((1, out_dim), jnp.float32)
    return p


if __name__ == "__main__":
    B, in_dim, out_dim, time_embed_dim, H, W = 2, 4, 8, 32, 16, 16
    key = jax.random.PRNGKey(0)
    kx, kt, kp = jax.random.split(key, 3)
    x = jax.random.normal(kx, (B, in_dim, H, W), jnp.float32)      # NCHW input
    t_emb = jax.random.normal(kt, (B, time_embed_dim), jnp.float32)
    params = init_params(kp, in_dim, out_dim, time_embed_dim)
    has_residual = in_dim != out_dim

    out = middle_layer_forward(x, t_emb, params, has_residual)
    out = jax.block_until_ready(out)
    assert out.shape == (B, out_dim, H, W)

    # bf16 MXU inputs (f32 accumulation) vs. the f32 HIGHEST reference:
    # 5e-2 tolerance comfortably covers the precision difference.
    ref = reference_nchw(x, t_emb, params, has_residual)
    np.testing.assert_allclose(np.asarray(out), np.asarray(ref),
                               atol=5e-2, rtol=5e-2)
    print("KERNEL_OK")
</pallas_src>

<mosaic_0001>
module attributes {stable_mosaic.version = 11 : i64} {
  func.func @middle_layer_kernel(%arg0: memref<2x16x16x4xf32, #tpu.memory_space<vmem>>, %arg1: memref<2x32xbf16, #tpu.memory_space<vmem>>, %arg2: memref<32x4xbf16, #tpu.memory_space<vmem>>, %arg3: memref<1x4xf32, #tpu.memory_space<vmem>>, %arg4: memref<36x8xbf16, #tpu.memory_space<vmem>>, %arg5: memref<1x8xf32, #tpu.memory_space<vmem>>, %arg6: memref<1x8xf32, #tpu.memory_space<vmem>>, %arg7: memref<1x8xf32, #tpu.memory_space<vmem>>, %arg8: memref<72x8xbf16, #tpu.memory_space<vmem>>, %arg9: memref<1x8xf32, #tpu.memory_space<vmem>>, %arg10: memref<1x8xf32, #tpu.memory_space<vmem>>, %arg11: memref<1x8xf32, #tpu.memory_space<vmem>>, %arg12: memref<4x8xbf16, #tpu.memory_space<vmem>>, %arg13: memref<1x8xf32, #tpu.memory_space<vmem>>, %arg14: memref<512x8xf32, #tpu.memory_space<vmem>>, %arg15: memref<2x18x18x4xf32, #tpu.memory_space<vmem>>, %arg16: memref<2x18x18x8xf32, #tpu.memory_space<vmem>>) attributes {dimension_semantics = [], scalar_prefetch = 0 : i64, scratch_operands = 2 : i64, tpu.core_type = #tpu.core_type<tc>} {
    %c0 = arith.constant 0 : index
    %c0_0 = arith.constant 0 : index
    %c0_1 = arith.constant 0 : index
    %c0_2 = arith.constant 0 : index
    %0 = vector.load %arg0[%c0, %c0_0, %c0_1, %c0_2] : memref<2x16x16x4xf32, #tpu.memory_space<vmem>>, vector<2x16x16x4xf32>
    %c0_3 = arith.constant 0 : index
    %c0_4 = arith.constant 0 : index
    %1 = vector.load %arg1[%c0_3, %c0_4] : memref<2x32xbf16, #tpu.memory_space<vmem>>, vector<2x32xbf16>
    %c0_5 = arith.constant 0 : index
    %c0_6 = arith.constant 0 : index
    %2 = vector.load %arg2[%c0_5, %c0_6] : memref<32x4xbf16, #tpu.memory_space<vmem>>, vector<32x4xbf16>
    %cst = arith.constant dense<0.000000e+00> : vector<2x4xf32>
    %3 = tpu.matmul %1, %2, %cst {dimension_numbers = #tpu.dot_dimension_numbers<[1], [0], [0], [1], [0, 0, 1, 1], [], []>} : vector<2x32xbf16>, vector<32x4xbf16>, vector<2x4xf32> -> vector<2x4xf32>
    %c0_7 = arith.constant 0 : index
    %c0_8 = arith.constant 0 : index
    %4 = vector.load %arg3[%c0_7, %c0_8] : memref<1x4xf32, #tpu.memory_space<vmem>>, vector<1x4xf32>
    %5 = vector.broadcast %4 : vector<1x4xf32> to vector<2x4xf32>
    %6 = arith.addf %3, %5 : vector<2x4xf32>
    %7 = vector.shape_cast %6 : vector<2x4xf32> to vector<2x1x1x4xf32>
    %8 = vector.broadcast %7 : vector<2x1x1x4xf32> to vector<2x16x16x4xf32>
    %9 = arith.addf %0, %8 : vector<2x16x16x4xf32>
    %cst_9 = arith.constant 0.000000e+00 : f32
    %10 = vector.broadcast %cst_9 : f32 to vector<2x1x18x4xf32>
    %cst_10 = arith.constant 0.000000e+00 : f32
    %11 = vector.broadcast %cst_10 : f32 to vector<2x16x1x4xf32>
    %c0_11 = arith.constant 0 : index
    %c0_12 = arith.constant 0 : index
    %c0_13 = arith.constant 0 : index
    %c0_14 = arith.constant 0 : index
    %12 = vector.load %arg15[%c0_11, %c0_12, %c0_13, %c0_14] : memref<2x18x18x4xf32, #tpu.memory_space<vmem>>, vector<2x1x18x4xf32>
    tpu.vector_store %arg15[%c0_11, %c0_12, %c0_13, %c0_14], %10 {strides = array<i32>} : memref<2x18x18x4xf32, #tpu.memory_space<vmem>>, vector<2x1x18x4xf32>,
    %c0_15 = arith.constant 0 : index
    %c17 = arith.constant 17 : index
    %c0_16 = arith.constant 0 : index
    %c0_17 = arith.constant 0 : index
    %13 = vector.load %arg15[%c0_15, %c17, %c0_16, %c0_17] : memref<2x18x18x4xf32, #tpu.memory_space<vmem>>, vector<2x1x18x4xf32>
    tpu.vector_store %arg15[%c0_15, %c17, %c0_16, %c0_17], %10 {strides = array<i32>} : memref<2x18x18x4xf32, #tpu.memory_space<vmem>>, vector<2x1x18x4xf32>,
    %c0_18 = arith.constant 0 : index
    %c1 = arith.constant 1 : index
    %c0_19 = arith.constant 0 : index
    %c0_20 = arith.constant 0 : index
    %14 = vector.load %arg15[%c0_18, %c1, %c0_19, %c0_20] : memref<2x18x18x4xf32, #tpu.memory_space<vmem>>, vector<2x16x1x4xf32>
    tpu.vector_store %arg15[%c0_18, %c1, %c0_19, %c0_20], %11 {strides = array<i32>} : memref<2x18x18x4xf32, #tpu.memory_space<vmem>>, vector<2x16x1x4xf32>,
    %c0_21 = arith.constant 0 : index
    %c1_22 = arith.constant 1 : index
    %c17_23 = arith.constant 17 : index
    %c0_24 = arith.constant 0 : index
    %15 = vector.load %arg15[%c0_21, %c1_22, %c17_23, %c0_24] : memref<2x18x18x4xf32, #tpu.memory_space<vmem>>, vector<2x16x1x4xf32>
    tpu.vector_store %arg15[%c0_21, %c1_22, %c17_23, %c0_24], %11 {strides = array<i32>} : memref<2x18x18x4xf32, #tpu.memory_space<vmem>>, vector<2x16x1x4xf32>,
    %c0_25 = arith.constant 0 : index
    %c1_26 = arith.constant 1 : index
    %c1_27 = arith.constant 1 : index
    %c0_28 = arith.constant 0 : index
    %16 = vector.load %arg15[%c0_25, %c1_26, %c1_27, %c0_28] : memref<2x18x18x4xf32, #tpu.memory_space<vmem>>, vector<2x16x16x4xf32>
    tpu.vector_store %arg15[%c0_25, %c1_26, %c1_27, %c0_28], %9 {strides = array<i32>} : memref<2x18x18x4xf32, #tpu.memory_space<vmem>>, vector<2x16x16x4xf32>,
    %c0_29 = arith.constant 0 : index
    %c0_30 = arith.constant 0 : index
    %c0_31 = arith.constant 0 : index
    %c0_32 = arith.constant 0 : index
    %17 = vector.load %arg15[%c0_29, %c0_30, %c0_31, %c0_32] : memref<2x18x18x4xf32, #tpu.memory_space<vmem>>, vector<2x16x16x4xf32>
    %18 = vector.shape_cast %17 : vector<2x16x16x4xf32> to vector<512x4xf32>
    %c0_33 = arith.constant 0 : index
    %c0_34 = arith.constant 0 : index
    %c1_35 = arith.constant 1 : index
    %c0_36 = arith.constant 0 : index
    %19 = vector.load %arg15[%c0_33, %c0_34, %c1_35, %c0_36] : memref<2x18x18x4xf32, #tpu.memory_space<vmem>>, vector<2x16x16x4xf32>
    %20 = vector.shape_cast %19 : vector<2x16x16x4xf32> to vector<512x4xf32>
    %c0_37 = arith.constant 0 : index
    %c0_38 = arith.constant 0 : index
    %c2 = arith.constant 2 : index
    %c0_39 = arith.constant 0 : index
    %21 = vector.load %arg15[%c0_37, %c0_38, %c2, %c0_39] : memref<2x18x18x4xf32, #tpu.memory_space<vmem>>, vector<2x16x16x4xf32>
    %22 = vector.shape_cast %21 : vector<2x16x16x4xf32> to vector<512x4xf32>
    %c0_40 = arith.constant 0 : index
    %c1_41 = arith.constant 1 : index
    %c0_42 = arith.constant 0 : index
    %c0_43 = arith.constant 0 : index
    %23 = vector.load %arg15[%c0_40, %c1_41, %c0_42, %c0_43] : memref<2x18x18x4xf32, #tpu.memory_space<vmem>>, vector<2x16x16x4xf32>
    %24 = vector.shape_cast %23 : vector<2x16x16x4xf32> to vector<512x4xf32>
    %c0_44 = arith.constant 0 : index
    %c1_45 = arith.constant 1 : index
    %c1_46 = arith.constant 1 : index
    %c0_47 = arith.constant 0 : index
    %25 = vector.load %arg15[%c0_44, %c1_45, %c1_46, %c0_47] : memref<2x18x18x4xf32, #tpu.memory_space<vmem>>, vector<2x16x16x4xf32>
    %26 = vector.shape_cast %25 : vector<2x16x16x4xf32> to vector<512x4xf32>
    %c0_48 = arith.constant 0 : index
    %c1_49 = arith.constant 1 : index
    %c2_50 = arith.constant 2 : index
    %c0_51 = arith.constant 0 : index
    %27 = vector.load %arg15[%c0_48, %c1_49, %c2_50, %c0_51] : memref<2x18x18x4xf32, #tpu.memory_space<vmem>>, vector<2x16x16x4xf32>
    %28 = vector.shape_cast %27 : vector<2x16x16x4xf32> to vector<512x4xf32>
    %c0_52 = arith.constant 0 : index
    %c2_53 = arith.constant 2 : index
    %c0_54 = arith.constant 0 : index
    %c0_55 = arith.constant 0 : index
    %29 = vector.load %arg15[%c0_52, %c2_53, %c0_54, %c0_55] : memref<2x18x18x4xf32, #tpu.memory_space<vmem>>, vector<2x16x16x4xf32>
    %30 = vector.shape_cast %29 : vector<2x16x16x4xf32> to vector<512x4xf32>
    %c0_56 = arith.constant 0 : index
    %c2_57 = arith.constant 2 : index
    %c1_58 = arith.constant 1 : index
    %c0_59 = arith.constant 0 : index
    %31 = vector.load %arg15[%c0_56, %c2_57, %c1_58, %c0_59] : memref<2x18x18x4xf32, #tpu.memory_space<vmem>>, vector<2x16x16x4xf32>
    %32 = vector.shape_cast %31 : vector<2x16x16x4xf32> to vector<512x4xf32>
    %c0_60 = arith.constant 0 : index
    %c2_61 = arith.constant 2 : index
    %c2_62 = arith.constant 2 : index
    %c0_63 = arith.constant 0 : index
    %33 = vector.load %arg15[%c0_60, %c2_61, %c2_62, %c0_63] : memref<2x18x18x4xf32, #tpu.memory_space<vmem>>, vector<2x16x16x4xf32>
    %34 = vector.shape_cast %33 : vector<2x16x16x4xf32> to vector<512x4xf32>
    %35 = tpu.concatenate %18, %20, %22, %24, %26, %28, %30, %32, %34 in 1 : vector<512x4xf32>, vector<512x4xf32>, vector<512x4xf32>, vector<512x4xf32>, vector<512x4xf32>, vector<512x4xf32>, vector<512x4xf32>, vector<512x4xf32>, vector<512x4xf32> -> vector<512x36xf32>
    %36 = arith.truncf %35 : vector<512x36xf32> to vector<512x36xbf16>
    %c0_64 = arith.constant 0 : index
    %c0_65 = arith.constant 0 : index
    %37 = vector.load %arg4[%c0_64, %c0_65] : memref<36x8xbf16, #tpu.memory_space<vmem>>, vector<36x8xbf16>
    %cst_66 = arith.constant dense<0.000000e+00> : vector<512x8xf32>
    %38 = tpu.matmul %36, %37, %cst_66 {dimension_numbers = #tpu.dot_dimension_numbers<[1], [0], [0], [1], [0, 0, 1, 1], [], []>} : vector<512x36xbf16>, vector<36x8xbf16>, vector<512x8xf32> -> vector<512x8xf32>
    %c0_67 = arith.constant 0 : index
    %c0_68 = arith.constant 0 : index
    %39 = vector.load %arg5[%c0_67, %c0_68] : memref<1x8xf32, #tpu.memory_space<vmem>>, vector<1x8xf32>
    %40 = vector.broadcast %39 : vector<1x8xf32> to vector<512x8xf32>
    %41 = arith.addf %38, %40 : vector<512x8xf32>
    %c0_69 = arith.constant 0 : index
    %c0_70 = arith.constant 0 : index
    %42 = vector.load %arg6[%c0_69, %c0_70] : memref<1x8xf32, #tpu.memory_space<vmem>>, vector<1x8xf32>
    %c0_71 = arith.constant 0 : index
    %c0_72 = arith.constant 0 : index
    %43 = vector.load %arg7[%c0_71, %c0_72] : memref<1x8xf32, #tpu.memory_space<vmem>>, vector<1x8xf32>
    %cst_73 = arith.constant dense<0.000000e+00> : vector<8xf32>
    %44 = vector.multi_reduction <add>, %41, %cst_73 [0] : vector<512x8xf32> to vector<8xf32>
    %45 = vector.shape_cast %44 : vector<8xf32> to vector<1x8xf32>
    %46 = arith.mulf %41, %41 : vector<512x8xf32>
    %cst_74 = arith.constant dense<0.000000e+00> : vector<8xf32>
    %47 = vector.multi_reduction <add>, %46, %cst_74 [0] : vector<512x8xf32> to vector<8xf32>
    %48 = vector.shape_cast %47 : vector<8xf32> to vector<1x8xf32>
    %cst_75 = arith.constant 0.001953125 : f32
    %49 = vector.broadcast %cst_75 : f32 to vector<1x8xf32>
    %50 = arith.mulf %45, %49 : vector<1x8xf32>
    %cst_76 = arith.constant 0.001953125 : f32
    %51 = vector.broadcast %cst_76 : f32 to vector<1x8xf32>
    %52 = arith.mulf %48, %51 : vector<1x8xf32>
    %53 = arith.mulf %50, %50 : vector<1x8xf32>
    %54 = arith.subf %52, %53 : vector<1x8xf32>
    %cst_77 = arith.constant 9.99999974E-6 : f32
    %55 = vector.broadcast %cst_77 : f32 to vector<1x8xf32>
    %56 = arith.addf %54, %55 : vector<1x8xf32>
    %57 = math.rsqrt %56 : vector<1x8xf32>
    %58 = arith.mulf %42, %57 : vector<1x8xf32>
    %59 = arith.mulf %50, %58 : vector<1x8xf32>
    %60 = arith.subf %43, %59 : vector<1x8xf32>
    %61 = vector.broadcast %58 : vector<1x8xf32> to vector<512x8xf32>
    %62 = arith.mulf %41, %61 : vector<512x8xf32>
    %63 = vector.broadcast %60 : vector<1x8xf32> to vector<512x8xf32>
    %64 = arith.addf %62, %63 : vector<512x8xf32>
    %cst_78 = arith.constant 0.000000e+00 : f32
    %65 = vector.broadcast %cst_78 : f32 to vector<512x8xf32>
    %66 = arith.subf %65, %64 : vector<512x8xf32>
    %67 = math.exp %66 : vector<512x8xf32>
    %cst_79 = arith.constant 1.000000e+00 : f32
    %68 = vector.broadcast %cst_79 : f32 to vector<512x8xf32>
    %69 = arith.addf %68, %67 : vector<512x8xf32>
    %70 = tpu.reciprocal %69 {approx = true} : vector<512x8xf32> -> vector<512x8xf32>
    %71 = arith.mulf %64, %70 : vector<512x8xf32>
    %cst_80 = arith.constant 0.000000e+00 : f32
    %72 = vector.broadcast %cst_80 : f32 to vector<2x1x18x8xf32>
    %cst_81 = arith.constant 0.000000e+00 : f32
    %73 = vector.broadcast %cst_81 : f32 to vector<2x16x1x8xf32>
    %c0_82 = arith.constant 0 : index
    %c0_83 = arith.constant 0 : index
    %c0_84 = arith.constant 0 : index
    %c0_85 = arith.constant 0 : index
    %74 = vector.load %arg16[%c0_82, %c0_83, %c0_84, %c0_85] : memref<2x18x18x8xf32, #tpu.memory_space<vmem>>, vector<2x1x18x8xf32>
    tpu.vector_store %arg16[%c0_82, %c0_83, %c0_84, %c0_85], %72 {strides = array<i32>} : memref<2x18x18x8xf32, #tpu.memory_space<vmem>>, vector<2x1x18x8xf32>,
    %c0_86 = arith.constant 0 : index
    %c17_87 = arith.constant 17 : index
    %c0_88 = arith.constant 0 : index
    %c0_89 = arith.constant 0 : index
    %75 = vector.load %arg16[%c0_86, %c17_87, %c0_88, %c0_89] : memref<2x18x18x8xf32, #tpu.memory_space<vmem>>, vector<2x1x18x8xf32>
    tpu.vector_store %arg16[%c0_86, %c17_87, %c0_88, %c0_89], %72 {strides = array<i32>} : memref<2x18x18x8xf32, #tpu.memory_space<vmem>>, vector<2x1x18x8xf32>,
    %c0_90 = arith.constant 0 : index
    %c1_91 = arith.constant 1 : index
    %c0_92 = arith.constant 0 : index
    %c0_93 = arith.constant 0 : index
    %76 = vector.load %arg16[%c0_90, %c1_91, %c0_92, %c0_93] : memref<2x18x18x8xf32, #tpu.memory_space<vmem>>, vector<2x16x1x8xf32>
    tpu.vector_store %arg16[%c0_90, %c1_91, %c0_92, %c0_93], %73 {strides = array<i32>} : memref<2x18x18x8xf32, #tpu.memory_space<vmem>>, vector<2x16x1x8xf32>,
    %c0_94 = arith.constant 0 : index
    %c1_95 = arith.constant 1 : index
    %c17_96 = arith.constant 17 : index
    %c0_97 = arith.constant 0 : index
    %77 = vector.load %arg16[%c0_94, %c1_95, %c17_96, %c0_97] : memref<2x18x18x8xf32, #tpu.memory_space<vmem>>, vector<2x16x1x8xf32>
    tpu.vector_store %arg16[%c0_94, %c1_95, %c17_96, %c0_97], %73 {strides = array<i32>} : memref<2x18x18x8xf32, #tpu.memory_space<vmem>>, vector<2x16x1x8xf32>,
    %78 = vector.shape_cast %71 : vector<512x8xf32> to vector<2x16x16x8xf32>
    %c0_98 = arith.constant 0 : index
    %c1_99 = arith.constant 1 : index
    %c1_100 = arith.constant 1 : index
    %c0_101 = arith.constant 0 : index
    %79 = vector.load %arg16[%c0_98, %c1_99, %c1_100, %c0_101] : memref<2x18x18x8xf32, #tpu.memory_space<vmem>>, vector<2x16x16x8xf32>
    tpu.vector_store %arg16[%c0_98, %c1_99, %c1_100, %c0_101], %78 {strides = array<i32>} : memref<2x18x18x8xf32, #tpu.memory_space<vmem>>, vector<2x16x16x8xf32>,
    %c0_102 = arith.constant 0 : index
    %c0_103 = arith.constant 0 : index
    %c0_104 = arith.constant 0 : index
    %c0_105 = arith.constant 0 : index
    %80 = vector.load %arg16[%c0_102, %c0_103, %c0_104, %c0_105] : memref<2x18x18x8xf32, #tpu.memory_space<vmem>>, vector<2x16x16x8xf32>
    %81 = vector.shape_cast %80 : vector<2x16x16x8xf32> to vector<512x8xf32>
    %c0_106 = arith.constant 0 : index
    %c0_107 = arith.constant 0 : index
    %c1_108 = arith.constant 1 : index
    %c0_109 = arith.constant 0 : index
    %82 = vector.load %arg16[%c0_106, %c0_107, %c1_108, %c0_109] : memref<2x18x18x8xf32, #tpu.memory_space<vmem>>, vector<2x16x16x8xf32>
    %83 = vector.shape_cast %82 : vector<2x16x16x8xf32> to vector<512x8xf32>
    %c0_110 = arith.constant 0 : index
    %c0_111 = arith.constant 0 : index
    %c2_112 = arith.constant 2 : index
    %c0_113 = arith.constant 0 : index
    %84 = vector.load %arg16[%c0_110, %c0_111, %c2_112, %c0_113] : memref<2x18x18x8xf32, #tpu.memory_space<vmem>>, vector<2x16x16x8xf32>
    %85 = vector.shape_cast %84 : vector<2x16x16x8xf32> to vector<512x8xf32>
    %c0_114 = arith.constant 0 : index
    %c1_115 = arith.constant 1 : index
    %c0_116 = arith.constant 0 : index
    %c0_117 = arith.constant 0 : index
    %86 = vector.load %arg16[%c0_114, %c1_115, %c0_116, %c0_117] : memref<2x18x18x8xf32, #tpu.memory_space<vmem>>, vector<2x16x16x8xf32>
    %87 = vector.shape_cast %86 : vector<2x16x16x8xf32> to vector<512x8xf32>
    %c0_118 = arith.constant 0 : index
    %c1_119 = arith.constant 1 : index
    %c1_120 = arith.constant 1 : index
    %c0_121 = arith.constant 0 : index
    %88 = vector.load %arg16[%c0_118, %c1_119, %c1_120, %c0_121] : memref<2x18x18x8xf32, #tpu.memory_space<vmem>>, vector<2x16x16x8xf32>
    %89 = vector.shape_cast %88 : vector<2x16x16x8xf32> to vector<512x8xf32>
    %c0_122 = arith.constant 0 : index
    %c1_123 = arith.constant 1 : index
    %c2_124 = arith.constant 2 : index
    %c0_125 = arith.constant 0 : index
    %90 = vector.load %arg16[%c0_122, %c1_123, %c2_124, %c0_125] : memref<2x18x18x8xf32, #tpu.memory_space<vmem>>, vector<2x16x16x8xf32>
    %91 = vector.shape_cast %90 : vector<2x16x16x8xf32> to vector<512x8xf32>
    %c0_126 = arith.constant 0 : index
    %c2_127 = arith.constant 2 : index
    %c0_128 = arith.constant 0 : index
    %c0_129 = arith.constant 0 : index
    %92 = vector.load %arg16[%c0_126, %c2_127, %c0_128, %c0_129] : memref<2x18x18x8xf32, #tpu.memory_space<vmem>>, vector<2x16x16x8xf32>
    %93 = vector.shape_cast %92 : vector<2x16x16x8xf32> to vector<512x8xf32>
    %c0_130 = arith.constant 0 : index
    %c2_131 = arith.constant 2 : index
    %c1_132 = arith.constant 1 : index
    %c0_133 = arith.constant 0 : index
    %94 = vector.load %arg16[%c0_130, %c2_131, %c1_132, %c0_133] : memref<2x18x18x8xf32, #tpu.memory_space<vmem>>, vector<2x16x16x8xf32>
    %95 = vector.shape_cast %94 : vector<2x16x16x8xf32> to vector<512x8xf32>
    %c0_134 = arith.constant 0 : index
    %c2_135 = arith.constant 2 : index
    %c2_136 = arith.constant 2 : index
    %c0_137 = arith.constant 0 : index
    %96 = vector.load %arg16[%c0_134, %c2_135, %c2_136, %c0_137] : memref<2x18x18x8xf32, #tpu.memory_space<vmem>>, vector<2x16x16x8xf32>
    %97 = vector.shape_cast %96 : vector<2x16x16x8xf32> to vector<512x8xf32>
    %98 = tpu.concatenate %81, %83, %85, %87, %89, %91, %93, %95, %97 in 1 : vector<512x8xf32>, vector<512x8xf32>, vector<512x8xf32>, vector<512x8xf32>, vector<512x8xf32>, vector<512x8xf32>, vector<512x8xf32>, vector<512x8xf32>, vector<512x8xf32> -> vector<512x72xf32>
    %99 = arith.truncf %98 : vector<512x72xf32> to vector<512x72xbf16>
    %c0_138 = arith.constant 0 : index
    %c0_139 = arith.constant 0 : index
    %100 = vector.load %arg8[%c0_138, %c0_139] : memref<72x8xbf16, #tpu.memory_space<vmem>>, vector<72x8xbf16>
    %cst_140 = arith.constant dense<0.000000e+00> : vector<512x8xf32>
    %101 = tpu.matmul %99, %100, %cst_140 {dimension_numbers = #tpu.dot_dimension_numbers<[1], [0], [0], [1], [0, 0, 1, 1], [], []>} : vector<512x72xbf16>, vector<72x8xbf16>, vector<512x8xf32> -> vector<512x8xf32>
    %c0_141 = arith.constant 0 : index
    %c0_142 = arith.constant 0 : index
    %102 = vector.load %arg9[%c0_141, %c0_142] : memref<1x8xf32, #tpu.memory_space<vmem>>, vector<1x8xf32>
    %103 = vector.broadcast %102 : vector<1x8xf32> to vector<512x8xf32>
    %104 = arith.addf %101, %103 : vector<512x8xf32>
    %c0_143 = arith.constant 0 : index
    %c0_144 = arith.constant 0 : index
    %105 = vector.load %arg10[%c0_143, %c0_144] : memref<1x8xf32, #tpu.memory_space<vmem>>, vector<1x8xf32>
    %c0_145 = arith.constant 0 : index
    %c0_146 = arith.constant 0 : index
    %106 = vector.load %arg11[%c0_145, %c0_146] : memref<1x8xf32, #tpu.memory_space<vmem>>, vector<1x8xf32>
    %cst_147 = arith.constant dense<0.000000e+00> : vector<8xf32>
    %107 = vector.multi_reduction <add>, %104, %cst_147 [0] : vector<512x8xf32> to vector<8xf32>
    %108 = vector.shape_cast %107 : vector<8xf32> to vector<1x8xf32>
    %109 = arith.mulf %104, %104 : vector<512x8xf32>
    %cst_148 = arith.constant dense<0.000000e+00> : vector<8xf32>
    %110 = vector.multi_reduction <add>, %109, %cst_148 [0] : vector<512x8xf32> to vector<8xf32>
    %111 = vector.shape_cast %110 : vector<8xf32> to vector<1x8xf32>
    %cst_149 = arith.constant 0.001953125 : f32
    %112 = vector.broadcast %cst_149 : f32 to vector<1x8xf32>
    %113 = arith.mulf %108, %112 : vector<1x8xf32>
    %cst_150 = arith.constant 0.001953125 : f32
    %114 = vector.broadcast %cst_150 : f32 to vector<1x8xf32>
    %115 = arith.mulf %111, %114 : vector<1x8xf32>
    %116 = arith.mulf %113, %113 : vector<1x8xf32>
    %117 = arith.subf %115, %116 : vector<1x8xf32>
    %cst_151 = arith.constant 9.99999974E-6 : f32
    %118 = vector.broadcast %cst_151 : f32 to vector<1x8xf32>
    %119 = arith.addf %117, %118 : vector<1x8xf32>
    %120 = math.rsqrt %119 : vector<1x8xf32>
    %121 = arith.mulf %105, %120 : vector<1x8xf32>
    %122 = arith.mulf %113, %121 : vector<1x8xf32>
    %123 = arith.subf %106, %122 : vector<1x8xf32>
    %124 = vector.broadcast %121 : vector<1x8xf32> to vector<512x8xf32>
    %125 = arith.mulf %104, %124 : vector<512x8xf32>
    %126 = vector.broadcast %123 : vector<1x8xf32> to vector<512x8xf32>
    %127 = arith.addf %125, %126 : vector<512x8xf32>
    %cst_152 = arith.constant 0.000000e+00 : f32
    %128 = vector.broadcast %cst_152 : f32 to vector<512x8xf32>
    %129 = arith.subf %128, %127 : vector<512x8xf32>
    %130 = math.exp %129 : vector<512x8xf32>
    %cst_153 = arith.constant 1.000000e+00 : f32
    %131 = vector.broadcast %cst_153 : f32 to vector<512x8xf32>
    %132 = arith.addf %131, %130 : vector<512x8xf32>
    %133 = tpu.reciprocal %132 {approx = true} : vector<512x8xf32> -> vector<512x8xf32>
    %134 = arith.mulf %127, %133 : vector<512x8xf32>
    %135 = vector.shape_cast %0 : vector<2x16x16x4xf32> to vector<512x4xf32>
    %136 = arith.truncf %135 : vector<512x4xf32> to vector<512x4xbf16>
    %c0_154 = arith.constant 0 : index
    %c0_155 = arith.constant 0 : index
    %137 = vector.load %arg12[%c0_154, %c0_155] : memref<4x8xbf16, #tpu.memory_space<vmem>>, vector<4x8xbf16>
    %cst_156 = arith.constant dense<0.000000e+00> : vector<512x8xf32>
    %138 = tpu.matmul %136, %137, %cst_156 {dimension_numbers = #tpu.dot_dimension_numbers<[1], [0], [0], [1], [0, 0, 1, 1], [], []>} : vector<512x4xbf16>, vector<4x8xbf16>, vector<512x8xf32> -> vector<512x8xf32>
    %c0_157 = arith.constant 0 : index
    %c0_158 = arith.constant 0 : index
    %139 = vector.load %arg13[%c0_157, %c0_158] : memref<1x8xf32, #tpu.memory_space<vmem>>, vector<1x8xf32>
    %140 = vector.broadcast %139 : vector<1x8xf32> to vector<512x8xf32>
    %141 = arith.addf %138, %140 : vector<512x8xf32>
    %142 = arith.addf %134, %141 : vector<512x8xf32>
    %c0_159 = arith.constant 0 : index
    %c0_160 = arith.constant 0 : index
    %143 = vector.load %arg14[%c0_159, %c0_160] : memref<512x8xf32, #tpu.memory_space<vmem>>, vector<512x8xf32>
    tpu.vector_store %arg14[%c0_159, %c0_160], %142 {strides = array<i32>} : memref<512x8xf32, #tpu.memory_space<vmem>>, vector<512x8xf32>,
    return
  }
}

</mosaic_0001>

<llo_original>
// kernel: tpu_custom_call.1
$region0: #{tpu_custom_call.1}
  #allocation0 [shape = 'u32[]', space=smem, size = 0x4, offset = 0x4, fixed_abs, tag = 'smem constant byte address 0x4 - core index']
  #allocation1 [shape = 'u32[144,128]{1,0:T(1,128)}', space=vmem, size = 0x12000, scoped, tag = 'internal scratch']
  #allocation2 [shape = 'f32[2,18,18,4]{3,2,1,0:T(8,128)}', space=vmem, size = 0x6c000, scoped, tag = 'scratch operand']
  #allocation3 [shape = 'f32[2,18,18,8]{3,2,1,0:T(8,128)}', space=vmem, size = 0x6c000, scoped, tag = 'scratch operand']
  %s0 = inlined_call_operand.vmem [shape: f32[2,16,16,4], index: 0, kind: input, shape index: {}]
  %s1 = inlined_call_operand.vmem [shape: bf16[2,32], index: 1, kind: input, shape index: {}]
  %s2 = inlined_call_operand.vmem [shape: bf16[32,4], index: 2, kind: input, shape index: {}]
  %s3 = inlined_call_operand.vmem [shape: f32[1,4], index: 3, kind: input, shape index: {}]
  %s4 = inlined_call_operand.vmem [shape: bf16[36,8], index: 4, kind: input, shape index: {}]
  %s5 = inlined_call_operand.vmem [shape: f32[1,8], index: 5, kind: input, shape index: {}]
  %s6 = inlined_call_operand.vmem [shape: f32[1,8], index: 6, kind: input, shape index: {}]
  %s7 = inlined_call_operand.vmem [shape: f32[1,8], index: 7, kind: input, shape index: {}]
  %s8 = inlined_call_operand.vmem [shape: bf16[72,8], index: 8, kind: input, shape index: {}]
  %s9 = inlined_call_operand.vmem [shape: f32[1,8], index: 9, kind: input, shape index: {}]
  %s10 = inlined_call_operand.vmem [shape: f32[1,8], index: 10, kind: input, shape index: {}]
  %s11 = inlined_call_operand.vmem [shape: f32[1,8], index: 11, kind: input, shape index: {}]
  %s12 = inlined_call_operand.vmem [shape: bf16[4,8], index: 12, kind: input, shape index: {}]
  %s13 = inlined_call_operand.vmem [shape: f32[1,8], index: 13, kind: input, shape index: {}]
  %s14 = inlined_call_operand.vmem [shape: f32[512,8], index: 14, kind: output, shape index: {}]
  %s15 = sld [smem:[#allocation0]]
  $region66: #{tpu_custom_call.1} parent=0
    _
  %s17 = ssub.s32 1, %s15
  %s18 = scalar_select 0, %s17, %s15
  // Predicated region
  $region2: #{tpu_custom_call.1} parent=0 // pred_check
    _
  $region3: #{tpu_custom_call.1} parent=0 // pred_check_branch
    %20 = sbr.rel (0) target = $region5
  $region4: #{tpu_custom_call.1} parent=0 // pred_region
    _
  $region5: #{tpu_custom_call.1} parent=0 // pred_fallthru
    _
  // Predicated region
  $region6: #{tpu_custom_call.1} parent=0 // pred_check
    _
  $region7: #{tpu_custom_call.1} parent=0 // pred_check_branch
    %22 = sbr.rel (0) target = $region9
  $region8: #{tpu_custom_call.1} parent=0 // pred_region
    _
  $region9: #{tpu_custom_call.1} parent=0 // pred_fallthru
    _
  // Predicated region
  $region10: #{tpu_custom_call.1} parent=0 // pred_check
    _
  $region11: #{tpu_custom_call.1} parent=0 // pred_check_branch
    %24 = sbr.rel (0) target = $region13
  $region12: #{tpu_custom_call.1} parent=0 // pred_region
    _
  $region13: #{tpu_custom_call.1} parent=0 // pred_fallthru
    _
  // Predicated region
  $region14: #{tpu_custom_call.1} parent=0 // pred_check
    _
  $region15: #{tpu_custom_call.1} parent=0 // pred_check_branch
    %26 = sbr.rel (0) target = $region17
  $region16: #{tpu_custom_call.1} parent=0 // pred_region
    _
  $region17: #{tpu_custom_call.1} parent=0 // pred_fallthru
    _
  // Predicated region
  $region18: #{tpu_custom_call.1} parent=0 // pred_check
    _
  $region19: #{tpu_custom_call.1} parent=0 // pred_check_branch
    %28 = sbr.rel (0) target = $region21
  $region20: #{tpu_custom_call.1} parent=0 // pred_region
    _
  $region21: #{tpu_custom_call.1} parent=0 // pred_fallthru
    _
  // Predicated region
  $region22: #{tpu_custom_call.1} parent=0 // pred_check
    _
  $region23: #{tpu_custom_call.1} parent=0 // pred_check_branch
    %30 = sbr.rel (0) target = $region25
  $region24: #{tpu_custom_call.1} parent=0 // pred_region
    _
  $region25: #{tpu_custom_call.1} parent=0 // pred_fallthru
    _
  // Predicated region
  $region26: #{tpu_custom_call.1} parent=0 // pred_check
    _
  $region27: #{tpu_custom_call.1} parent=0 // pred_check_branch
    %32 = sbr.rel (0) target = $region29
  $region28: #{tpu_custom_call.1} parent=0 // pred_region
    _
  $region29: #{tpu_custom_call.1} parent=0 // pred_fallthru
    _
  // Predicated region
  $region30: #{tpu_custom_call.1} parent=0 // pred_check
    _
  $region31: #{tpu_custom_call.1} parent=0 // pred_check_branch
    %34 = sbr.rel (0) target = $region33
  $region32: #{tpu_custom_call.1} parent=0 // pred_region
    _
  $region33: #{tpu_custom_call.1} parent=0 // pred_fallthru
    _
  // Predicated region
  $region34: #{tpu_custom_call.1} parent=0 // pred_check
    _
  $region35: #{tpu_custom_call.1} parent=0 // pred_check_branch
    %36 = sbr.rel (0) target = $region37
  $region36: #{tpu_custom_call.1} parent=0 // pred_region
    _
  $region37: #{tpu_custom_call.1} parent=0 // pred_fallthru
    _
  // Predicated region
  $region38: #{tpu_custom_call.1} parent=0 // pred_check
    _
  $region39: #{tpu_custom_call.1} parent=0 // pred_check_branch
    %38 = sbr.rel (0) target = $region41
  $region40: #{tpu_custom_call.1} parent=0 // pred_region
    _
  $region41: #{tpu_custom_call.1} parent=0 // pred_fallthru
    _
  // Predicated region
  $region42: #{tpu_custom_call.1} parent=0 // pred_check
    _
  $region43: #{tpu_custom_call.1} parent=0 // pred_check_branch
    %40 = sbr.rel (0) target = $region45
  $region44: #{tpu_custom_call.1} parent=0 // pred_region
    _
  $region45: #{tpu_custom_call.1} parent=0 // pred_fallthru
    _
  // Predicated region
  $region46: #{tpu_custom_call.1} parent=0 // pred_check
    _
  $region47: #{tpu_custom_call.1} parent=0 // pred_check_branch
    %42 = sbr.rel (0) target = $region49
  $region48: #{tpu_custom_call.1} parent=0 // pred_region
    _
  $region49: #{tpu_custom_call.1} parent=0 // pred_fallthru
    _
  // Predicated region
  $region50: #{tpu_custom_call.1} parent=0 // pred_check
    _
  $region51: #{tpu_custom_call.1} parent=0 // pred_check_branch
    %44 = sbr.rel (0) target = $region53
  $region52: #{tpu_custom_call.1} parent=0 // pred_region
    _
  $region53: #{tpu_custom_call.1} parent=0 // pred_fallthru
    _
  // Predicated region
  $region54: #{tpu_custom_call.1} parent=0 // pred_check
    _
  $region55: #{tpu_custom_call.1} parent=0 // pred_check_branch
    %46 = sbr.rel (0) target = $region57
  $region56: #{tpu_custom_call.1} parent=0 // pred_region
    _
  $region57: #{tpu_custom_call.1} parent=0 // pred_fallthru
    _
  %v48 = vld [vmem:[%s0] sm:$0xff]
  %v49 = vld [vmem:[%s0 + $0x8] sm:$0xff]
  %v50 = vld [vmem:[%s0 + $0x10] sm:$0xff]
  %v51 = vld [vmem:[%s0 + $0x18] sm:$0xff]
  %v52 = vld [vmem:[%s0 + $0x20] sm:$0xff]
  %v53 = vld [vmem:[%s0 + $0x28] sm:$0xff]
  %v54 = vld [vmem:[%s0 + $0x30] sm:$0xff]
  %v55 = vld [vmem:[%s0 + $0x38] sm:$0xff]
  %v56 = vld [vmem:[%s0 + $0x40] sm:$0xff]
  %v57 = vld [vmem:[%s0 + $0x48] sm:$0xff]
  %v58 = vld [vmem:[%s0 + $0x50] sm:$0xff]
  %v59 = vld [vmem:[%s0 + $0x58] sm:$0xff]
  %v60 = vld [vmem:[%s0 + $0x60] sm:$0xff]
  %v61 = vld [vmem:[%s0 + $0x68] sm:$0xff]
  %v62 = vld [vmem:[%s0 + $0x70] sm:$0xff]
  %v63 = vld [vmem:[%s0 + $0x78] sm:$0xff]
  %v64 = vld [vmem:[%s0 + $0x80] sm:$0xff]
  %v65 = vld [vmem:[%s0 + $0x88] sm:$0xff]
  %v66 = vld [vmem:[%s0 + $0x90] sm:$0xff]
  %v67 = vld [vmem:[%s0 + $0x98] sm:$0xff]
  %v68 = vld [vmem:[%s0 + $0xa0] sm:$0xff]
  %v69 = vld [vmem:[%s0 + $0xa8] sm:$0xff]
  %v70 = vld [vmem:[%s0 + $0xb0] sm:$0xff]
  %v71 = vld [vmem:[%s0 + $0xb8] sm:$0xff]
  %v72 = vld [vmem:[%s0 + $0xc0] sm:$0xff]
  %v73 = vld [vmem:[%s0 + $0xc8] sm:$0xff]
  %v74 = vld [vmem:[%s0 + $0xd0] sm:$0xff]
  %v75 = vld [vmem:[%s0 + $0xd8] sm:$0xff]
  %v76 = vld [vmem:[%s0 + $0xe0] sm:$0xff]
  %v77 = vld [vmem:[%s0 + $0xe8] sm:$0xff]
  %v78 = vld [vmem:[%s0 + $0xf0] sm:$0xff]
  %v79 = vld [vmem:[%s0 + $0xf8] sm:$0xff]
  %v80 = vld [vmem:[%s0 + $0x100] sm:$0xff]
  %v81 = vld [vmem:[%s0 + $0x108] sm:$0xff]
  %v82 = vld [vmem:[%s0 + $0x110] sm:$0xff]
  %v83 = vld [vmem:[%s0 + $0x118] sm:$0xff]
  %v84 = vld [vmem:[%s0 + $0x120] sm:$0xff]
  %v85 = vld [vmem:[%s0 + $0x128] sm:$0xff]
  %v86 = vld [vmem:[%s0 + $0x130] sm:$0xff]
  %v87 = vld [vmem:[%s0 + $0x138] sm:$0xff]
  %v88 = vld [vmem:[%s0 + $0x140] sm:$0xff]
  %v89 = vld [vmem:[%s0 + $0x148] sm:$0xff]
  %v90 = vld [vmem:[%s0 + $0x150] sm:$0xff]
  %v91 = vld [vmem:[%s0 + $0x158] sm:$0xff]
  %v92 = vld [vmem:[%s0 + $0x160] sm:$0xff]
  %v93 = vld [vmem:[%s0 + $0x168] sm:$0xff]
  %v94 = vld [vmem:[%s0 + $0x170] sm:$0xff]
  %v95 = vld [vmem:[%s0 + $0x178] sm:$0xff]
  %v96 = vld [vmem:[%s0 + $0x180] sm:$0xff]
  %v97 = vld [vmem:[%s0 + $0x188] sm:$0xff]
  %v98 = vld [vmem:[%s0 + $0x190] sm:$0xff]
  %v99 = vld [vmem:[%s0 + $0x198] sm:$0xff]
  %v100 = vld [vmem:[%s0 + $0x1a0] sm:$0xff]
  %v101 = vld [vmem:[%s0 + $0x1a8] sm:$0xff]
  %v102 = vld [vmem:[%s0 + $0x1b0] sm:$0xff]
  %v103 = vld [vmem:[%s0 + $0x1b8] sm:$0xff]
  %v104 = vld [vmem:[%s0 + $0x1c0] sm:$0xff]
  %v105 = vld [vmem:[%s0 + $0x1c8] sm:$0xff]
  %v106 = vld [vmem:[%s0 + $0x1d0] sm:$0xff]
  %v107 = vld [vmem:[%s0 + $0x1d8] sm:$0xff]
  %v108 = vld [vmem:[%s0 + $0x1e0] sm:$0xff]
  %v109 = vld [vmem:[%s0 + $0x1e8] sm:$0xff]
  %v110 = vld [vmem:[%s0 + $0x1f0] sm:$0xff]
  %v111 = vld [vmem:[%s0 + $0x1f8] sm:$0xff]
  %v112 = vld [vmem:[%s1] sm:$0x1]
  %v113 = vld [vmem:[%s2] sm:$0xf]
  %v114 = vld [vmem:[%s2 + $0x4] sm:$0xf]
  %v115 = vld [vmem:[%s2 + $0x8] sm:$0xf]
  %v116 = vld [vmem:[%s2 + $0xc] sm:$0xf]
  %v117 = vld [vmem:[%s3] sm:$0x1]
  %v119 = vlaneseq
  %v120 = vshrl.u32 %v119, 7
  %v121 = vsub.s32 0, %v120
  %v122 = vrot.slane %v117, %v121
  %v128 = vunpack.c.l.b16 %v113
  %v129 = vunpack.c.l.b16 %v114
  %v130 = vunpack.c.l.b16 %v115
  %v131 = vunpack.c.l.b16 %v116
  %v132 = vpack.c.b16 %v129, %v128
  %v133 = vpack.c.b16 %v131, %v130
  %vm136 = vcmask 261120
  %v138 = vsel %vm136, %v112, 0
  %140 = vmatprep.subr.bf16.mxu0 0
  %141 = vmatpush1.bf16.msra.mxu0 %v132
  %142 = vmatprep.subr.bf16.mxu0 0
  %143 = vmatpush1.bf16.msra.mxu0 %v133
  %144 = vmatprep.subr.bf16.mxu0 0
  %145 = vmatpush1.bf16.msra.mxu0 0
  %146 = vmatprep.subr.bf16.mxu0 0
  %147 = vmatpush1.bf16.msra.mxu0 0
  %148 = vmatprep.subr.bf16.mxu0 0
  %149 = vmatpush1.bf16.msra.mxu0 0
  %150 = vmatprep.subr.bf16.mxu0 0
  %151 = vmatpush1.bf16.msra.mxu0 0
  %152 = vmatprep.subr.bf16.mxu0 0
  %153 = vmatpush1.bf16.msra.mxu0 0
  %154 = vmatprep.subr.bf16.mxu0 0
  %155 = vmatpush1.bf16.msra.mxu0 0
  %156 = vmatprep.subr.bf16.mxu0 0
  %157 = vmatpush1.bf16.msra.mxu0 0
  %158 = vmatprep.subr.bf16.mxu0 0
  %159 = vmatpush1.bf16.msra.mxu0 0
  %160 = vmatprep.subr.bf16.mxu0 0
  %161 = vmatpush1.bf16.msra.mxu0 0
  %162 = vmatprep.subr.bf16.mxu0 0
  %163 = vmatpush1.bf16.msra.mxu0 0
  %164 = vmatprep.subr.bf16.mxu0 0
  %165 = vmatpush1.bf16.msra.mxu0 0
  %166 = vmatprep.subr.bf16.mxu0 0
  %167 = vmatpush1.bf16.msra.mxu0 0
  %168 = vmatprep.subr.bf16.mxu0 0
  %169 = vmatpush1.bf16.msra.mxu0 0
  %170 = vmatprep.subr.bf16.mxu0 0
  %171 = vmatpush1.bf16.msra.mxu0 0
  %172 = vmatprep.mubr.bf16.mxu0 0
  %173 = vmatmul.mubr.bf16.gmra.mrb[0].mxu0 %v138
  %v174 = vpop.f32.mrb[0].mxu0
  %v175 = vadd.f32 %v122, %v174
  %v176 = vpop.f32.mrb[0].mxu0
  %v177 = vpop.f32.mrb[0].mxu0
  %v178 = vpop.f32.mrb[0].mxu0
  %179 = vdwg.mxu0
  %v182 = vunpack.c.l.s4 1966171168
  %v183 = vunpack.c.0.s8 %v182
  %v184 = vlaneseq
  %v185 = vshrl.u32 %v184, 7
  %v186 = vsub.s32 %v183, %v185
  %v187 = vrot.slane %v175, %v186
  %v188 = vcombine.high %v187, %v187
  %v190 = vunpack.c.l.s4 1966171168
  %v191 = vunpack.c.0.s8 %v190
  %v192 = vlaneseq
  %v193 = vshrl.u32 %v192, 7
  %v194 = vsub.s32 %v191, %v193
  %v195 = vrot.slane %v187, %v194
  %v197 = vunpack.c.l.s4 1966171168
  %v198 = vunpack.c.0.s8 %v197
  %v199 = vlaneseq
  %v200 = vshrl.u32 %v199, 7
  %v201 = vsub.s32 %v198, %v200
  %v202 = vrot.slane %v188, %v201
  %v203 = vlaneseq
  %v204 = vshrl.u32 %v203, 7
  %v205 = vsub.s32 0, %v204
  %v206 = vrot.slane %v195, %v205
  %v207 = vlaneseq
  %v208 = vshrl.u32 %v207, 7
  %v209 = vsub.s32 0, %v208
  %v210 = vrot.slane %v202, %v209
  %v213 = vadd.f32 %v48, %v206
  %v214 = vadd.f32 %v49, %v206
  %v215 = vadd.f32 %v50, %v206
  %v216 = vadd.f32 %v51, %v206
  %v217 = vadd.f32 %v52, %v206
  %v218 = vadd.f32 %v53, %v206
  %v219 = vadd.f32 %v54, %v206
  %v220 = vadd.f32 %v55, %v206
  %v221 = vadd.f32 %v56, %v206
  %v222 = vadd.f32 %v57, %v206
  %v223 = vadd.f32 %v58, %v206
  %v224 = vadd.f32 %v59, %v206
  %v225 = vadd.f32 %v60, %v206
  %v226 = vadd.f32 %v61, %v206
  %v227 = vadd.f32 %v62, %v206
  %v228 = vadd.f32 %v63, %v206
  %v229 = vadd.f32 %v64, %v206
  %v230 = vadd.f32 %v65, %v206
  %v231 = vadd.f32 %v66, %v206
  %v232 = vadd.f32 %v67, %v206
  %v233 = vadd.f32 %v68, %v206
  %v234 = vadd.f32 %v69, %v206
  %v235 = vadd.f32 %v70, %v206
  %v236 = vadd.f32 %v71, %v206
  %v237 = vadd.f32 %v72, %v206
  %v238 = vadd.f32 %v73, %v206
  %v239 = vadd.f32 %v74, %v206
  %v240 = vadd.f32 %v75, %v206
  %v241 = vadd.f32 %v76, %v206
  %v242 = vadd.f32 %v77, %v206
  %v243 = vadd.f32 %v78, %v206
  %v244 = vadd.f32 %v79, %v206
  %v245 = vadd.f32 %v80, %v210
  %v246 = vadd.f32 %v81, %v210
  %v247 = vadd.f32 %v82, %v210
  %v248 = vadd.f32 %v83, %v210
  %v249 = vadd.f32 %v84, %v210
  %v250 = vadd.f32 %v85, %v210
  %v251 = vadd.f32 %v86, %v210
  %v252 = vadd.f32 %v87, %v210
  %v253 = vadd.f32 %v88, %v210
  %v254 = vadd.f32 %v89, %v210
  %v255 = vadd.f32 %v90, %v210
  %v256 = vadd.f32 %v91, %v210
  %v257 = vadd.f32 %v92, %v210
  %v258 = vadd.f32 %v93, %v210
  %v259 = vadd.f32 %v94, %v210
  %v260 = vadd.f32 %v95, %v210
  %v261 = vadd.f32 %v96, %v210
  %v262 = vadd.f32 %v97, %v210
  %v263 = vadd.f32 %v98, %v210
  %v264 = vadd.f32 %v99, %v210
  %v265 = vadd.f32 %v100, %v210
  %v266 = vadd.f32 %v101, %v210
  %v267 = vadd.f32 %v102, %v210
  %v268 = vadd.f32 %v103, %v210
  %v269 = vadd.f32 %v104, %v210
  %v270 = vadd.f32 %v105, %v210
  %v271 = vadd.f32 %v106, %v210
  %v272 = vadd.f32 %v107, %v210
  %v273 = vadd.f32 %v108, %v210
  %v274 = vadd.f32 %v109, %v210
  %v275 = vadd.f32 %v110, %v210
  %v276 = vadd.f32 %v111, %v210
  %vm277 = vcmask 31744
  %278 = vst.msk [vmem:[#allocation2] sm:$0xff] %vm277, 0.0
  %279 = vst.msk [vmem:[#allocation2 + $0x8] sm:$0xff] %vm277, 0.0
  %vm280 = vcmask 25600
  %281 = vst.msk [vmem:[#allocation2 + $0x10] sm:$0x3] %vm280, 0.0
  %282 = vst.msk [vmem:[#allocation2 + $0x1b0] sm:$0xff] %vm277, 0.0
  %283 = vst.msk [vmem:[#allocation2 + $0x1b8] sm:$0xff] %vm277, 0.0
  %284 = vst.msk [vmem:[#allocation2 + $0x1c0] sm:$0x3] %vm280, 0.0
  %s285 = scalar_lea.vmem [#allocation2], 408
  %286 = vst.msk [vmem:[%s285] sm:$0xff] %vm277, 0.0
  %287 = vst.msk [vmem:[%s285 + $0x8] sm:$0xff] %vm277, 0.0
  %288 = vst.msk [vmem:[%s285 + $0x10] sm:$0x3] %vm280, 0.0
  %289 = vst.msk [vmem:[%s285 + $0x1b0] sm:$0xff] %vm277, 0.0
  %290 = vst.msk [vmem:[%s285 + $0x1b8] sm:$0xff] %vm277, 0.0
  %291 = vst.msk [vmem:[%s285 + $0x1c0] sm:$0x3] %vm280, 0.0
  %s292 = scalar_lea.vmem [#allocation2], 24
  %vm293 = vcmask 24576
  %294 = vst.msk [vmem:[%s292] sm:$0x1] %vm293, 0.0
  %295 = vst.msk [vmem:[%s292 + $0x18] sm:$0x1] %vm293, 0.0
  %296 = vst.msk [vmem:[%s292 + $0x30] sm:$0x1] %vm293, 0.0
  %297 = vst.msk [vmem:[%s292 + $0x48] sm:$0x1] %vm293, 0.0
  %298 = vst.msk [vmem:[%s292 + $0x60] sm:$0x1] %vm293, 0.0
  %299 = vst.msk [vmem:[%s292 + $0x78] sm:$0x1] %vm293, 0.0
  %300 = vst.msk [vmem:[%s292 + $0x90] sm:$0x1] %vm293, 0.0
  %301 = vst.msk [vmem:[%s292 + $0xa8] sm:$0x1] %vm293, 0.0
  %302 = vst.msk [vmem:[%s292 + $0xc0] sm:$0x1] %vm293, 0.0
  %303 = vst.msk [vmem:[%s292 + $0xd8] sm:$0x1] %vm293, 0.0
  %304 = vst.msk [vmem:[%s292 + $0xf0] sm:$0x1] %vm293, 0.0
  %305 = vst.msk [vmem:[%s292 + $0x108] sm:$0x1] %vm293, 0.0
  %306 = vst.msk [vmem:[%s292 + $0x120] sm:$0x1] %vm293, 0.0
  %307 = vst.msk [vmem:[%s292 + $0x138] sm:$0x1] %vm293, 0.0
  %308 = vst.msk [vmem:[%s292 + $0x150] sm:$0x1] %vm293, 0.0
  %309 = vst.msk [vmem:[%s292 + $0x168] sm:$0x1] %vm293, 0.0
  %310 = vst.msk [vmem:[%s292 + $0x1b0] sm:$0x1] %vm293, 0.0
  %311 = vst.msk [vmem:[%s292 + $0x1c8] sm:$0x1] %vm293, 0.0
  %312 = vst.msk [vmem:[%s292 + $0x1e0] sm:$0x1] %vm293, 0.0
  %313 = vst.msk [vmem:[%s292 + $0x1f8] sm:$0x1] %vm293, 0.0
  %314 = vst.msk [vmem:[%s292 + $0x210] sm:$0x1] %vm293, 0.0
  %315 = vst.msk [vmem:[%s292 + $0x228] sm:$0x1] %vm293, 0.0
  %316 = vst.msk [vmem:[%s292 + $0x240] sm:$0x1] %vm293, 0.0
  %317 = vst.msk [vmem:[%s292 + $0x258] sm:$0x1] %vm293, 0.0
  %318 = vst.msk [vmem:[%s292 + $0x270] sm:$0x1] %vm293, 0.0
  %319 = vst.msk [vmem:[%s292 + $0x288] sm:$0x1] %vm293, 0.0
  %320 = vst.msk [vmem:[%s292 + $0x2a0] sm:$0x1] %vm293, 0.0
  %321 = vst.msk [vmem:[%s292 + $0x2b8] sm:$0x1] %vm293, 0.0
  %322 = vst.msk [vmem:[%s292 + $0x2d0] sm:$0x1] %vm293, 0.0
  %323 = vst.msk [vmem:[%s292 + $0x2e8] sm:$0x1] %vm293, 0.0
  %324 = vst.msk [vmem:[%s292 + $0x300] sm:$0x1] %vm293, 0.0
  %325 = vst.msk [vmem:[%s292 + $0x318] sm:$0x1] %vm293, 0.0
  %326 = vst.msk [vmem:[%s292 + $0x11] sm:$0x1] %vm293, 0.0
  %327 = vst.msk [vmem:[%s292 + $0x29] sm:$0x1] %vm293, 0.0
  %328 = vst.msk [vmem:[%s292 + $0x41] sm:$0x1] %vm293, 0.0
  %329 = vst.msk [vmem:[%s292 + $0x59] sm:$0x1] %vm293, 0.0
  %330 = vst.msk [vmem:[%s292 + $0x71] sm:$0x1] %vm293, 0.0
  %331 = vst.msk [vmem:[%s292 + $0x89] sm:$0x1] %vm293, 0.0
  %332 = vst.msk [vmem:[%s292 + $0xa1] sm:$0x1] %vm293, 0.0
  %333 = vst.msk [vmem:[%s292 + $0xb9] sm:$0x1] %vm293, 0.0
  %334 = vst.msk [vmem:[%s292 + $0xd1] sm:$0x1] %vm293, 0.0
  %335 = vst.msk [vmem:[%s292 + $0xe9] sm:$0x1] %vm293, 0.0
  %336 = vst.msk [vmem:[%s292 + $0x101] sm:$0x1] %vm293, 0.0
  %337 = vst.msk [vmem:[%s292 + $0x119] sm:$0x1] %vm293, 0.0
  %338 = vst.msk [vmem:[%s292 + $0x131] sm:$0x1] %vm293, 0.0
  %339 = vst.msk [vmem:[%s292 + $0x149] sm:$0x1] %vm293, 0.0
  %340 = vst.msk [vmem:[%s292 + $0x161] sm:$0x1] %vm293, 0.0
  %341 = vst.msk [vmem:[%s292 + $0x179] sm:$0x1] %vm293, 0.0
  %342 = vst.msk [vmem:[%s292 + $0x1c1] sm:$0x1] %vm293, 0.0
  %343 = vst.msk [vmem:[%s292 + $0x1d9] sm:$0x1] %vm293, 0.0
  %344 = vst.msk [vmem:[%s292 + $0x1f1] sm:$0x1] %vm293, 0.0
  %345 = vst.msk [vmem:[%s292 + $0x209] sm:$0x1] %vm293, 0.0
  %346 = vst.msk [vmem:[%s292 + $0x221] sm:$0x1] %vm293, 0.0
  %347 = vst.msk [vmem:[%s292 + $0x239] sm:$0x1] %vm293, 0.0
  %348 = vst.msk [vmem:[%s292 + $0x251] sm:$0x1] %vm293, 0.0
  %349 = vst.msk [vmem:[%s292 + $0x269] sm:$0x1] %vm293, 0.0
  %350 = vst.msk [vmem:[%s292 + $0x281] sm:$0x1] %vm293, 0.0
  %351 = vst.msk [vmem:[%s292 + $0x299] sm:$0x1] %vm293, 0.0
  %352 = vst.msk [vmem:[%s292 + $0x2b1] sm:$0x1] %vm293, 0.0
  %353 = vst.msk [vmem:[%s292 + $0x2c9] sm:$0x1] %vm293, 0.0
  %354 = vst.msk [vmem:[%s292 + $0x2e1] sm:$0x1] %vm293, 0.0
  %355 = vst.msk [vmem:[%s292 + $0x2f9] sm:$0x1] %vm293, 0.0
  %356 = vst.msk [vmem:[%s292 + $0x311] sm:$0x1] %vm293, 0.0
  %357 = vst.msk [vmem:[%s292 + $0x329] sm:$0x1] %vm293, 0.0
  %358 = vst.msk [vmem:[%s292 + $0x1] sm:$0xff] %vm277, %v213
  %359 = vst.msk [vmem:[%s292 + $0x9] sm:$0xff] %vm277, %v214
  %360 = vst.msk [vmem:[%s292 + $0x19] sm:$0xff] %vm277, %v215
  %361 = vst.msk [vmem:[%s292 + $0x21] sm:$0xff] %vm277, %v216
  %362 = vst.msk [vmem:[%s292 + $0x31] sm:$0xff] %vm277, %v217
  %363 = vst.msk [vmem:[%s292 + $0x39] sm:$0xff] %vm277, %v218
  %364 = vst.msk [vmem:[%s292 + $0x49] sm:$0xff] %vm277, %v219
  %365 = vst.msk [vmem:[%s292 + $0x51] sm:$0xff] %vm277, %v220
  %366 = vst.msk [vmem:[%s292 + $0x61] sm:$0xff] %vm277, %v221
  %367 = vst.msk [vmem:[%s292 + $0x69] sm:$0xff] %vm277, %v222
  %368 = vst.msk [vmem:[%s292 + $0x79] sm:$0xff] %vm277, %v223
  %369 = vst.msk [vmem:[%s292 + $0x81] sm:$0xff] %vm277, %v224
  %370 = vst.msk [vmem:[%s292 + $0x91] sm:$0xff] %vm277, %v225
  %371 = vst.msk [vmem:[%s292 + $0x99] sm:$0xff] %vm277, %v226
  %372 = vst.msk [vmem:[%s292 + $0xa9] sm:$0xff] %vm277, %v227
  %373 = vst.msk [vmem:[%s292 + $0xb1] sm:$0xff] %vm277, %v228
  %374 = vst.msk [vmem:[%s292 + $0xc1] sm:$0xff] %vm277, %v229
  %375 = vst.msk [vmem:[%s292 + $0xc9] sm:$0xff] %vm277, %v230
  %376 = vst.msk [vmem:[%s292 + $0xd9] sm:$0xff] %vm277, %v231
  %377 = vst.msk [vmem:[%s292 + $0xe1] sm:$0xff] %vm277, %v232
  %378 = vst.msk [vmem:[%s292 + $0xf1] sm:$0xff] %vm277, %v233
  %379 = vst.msk [vmem:[%s292 + $0xf9] sm:$0xff] %vm277, %v234
  %380 = vst.msk [vmem:[%s292 + $0x109] sm:$0xff] %vm277, %v235
  %381 = vst.msk [vmem:[%s292 + $0x111] sm:$0xff] %vm277, %v236
  %382 = vst.msk [vmem:[%s292 + $0x121] sm:$0xff] %vm277, %v237
  %383 = vst.msk [vmem:[%s292 + $0x129] sm:$0xff] %vm277, %v238
  %384 = vst.msk [vmem:[%s292 + $0x139] sm:$0xff] %vm277, %v239
  %385 = vst.msk [vmem:[%s292 + $0x141] sm:$0xff] %vm277, %v240
  %386 = vst.msk [vmem:[%s292 + $0x151] sm:$0xff] %vm277, %v241
  %387 = vst.msk [vmem:[%s292 + $0x159] sm:$0xff] %vm277, %v242
  %388 = vst.msk [vmem:[%s292 + $0x169] sm:$0xff] %vm277, %v243
  %389 = vst.msk [vmem:[%s292 + $0x171] sm:$0xff] %vm277, %v244
  %390 = vst.msk [vmem:[%s292 + $0x1b1] sm:$0xff] %vm277, %v245
  %391 = vst.msk [vmem:[%s292 + $0x1b9] sm:$0xff] %vm277, %v246
  %392 = vst.msk [vmem:[%s292 + $0x1c9] sm:$0xff] %vm277, %v247
  %393 = vst.msk [vmem:[%s292 + $0x1d1] sm:$0xff] %vm277, %v248
  %394 = vst.msk [vmem:[%s292 + $0x1e1] sm:$0xff] %vm277, %v249
  %395 = vst.msk [vmem:[%s292 + $0x1e9] sm:$0xff] %vm277, %v250
  %396 = vst.msk [vmem:[%s292 + $0x1f9] sm:$0xff] %vm277, %v251
  %397 = vst.msk [vmem:[%s292 + $0x201] sm:$0xff] %vm277, %v252
  %398 = vst.msk [vmem:[%s292 + $0x211] sm:$0xff] %vm277, %v253
  %399 = vst.msk [vmem:[%s292 + $0x219] sm:$0xff] %vm277, %v254
  %400 = vst.msk [vmem:[%s292 + $0x229] sm:$0xff] %vm277, %v255
  %401 = vst.msk [vmem:[%s292 + $0x231] sm:$0xff] %vm277, %v256
  %402 = vst.msk [vmem:[%s292 + $0x241] sm:$0xff] %vm277, %v257
  %403 = vst.msk [vmem:[%s292 + $0x249] sm:$0xff] %vm277, %v258
  %404 = vst.msk [vmem:[%s292 + $0x259] sm:$0xff] %vm277, %v259
  %405 = vst.msk [vmem:[%s292 + $0x261] sm:$0xff] %vm277, %v260
  %406 = vst.msk [vmem:[%s292 + $0x271] sm:$0xff] %vm277, %v261
  %407 = vst.msk [vmem:[%s292 + $0x279] sm:$0xff] %vm277, %v262
  %408 = vst.msk [vmem:[%s292 + $0x289] sm:$0xff] %vm277, %v263
  %409 = vst.msk [vmem:[%s292 + $0x291] sm:$0xff] %vm277, %v264
  %410 = vst.msk [vmem:[%s292 + $0x2a1] sm:$0xff] %vm277, %v265
  %411 = vst.msk [vmem:[%s292 + $0x2a9] sm:$0xff] %vm277, %v266
  %412 = vst.msk [vmem:[%s292 + $0x2b9] sm:$0xff] %vm277, %v267
  %413 = vst.msk [vmem:[%s292 + $0x2c1] sm:$0xff] %vm277, %v268
  %414 = vst.msk [vmem:[%s292 + $0x2d1] sm:$0xff] %vm277, %v269
  %415 = vst.msk [vmem:[%s292 + $0x2d9] sm:$0xff] %vm277, %v270
  %416 = vst.msk [vmem:[%s292 + $0x2e9] sm:$0xff] %vm277, %v271
  %417 = vst.msk [vmem:[%s292 + $0x2f1] sm:$0xff] %vm277, %v272
  %418 = vst.msk [vmem:[%s292 + $0x301] sm:$0xff] %vm277, %v273
  %419 = vst.msk [vmem:[%s292 + $0x309] sm:$0xff] %vm277, %v274
  %420 = vst.msk [vmem:[%s292 + $0x319] sm:$0xff] %vm277, %v275
  %421 = vst.msk [vmem:[%s292 + $0x321] sm:$0xff] %vm277, %v276
  %v422 = vld [vmem:[#allocation2] sm:$0xff]
  %v423 = vld [vmem:[#allocation2 + $0x8] sm:$0xff]
  %v424 = vld [vmem:[#allocation2 + $0x18] sm:$0xff]
  %v425 = vld [vmem:[#allocation2 + $0x20] sm:$0xff]
  %v426 = vld [vmem:[#allocation2 + $0x30] sm:$0xff]
  %v427 = vld [vmem:[#allocation2 + $0x38] sm:$0xff]
  %v428 = vld [vmem:[#allocation2 + $0x48] sm:$0xff]
  %v429 = vld [vmem:[#allocation2 + $0x50] sm:$0xff]
  %v430 = vld [vmem:[#allocation2 + $0x60] sm:$0xff]
  %v431 = vld [vmem:[#allocation2 + $0x68] sm:$0xff]
  %v432 = vld [vmem:[#allocation2 + $0x78] sm:$0xff]
  %v433 = vld [vmem:[#allocation2 + $0x80] sm:$0xff]
  %v434 = vld [vmem:[#allocation2 + $0x90] sm:$0xff]
  %v435 = vld [vmem:[#allocation2 + $0x98] sm:$0xff]
  %v436 = vld [vmem:[#allocation2 + $0xa8] sm:$0xff]
  %v437 = vld [vmem:[#allocation2 + $0xb0] sm:$0xff]
  %v438 = vld [vmem:[#allocation2 + $0xc0] sm:$0xff]
  %v439 = vld [vmem:[#allocation2 + $0xc8] sm:$0xff]
  %v440 = vld [vmem:[#allocation2 + $0xd8] sm:$0xff]
  %v441 = vld [vmem:[#allocation2 + $0xe0] sm:$0xff]
  %v442 = vld [vmem:[#allocation2 + $0xf0] sm:$0xff]
  %v443 = vld [vmem:[#allocation2 + $0xf8] sm:$0xff]
  %v444 = vld [vmem:[#allocation2 + $0x108] sm:$0xff]
  %v445 = vld [vmem:[#allocation2 + $0x110] sm:$0xff]
  %v446 = vld [vmem:[#allocation2 + $0x120] sm:$0xff]
  %v447 = vld [vmem:[#allocation2 + $0x128] sm:$0xff]
  %v448 = vld [vmem:[#allocation2 + $0x138] sm:$0xff]
  %v449 = vld [vmem:[#allocation2 + $0x140] sm:$0xff]
  %v450 = vld [vmem:[#allocation2 + $0x150] sm:$0xff]
  %v451 = vld [vmem:[#allocation2 + $0x158] sm:$0xff]
  %v452 = vld [vmem:[#allocation2 + $0x168] sm:$0xff]
  %v453 = vld [vmem:[#allocation2 + $0x170] sm:$0xff]
  %v454 = vld [vmem:[#allocation2 + $0x1b0] sm:$0xff]
  %v455 = vld [vmem:[#allocation2 + $0x1b8] sm:$0xff]
  %v456 = vld [vmem:[#allocation2 + $0x1c8] sm:$0xff]
  %v457 = vld [vmem:[#allocation2 + $0x1d0] sm:$0xff]
  %v458 = vld [vmem:[#allocation2 + $0x1e0] sm:$0xff]
  %v459 = vld [vmem:[#allocation2 + $0x1e8] sm:$0xff]
  %v460 = vld [vmem:[#allocation2 + $0x1f8] sm:$0xff]
  %v461 = vld [vmem:[#allocation2 + $0x200] sm:$0xff]
  %v462 = vld [vmem:[#allocation2 + $0x210] sm:$0xff]
  %v463 = vld [vmem:[#allocation2 + $0x218] sm:$0xff]
  %v464 = vld [vmem:[#allocation2 + $0x228] sm:$0xff]
  %v465 = vld [vmem:[#allocation2 + $0x230] sm:$0xff]
  %v466 = vld [vmem:[#allocation2 + $0x240] sm:$0xff]
  %v467 = vld [vmem:[#allocation2 + $0x248] sm:$0xff]
  %v468 = vld [vmem:[#allocation2 + $0x258] sm:$0xff]
  %v469 = vld [vmem:[#allocation2 + $0x260] sm:$0xff]
  %v470 = vld [vmem:[#allocation2 + $0x270] sm:$0xff]
  %v471 = vld [vmem:[#allocation2 + $0x278] sm:$0xff]
  %v472 = vld [vmem:[#allocation2 + $0x288] sm:$0xff]
  %v473 = vld [vmem:[#allocation2 + $0x290] sm:$0xff]
  %v474 = vld [vmem:[#allocation2 + $0x2a0] sm:$0xff]
  %v475 = vld [vmem:[#allocation2 + $0x2a8] sm:$0xff]
  %v476 = vld [vmem:[#allocation2 + $0x2b8] sm:$0xff]
  %v477 = vld [vmem:[#allocation2 + $0x2c0] sm:$0xff]
  %v478 = vld [vmem:[#allocation2 + $0x2d0] sm:$0xff]
  %v479 = vld [vmem:[#allocation2 + $0x2d8] sm:$0xff]
  %v480 = vld [vmem:[#allocation2 + $0x2e8] sm:$0xff]
  %v481 = vld [vmem:[#allocation2 + $0x2f0] sm:$0xff]
  %v482 = vld [vmem:[#allocation2 + $0x300] sm:$0xff]
  %v483 = vld [vmem:[#allocation2 + $0x308] sm:$0xff]
  %v484 = vld [vmem:[#allocation2 + $0x318] sm:$0xff]
  %v485 = vld [vmem:[#allocation2 + $0x320] sm:$0xff]
  %v486 = vld [vmem:[#allocation2 + $0x1] sm:$0xff]
  %v487 = vld [vmem:[#allocation2 + $0x9] sm:$0xff]
  %v488 = vld [vmem:[#allocation2 + $0x19] sm:$0xff]
  %v489 = vld [vmem:[#allocation2 + $0x21] sm:$0xff]
  %v490 = vld [vmem:[#allocation2 + $0x31] sm:$0xff]
  %v491 = vld [vmem:[#allocation2 + $0x39] sm:$0xff]
  %v492 = vld [vmem:[#allocation2 + $0x49] sm:$0xff]
  %v493 = vld [vmem:[#allocation2 + $0x51] sm:$0xff]
  %v494 = vld [vmem:[#allocation2 + $0x61] sm:$0xff]
  %v495 = vld [vmem:[#allocation2 + $0x69] sm:$0xff]
  %v496 = vld [vmem:[#allocation2 + $0x79] sm:$0xff]
  %v497 = vld [vmem:[#allocation2 + $0x81] sm:$0xff]
  %v498 = vld [vmem:[#allocation2 + $0x91] sm:$0xff]
  %v499 = vld [vmem:[#allocation2 + $0x99] sm:$0xff]
  %v500 = vld [vmem:[#allocation2 + $0xa9] sm:$0xff]
  %v501 = vld [vmem:[#allocation2 + $0xb1] sm:$0xff]
  %v502 = vld [vmem:[#allocation2 + $0xc1] sm:$0xff]
  %v503 = vld [vmem:[#allocation2 + $0xc9] sm:$0xff]
  %v504 = vld [vmem:[#allocation2 + $0xd9] sm:$0xff]
  %v505 = vld [vmem:[#allocation2 + $0xe1] sm:$0xff]
  %v506 = vld [vmem:[#allocation2 + $0xf1] sm:$0xff]
  %v507 = vld [vmem:[#allocation2 + $0xf9] sm:$0xff]
  %v508 = vld [vmem:[#allocation2 + $0x109] sm:$0xff]
  %v509 = vld [vmem:[#allocation2 + $0x111] sm:$0xff]
  %v510 = vld [vmem:[#allocation2 + $0x121] sm:$0xff]
  %v511 = vld [vmem:[#allocation2 + $0x129] sm:$0xff]
  %v512 = vld [vmem:[#allocation2 + $0x139] sm:$0xff]
  %v513 = vld [vmem:[#allocation2 + $0x141] sm:$0xff]
  %v514 = vld [vmem:[#allocation2 + $0x151] sm:$0xff]
  %v515 = vld [vmem:[#allocation2 + $0x159] sm:$0xff]
  %v516 = vld [vmem:[#allocation2 + $0x169] sm:$0xff]
  %v517 = vld [vmem:[#allocation2 + $0x171] sm:$0xff]
  %v518 = vld [vmem:[#allocation2 + $0x1b1] sm:$0xff]
  %v519 = vld [vmem:[#allocation2 + $0x1b9] sm:$0xff]
  %v520 = vld [vmem:[#allocation2 + $0x1c9] sm:$0xff]
  %v521 = vld [vmem:[#allocation2 + $0x1d1] sm:$0xff]
  %v522 = vld [vmem:[#allocation2 + $0x1e1] sm:$0xff]
  %v523 = vld [vmem:[#allocation2 + $0x1e9] sm:$0xff]
  %v524 = vld [vmem:[#allocation2 + $0x1f9] sm:$0xff]
  %v525 = vld [vmem:[#allocation2 + $0x201] sm:$0xff]
  %v526 = vld [vmem:[#allocation2 + $0x211] sm:$0xff]
  %v527 = vld [vmem:[#allocation2 + $0x219] sm:$0xff]
  %v528 = vld [vmem:[#allocation2 + $0x229] sm:$0xff]
  %v529 = vld [vmem:[#allocation2 + $0x231] sm:$0xff]
  %v530 = vld [vmem:[#allocation2 + $0x241] sm:$0xff]
  %v531 = vld [vmem:[#allocation2 + $0x249] sm:$0xff]
  %v532 = vld [vmem:[#allocation2 + $0x259] sm:$0xff]
  %v533 = vld [vmem:[#allocation2 + $0x261] sm:$0xff]
  %v534 = vld [vmem:[#allocation2 + $0x271] sm:$0xff]
  %v535 = vld [vmem:[#allocation2 + $0x279] sm:$0xff]
  %v536 = vld [vmem:[#allocation2 + $0x289] sm:$0xff]
  %v537 = vld [vmem:[#allocation2 + $0x291] sm:$0xff]
  %v538 = vld [vmem:[#allocation2 + $0x2a1] sm:$0xff]
  %v539 = vld [vmem:[#allocation2 + $0x2a9] sm:$0xff]
  %v540 = vld [vmem:[#allocation2 + $0x2b9] sm:$0xff]
  %v541 = vld [vmem:[#allocation2 + $0x2c1] sm:$0xff]
  %v542 = vld [vmem:[#allocation2 + $0x2d1] sm:$0xff]
  %v543 = vld [vmem:[#allocation2 + $0x2d9] sm:$0xff]
  %v544 = vld [vmem:[#allocation2 + $0x2e9] sm:$0xff]
  %v545 = vld [vmem:[#allocation2 + $0x2f1] sm:$0xff]
  %v546 = vld [vmem:[#allocation2 + $0x301] sm:$0xff]
  %v547 = vld [vmem:[#allocation2 + $0x309] sm:$0xff]
  %v548 = vld [vmem:[#allocation2 + $0x319] sm:$0xff]
  %v549 = vld [vmem:[#allocation2 + $0x321] sm:$0xff]
  %v550 = vld [vmem:[#allocation2 + $0x2] sm:$0xff]
  %v551 = vld [vmem:[#allocation2 + $0xa] sm:$0xff]
  %v552 = vld [vmem:[#allocation2 + $0x1a] sm:$0xff]
  %v553 = vld [vmem:[#allocation2 + $0x22] sm:$0xff]
  %v554 = vld [vmem:[#allocation2 + $0x32] sm:$0xff]
  %v555 = vld [vmem:[#allocation2 + $0x3a] sm:$0xff]
  %v556 = vld [vmem:[#allocation2 + $0x4a] sm:$0xff]
  %v557 = vld [vmem:[#allocation2 + $0x52] sm:$0xff]
  %v558 = vld [vmem:[#allocation2 + $0x62] sm:$0xff]
  %v559 = vld [vmem:[#allocation2 + $0x6a] sm:$0xff]
  %v560 = vld [vmem:[#allocation2 + $0x7a] sm:$0xff]
  %v561 = vld [vmem:[#allocation2 + $0x82] sm:$0xff]
  %v562 = vld [vmem:[#allocation2 + $0x92] sm:$0xff]
  %v563 = vld [vmem:[#allocation2 + $0x9a] sm:$0xff]
  %v564 = vld [vmem:[#allocation2 + $0xaa] sm:$0xff]
  %v565 = vld [vmem:[#allocation2 + $0xb2] sm:$0xff]
  %v566 = vld [vmem:[#allocation2 + $0xc2] sm:$0xff]
  %v567 = vld [vmem:[#allocation2 + $0xca] sm:$0xff]
  %v568 = vld [vmem:[#allocation2 + $0xda] sm:$0xff]
  %v569 = vld [vmem:[#allocation2 + $0xe2] sm:$0xff]
  %v570 = vld [vmem:[#allocation2 + $0xf2] sm:$0xff]
  %v571 = vld [vmem:[#allocation2 + $0xfa] sm:$0xff]
  %v572 = vld [vmem:[#allocation2 + $0x10a] sm:$0xff]
  %v573 = vld [vmem:[#allocation2 + $0x112] sm:$0xff]
  %v574 = vld [vmem:[#allocation2 + $0x122] sm:$0xff]
  %v575 = vld [vmem:[#allocation2 + $0x12a] sm:$0xff]
  %v576 = vld [vmem:[#allocation2 + $0x13a] sm:$0xff]
  %v577 = vld [vmem:[#allocation2 + $0x142] sm:$0xff]
  %v578 = vld [vmem:[#allocation2 + $0x152] sm:$0xff]
  %v579 = vld [vmem:[#allocation2 + $0x15a] sm:$0xff]
  %v580 = vld [vmem:[#allocation2 + $0x16a] sm:$0xff]
  %v581 = vld [vmem:[#allocation2 + $0x172] sm:$0xff]
  %v582 = vld [vmem:[#allocation2 + $0x1b2] sm:$0xff]
  %v583 = vld [vmem:[#allocation2 + $0x1ba] sm:$0xff]
  %v584 = vld [vmem:[#allocation2 + $0x1ca] sm:$0xff]
  %v585 = vld [vmem:[#allocation2 + $0x1d2] sm:$0xff]
  %v586 = vld [vmem:[#allocation2 + $0x1e2] sm:$0xff]
  %v587 = vld [vmem:[#allocation2 + $0x1ea] sm:$0xff]
  %v588 = vld [vmem:[#allocation2 + $0x1fa] sm:$0xff]
  %v589 = vld [vmem:[#allocation2 + $0x202] sm:$0xff]
  %v590 = vld [vmem:[#allocation2 + $0x212] sm:$0xff]
  %v591 = vld [vmem:[#allocation2 + $0x21a] sm:$0xff]
  %v592 = vld [vmem:[#allocation2 + $0x22a] sm:$0xff]
  %v593 = vld [vmem:[#allocation2 + $0x232] sm:$0xff]
  %v594 = vld [vmem:[#allocation2 + $0x242] sm:$0xff]
  %v595 = vld [vmem:[#allocation2 + $0x24a] sm:$0xff]
  %v596 = vld [vmem:[#allocation2 + $0x25a] sm:$0xff]
  %v597 = vld [vmem:[#allocation2 + $0x262] sm:$0xff]
  %v598 = vld [vmem:[#allocation2 + $0x272] sm:$0xff]
  %v599 = vld [vmem:[#allocation2 + $0x27a] sm:$0xff]
  %v600 = vld [vmem:[#allocation2 + $0x28a] sm:$0xff]
  %v601 = vld [vmem:[#allocation2 + $0x292] sm:$0xff]
  %v602 = vld [vmem:[#allocation2 + $0x2a2] sm:$0xff]
  %v603 = vld [vmem:[#allocation2 + $0x2aa] sm:$0xff]
  %v604 = vld [vmem:[#allocation2 + $0x2ba] sm:$0xff]
  %v605 = vld [vmem:[#allocation2 + $0x2c2] sm:$0xff]
  %v606 = vld [vmem:[#allocation2 + $0x2d2] sm:$0xff]
  %v607 = vld [vmem:[#allocation2 + $0x2da] sm:$0xff]
  %v608 = vld [vmem:[#allocation2 + $0x2ea] sm:$0xff]
  %v609 = vld [vmem:[#allocation2 + $0x2f2] sm:$0xff]
  %v610 = vld [vmem:[#allocation2 + $0x302] sm:$0xff]
  %v611 = vld [vmem:[#allocation2 + $0x30a] sm:$0xff]
  %v612 = vld [vmem:[#allocation2 + $0x31a] sm:$0xff]
  %v613 = vld [vmem:[#allocation2 + $0x322] sm:$0xff]
  %v614 = vld [vmem:[%s292] sm:$0xff]
  %v615 = vld [vmem:[%s292 + $0x8] sm:$0xff]
  %v616 = vld [vmem:[%s292 + $0x18] sm:$0xff]
  %v617 = vld [vmem:[%s292 + $0x20] sm:$0xff]
  %v618 = vld [vmem:[%s292 + $0x30] sm:$0xff]
  %v619 = vld [vmem:[%s292 + $0x38] sm:$0xff]
  %v620 = vld [vmem:[%s292 + $0x48] sm:$0xff]
  %v621 = vld [vmem:[%s292 + $0x50] sm:$0xff]
  %v622 = vld [vmem:[%s292 + $0x60] sm:$0xff]
  %v623 = vld [vmem:[%s292 + $0x68] sm:$0xff]
  %v624 = vld [vmem:[%s292 + $0x78] sm:$0xff]
  %v625 = vld [vmem:[%s292 + $0x80] sm:$0xff]
  %v626 = vld [vmem:[%s292 + $0x90] sm:$0xff]
  %v627 = vld [vmem:[%s292 + $0x98] sm:$0xff]
  %v628 = vld [vmem:[%s292 + $0xa8] sm:$0xff]
  %v629 = vld [vmem:[%s292 + $0xb0] sm:$0xff]
  %v630 = vld [vmem:[%s292 + $0xc0] sm:$0xff]
  %v631 = vld [vmem:[%s292 + $0xc8] sm:$0xff]
  %v632 = vld [vmem:[%s292 + $0xd8] sm:$0xff]
  %v633 = vld [vmem:[%s292 + $0xe0] sm:$0xff]
  %v634 = vld [vmem:[%s292 + $0xf0] sm:$0xff]
  %v635 = vld [vmem:[%s292 + $0xf8] sm:$0xff]
  %v636 = vld [vmem:[%s292 + $0x108] sm:$0xff]
  %v637 = vld [vmem:[%s292 + $0x110] sm:$0xff]
  %v638 = vld [vmem:[%s292 + $0x120] sm:$0xff]
  %v639 = vld [vmem:[%s292 + $0x128] sm:$0xff]
  %v640 = vld [vmem:[%s292 + $0x138] sm:$0xff]
  %v641 = vld [vmem:[%s292 + $0x140] sm:$0xff]
  %v642 = vld [vmem:[%s292 + $0x150] sm:$0xff]
  %v643 = vld [vmem:[%s292 + $0x158] sm:$0xff]
  %v644 = vld [vmem:[%s292 + $0x168] sm:$0xff]
  %v645 = vld [vmem:[%s292 + $0x170] sm:$0xff]
  %v646 = vld [vmem:[%s292 + $0x1b0] sm:$0xff]
  %v647 = vld [vmem:[%s292 + $0x1b8] sm:$0xff]
  %v648 = vld [vmem:[%s292 + $0x1c8] sm:$0xff]
  %v649 = vld [vmem:[%s292 + $0x1d0] sm:$0xff]
  %v650 = vld [vmem:[%s292 + $0x1e0] sm:$0xff]
  %v651 = vld [vmem:[%s292 + $0x1e8] sm:$0xff]
  %v652 = vld [vmem:[%s292 + $0x1f8] sm:$0xff]
  %v653 = vld [vmem:[%s292 + $0x200] sm:$0xff]
  %v654 = vld [vmem:[%s292 + $0x210] sm:$0xff]
  %v655 = vld [vmem:[%s292 + $0x218] sm:$0xff]
  %v656 = vld [vmem:[%s292 + $0x228] sm:$0xff]
  %v657 = vld [vmem:[%s292 + $0x230] sm:$0xff]
  %v658 = vld [vmem:[%s292 + $0x240] sm:$0xff]
  %v659 = vld [vmem:[%s292 + $0x248] sm:$0xff]
  %v660 = vld [vmem:[%s292 + $0x258] sm:$0xff]
  %v661 = vld [vmem:[%s292 + $0x260] sm:$0xff]
  %v662 = vld [vmem:[%s292 + $0x270] sm:$0xff]
  %v663 = vld [vmem:[%s292 + $0x278] sm:$0xff]
  %v664 = vld [vmem:[%s292 + $0x288] sm:$0xff]
  %v665 = vld [vmem:[%s292 + $0x290] sm:$0xff]
  %v666 = vld [vmem:[%s292 + $0x2a0] sm:$0xff]
  %v667 = vld [vmem:[%s292 + $0x2a8] sm:$0xff]
  %v668 = vld [vmem:[%s292 + $0x2b8] sm:$0xff]
  %v669 = vld [vmem:[%s292 + $0x2c0] sm:$0xff]
  %v670 = vld [vmem:[%s292 + $0x2d0] sm:$0xff]
  %v671 = vld [vmem:[%s292 + $0x2d8] sm:$0xff]
  %v672 = vld [vmem:[%s292 + $0x2e8] sm:$0xff]
  %v673 = vld [vmem:[%s292 + $0x2f0] sm:$0xff]
  %v674 = vld [vmem:[%s292 + $0x300] sm:$0xff]
  %v675 = vld [vmem:[%s292 + $0x308] sm:$0xff]
  %v676 = vld [vmem:[%s292 + $0x318] sm:$0xff]
  %v677 = vld [vmem:[%s292 + $0x320] sm:$0xff]
  %v678 = vld [vmem:[%s292 + $0x1] sm:$0xff]
  %v679 = vld [vmem:[%s292 + $0x9] sm:$0xff]
  %v680 = vld [vmem:[%s292 + $0x19] sm:$0xff]
  %v681 = vld [vmem:[%s292 + $0x21] sm:$0xff]
  %v682 = vld [vmem:[%s292 + $0x31] sm:$0xff]
  %v683 = vld [vmem:[%s292 + $0x39] sm:$0xff]
  %v684 = vld [vmem:[%s292 + $0x49] sm:$0xff]
  %v685 = vld [vmem:[%s292 + $0x51] sm:$0xff]
  %v686 = vld [vmem:[%s292 + $0x61] sm:$0xff]
  %v687 = vld [vmem:[%s292 + $0x69] sm:$0xff]
  %v688 = vld [vmem:[%s292 + $0x79] sm:$0xff]
  %v689 = vld [vmem:[%s292 + $0x81] sm:$0xff]
  %v690 = vld [vmem:[%s292 + $0x91] sm:$0xff]
  %v691 = vld [vmem:[%s292 + $0x99] sm:$0xff]
  %v692 = vld [vmem:[%s292 + $0xa9] sm:$0xff]
  %v693 = vld [vmem:[%s292 + $0xb1] sm:$0xff]
  %v694 = vld [vmem:[%s292 + $0xc1] sm:$0xff]
  %v695 = vld [vmem:[%s292 + $0xc9] sm:$0xff]
  %v696 = vld [vmem:[%s292 + $0xd9] sm:$0xff]
  %v697 = vld [vmem:[%s292 + $0xe1] sm:$0xff]
  %v698 = vld [vmem:[%s292 + $0xf1] sm:$0xff]
  %v699 = vld [vmem:[%s292 + $0xf9] sm:$0xff]
  %v700 = vld [vmem:[%s292 + $0x109] sm:$0xff]
  %v701 = vld [vmem:[%s292 + $0x111] sm:$0xff]
  %v702 = vld [vmem:[%s292 + $0x121] sm:$0xff]
  %v703 = vld [vmem:[%s292 + $0x129] sm:$0xff]
  %v704 = vld [vmem:[%s292 + $0x139] sm:$0xff]
  %v705 = vld [vmem:[%s292 + $0x141] sm:$0xff]
  %v706 = vld [vmem:[%s292 + $0x151] sm:$0xff]
  %v707 = vld [vmem:[%s292 + $0x159] sm:$0xff]
  %v708 = vld [vmem:[%s292 + $0x169] sm:$0xff]
  %v709 = vld [vmem:[%s292 + $0x171] sm:$0xff]
  %v710 = vld [vmem:[%s292 + $0x1b1] sm:$0xff]
  %v711 = vld [vmem:[%s292 + $0x1b9] sm:$0xff]
  %v712 = vld [vmem:[%s292 + $0x1c9] sm:$0xff]
  %v713 = vld [vmem:[%s292 + $0x1d1] sm:$0xff]
  %v714 = vld [vmem:[%s292 + $0x1e1] sm:$0xff]
  %v715 = vld [vmem:[%s292 + $0x1e9] sm:$0xff]
  %v716 = vld [vmem:[%s292 + $0x1f9] sm:$0xff]
  %v717 = vld [vmem:[%s292 + $0x201] sm:$0xff]
  %v718 = vld [vmem:[%s292 + $0x211] sm:$0xff]
  %v719 = vld [vmem:[%s292 + $0x219] sm:$0xff]
  %v720 = vld [vmem:[%s292 + $0x229] sm:$0xff]
  %v721 = vld [vmem:[%s292 + $0x231] sm:$0xff]
  %v722 = vld [vmem:[%s292 + $0x241] sm:$0xff]
  %v723 = vld [vmem:[%s292 + $0x249] sm:$0xff]
  %v724 = vld [vmem:[%s292 + $0x259] sm:$0xff]
  %v725 = vld [vmem:[%s292 + $0x261] sm:$0xff]
  %v726 = vld [vmem:[%s292 + $0x271] sm:$0xff]
  %v727 = vld [vmem:[%s292 + $0x279] sm:$0xff]
  %v728 = vld [vmem:[%s292 + $0x289] sm:$0xff]
  %v729 = vld [vmem:[%s292 + $0x291] sm:$0xff]
  %v730 = vld [vmem:[%s292 + $0x2a1] sm:$0xff]
  %v731 = vld [vmem:[%s292 + $0x2a9] sm:$0xff]
  %v732 = vld [vmem:[%s292 + $0x2b9] sm:$0xff]
  %v733 = vld [vmem:[%s292 + $0x2c1] sm:$0xff]
  %v734 = vld [vmem:[%s292 + $0x2d1] sm:$0xff]
  %v735 = vld [vmem:[%s292 + $0x2d9] sm:$0xff]
  %v736 = vld [vmem:[%s292 + $0x2e9] sm:$0xff]
  %v737 = vld [vmem:[%s292 + $0x2f1] sm:$0xff]
  %v738 = vld [vmem:[%s292 + $0x301] sm:$0xff]
  %v739 = vld [vmem:[%s292 + $0x309] sm:$0xff]
  %v740 = vld [vmem:[%s292 + $0x319] sm:$0xff]
  %v741 = vld [vmem:[%s292 + $0x321] sm:$0xff]
  %v742 = vld [vmem:[%s292 + $0x2] sm:$0xff]
  %v743 = vld [vmem:[%s292 + $0xa] sm:$0xff]
  %v744 = vld [vmem:[%s292 + $0x1a] sm:$0xff]
  %v745 = vld [vmem:[%s292 + $0x22] sm:$0xff]
  %v746 = vld [vmem:[%s292 + $0x32] sm:$0xff]
  %v747 = vld [vmem:[%s292 + $0x3a] sm:$0xff]
  %v748 = vld [vmem:[%s292 + $0x4a] sm:$0xff]
  %v749 = vld [vmem:[%s292 + $0x52] sm:$0xff]
  %v750 = vld [vmem:[%s292 + $0x62] sm:$0xff]
  %v751 = vld [vmem:[%s292 + $0x6a] sm:$0xff]
  %v752 = vld [vmem:[%s292 + $0x7a] sm:$0xff]
  %v753 = vld [vmem:[%s292 + $0x82] sm:$0xff]
  %v754 = vld [vmem:[%s292 + $0x92] sm:$0xff]
  %v755 = vld [vmem:[%s292 + $0x9a] sm:$0xff]
  %v756 = vld [vmem:[%s292 + $0xaa] sm:$0xff]
  %v757 = vld [vmem:[%s292 + $0xb2] sm:$0xff]
  %v758 = vld [vmem:[%s292 + $0xc2] sm:$0xff]
  %v759 = vld [vmem:[%s292 + $0xca] sm:$0xff]
  %v760 = vld [vmem:[%s292 + $0xda] sm:$0xff]
  %v761 = vld [vmem:[%s292 + $0xe2] sm:$0xff]
  %v762 = vld [vmem:[%s292 + $0xf2] sm:$0xff]
  %v763 = vld [vmem:[%s292 + $0xfa] sm:$0xff]
  %v764 = vld [vmem:[%s292 + $0x10a] sm:$0xff]
  %v765 = vld [vmem:[%s292 + $0x112] sm:$0xff]
  %v766 = vld [vmem:[%s292 + $0x122] sm:$0xff]
  %v767 = vld [vmem:[%s292 + $0x12a] sm:$0xff]
  %v768 = vld [vmem:[%s292 + $0x13a] sm:$0xff]
  %v769 = vld [vmem:[%s292 + $0x142] sm:$0xff]
  %v770 = vld [vmem:[%s292 + $0x152] sm:$0xff]
  %v771 = vld [vmem:[%s292 + $0x15a] sm:$0xff]
  %v772 = vld [vmem:[%s292 + $0x16a] sm:$0xff]
  %v773 = vld [vmem:[%s292 + $0x172] sm:$0xff]
  %v774 = vld [vmem:[%s292 + $0x1b2] sm:$0xff]
  %v775 = vld [vmem:[%s292 + $0x1ba] sm:$0xff]
  %v776 = vld [vmem:[%s292 + $0x1ca] sm:$0xff]
  %v777 = vld [vmem:[%s292 + $0x1d2] sm:$0xff]
  %v778 = vld [vmem:[%s292 + $0x1e2] sm:$0xff]
  %v779 = vld [vmem:[%s292 + $0x1ea] sm:$0xff]
  %v780 = vld [vmem:[%s292 + $0x1fa] sm:$0xff]
  %v781 = vld [vmem:[%s292 + $0x202] sm:$0xff]
  %v782 = vld [vmem:[%s292 + $0x212] sm:$0xff]
  %v783 = vld [vmem:[%s292 + $0x21a] sm:$0xff]
  %v784 = vld [vmem:[%s292 + $0x22a] sm:$0xff]
  %v785 = vld [vmem:[%s292 + $0x232] sm:$0xff]
  %v786 = vld [vmem:[%s292 + $0x242] sm:$0xff]
  %v787 = vld [vmem:[%s292 + $0x24a] sm:$0xff]
  %v788 = vld [vmem:[%s292 + $0x25a] sm:$0xff]
  %v789 = vld [vmem:[%s292 + $0x262] sm:$0xff]
  %v790 = vld [vmem:[%s292 + $0x272] sm:$0xff]
  %v791 = vld [vmem:[%s292 + $0x27a] sm:$0xff]
  %v792 = vld [vmem:[%s292 + $0x28a] sm:$0xff]
  %v793 = vld [vmem:[%s292 + $0x292] sm:$0xff]
  %v794 = vld [vmem:[%s292 + $0x2a2] sm:$0xff]
  %v795 = vld [vmem:[%s292 + $0x2aa] sm:$0xff]
  %v796 = vld [vmem:[%s292 + $0x2ba] sm:$0xff]
  %v797 = vld [vmem:[%s292 + $0x2c2] sm:$0xff]
  %v798 = vld [vmem:[%s292 + $0x2d2] sm:$0xff]
  %v799 = vld [vmem:[%s292 + $0x2da] sm:$0xff]
  %v800 = vld [vmem:[%s292 + $0x2ea] sm:$0xff]
  %v801 = vld [vmem:[%s292 + $0x2f2] sm:$0xff]
  %v802 = vld [vmem:[%s292 + $0x302] sm:$0xff]
  %v803 = vld [vmem:[%s292 + $0x30a] sm:$0xff]
  %v804 = vld [vmem:[%s292 + $0x31a] sm:$0xff]
  %v805 = vld [vmem:[%s292 + $0x322] sm:$0xff]
  %s806 = scalar_lea.vmem [#allocation2], 48
  %v807 = vld [vmem:[%s806] sm:$0xff]
  %v808 = vld [vmem:[%s806 + $0x8] sm:$0xff]
  %v809 = vld [vmem:[%s806 + $0x18] sm:$0xff]
  %v810 = vld [vmem:[%s806 + $0x20] sm:$0xff]
  %v811 = vld [vmem:[%s806 + $0x30] sm:$0xff]
  %v812 = vld [vmem:[%s806 + $0x38] sm:$0xff]
  %v813 = vld [vmem:[%s806 + $0x48] sm:$0xff]
  %v814 = vld [vmem:[%s806 + $0x50] sm:$0xff]
  %v815 = vld [vmem:[%s806 + $0x60] sm:$0xff]
  %v816 = vld [vmem:[%s806 + $0x68] sm:$0xff]
  %v817 = vld [vmem:[%s806 + $0x78] sm:$0xff]
  %v818 = vld [vmem:[%s806 + $0x80] sm:$0xff]
  %v819 = vld [vmem:[%s806 + $0x90] sm:$0xff]
  %v820 = vld [vmem:[%s806 + $0x98] sm:$0xff]
  %v821 = vld [vmem:[%s806 + $0xa8] sm:$0xff]
  %v822 = vld [vmem:[%s806 + $0xb0] sm:$0xff]
  %v823 = vld [vmem:[%s806 + $0xc0] sm:$0xff]
  %v824 = vld [vmem:[%s806 + $0xc8] sm:$0xff]
  %v825 = vld [vmem:[%s806 + $0xd8] sm:$0xff]
  %v826 = vld [vmem:[%s806 + $0xe0] sm:$0xff]
  %v827 = vld [vmem:[%s806 + $0xf0] sm:$0xff]
  %v828 = vld [vmem:[%s806 + $0xf8] sm:$0xff]
  %v829 = vld [vmem:[%s806 + $0x108] sm:$0xff]
  %v830 = vld [vmem:[%s806 + $0x110] sm:$0xff]
  %v831 = vld [vmem:[%s806 + $0x120] sm:$0xff]
  %v832 = vld [vmem:[%s806 + $0x128] sm:$0xff]
  %v833 = vld [vmem:[%s806 + $0x138] sm:$0xff]
  %v834 = vld [vmem:[%s806 + $0x140] sm:$0xff]
  %v835 = vld [vmem:[%s806 + $0x150] sm:$0xff]
  %v836 = vld [vmem:[%s806 + $0x158] sm:$0xff]
  %v837 = vld [vmem:[%s806 + $0x168] sm:$0xff]
  %v838 = vld [vmem:[%s806 + $0x170] sm:$0xff]
  %v839 = vld [vmem:[%s806 + $0x1b0] sm:$0xff]
  %v840 = vld [vmem:[%s806 + $0x1b8] sm:$0xff]
  %v841 = vld [vmem:[%s806 + $0x1c8] sm:$0xff]
  %v842 = vld [vmem:[%s806 + $0x1d0] sm:$0xff]
  %v843 = vld [vmem:[%s806 + $0x1e0] sm:$0xff]
  %v844 = vld [vmem:[%s806 + $0x1e8] sm:$0xff]
  %v845 = vld [vmem:[%s806 + $0x1f8] sm:$0xff]
  %v846 = vld [vmem:[%s806 + $0x200] sm:$0xff]
  %v847 = vld [vmem:[%s806 + $0x210] sm:$0xff]
  %v848 = vld [vmem:[%s806 + $0x218] sm:$0xff]
  %v849 = vld [vmem:[%s806 + $0x228] sm:$0xff]
  %v850 = vld [vmem:[%s806 + $0x230] sm:$0xff]
  %v851 = vld [vmem:[%s806 + $0x240] sm:$0xff]
  %v852 = vld [vmem:[%s806 + $0x248] sm:$0xff]
  %v853 = vld [vmem:[%s806 + $0x258] sm:$0xff]
  %v854 = vld [vmem:[%s806 + $0x260] sm:$0xff]
  %v855 = vld [vmem:[%s806 + $0x270] sm:$0xff]
  %v856 = vld [vmem:[%s806 + $0x278] sm:$0xff]
  %v857 = vld [vmem:[%s806 + $0x288] sm:$0xff]
  %v858 = vld [vmem:[%s806 + $0x290] sm:$0xff]
  %v859 = vld [vmem:[%s806 + $0x2a0] sm:$0xff]
  %v860 = vld [vmem:[%s806 + $0x2a8] sm:$0xff]
  %v861 = vld [vmem:[%s806 + $0x2b8] sm:$0xff]
  %v862 = vld [vmem:[%s806 + $0x2c0] sm:$0xff]
  %v863 = vld [vmem:[%s806 + $0x2d0] sm:$0xff]
  %v864 = vld [vmem:[%s806 + $0x2d8] sm:$0xff]
  %v865 = vld [vmem:[%s806 + $0x2e8] sm:$0xff]
  %v866 = vld [vmem:[%s806 + $0x2f0] sm:$0xff]
  %v867 = vld [vmem:[%s806 + $0x300] sm:$0xff]
  %v868 = vld [vmem:[%s806 + $0x308] sm:$0xff]
  %v869 = vld [vmem:[%s806 + $0x318] sm:$0xff]
  %v870 = vld [vmem:[%s806 + $0x320] sm:$0xff]
  %v871 = vld [vmem:[%s806 + $0x1] sm:$0xff]
  %v872 = vld [vmem:[%s806 + $0x9] sm:$0xff]
  %v873 = vld [vmem:[%s806 + $0x19] sm:$0xff]
  %v874 = vld [vmem:[%s806 + $0x21] sm:$0xff]
  %v875 = vld [vmem:[%s806 + $0x31] sm:$0xff]
  %v876 = vld [vmem:[%s806 + $0x39] sm:$0xff]
  %v877 = vld [vmem:[%s806 + $0x49] sm:$0xff]
  %v878 = vld [vmem:[%s806 + $0x51] sm:$0xff]
  %v879 = vld [vmem:[%s806 + $0x61] sm:$0xff]
  %v880 = vld [vmem:[%s806 + $0x69] sm:$0xff]
  %v881 = vld [vmem:[%s806 + $0x79] sm:$0xff]
  %v882 = vld [vmem:[%s806 + $0x81] sm:$0xff]
  %v883 = vld [vmem:[%s806 + $0x91] sm:$0xff]
  %v884 = vld [vmem:[%s806 + $0x99] sm:$0xff]
  %v885 = vld [vmem:[%s806 + $0xa9] sm:$0xff]
  %v886 = vld [vmem:[%s806 + $0xb1] sm:$0xff]
  %v887 = vld [vmem:[%s806 + $0xc1] sm:$0xff]
  %v888 = vld [vmem:[%s806 + $0xc9] sm:$0xff]
  %v889 = vld [vmem:[%s806 + $0xd9] sm:$0xff]
  %v890 = vld [vmem:[%s806 + $0xe1] sm:$0xff]
  %v891 = vld [vmem:[%s806 + $0xf1] sm:$0xff]
  %v892 = vld [vmem:[%s806 + $0xf9] sm:$0xff]
  %v893 = vld [vmem:[%s806 + $0x109] sm:$0xff]
  %v894 = vld [vmem:[%s806 + $0x111] sm:$0xff]
  %v895 = vld [vmem:[%s806 + $0x121] sm:$0xff]
  %v896 = vld [vmem:[%s806 + $0x129] sm:$0xff]
  %v897 = vld [vmem:[%s806 + $0x139] sm:$0xff]
  %v898 = vld [vmem:[%s806 + $0x141] sm:$0xff]
  %v899 = vld [vmem:[%s806 + $0x151] sm:$0xff]
  %v900 = vld [vmem:[%s806 + $0x159] sm:$0xff]
  %v901 = vld [vmem:[%s806 + $0x169] sm:$0xff]
  %v902 = vld [vmem:[%s806 + $0x171] sm:$0xff]
  %v903 = vld [vmem:[%s806 + $0x1b1] sm:$0xff]
  %v904 = vld [vmem:[%s806 + $0x1b9] sm:$0xff]
  %v905 = vld [vmem:[%s806 + $0x1c9] sm:$0xff]
  %v906 = vld [vmem:[%s806 + $0x1d1] sm:$0xff]
  %v907 = vld [vmem:[%s806 + $0x1e1] sm:$0xff]
  %v908 = vld [vmem:[%s806 + $0x1e9] sm:$0xff]
  %v909 = vld [vmem:[%s806 + $0x1f9] sm:$0xff]
  %v910 = vld [vmem:[%s806 + $0x201] sm:$0xff]
  %v911 = vld [vmem:[%s806 + $0x211] sm:$0xff]
  %v912 = vld [vmem:[%s806 + $0x219] sm:$0xff]
  %v913 = vld [vmem:[%s806 + $0x229] sm:$0xff]
  %v914 = vld [vmem:[%s806 + $0x231] sm:$0xff]
  %v915 = vld [vmem:[%s806 + $0x241] sm:$0xff]
  %v916 = vld [vmem:[%s806 + $0x249] sm:$0xff]
  %v917 = vld [vmem:[%s806 + $0x259] sm:$0xff]
  %v918 = vld [vmem:[%s806 + $0x261] sm:$0xff]
  %v919 = vld [vmem:[%s806 + $0x271] sm:$0xff]
  %v920 = vld [vmem:[%s806 + $0x279] sm:$0xff]
  %v921 = vld [vmem:[%s806 + $0x289] sm:$0xff]
  %v922 = vld [vmem:[%s806 + $0x291] sm:$0xff]
  %v923 = vld [vmem:[%s806 + $0x2a1] sm:$0xff]
  %v924 = vld [vmem:[%s806 + $0x2a9] sm:$0xff]
  %v925 = vld [vmem:[%s806 + $0x2b9] sm:$0xff]
  %v926 = vld [vmem:[%s806 + $0x2c1] sm:$0xff]
  %v927 = vld [vmem:[%s806 + $0x2d1] sm:$0xff]
  %v928 = vld [vmem:[%s806 + $0x2d9] sm:$0xff]
  %v929 = vld [vmem:[%s806 + $0x2e9] sm:$0xff]
  %v930 = vld [vmem:[%s806 + $0x2f1] sm:$0xff]
  %v931 = vld [vmem:[%s806 + $0x301] sm:$0xff]
  %v932 = vld [vmem:[%s806 + $0x309] sm:$0xff]
  %v933 = vld [vmem:[%s806 + $0x319] sm:$0xff]
  %v934 = vld [vmem:[%s806 + $0x321] sm:$0xff]
  %v935 = vld [vmem:[%s806 + $0x2] sm:$0xff]
  %v936 = vld [vmem:[%s806 + $0xa] sm:$0xff]
  %v937 = vld [vmem:[%s806 + $0x1a] sm:$0xff]
  %v938 = vld [vmem:[%s806 + $0x22] sm:$0xff]
  %v939 = vld [vmem:[%s806 + $0x32] sm:$0xff]
  %v940 = vld [vmem:[%s806 + $0x3a] sm:$0xff]
  %v941 = vld [vmem:[%s806 + $0x4a] sm:$0xff]
  %v942 = vld [vmem:[%s806 + $0x52] sm:$0xff]
  %v943 = vld [vmem:[%s806 + $0x62] sm:$0xff]
  %v944 = vld [vmem:[%s806 + $0x6a] sm:$0xff]
  %v945 = vld [vmem:[%s806 + $0x7a] sm:$0xff]
  %v946 = vld [vmem:[%s806 + $0x82] sm:$0xff]
  %v947 = vld [vmem:[%s806 + $0x92] sm:$0xff]
  %v948 = vld [vmem:[%s806 + $0x9a] sm:$0xff]
  %v949 = vld [vmem:[%s806 + $0xaa] sm:$0xff]
  %v950 = vld [vmem:[%s806 + $0xb2] sm:$0xff]
  %v951 = vld [vmem:[%s806 + $0xc2] sm:$0xff]
  %v952 = vld [vmem:[%s806 + $0xca] sm:$0xff]
  %v953 = vld [vmem:[%s806 + $0xda] sm:$0xff]
  %v954 = vld [vmem:[%s806 + $0xe2] sm:$0xff]
  %v955 = vld [vmem:[%s806 + $0xf2] sm:$0xff]
  %v956 = vld [vmem:[%s806 + $0xfa] sm:$0xff]
  %v957 = vld [vmem:[%s806 + $0x10a] sm:$0xff]
  %v958 = vld [vmem:[%s806 + $0x112] sm:$0xff]
  %v959 = vld [vmem:[%s806 + $0x122] sm:$0xff]
  %v960 = vld [vmem:[%s806 + $0x12a] sm:$0xff]
  %v961 = vld [vmem:[%s806 + $0x13a] sm:$0xff]
  %v962 = vld [vmem:[%s806 + $0x142] sm:$0xff]
  %v963 = vld [vmem:[%s806 + $0x152] sm:$0xff]
  %v964 = vld [vmem:[%s806 + $0x15a] sm:$0xff]
  %v965 = vld [vmem:[%s806 + $0x16a] sm:$0xff]
  %v966 = vld [vmem:[%s806 + $0x172] sm:$0xff]
  %v967 = vld [vmem:[%s806 + $0x1b2] sm:$0xff]
  %v968 = vld [vmem:[%s806 + $0x1ba] sm:$0xff]
  %v969 = vld [vmem:[%s806 + $0x1ca] sm:$0xff]
  %v970 = vld [vmem:[%s806 + $0x1d2] sm:$0xff]
  %v971 = vld [vmem:[%s806 + $0x1e2] sm:$0xff]
  %v972 = vld [vmem:[%s806 + $0x1ea] sm:$0xff]
  %v973 = vld [vmem:[%s806 + $0x1fa] sm:$0xff]
  %v974 = vld [vmem:[%s806 + $0x202] sm:$0xff]
  %v975 = vld [vmem:[%s806 + $0x212] sm:$0xff]
  %v976 = vld [vmem:[%s806 + $0x21a] sm:$0xff]
  %v977 = vld [vmem:[%s806 + $0x22a] sm:$0xff]
  %v978 = vld [vmem:[%s806 + $0x232] sm:$0xff]
  %v979 = vld [vmem:[%s806 + $0x242] sm:$0xff]
  %v980 = vld [vmem:[%s806 + $0x24a] sm:$0xff]
  %v981 = vld [vmem:[%s806 + $0x25a] sm:$0xff]
  %v982 = vld [vmem:[%s806 + $0x262] sm:$0xff]
  %v983 = vld [vmem:[%s806 + $0x272] sm:$0xff]
  %v984 = vld [vmem:[%s806 + $0x27a] sm:$0xff]
  %v985 = vld [vmem:[%s806 + $0x28a] sm:$0xff]
  %v986 = vld [vmem:[%s806 + $0x292] sm:$0xff]
  %v987 = vld [vmem:[%s806 + $0x2a2] sm:$0xff]
  %v988 = vld [vmem:[%s806 + $0x2aa] sm:$0xff]
  %v989 = vld [vmem:[%s806 + $0x2ba] sm:$0xff]
  %v990 = vld [vmem:[%s806 + $0x2c2] sm:$0xff]
  %v991 = vld [vmem:[%s806 + $0x2d2] sm:$0xff]
  %v992 = vld [vmem:[%s806 + $0x2da] sm:$0xff]
  %v993 = vld [vmem:[%s806 + $0x2ea] sm:$0xff]
  %v994 = vld [vmem:[%s806 + $0x2f2] sm:$0xff]
  %v995 = vld [vmem:[%s806 + $0x302] sm:$0xff]
  %v996 = vld [vmem:[%s806 + $0x30a] sm:$0xff]
  %v997 = vld [vmem:[%s806 + $0x31a] sm:$0xff]
  %v998 = vld [vmem:[%s806 + $0x322] sm:$0xff]
  %1063 = vrot.lane.b32.xlu0 %v486, 4
  %v1064 = vpop.permute.xlu0 %1063
  %1065 = vrot.lane.b32.xlu0 %v487, 4
  %v1066 = vpop.permute.xlu0 %1065
  %1067 = vrot.lane.b32.xlu0 %v488, 4
  %v1068 = vpop.permute.xlu0 %1067
  %1069 = vrot.lane.b32.xlu0 %v489, 4
  %v1070 = vpop.permute.xlu0 %1069
  %1071 = vrot.lane.b32.xlu0 %v490, 4
  %v1072 = vpop.permute.xlu0 %1071
  %1073 = vrot.lane.b32.xlu0 %v491, 4
  %v1074 = vpop.permute.xlu0 %1073
  %1075 = vrot.lane.b32.xlu0 %v492, 4
  %v1076 = vpop.permute.xlu0 %1075
  %1077 = vrot.lane.b32.xlu0 %v493, 4
  %v1078 = vpop.permute.xlu0 %1077
  %1079 = vrot.lane.b32.xlu0 %v494, 4
  %v1080 = vpop.permute.xlu0 %1079
  %1081 = vrot.lane.b32.xlu0 %v495, 4
  %v1082 = vpop.permute.xlu0 %1081
  %1083 = vrot.lane.b32.xlu0 %v496, 4
  %v1084 = vpop.permute.xlu0 %1083
  %1085 = vrot.lane.b32.xlu0 %v497, 4
  %v1086 = vpop.permute.xlu0 %1085
  %1087 = vrot.lane.b32.xlu0 %v498, 4
  %v1088 = vpop.permute.xlu0 %1087
  %1089 = vrot.lane.b32.xlu0 %v499, 4
  %v1090 = vpop.permute.xlu0 %1089
  %1091 = vrot.lane.b32.xlu0 %v500, 4
  %v1092 = vpop.permute.xlu0 %1091
  %1093 = vrot.lane.b32.xlu0 %v501, 4
  %v1094 = vpop.permute.xlu0 %1093
  %1095 = vrot.lane.b32.xlu0 %v502, 4
  %v1096 = vpop.permute.xlu0 %1095
  %1097 = vrot.lane.b32.xlu0 %v503, 4
  %v1098 = vpop.permute.xlu0 %1097
  %1099 = vrot.lane.b32.xlu0 %v504, 4
  %v1100 = vpop.permute.xlu0 %1099
  %1101 = vrot.lane.b32.xlu0 %v505, 4
  %v1102 = vpop.permute.xlu0 %1101
  %1103 = vrot.lane.b32.xlu0 %v506, 4
  %v1104 = vpop.permute.xlu0 %1103
  %1105 = vrot.lane.b32.xlu0 %v507, 4
  %v1106 = vpop.permute.xlu0 %1105
  %1107 = vrot.lane.b32.xlu0 %v508, 4
  %v1108 = vpop.permute.xlu0 %1107
  %1109 = vrot.lane.b32.xlu0 %v509, 4
  %v1110 = vpop.permute.xlu0 %1109
  %1111 = vrot.lane.b32.xlu0 %v510, 4
  %v1112 = vpop.permute.xlu0 %1111
  %1113 = vrot.lane.b32.xlu0 %v511, 4
  %v1114 = vpop.permute.xlu0 %1113
  %1115 = vrot.lane.b32.xlu0 %v512, 4
  %v1116 = vpop.permute.xlu0 %1115
  %1117 = vrot.lane.b32.xlu0 %v513, 4
  %v1118 = vpop.permute.xlu0 %1117
  %1119 = vrot.lane.b32.xlu0 %v514, 4
  %v1120 = vpop.permute.xlu0 %1119
  %1121 = vrot.lane.b32.xlu0 %v515, 4
  %v1122 = vpop.permute.xlu0 %1121
  %1123 = vrot.lane.b32.xlu0 %v516, 4
  %v1124 = vpop.permute.xlu0 %1123
  %1125 = vrot.lane.b32.xlu0 %v517, 4
  %v1126 = vpop.permute.xlu0 %1125
  %1127 = vrot.lane.b32.xlu0 %v518, 4
  %v1128 = vpop.permute.xlu0 %1127
  %1129 = vrot.lane.b32.xlu0 %v519, 4
  %v1130 = vpop.permute.xlu0 %1129
  %1131 = vrot.lane.b32.xlu0 %v520, 4
  %v1132 = vpop.permute.xlu0 %1131
  %1133 = vrot.lane.b32.xlu0 %v521, 4
  %v1134 = vpop.permute.xlu0 %1133
  %1135 = vrot.lane.b32.xlu0 %v522, 4
  %v1136 = vpop.permute.xlu0 %1135
  %1137 = vrot.lane.b32.xlu0 %v523, 4
  %v1138 = vpop.permute.xlu0 %1137
  %1139 = vrot.lane.b32.xlu0 %v524, 4
  %v1140 = vpop.permute.xlu0 %1139
  %1141 = vrot.lane.b32.xlu0 %v525, 4
  %v1142 = vpop.permute.xlu0 %1141
  %1143 = vrot.lane.b32.xlu0 %v526, 4
  %v1144 = vpop.permute.xlu0 %1143
  %1145 = vrot.lane.b32.xlu0 %v527, 4
  %v1146 = vpop.permute.xlu0 %1145
  %1147 = vrot.lane.b32.xlu0 %v528, 4
  %v1148 = vpop.permute.xlu0 %1147
  %1149 = vrot.lane.b32.xlu0 %v529, 4
  %v1150 = vpop.permute.xlu0 %1149
  %1151 = vrot.lane.b32.xlu0 %v530, 4
  %v1152 = vpop.permute.xlu0 %1151
  %1153 = vrot.lane.b32.xlu0 %v531, 4
  %v1154 = vpop.permute.xlu0 %1153
  %1155 = vrot.lane.b32.xlu0 %v532, 4
  %v1156 = vpop.permute.xlu0 %1155
  %1157 = vrot.lane.b32.xlu0 %v533, 4
  %v1158 = vpop.permute.xlu0 %1157
  %1159 = vrot.lane.b32.xlu0 %v534, 4
  %v1160 = vpop.permute.xlu0 %1159
  %1161 = vrot.lane.b32.xlu0 %v535, 4
  %v1162 = vpop.permute.xlu0 %1161
  %1163 = vrot.lane.b32.xlu0 %v536, 4
  %v1164 = vpop.permute.xlu0 %1163
  %1165 = vrot.lane.b32.xlu0 %v537, 4
  %v1166 = vpop.permute.xlu0 %1165
  %1167 = vrot.lane.b32.xlu0 %v538, 4
  %v1168 = vpop.permute.xlu0 %1167
  %1169 = vrot.lane.b32.xlu0 %v539, 4
  %v1170 = vpop.permute.xlu0 %1169
  %1171 = vrot.lane.b32.xlu0 %v540, 4
  %v1172 = vpop.permute.xlu0 %1171
  %1173 = vrot.lane.b32.xlu0 %v541, 4
  %v1174 = vpop.permute.xlu0 %1173
  %1175 = vrot.lane.b32.xlu0 %v542, 4
  %v1176 = vpop.permute.xlu0 %1175
  %1177 = vrot.lane.b32.xlu0 %v543, 4
  %v1178 = vpop.permute.xlu0 %1177
  %1179 = vrot.lane.b32.xlu0 %v544, 4
  %v1180 = vpop.permute.xlu0 %1179
  %1181 = vrot.lane.b32.xlu0 %v545, 4
  %v1182 = vpop.permute.xlu0 %1181
  %1183 = vrot.lane.b32.xlu0 %v546, 4
  %v1184 = vpop.permute.xlu0 %1183
  %1185 = vrot.lane.b32.xlu0 %v547, 4
  %v1186 = vpop.permute.xlu0 %1185
  %1187 = vrot.lane.b32.xlu0 %v548, 4
  %v1188 = vpop.permute.xlu0 %1187
  %1189 = vrot.lane.b32.xlu0 %v549, 4
  %v1190 = vpop.permute.xlu0 %1189
  %1319 = vrot.lane.b32.xlu0 %v550, 8
  %v1320 = vpop.permute.xlu0 %1319
  %1321 = vrot.lane.b32.xlu0 %v551, 8
  %v1322 = vpop.permute.xlu0 %1321
  %1323 = vrot.lane.b32.xlu0 %v552, 8
  %v1324 = vpop.permute.xlu0 %1323
  %1325 = vrot.lane.b32.xlu0 %v553, 8
  %v1326 = vpop.permute.xlu0 %1325
  %1327 = vrot.lane.b32.xlu0 %v554, 8
  %v1328 = vpop.permute.xlu0 %1327
  %1329 = vrot.lane.b32.xlu0 %v555, 8
  %v1330 = vpop.permute.xlu0 %1329
  %1331 = vrot.lane.b32.xlu0 %v556, 8
  %v1332 = vpop.permute.xlu0 %1331
  %1333 = vrot.lane.b32.xlu0 %v557, 8
  %v1334 = vpop.permute.xlu0 %1333
  %1335 = vrot.lane.b32.xlu0 %v558, 8
  %v1336 = vpop.permute.xlu0 %1335
  %1337 = vrot.lane.b32.xlu0 %v559, 8
  %v1338 = vpop.permute.xlu0 %1337
  %1339 = vrot.lane.b32.xlu0 %v560, 8
  %v1340 = vpop.permute.xlu0 %1339
  %1341 = vrot.lane.b32.xlu0 %v561, 8
  %v1342 = vpop.permute.xlu0 %1341
  %1343 = vrot.lane.b32.xlu0 %v562, 8
  %v1344 = vpop.permute.xlu0 %1343
  %1345 = vrot.lane.b32.xlu0 %v563, 8
  %v1346 = vpop.permute.xlu0 %1345
  %1347 = vrot.lane.b32.xlu0 %v564, 8
  %v1348 = vpop.permute.xlu0 %1347
  %1349 = vrot.lane.b32.xlu0 %v565, 8
  %v1350 = vpop.permute.xlu0 %1349
  %1351 = vrot.lane.b32.xlu0 %v566, 8
  %v1352 = vpop.permute.xlu0 %1351
  %1353 = vrot.lane.b32.xlu0 %v567, 8
  %v1354 = vpop.permute.xlu0 %1353
  %1355 = vrot.lane.b32.xlu0 %v568, 8
  %v1356 = vpop.permute.xlu0 %1355
  %1357 = vrot.lane.b32.xlu0 %v569, 8
  %v1358 = vpop.permute.xlu0 %1357
  %1359 = vrot.lane.b32.xlu0 %v570, 8
  %v1360 = vpop.permute.xlu0 %1359
  %1361 = vrot.lane.b32.xlu0 %v571, 8
  %v1362 = vpop.permute.xlu0 %1361
  %1363 = vrot.lane.b32.xlu0 %v572, 8
  %v1364 = vpop.permute.xlu0 %1363
  %1365 = vrot.lane.b32.xlu0 %v573, 8
  %v1366 = vpop.permute.xlu0 %1365
  %1367 = vrot.lane.b32.xlu0 %v574, 8
  %v1368 = vpop.permute.xlu0 %1367
  %1369 = vrot.lane.b32.xlu0 %v575, 8
  %v1370 = vpop.permute.xlu0 %1369
  %1371 = vrot.lane.b32.xlu0 %v576, 8
  %v1372 = vpop.permute.xlu0 %1371
  %1373 = vrot.lane.b32.xlu0 %v577, 8
  %v1374 = vpop.permute.xlu0 %1373
  %1375 = vrot.lane.b32.xlu0 %v578, 8
  %v1376 = vpop.permute.xlu0 %1375
  %1377 = vrot.lane.b32.xlu0 %v579, 8
  %v1378 = vpop.permute.xlu0 %1377
  %1379 = vrot.lane.b32.xlu0 %v580, 8
  %v1380 = vpop.permute.xlu0 %1379
  %1381 = vrot.lane.b32.xlu0 %v581, 8
  %v1382 = vpop.permute.xlu0 %1381
  %1383 = vrot.lane.b32.xlu0 %v582, 8
  %v1384 = vpop.permute.xlu0 %1383
  %1385 = vrot.lane.b32.xlu0 %v583, 8
  %v1386 = vpop.permute.xlu0 %1385
  %1387 = vrot.lane.b32.xlu0 %v584, 8
  %v1388 = vpop.permute.xlu0 %1387
  %1389 = vrot.lane.b32.xlu0 %v585, 8
  %v1390 = vpop.permute.xlu0 %1389
  %1391 = vrot.lane.b32.xlu0 %v586, 8
  %v1392 = vpop.permute.xlu0 %1391
  %1393 = vrot.lane.b32.xlu0 %v587, 8
  %v1394 = vpop.permute.xlu0 %1393
  %1395 = vrot.lane.b32.xlu0 %v588, 8
  %v1396 = vpop.permute.xlu0 %1395
  %1397 = vrot.lane.b32.xlu0 %v589, 8
  %v1398 = vpop.permute.xlu0 %1397
  %1399 = vrot.lane.b32.xlu0 %v590, 8
  %v1400 = vpop.permute.xlu0 %1399
  %1401 = vrot.lane.b32.xlu0 %v591, 8
  %v1402 = vpop.permute.xlu0 %1401
  %1403 = vrot.lane.b32.xlu0 %v592, 8
  %v1404 = vpop.permute.xlu0 %1403
  %1405 = vrot.lane.b32.xlu0 %v593, 8
  %v1406 = vpop.permute.xlu0 %1405
  %1407 = vrot.lane.b32.xlu0 %v594, 8
  %v1408 = vpop.permute.xlu0 %1407
  %1409 = vrot.lane.b32.xlu0 %v595, 8
  %v1410 = vpop.permute.xlu0 %1409
  %1411 = vrot.lane.b32.xlu0 %v596, 8
  %v1412 = vpop.permute.xlu0 %1411
  %1413 = vrot.lane.b32.xlu0 %v597, 8
  %v1414 = vpop.permute.xlu0 %1413
  %1415 = vrot.lane.b32.xlu0 %v598, 8
  %v1416 = vpop.permute.xlu0 %1415
  %1417 = vrot.lane.b32.xlu0 %v599, 8
  %v1418 = vpop.permute.xlu0 %1417
  %1419 = vrot.lane.b32.xlu0 %v600, 8
  %v1420 = vpop.permute.xlu0 %1419
  %1421 = vrot.lane.b32.xlu0 %v601, 8
  %v1422 = vpop.permute.xlu0 %1421
  %1423 = vrot.lane.b32.xlu0 %v602, 8
  %v1424 = vpop.permute.xlu0 %1423
  %1425 = vrot.lane.b32.xlu0 %v603, 8
  %v1426 = vpop.permute.xlu0 %1425
  %1427 = vrot.lane.b32.xlu0 %v604, 8
  %v1428 = vpop.permute.xlu0 %1427
  %1429 = vrot.lane.b32.xlu0 %v605, 8
  %v1430 = vpop.permute.xlu0 %1429
  %1431 = vrot.lane.b32.xlu0 %v606, 8
  %v1432 = vpop.permute.xlu0 %1431
  %1433 = vrot.lane.b32.xlu0 %v607, 8
  %v1434 = vpop.permute.xlu0 %1433
  %1435 = vrot.lane.b32.xlu0 %v608, 8
  %v1436 = vpop.permute.xlu0 %1435
  %1437 = vrot.lane.b32.xlu0 %v609, 8
  %v1438 = vpop.permute.xlu0 %1437
  %1439 = vrot.lane.b32.xlu0 %v610, 8
  %v1440 = vpop.permute.xlu0 %1439
  %1441 = vrot.lane.b32.xlu0 %v611, 8
  %v1442 = vpop.permute.xlu0 %1441
  %1443 = vrot.lane.b32.xlu0 %v612, 8
  %v1444 = vpop.permute.xlu0 %1443
  %1445 = vrot.lane.b32.xlu0 %v613, 8
  %v1446 = vpop.permute.xlu0 %1445
  %1575 = vrot.lane.b32.xlu0 %v614, 12
  %v1576 = vpop.permute.xlu0 %1575
  %1577 = vrot.lane.b32.xlu0 %v615, 12
  %v1578 = vpop.permute.xlu0 %1577
  %1579 = vrot.lane.b32.xlu0 %v616, 12
  %v1580 = vpop.permute.xlu0 %1579
  %1581 = vrot.lane.b32.xlu0 %v617, 12
  %v1582 = vpop.permute.xlu0 %1581
  %1583 = vrot.lane.b32.xlu0 %v618, 12
  %v1584 = vpop.permute.xlu0 %1583
  %1585 = vrot.lane.b32.xlu0 %v619, 12
  %v1586 = vpop.permute.xlu0 %1585
  %1587 = vrot.lane.b32.xlu0 %v620, 12
  %v1588 = vpop.permute.xlu0 %1587
  %1589 = vrot.lane.b32.xlu0 %v621, 12
  %v1590 = vpop.permute.xlu0 %1589
  %1591 = vrot.lane.b32.xlu0 %v622, 12
  %v1592 = vpop.permute.xlu0 %1591
  %1593 = vrot.lane.b32.xlu0 %v623, 12
  %v1594 = vpop.permute.xlu0 %1593
  %1595 = vrot.lane.b32.xlu0 %v624, 12
  %v1596 = vpop.permute.xlu0 %1595
  %1597 = vrot.lane.b32.xlu0 %v625, 12
  %v1598 = vpop.permute.xlu0 %1597
  %1599 = vrot.lane.b32.xlu0 %v626, 12
  %v1600 = vpop.permute.xlu0 %1599
  %1601 = vrot.lane.b32.xlu0 %v627, 12
  %v1602 = vpop.permute.xlu0 %1601
  %1603 = vrot.lane.b32.xlu0 %v628, 12
  %v1604 = vpop.permute.xlu0 %1603
  %1605 = vrot.lane.b32.xlu0 %v629, 12
  %v1606 = vpop.permute.xlu0 %1605
  %1607 = vrot.lane.b32.xlu0 %v630, 12
  %v1608 = vpop.permute.xlu0 %1607
  %1609 = vrot.lane.b32.xlu0 %v631, 12
  %v1610 = vpop.permute.xlu0 %1609
  %1611 = vrot.lane.b32.xlu0 %v632, 12
  %v1612 = vpop.permute.xlu0 %1611
  %1613 = vrot.lane.b32.xlu0 %v633, 12
  %v1614 = vpop.permute.xlu0 %1613
  %1615 = vrot.lane.b32.xlu0 %v634, 12
  %v1616 = vpop.permute.xlu0 %1615
  %1617 = vrot.lane.b32.xlu0 %v635, 12
  %v1618 = vpop.permute.xlu0 %1617
  %1619 = vrot.lane.b32.xlu0 %v636, 12
  %v1620 = vpop.permute.xlu0 %1619
  %1621 = vrot.lane.b32.xlu0 %v637, 12
  %v1622 = vpop.permute.xlu0 %1621
  %1623 = vrot.lane.b32.xlu0 %v638, 12
  %v1624 = vpop.permute.xlu0 %1623
  %1625 = vrot.lane.b32.xlu0 %v639, 12
  %v1626 = vpop.permute.xlu0 %1625
  %1627 = vrot.lane.b32.xlu0 %v640, 12
  %v1628 = vpop.permute.xlu0 %1627
  %1629 = vrot.lane.b32.xlu0 %v641, 12
  %v1630 = vpop.permute.xlu0 %1629
  %1631 = vrot.lane.b32.xlu0 %v642, 12
  %v1632 = vpop.permute.xlu0 %1631
  %1633 = vrot.lane.b32.xlu0 %v643, 12
  %v1634 = vpop.permute.xlu0 %1633
  %1635 = vrot.lane.b32.xlu0 %v644, 12
  %v1636 = vpop.permute.xlu0 %1635
  %1637 = vrot.lane.b32.xlu0 %v645, 12
  %v1638 = vpop.permute.xlu0 %1637
  %1639 = vrot.lane.b32.xlu0 %v646, 12
  %v1640 = vpop.permute.xlu0 %1639
  %1641 = vrot.lane.b32.xlu0 %v647, 12
  %v1642 = vpop.permute.xlu0 %1641
  %1643 = vrot.lane.b32.xlu0 %v648, 12
  %v1644 = vpop.permute.xlu0 %1643
  %1645 = vrot.lane.b32.xlu0 %v649, 12
  %v1646 = vpop.permute.xlu0 %1645
  %1647 = vrot.lane.b32.xlu0 %v650, 12
  %v1648 = vpop.permute.xlu0 %1647
  %1649 = vrot.lane.b32.xlu0 %v651, 12
  %v1650 = vpop.permute.xlu0 %1649
  %1651 = vrot.lane.b32.xlu0 %v652, 12
  %v1652 = vpop.permute.xlu0 %1651
  %1653 = vrot.lane.b32.xlu0 %v653, 12
  %v1654 = vpop.permute.xlu0 %1653
  %1655 = vrot.lane.b32.xlu0 %v654, 12
  %v1656 = vpop.permute.xlu0 %1655
  %1657 = vrot.lane.b32.xlu0 %v655, 12
  %v1658 = vpop.permute.xlu0 %1657
  %1659 = vrot.lane.b32.xlu0 %v656, 12
  %v1660 = vpop.permute.xlu0 %1659
  %1661 = vrot.lane.b32.xlu0 %v657, 12
  %v1662 = vpop.permute.xlu0 %1661
  %1663 = vrot.lane.b32.xlu0 %v658, 12
  %v1664 = vpop.permute.xlu0 %1663
  %1665 = vrot.lane.b32.xlu0 %v659, 12
  %v1666 = vpop.permute.xlu0 %1665
  %1667 = vrot.lane.b32.xlu0 %v660, 12
  %v1668 = vpop.permute.xlu0 %1667
  %1669 = vrot.lane.b32.xlu0 %v661, 12
  %v1670 = vpop.permute.xlu0 %1669
  %1671 = vrot.lane.b32.xlu0 %v662, 12
  %v1672 = vpop.permute.xlu0 %1671
  %1673 = vrot.lane.b32.xlu0 %v663, 12
  %v1674 = vpop.permute.xlu0 %1673
  %1675 = vrot.lane.b32.xlu0 %v664, 12
  %v1676 = vpop.permute.xlu0 %1675
  %1677 = vrot.lane.b32.xlu0 %v665, 12
  %v1678 = vpop.permute.xlu0 %1677
  %1679 = vrot.lane.b32.xlu0 %v666, 12
  %v1680 = vpop.permute.xlu0 %1679
  %1681 = vrot.lane.b32.xlu0 %v667, 12
  %v1682 = vpop.permute.xlu0 %1681
  %1683 = vrot.lane.b32.xlu0 %v668, 12
  %v1684 = vpop.permute.xlu0 %1683
  %1685 = vrot.lane.b32.xlu0 %v669, 12
  %v1686 = vpop.permute.xlu0 %1685
  %1687 = vrot.lane.b32.xlu0 %v670, 12
  %v1688 = vpop.permute.xlu0 %1687
  %1689 = vrot.lane.b32.xlu0 %v671, 12
  %v1690 = vpop.permute.xlu0 %1689
  %1691 = vrot.lane.b32.xlu0 %v672, 12
  %v1692 = vpop.permute.xlu0 %1691
  %1693 = vrot.lane.b32.xlu0 %v673, 12
  %v1694 = vpop.permute.xlu0 %1693
  %1695 = vrot.lane.b32.xlu0 %v674, 12
  %v1696 = vpop.permute.xlu0 %1695
  %1697 = vrot.lane.b32.xlu0 %v675, 12
  %v1698 = vpop.permute.xlu0 %1697
  %1699 = vrot.lane.b32.xlu0 %v676, 12
  %v1700 = vpop.permute.xlu0 %1699
  %1701 = vrot.lane.b32.xlu0 %v677, 12
  %v1702 = vpop.permute.xlu0 %1701
  %1831 = vrot.lane.b32.xlu0 %v678, 16
  %v1832 = vpop.permute.xlu0 %1831
  %1833 = vrot.lane.b32.xlu0 %v679, 16
  %v1834 = vpop.permute.xlu0 %1833
  %1835 = vrot.lane.b32.xlu0 %v680, 16
  %v1836 = vpop.permute.xlu0 %1835
  %1837 = vrot.lane.b32.xlu0 %v681, 16
  %v1838 = vpop.permute.xlu0 %1837
  %1839 = vrot.lane.b32.xlu0 %v682, 16
  %v1840 = vpop.permute.xlu0 %1839
  %1841 = vrot.lane.b32.xlu0 %v683, 16
  %v1842 = vpop.permute.xlu0 %1841
  %1843 = vrot.lane.b32.xlu0 %v684, 16
  %v1844 = vpop.permute.xlu0 %1843
  %1845 = vrot.lane.b32.xlu0 %v685, 16
  %v1846 = vpop.permute.xlu0 %1845
  %1847 = vrot.lane.b32.xlu0 %v686, 16
  %v1848 = vpop.permute.xlu0 %1847
  %1849 = vrot.lane.b32.xlu0 %v687, 16
  %v1850 = vpop.permute.xlu0 %1849
  %1851 = vrot.lane.b32.xlu0 %v688, 16
  %v1852 = vpop.permute.xlu0 %1851
  %1853 = vrot.lane.b32.xlu0 %v689, 16
  %v1854 = vpop.permute.xlu0 %1853
  %1855 = vrot.lane.b32.xlu0 %v690, 16
  %v1856 = vpop.permute.xlu0 %1855
  %1857 = vrot.lane.b32.xlu0 %v691, 16
  %v1858 = vpop.permute.xlu0 %1857
  %1859 = vrot.lane.b32.xlu0 %v692, 16
  %v1860 = vpop.permute.xlu0 %1859
  %1861 = vrot.lane.b32.xlu0 %v693, 16
  %v1862 = vpop.permute.xlu0 %1861
  %1863 = vrot.lane.b32.xlu0 %v694, 16
  %v1864 = vpop.permute.xlu0 %1863
  %1865 = vrot.lane.b32.xlu0 %v695, 16
  %v1866 = vpop.permute.xlu0 %1865
  %1867 = vrot.lane.b32.xlu0 %v696, 16
  %v1868 = vpop.permute.xlu0 %1867
  %1869 = vrot.lane.b32.xlu0 %v697, 16
  %v1870 = vpop.permute.xlu0 %1869
  %1871 = vrot.lane.b32.xlu0 %v698, 16
  %v1872 = vpop.permute.xlu0 %1871
  %1873 = vrot.lane.b32.xlu0 %v699, 16
  %v1874 = vpop.permute.xlu0 %1873
  %1875 = vrot.lane.b32.xlu0 %v700, 16
  %v1876 = vpop.permute.xlu0 %1875
  %1877 = vrot.lane.b32.xlu0 %v701, 16
  %v1878 = vpop.permute.xlu0 %1877
  %1879 = vrot.lane.b32.xlu0 %v702, 16
  %v1880 = vpop.permute.xlu0 %1879
  %1881 = vrot.lane.b32.xlu0 %v703, 16
  %v1882 = vpop.permute.xlu0 %1881
  %1883 = vrot.lane.b32.xlu0 %v704, 16
  %v1884 = vpop.permute.xlu0 %1883
  %1885 = vrot.lane.b32.xlu0 %v705, 16
  %v1886 = vpop.permute.xlu0 %1885
  %1887 = vrot.lane.b32.xlu0 %v706, 16
  %v1888 = vpop.permute.xlu0 %1887
  %1889 = vrot.lane.b32.xlu0 %v707, 16
  %v1890 = vpop.permute.xlu0 %1889
  %1891 = vrot.lane.b32.xlu0 %v708, 16
  %v1892 = vpop.permute.xlu0 %1891
  %1893 = vrot.lane.b32.xlu0 %v709, 16
  %v1894 = vpop.permute.xlu0 %1893
  %1895 = vrot.lane.b32.xlu0 %v710, 16
  %v1896 = vpop.permute.xlu0 %1895
  %1897 = vrot.lane.b32.xlu0 %v711, 16
  %v1898 = vpop.permute.xlu0 %1897
  %1899 = vrot.lane.b32.xlu0 %v712, 16
  %v1900 = vpop.permute.xlu0 %1899
  %1901 = vrot.lane.b32.xlu0 %v713, 16
  %v1902 = vpop.permute.xlu0 %1901
  %1903 = vrot.lane.b32.xlu0 %v714, 16
  %v1904 = vpop.permute.xlu0 %1903
  %1905 = vrot.lane.b32.xlu0 %v715, 16
  %v1906 = vpop.permute.xlu0 %1905
  %1907 = vrot.lane.b32.xlu0 %v716, 16
  %v1908 = vpop.permute.xlu0 %1907
  %1909 = vrot.lane.b32.xlu0 %v717, 16
  %v1910 = vpop.permute.xlu0 %1909
  %1911 = vrot.lane.b32.xlu0 %v718, 16
  %v1912 = vpop.permute.xlu0 %1911
  %1913 = vrot.lane.b32.xlu0 %v719, 16
  %v1914 = vpop.permute.xlu0 %1913
  %1915 = vrot.lane.b32.xlu0 %v720, 16
  %v1916 = vpop.permute.xlu0 %1915
  %1917 = vrot.lane.b32.xlu0 %v721, 16
  %v1918 = vpop.permute.xlu0 %1917
  %1919 = vrot.lane.b32.xlu0 %v722, 16
  %v1920 = vpop.permute.xlu0 %1919
  %1921 = vrot.lane.b32.xlu0 %v723, 16
  %v1922 = vpop.permute.xlu0 %1921
  %1923 = vrot.lane.b32.xlu0 %v724, 16
  %v1924 = vpop.permute.xlu0 %1923
  %1925 = vrot.lane.b32.xlu0 %v725, 16
  %v1926 = vpop.permute.xlu0 %1925
  %1927 = vrot.lane.b32.xlu0 %v726, 16
  %v1928 = vpop.permute.xlu0 %1927
  %1929 = vrot.lane.b32.xlu0 %v727, 16
  %v1930 = vpop.permute.xlu0 %1929
  %1931 = vrot.lane.b32.xlu0 %v728, 16
  %v1932 = vpop.permute.xlu0 %1931
  %1933 = vrot.lane.b32.xlu0 %v729, 16
  %v1934 = vpop.permute.xlu0 %1933
  %1935 = vrot.lane.b32.xlu0 %v730, 16
  %v1936 = vpop.permute.xlu0 %1935
  %1937 = vrot.lane.b32.xlu0 %v731, 16
  %v1938 = vpop.permute.xlu0 %1937
  %1939 = vrot.lane.b32.xlu0 %v732, 16
  %v1940 = vpop.permute.xlu0 %1939
  %1941 = vrot.lane.b32.xlu0 %v733, 16
  %v1942 = vpop.permute.xlu0 %1941
  %1943 = vrot.lane.b32.xlu0 %v734, 16
  %v1944 = vpop.permute.xlu0 %1943
  %1945 = vrot.lane.b32.xlu0 %v735, 16
  %v1946 = vpop.permute.xlu0 %1945
  %1947 = vrot.lane.b32.xlu0 %v736, 16
  %v1948 = vpop.permute.xlu0 %1947
  %1949 = vrot.lane.b32.xlu0 %v737, 16
  %v1950 = vpop.permute.xlu0 %1949
  %1951 = vrot.lane.b32.xlu0 %v738, 16
  %v1952 = vpop.permute.xlu0 %1951
  %1953 = vrot.lane.b32.xlu0 %v739, 16
  %v1954 = vpop.permute.xlu0 %1953
  %1955 = vrot.lane.b32.xlu0 %v740, 16
  %v1956 = vpop.permute.xlu0 %1955
  %1957 = vrot.lane.b32.xlu0 %v741, 16
  %v1958 = vpop.permute.xlu0 %1957
  %2087 = vrot.lane.b32.xlu0 %v742, 20
  %v2088 = vpop.permute.xlu0 %2087
  %2089 = vrot.lane.b32.xlu0 %v743, 20
  %v2090 = vpop.permute.xlu0 %2089
  %2091 = vrot.lane.b32.xlu0 %v744, 20
  %v2092 = vpop.permute.xlu0 %2091
  %2093 = vrot.lane.b32.xlu0 %v745, 20
  %v2094 = vpop.permute.xlu0 %2093
  %2095 = vrot.lane.b32.xlu0 %v746, 20
  %v2096 = vpop.permute.xlu0 %2095
  %2097 = vrot.lane.b32.xlu0 %v747, 20
  %v2098 = vpop.permute.xlu0 %2097
  %2099 = vrot.lane.b32.xlu0 %v748, 20
  %v2100 = vpop.permute.xlu0 %2099
  %2101 = vrot.lane.b32.xlu0 %v749, 20
  %v2102 = vpop.permute.xlu0 %2101
  %2103 = vrot.lane.b32.xlu0 %v750, 20
  %v2104 = vpop.permute.xlu0 %2103
  %2105 = vrot.lane.b32.xlu0 %v751, 20
  %v2106 = vpop.permute.xlu0 %2105
  %2107 = vrot.lane.b32.xlu0 %v752, 20
  %v2108 = vpop.permute.xlu0 %2107
  %2109 = vrot.lane.b32.xlu0 %v753, 20
  %v2110 = vpop.permute.xlu0 %2109
  %2111 = vrot.lane.b32.xlu0 %v754, 20
  %v2112 = vpop.permute.xlu0 %2111
  %2113 = vrot.lane.b32.xlu0 %v755, 20
  %v2114 = vpop.permute.xlu0 %2113
  %2115 = vrot.lane.b32.xlu0 %v756, 20
  %v2116 = vpop.permute.xlu0 %2115
  %2117 = vrot.lane.b32.xlu0 %v757, 20
  %v2118 = vpop.permute.xlu0 %2117
  %2119 = vrot.lane.b32.xlu0 %v758, 20
  %v2120 = vpop.permute.xlu0 %2119
  %2121 = vrot.lane.b32.xlu0 %v759, 20
  %v2122 = vpop.permute.xlu0 %2121
  %2123 = vrot.lane.b32.xlu0 %v760, 20
  %v2124 = vpop.permute.xlu0 %2123
  %2125 = vrot.lane.b32.xlu0 %v761, 20
  %v2126 = vpop.permute.xlu0 %2125
  %2127 = vrot.lane.b32.xlu0 %v762, 20
  %v2128 = vpop.permute.xlu0 %2127
  %2129 = vrot.lane.b32.xlu0 %v763, 20
  %v2130 = vpop.permute.xlu0 %2129
  %2131 = vrot.lane.b32.xlu0 %v764, 20
  %v2132 = vpop.permute.xlu0 %2131
  %2133 = vrot.lane.b32.xlu0 %v765, 20
  %v2134 = vpop.permute.xlu0 %2133
  %2135 = vrot.lane.b32.xlu0 %v766, 20
  %v2136 = vpop.permute.xlu0 %2135
  %2137 = vrot.lane.b32.xlu0 %v767, 20
  %v2138 = vpop.permute.xlu0 %2137
  %2139 = vrot.lane.b32.xlu0 %v768, 20
  %v2140 = vpop.permute.xlu0 %2139
  %2141 = vrot.lane.b32.xlu0 %v769, 20
  %v2142 = vpop.permute.xlu0 %2141
  %2143 = vrot.lane.b32.xlu0 %v770, 20
  %v2144 = vpop.permute.xlu0 %2143
  %2145 = vrot.lane.b32.xlu0 %v771, 20
  %v2146 = vpop.permute.xlu0 %2145
  %2147 = vrot.lane.b32.xlu0 %v772, 20
  %v2148 = vpop.permute.xlu0 %2147
  %2149 = vrot.lane.b32.xlu0 %v773, 20
  %v2150 = vpop.permute.xlu0 %2149
  %2151 = vrot.lane.b32.xlu0 %v774, 20
  %v2152 = vpop.permute.xlu0 %2151
  %2153 = vrot.lane.b32.xlu0 %v775, 20
  %v2154 = vpop.permute.xlu0 %2153
  %2155 = vrot.lane.b32.xlu0 %v776, 20
  %v2156 = vpop.permute.xlu0 %2155
  %2157 = vrot.lane.b32.xlu0 %v777, 20
  %v2158 = vpop.permute.xlu0 %2157
  %2159 = vrot.lane.b32.xlu0 %v778, 20
  %v2160 = vpop.permute.xlu0 %2159
  %2161 = vrot.lane.b32.xlu0 %v779, 20
  %v2162 = vpop.permute.xlu0 %2161
  %2163 = vrot.lane.b32.xlu0 %v780, 20
  %v2164 = vpop.permute.xlu0 %2163
  %2165 = vrot.lane.b32.xlu0 %v781, 20
  %v2166 = vpop.permute.xlu0 %2165
  %2167 = vrot.lane.b32.xlu0 %v782, 20
  %v2168 = vpop.permute.xlu0 %2167
  %2169 = vrot.lane.b32.xlu0 %v783, 20
  %v2170 = vpop.permute.xlu0 %2169
  %2171 = vrot.lane.b32.xlu0 %v784, 20
  %v2172 = vpop.permute.xlu0 %2171
  %2173 = vrot.lane.b32.xlu0 %v785, 20
  %v2174 = vpop.permute.xlu0 %2173
  %2175 = vrot.lane.b32.xlu0 %v786, 20
  %v2176 = vpop.permute.xlu0 %2175
  %2177 = vrot.lane.b32.xlu0 %v787, 20
  %v2178 = vpop.permute.xlu0 %2177
  %2179 = vrot.lane.b32.xlu0 %v788, 20
  %v2180 = vpop.permute.xlu0 %2179
  %2181 = vrot.lane.b32.xlu0 %v789, 20
  %v2182 = vpop.permute.xlu0 %2181
  %2183 = vrot.lane.b32.xlu0 %v790, 20
  %v2184 = vpop.permute.xlu0 %2183
  %2185 = vrot.lane.b32.xlu0 %v791, 20
  %v2186 = vpop.permute.xlu0 %2185
  %2187 = vrot.lane.b32.xlu0 %v792, 20
  %v2188 = vpop.permute.xlu0 %2187
  %2189 = vrot.lane.b32.xlu0 %v793, 20
  %v2190 = vpop.permute.xlu0 %2189
  %2191 = vrot.lane.b32.xlu0 %v794, 20
  %v2192 = vpop.permute.xlu0 %2191
  %2193 = vrot.lane.b32.xlu0 %v795, 20
  %v2194 = vpop.permute.xlu0 %2193
  %2195 = vrot.lane.b32.xlu0 %v796, 20
  %v2196 = vpop.permute.xlu0 %2195
  %2197 = vrot.lane.b32.xlu0 %v797, 20
  %v2198 = vpop.permute.xlu0 %2197
  %2199 = vrot.lane.b32.xlu0 %v798, 20
  %v2200 = vpop.permute.xlu0 %2199
  %2201 = vrot.lane.b32.xlu0 %v799, 20
  %v2202 = vpop.permute.xlu0 %2201
  %2203 = vrot.lane.b32.xlu0 %v800, 20
  %v2204 = vpop.permute.xlu0 %2203
  %2205 = vrot.lane.b32.xlu0 %v801, 20
  %v2206 = vpop.permute.xlu0 %2205
  %2207 = vrot.lane.b32.xlu0 %v802, 20
  %v2208 = vpop.permute.xlu0 %2207
  %2209 = vrot.lane.b32.xlu0 %v803, 20
  %v2210 = vpop.permute.xlu0 %2209
  %2211 = vrot.lane.b32.xlu0 %v804, 20
  %v2212 = vpop.permute.xlu0 %2211
  %2213 = vrot.lane.b32.xlu0 %v805, 20
  %v2214 = vpop.permute.xlu0 %2213
  %2343 = vrot.lane.b32.xlu0 %v807, 24
  %v2344 = vpop.permute.xlu0 %2343
  %2345 = vrot.lane.b32.xlu0 %v808, 24
  %v2346 = vpop.permute.xlu0 %2345
  %2347 = vrot.lane.b32.xlu0 %v809, 24
  %v2348 = vpop.permute.xlu0 %2347
  %2349 = vrot.lane.b32.xlu0 %v810, 24
  %v2350 = vpop.permute.xlu0 %2349
  %2351 = vrot.lane.b32.xlu0 %v811, 24
  %v2352 = vpop.permute.xlu0 %2351
  %2353 = vrot.lane.b32.xlu0 %v812, 24
  %v2354 = vpop.permute.xlu0 %2353
  %2355 = vrot.lane.b32.xlu0 %v813, 24
  %v2356 = vpop.permute.xlu0 %2355
  %2357 = vrot.lane.b32.xlu0 %v814, 24
  %v2358 = vpop.permute.xlu0 %2357
  %2359 = vrot.lane.b32.xlu0 %v815, 24
  %v2360 = vpop.permute.xlu0 %2359
  %2361 = vrot.lane.b32.xlu0 %v816, 24
  %v2362 = vpop.permute.xlu0 %2361
  %2363 = vrot.lane.b32.xlu0 %v817, 24
  %v2364 = vpop.permute.xlu0 %2363
  %2365 = vrot.lane.b32.xlu0 %v818, 24
  %v2366 = vpop.permute.xlu0 %2365
  %2367 = vrot.lane.b32.xlu0 %v819, 24
  %v2368 = vpop.permute.xlu0 %2367
  %2369 = vrot.lane.b32.xlu0 %v820, 24
  %v2370 = vpop.permute.xlu0 %2369
  %2371 = vrot.lane.b32.xlu0 %v821, 24
  %v2372 = vpop.permute.xlu0 %2371
  %2373 = vrot.lane.b32.xlu0 %v822, 24
  %v2374 = vpop.permute.xlu0 %2373
  %2375 = vrot.lane.b32.xlu0 %v823, 24
  %v2376 = vpop.permute.xlu0 %2375
  %2377 = vrot.lane.b32.xlu0 %v824, 24
  %v2378 = vpop.permute.xlu0 %2377
  %2379 = vrot.lane.b32.xlu0 %v825, 24
  %v2380 = vpop.permute.xlu0 %2379
  %2381 = vrot.lane.b32.xlu0 %v826, 24
  %v2382 = vpop.permute.xlu0 %2381
  %2383 = vrot.lane.b32.xlu0 %v827, 24
  %v2384 = vpop.permute.xlu0 %2383
  %2385 = vrot.lane.b32.xlu0 %v828, 24
  %v2386 = vpop.permute.xlu0 %2385
  %2387 = vrot.lane.b32.xlu0 %v829, 24
  %v2388 = vpop.permute.xlu0 %2387
  %2389 = vrot.lane.b32.xlu0 %v830, 24
  %v2390 = vpop.permute.xlu0 %2389
  %2391 = vrot.lane.b32.xlu0 %v831, 24
  %v2392 = vpop.permute.xlu0 %2391
  %2393 = vrot.lane.b32.xlu0 %v832, 24
  %v2394 = vpop.permute.xlu0 %2393
  %2395 = vrot.lane.b32.xlu0 %v833, 24
  %v2396 = vpop.permute.xlu0 %2395
  %2397 = vrot.lane.b32.xlu0 %v834, 24
  %v2398 = vpop.permute.xlu0 %2397
  %2399 = vrot.lane.b32.xlu0 %v835, 24
  %v2400 = vpop.permute.xlu0 %2399
  %2401 = vrot.lane.b32.xlu0 %v836, 24
  %v2402 = vpop.permute.xlu0 %2401
  %2403 = vrot.lane.b32.xlu0 %v837, 24
  %v2404 = vpop.permute.xlu0 %2403
  %2405 = vrot.lane.b32.xlu0 %v838, 24
  %v2406 = vpop.permute.xlu0 %2405
  %2407 = vrot.lane.b32.xlu0 %v839, 24
  %v2408 = vpop.permute.xlu0 %2407
  %2409 = vrot.lane.b32.xlu0 %v840, 24
  %v2410 = vpop.permute.xlu0 %2409
  %2411 = vrot.lane.b32.xlu0 %v841, 24
  %v2412 = vpop.permute.xlu0 %2411
  %2413 = vrot.lane.b32.xlu0 %v842, 24
  %v2414 = vpop.permute.xlu0 %2413
  %2415 = vrot.lane.b32.xlu0 %v843, 24
  %v2416 = vpop.permute.xlu0 %2415
  %2417 = vrot.lane.b32.xlu0 %v844, 24
  %v2418 = vpop.permute.xlu0 %2417
  %2419 = vrot.lane.b32.xlu0 %v845, 24
  %v2420 = vpop.permute.xlu0 %2419
  %2421 = vrot.lane.b32.xlu0 %v846, 24
  %v2422 = vpop.permute.xlu0 %2421
  %2423 = vrot.lane.b32.xlu0 %v847, 24
  %v2424 = vpop.permute.xlu0 %2423
  %2425 = vrot.lane.b32.xlu0 %v848, 24
  %v2426 = vpop.permute.xlu0 %2425
  %2427 = vrot.lane.b32.xlu0 %v849, 24
  %v2428 = vpop.permute.xlu0 %2427
  %2429 = vrot.lane.b32.xlu0 %v850, 24
  %v2430 = vpop.permute.xlu0 %2429
  %2431 = vrot.lane.b32.xlu0 %v851, 24
  %v2432 = vpop.permute.xlu0 %2431
  %2433 = vrot.lane.b32.xlu0 %v852, 24
  %v2434 = vpop.permute.xlu0 %2433
  %2435 = vrot.lane.b32.xlu0 %v853, 24
  %v2436 = vpop.permute.xlu0 %2435
  %2437 = vrot.lane.b32.xlu0 %v854, 24
  %v2438 = vpop.permute.xlu0 %2437
  %2439 = vrot.lane.b32.xlu0 %v855, 24
  %v2440 = vpop.permute.xlu0 %2439
  %2441 = vrot.lane.b32.xlu0 %v856, 24
  %v2442 = vpop.permute.xlu0 %2441
  %2443 = vrot.lane.b32.xlu0 %v857, 24
  %v2444 = vpop.permute.xlu0 %2443
  %2445 = vrot.lane.b32.xlu0 %v858, 24
  %v2446 = vpop.permute.xlu0 %2445
  %2447 = vrot.lane.b32.xlu0 %v859, 24
  %v2448 = vpop.permute.xlu0 %2447
  %2449 = vrot.lane.b32.xlu0 %v860, 24
  %v2450 = vpop.permute.xlu0 %2449
  %2451 = vrot.lane.b32.xlu0 %v861, 24
  %v2452 = vpop.permute.xlu0 %2451
  %2453 = vrot.lane.b32.xlu0 %v862, 24
  %v2454 = vpop.permute.xlu0 %2453
  %2455 = vrot.lane.b32.xlu0 %v863, 24
  %v2456 = vpop.permute.xlu0 %2455
  %2457 = vrot.lane.b32.xlu0 %v864, 24
  %v2458 = vpop.permute.xlu0 %2457
  %2459 = vrot.lane.b32.xlu0 %v865, 24
  %v2460 = vpop.permute.xlu0 %2459
  %2461 = vrot.lane.b32.xlu0 %v866, 24
  %v2462 = vpop.permute.xlu0 %2461
  %2463 = vrot.lane.b32.xlu0 %v867, 24
  %v2464 = vpop.permute.xlu0 %2463
  %2465 = vrot.lane.b32.xlu0 %v868, 24
  %v2466 = vpop.permute.xlu0 %2465
  %2467 = vrot.lane.b32.xlu0 %v869, 24
  %v2468 = vpop.permute.xlu0 %2467
  %2469 = vrot.lane.b32.xlu0 %v870, 24
  %v2470 = vpop.permute.xlu0 %2469
  %2599 = vrot.lane.b32.xlu0 %v871, 28
  %v2600 = vpop.permute.xlu0 %2599
  %2601 = vrot.lane.b32.xlu0 %v872, 28
  %v2602 = vpop.permute.xlu0 %2601
  %2603 = vrot.lane.b32.xlu0 %v873, 28
  %v2604 = vpop.permute.xlu0 %2603
  %2605 = vrot.lane.b32.xlu0 %v874, 28
  %v2606 = vpop.permute.xlu0 %2605
  %2607 = vrot.lane.b32.xlu0 %v875, 28
  %v2608 = vpop.permute.xlu0 %2607
  %2609 = vrot.lane.b32.xlu0 %v876, 28
  %v2610 = vpop.permute.xlu0 %2609
  %2611 = vrot.lane.b32.xlu0 %v877, 28
  %v2612 = vpop.permute.xlu0 %2611
  %2613 = vrot.lane.b32.xlu0 %v878, 28
  %v2614 = vpop.permute.xlu0 %2613
  %2615 = vrot.lane.b32.xlu0 %v879, 28
  %v2616 = vpop.permute.xlu0 %2615
  %2617 = vrot.lane.b32.xlu0 %v880, 28
  %v2618 = vpop.permute.xlu0 %2617
  %2619 = vrot.lane.b32.xlu0 %v881, 28
  %v2620 = vpop.permute.xlu0 %2619
  %2621 = vrot.lane.b32.xlu0 %v882, 28
  %v2622 = vpop.permute.xlu0 %2621
  %2623 = vrot.lane.b32.xlu0 %v883, 28
  %v2624 = vpop.permute.xlu0 %2623
  %2625 = vrot.lane.b32.xlu0 %v884, 28
  %v2626 = vpop.permute.xlu0 %2625
  %2627 = vrot.lane.b32.xlu0 %v885, 28
  %v2628 = vpop.permute.xlu0 %2627
  %2629 = vrot.lane.b32.xlu0 %v886, 28
  %v2630 = vpop.permute.xlu0 %2629
  %2631 = vrot.lane.b32.xlu0 %v887, 28
  %v2632 = vpop.permute.xlu0 %2631
  %2633 = vrot.lane.b32.xlu0 %v888, 28
  %v2634 = vpop.permute.xlu0 %2633
  %2635 = vrot.lane.b32.xlu0 %v889, 28
  %v2636 = vpop.permute.xlu0 %2635
  %2637 = vrot.lane.b32.xlu0 %v890, 28
  %v2638 = vpop.permute.xlu0 %2637
  %2639 = vrot.lane.b32.xlu0 %v891, 28
  %v2640 = vpop.permute.xlu0 %2639
  %2641 = vrot.lane.b32.xlu0 %v892, 28
  %v2642 = vpop.permute.xlu0 %2641
  %2643 = vrot.lane.b32.xlu0 %v893, 28
  %v2644 = vpop.permute.xlu0 %2643
  %2645 = vrot.lane.b32.xlu0 %v894, 28
  %v2646 = vpop.permute.xlu0 %2645
  %2647 = vrot.lane.b32.xlu0 %v895, 28
  %v2648 = vpop.permute.xlu0 %2647
  %2649 = vrot.lane.b32.xlu0 %v896, 28
  %v2650 = vpop.permute.xlu0 %2649
  %2651 = vrot.lane.b32.xlu0 %v897, 28
  %v2652 = vpop.permute.xlu0 %2651
  %2653 = vrot.lane.b32.xlu0 %v898, 28
  %v2654 = vpop.permute.xlu0 %2653
  %2655 = vrot.lane.b32.xlu0 %v899, 28
  %v2656 = vpop.permute.xlu0 %2655
  %2657 = vrot.lane.b32.xlu0 %v900, 28
  %v2658 = vpop.permute.xlu0 %2657
  %2659 = vrot.lane.b32.xlu0 %v901, 28
  %v2660 = vpop.permute.xlu0 %2659
  %2661 = vrot.lane.b32.xlu0 %v902, 28
  %v2662 = vpop.permute.xlu0 %2661
  %2663 = vrot.lane.b32.xlu0 %v903, 28
  %v2664 = vpop.permute.xlu0 %2663
  %2665 = vrot.lane.b32.xlu0 %v904, 28
  %v2666 = vpop.permute.xlu0 %2665
  %2667 = vrot.lane.b32.xlu0 %v905, 28
  %v2668 = vpop.permute.xlu0 %2667
  %2669 = vrot.lane.b32.xlu0 %v906, 28
  %v2670 = vpop.permute.xlu0 %2669
  %2671 = vrot.lane.b32.xlu0 %v907, 28
  %v2672 = vpop.permute.xlu0 %2671
  %2673 = vrot.lane.b32.xlu0 %v908, 28
  %v2674 = vpop.permute.xlu0 %2673
  %2675 = vrot.lane.b32.xlu0 %v909, 28
  %v2676 = vpop.permute.xlu0 %2675
  %2677 = vrot.lane.b32.xlu0 %v910, 28
  %v2678 = vpop.permute.xlu0 %2677
  %2679 = vrot.lane.b32.xlu0 %v911, 28
  %v2680 = vpop.permute.xlu0 %2679
  %2681 = vrot.lane.b32.xlu0 %v912, 28
  %v2682 = vpop.permute.xlu0 %2681
  %2683 = vrot.lane.b32.xlu0 %v913, 28
  %v2684 = vpop.permute.xlu0 %2683
  %2685 = vrot.lane.b32.xlu0 %v914, 28
  %v2686 = vpop.permute.xlu0 %2685
  %2687 = vrot.lane.b32.xlu0 %v915, 28
  %v2688 = vpop.permute.xlu0 %2687
  %2689 = vrot.lane.b32.xlu0 %v916, 28
  %v2690 = vpop.permute.xlu0 %2689
  %2691 = vrot.lane.b32.xlu0 %v917, 28
  %v2692 = vpop.permute.xlu0 %2691
  %2693 = vrot.lane.b32.xlu0 %v918, 28
  %v2694 = vpop.permute.xlu0 %2693
  %2695 = vrot.lane.b32.xlu0 %v919, 28
  %v2696 = vpop.permute.xlu0 %2695
  %2697 = vrot.lane.b32.xlu0 %v920, 28
  %v2698 = vpop.permute.xlu0 %2697
  %2699 = vrot.lane.b32.xlu0 %v921, 28
  %v2700 = vpop.permute.xlu0 %2699
  %2701 = vrot.lane.b32.xlu0 %v922, 28
  %v2702 = vpop.permute.xlu0 %2701
  %2703 = vrot.lane.b32.xlu0 %v923, 28
  %v2704 = vpop.permute.xlu0 %2703
  %2705 = vrot.lane.b32.xlu0 %v924, 28
  %v2706 = vpop.permute.xlu0 %2705
  %2707 = vrot.lane.b32.xlu0 %v925, 28
  %v2708 = vpop.permute.xlu0 %2707
  %2709 = vrot.lane.b32.xlu0 %v926, 28
  %v2710 = vpop.permute.xlu0 %2709
  %2711 = vrot.lane.b32.xlu0 %v927, 28
  %v2712 = vpop.permute.xlu0 %2711
  %2713 = vrot.lane.b32.xlu0 %v928, 28
  %v2714 = vpop.permute.xlu0 %2713
  %2715 = vrot.lane.b32.xlu0 %v929, 28
  %v2716 = vpop.permute.xlu0 %2715
  %2717 = vrot.lane.b32.xlu0 %v930, 28
  %v2718 = vpop.permute.xlu0 %2717
  %2719 = vrot.lane.b32.xlu0 %v931, 28
  %v2720 = vpop.permute.xlu0 %2719
  %2721 = vrot.lane.b32.xlu0 %v932, 28
  %v2722 = vpop.permute.xlu0 %2721
  %2723 = vrot.lane.b32.xlu0 %v933, 28
  %v2724 = vpop.permute.xlu0 %2723
  %2725 = vrot.lane.b32.xlu0 %v934, 28
  %v2726 = vpop.permute.xlu0 %2725
  %2855 = vrot.lane.b32.xlu0 %v935, 32
  %v2856 = vpop.permute.xlu0 %2855
  %2857 = vrot.lane.b32.xlu0 %v936, 32
  %v2858 = vpop.permute.xlu0 %2857
  %2859 = vrot.lane.b32.xlu0 %v937, 32
  %v2860 = vpop.permute.xlu0 %2859
  %2861 = vrot.lane.b32.xlu0 %v938, 32
  %v2862 = vpop.permute.xlu0 %2861
  %2863 = vrot.lane.b32.xlu0 %v939, 32
  %v2864 = vpop.permute.xlu0 %2863
  %2865 = vrot.lane.b32.xlu0 %v940, 32
  %v2866 = vpop.permute.xlu0 %2865
  %2867 = vrot.lane.b32.xlu0 %v941, 32
  %v2868 = vpop.permute.xlu0 %2867
  %2869 = vrot.lane.b32.xlu0 %v942, 32
  %v2870 = vpop.permute.xlu0 %2869
  %2871 = vrot.lane.b32.xlu0 %v943, 32
  %v2872 = vpop.permute.xlu0 %2871
  %2873 = vrot.lane.b32.xlu0 %v944, 32
  %v2874 = vpop.permute.xlu0 %2873
  %2875 = vrot.lane.b32.xlu0 %v945, 32
  %v2876 = vpop.permute.xlu0 %2875
  %2877 = vrot.lane.b32.xlu0 %v946, 32
  %v2878 = vpop.permute.xlu0 %2877
  %2879 = vrot.lane.b32.xlu0 %v947, 32
  %v2880 = vpop.permute.xlu0 %2879
  %2881 = vrot.lane.b32.xlu0 %v948, 32
  %v2882 = vpop.permute.xlu0 %2881
  %2883 = vrot.lane.b32.xlu0 %v949, 32
  %v2884 = vpop.permute.xlu0 %2883
  %2885 = vrot.lane.b32.xlu0 %v950, 32
  %v2886 = vpop.permute.xlu0 %2885
  %2887 = vrot.lane.b32.xlu0 %v951, 32
  %v2888 = vpop.permute.xlu0 %2887
  %2889 = vrot.lane.b32.xlu0 %v952, 32
  %v2890 = vpop.permute.xlu0 %2889
  %2891 = vrot.lane.b32.xlu0 %v953, 32
  %v2892 = vpop.permute.xlu0 %2891
  %2893 = vrot.lane.b32.xlu0 %v954, 32
  %v2894 = vpop.permute.xlu0 %2893
  %2895 = vrot.lane.b32.xlu0 %v955, 32
  %v2896 = vpop.permute.xlu0 %2895
  %2897 = vrot.lane.b32.xlu0 %v956, 32
  %v2898 = vpop.permute.xlu0 %2897
  %2899 = vrot.lane.b32.xlu0 %v957, 32
  %v2900 = vpop.permute.xlu0 %2899
  %2901 = vrot.lane.b32.xlu0 %v958, 32
  %v2902 = vpop.permute.xlu0 %2901
  %2903 = vrot.lane.b32.xlu0 %v959, 32
  %v2904 = vpop.permute.xlu0 %2903
  %2905 = vrot.lane.b32.xlu0 %v960, 32
  %v2906 = vpop.permute.xlu0 %2905
  %2907 = vrot.lane.b32.xlu0 %v961, 32
  %v2908 = vpop.permute.xlu0 %2907
  %2909 = vrot.lane.b32.xlu0 %v962, 32
  %v2910 = vpop.permute.xlu0 %2909
  %2911 = vrot.lane.b32.xlu0 %v963, 32
  %v2912 = vpop.permute.xlu0 %2911
  %2913 = vrot.lane.b32.xlu0 %v964, 32
  %v2914 = vpop.permute.xlu0 %2913
  %2915 = vrot.lane.b32.xlu0 %v965, 32
  %v2916 = vpop.permute.xlu0 %2915
  %2917 = vrot.lane.b32.xlu0 %v966, 32
  %v2918 = vpop.permute.xlu0 %2917
  %2919 = vrot.lane.b32.xlu0 %v967, 32
  %v2920 = vpop.permute.xlu0 %2919
  %2921 = vrot.lane.b32.xlu0 %v968, 32
  %v2922 = vpop.permute.xlu0 %2921
  %2923 = vrot.lane.b32.xlu0 %v969, 32
  %v2924 = vpop.permute.xlu0 %2923
  %2925 = vrot.lane.b32.xlu0 %v970, 32
  %v2926 = vpop.permute.xlu0 %2925
  %2927 = vrot.lane.b32.xlu0 %v971, 32
  %v2928 = vpop.permute.xlu0 %2927
  %2929 = vrot.lane.b32.xlu0 %v972, 32
  %v2930 = vpop.permute.xlu0 %2929
  %2931 = vrot.lane.b32.xlu0 %v973, 32
  %v2932 = vpop.permute.xlu0 %2931
  %2933 = vrot.lane.b32.xlu0 %v974, 32
  %v2934 = vpop.permute.xlu0 %2933
  %2935 = vrot.lane.b32.xlu0 %v975, 32
  %v2936 = vpop.permute.xlu0 %2935
  %2937 = vrot.lane.b32.xlu0 %v976, 32
  %v2938 = vpop.permute.xlu0 %2937
  %2939 = vrot.lane.b32.xlu0 %v977, 32
  %v2940 = vpop.permute.xlu0 %2939
  %2941 = vrot.lane.b32.xlu0 %v978, 32
  %v2942 = vpop.permute.xlu0 %2941
  %2943 = vrot.lane.b32.xlu0 %v979, 32
  %v2944 = vpop.permute.xlu0 %2943
  %2945 = vrot.lane.b32.xlu0 %v980, 32
  %v2946 = vpop.permute.xlu0 %2945
  %2947 = vrot.lane.b32.xlu0 %v981, 32
  %v2948 = vpop.permute.xlu0 %2947
  %2949 = vrot.lane.b32.xlu0 %v982, 32
  %v2950 = vpop.permute.xlu0 %2949
  %2951 = vrot.lane.b32.xlu0 %v983, 32
  %v2952 = vpop.permute.xlu0 %2951
  %2953 = vrot.lane.b32.xlu0 %v984, 32
  %v2954 = vpop.permute.xlu0 %2953
  %2955 = vrot.lane.b32.xlu0 %v985, 32
  %v2956 = vpop.permute.xlu0 %2955
  %2957 = vrot.lane.b32.xlu0 %v986, 32
  %v2958 = vpop.permute.xlu0 %2957
  %2959 = vrot.lane.b32.xlu0 %v987, 32
  %v2960 = vpop.permute.xlu0 %2959
  %2961 = vrot.lane.b32.xlu0 %v988, 32
  %v2962 = vpop.permute.xlu0 %2961
  %2963 = vrot.lane.b32.xlu0 %v989, 32
  %v2964 = vpop.permute.xlu0 %2963
  %2965 = vrot.lane.b32.xlu0 %v990, 32
  %v2966 = vpop.permute.xlu0 %2965
  %2967 = vrot.lane.b32.xlu0 %v991, 32
  %v2968 = vpop.permute.xlu0 %2967
  %2969 = vrot.lane.b32.xlu0 %v992, 32
  %v2970 = vpop.permute.xlu0 %2969
  %2971 = vrot.lane.b32.xlu0 %v993, 32
  %v2972 = vpop.permute.xlu0 %2971
  %2973 = vrot.lane.b32.xlu0 %v994, 32
  %v2974 = vpop.permute.xlu0 %2973
  %2975 = vrot.lane.b32.xlu0 %v995, 32
  %v2976 = vpop.permute.xlu0 %2975
  %2977 = vrot.lane.b32.xlu0 %v996, 32
  %v2978 = vpop.permute.xlu0 %2977
  %2979 = vrot.lane.b32.xlu0 %v997, 32
  %v2980 = vpop.permute.xlu0 %2979
  %2981 = vrot.lane.b32.xlu0 %v998, 32
  %v2982 = vpop.permute.xlu0 %2981
  %v3047 = vsel %vm277, %v422, %v1064
  %v3048 = vsel %vm277, %v423, %v1066
  %v3049 = vsel %vm277, %v424, %v1068
  %v3050 = vsel %vm277, %v425, %v1070
  %v3051 = vsel %vm277, %v426, %v1072
  %v3052 = vsel %vm277, %v427, %v1074
  %v3053 = vsel %vm277, %v428, %v1076
  %v3054 = vsel %vm277, %v429, %v1078
  %v3055 = vsel %vm277, %v430, %v1080
  %v3056 = vsel %vm277, %v431, %v1082
  %v3057 = vsel %vm277, %v432, %v1084
  %v3058 = vsel %vm277, %v433, %v1086
  %v3059 = vsel %vm277, %v434, %v1088
  %v3060 = vsel %vm277, %v435, %v1090
  %v3061 = vsel %vm277, %v436, %v1092
  %v3062 = vsel %vm277, %v437, %v1094
  %v3063 = vsel %vm277, %v438, %v1096
  %v3064 = vsel %vm277, %v439, %v1098
  %v3065 = vsel %vm277, %v440, %v1100
  %v3066 = vsel %vm277, %v441, %v1102
  %v3067 = vsel %vm277, %v442, %v1104
  %v3068 = vsel %vm277, %v443, %v1106
  %v3069 = vsel %vm277, %v444, %v1108
  %v3070 = vsel %vm277, %v445, %v1110
  %v3071 = vsel %vm277, %v446, %v1112
  %v3072 = vsel %vm277, %v447, %v1114
  %v3073 = vsel %vm277, %v448, %v1116
  %v3074 = vsel %vm277, %v449, %v1118
  %v3075 = vsel %vm277, %v450, %v1120
  %v3076 = vsel %vm277, %v451, %v1122
  %v3077 = vsel %vm277, %v452, %v1124
  %v3078 = vsel %vm277, %v453, %v1126
  %v3079 = vsel %vm277, %v454, %v1128
  %v3080 = vsel %vm277, %v455, %v1130
  %v3081 = vsel %vm277, %v456, %v1132
  %v3082 = vsel %vm277, %v457, %v1134
  %v3083 = vsel %vm277, %v458, %v1136
  %v3084 = vsel %vm277, %v459, %v1138
  %v3085 = vsel %vm277, %v460, %v1140
  %v3086 = vsel %vm277, %v461, %v1142
  %v3087 = vsel %vm277, %v462, %v1144
  %v3088 = vsel %vm277, %v463, %v1146
  %v3089 = vsel %vm277, %v464, %v1148
  %v3090 = vsel %vm277, %v465, %v1150
  %v3091 = vsel %vm277, %v466, %v1152
  %v3092 = vsel %vm277, %v467, %v1154
  %v3093 = vsel %vm277, %v468, %v1156
  %v3094 = vsel %vm277, %v469, %v1158
  %v3095 = vsel %vm277, %v470, %v1160
  %v3096 = vsel %vm277, %v471, %v1162
  %v3097 = vsel %vm277, %v472, %v1164
  %v3098 = vsel %vm277, %v473, %v1166
  %v3099 = vsel %vm277, %v474, %v1168
  %v3100 = vsel %vm277, %v475, %v1170
  %v3101 = vsel %vm277, %v476, %v1172
  %v3102 = vsel %vm277, %v477, %v1174
  %v3103 = vsel %vm277, %v478, %v1176
  %v3104 = vsel %vm277, %v479, %v1178
  %v3105 = vsel %vm277, %v480, %v1180
  %v3106 = vsel %vm277, %v481, %v1182
  %v3107 = vsel %vm277, %v482, %v1184
  %v3108 = vsel %vm277, %v483, %v1186
  %v3109 = vsel %vm277, %v484, %v1188
  %v3110 = vsel %vm277, %v485, %v1190
  %vm3111 = vcmask 64512
  %v3112 = vsel %vm3111, %v3047, %v1320
  %v3113 = vsel %vm3111, %v3048, %v1322
  %v3114 = vsel %vm3111, %v3049, %v1324
  %v3115 = vsel %vm3111, %v3050, %v1326
  %v3116 = vsel %vm3111, %v3051, %v1328
  %v3117 = vsel %vm3111, %v3052, %v1330
  %v3118 = vsel %vm3111, %v3053, %v1332
  %v3119 = vsel %vm3111, %v3054, %v1334
  %v3120 = vsel %vm3111, %v3055, %v1336
  %v3121 = vsel %vm3111, %v3056, %v1338
  %v3122 = vsel %vm3111, %v3057, %v1340
  %v3123 = vsel %vm3111, %v3058, %v1342
  %v3124 = vsel %vm3111, %v3059, %v1344
  %v3125 = vsel %vm3111, %v3060, %v1346
  %v3126 = vsel %vm3111, %v3061, %v1348
  %v3127 = vsel %vm3111, %v3062, %v1350
  %v3128 = vsel %vm3111, %v3063, %v1352
  %v3129 = vsel %vm3111, %v3064, %v1354
  %v3130 = vsel %vm3111, %v3065, %v1356
  %v3131 = vsel %vm3111, %v3066, %v1358
  %v3132 = vsel %vm3111, %v3067, %v1360
  %v3133 = vsel %vm3111, %v3068, %v1362
  %v3134 = vsel %vm3111, %v3069, %v1364
  %v3135 = vsel %vm3111, %v3070, %v1366
  %v3136 = vsel %vm3111, %v3071, %v1368
  %v3137 = vsel %vm3111, %v3072, %v1370
  %v3138 = vsel %vm3111, %v3073, %v1372
  %v3139 = vsel %vm3111, %v3074, %v1374
  %v3140 = vsel %vm3111, %v3075, %v1376
  %v3141 = vsel %vm3111, %v3076, %v1378
  %v3142 = vsel %vm3111, %v3077, %v1380
  %v3143 = vsel %vm3111, %v3078, %v1382
  %v3144 = vsel %vm3111, %v3079, %v1384
  %v3145 = vsel %vm3111, %v3080, %v1386
  %v3146 = vsel %vm3111, %v3081, %v1388
  %v3147 = vsel %vm3111, %v3082, %v1390
  %v3148 = vsel %vm3111, %v3083, %v1392
  %v3149 = vsel %vm3111, %v3084, %v1394
  %v3150 = vsel %vm3111, %v3085, %v1396
  %v3151 = vsel %vm3111, %v3086, %v1398
  %v3152 = vsel %vm3111, %v3087, %v1400
  %v3153 = vsel %vm3111, %v3088, %v1402
  %v3154 = vsel %vm3111, %v3089, %v1404
  %v3155 = vsel %vm3111, %v3090, %v1406
  %v3156 = vsel %vm3111, %v3091, %v1408
  %v3157 = vsel %vm3111, %v3092, %v1410
  %v3158 = vsel %vm3111, %v3093, %v1412
  %v3159 = vsel %vm3111, %v3094, %v1414
  %v3160 = vsel %vm3111, %v3095, %v1416
  %v3161 = vsel %vm3111, %v3096, %v1418
  %v3162 = vsel %vm3111, %v3097, %v1420
  %v3163 = vsel %vm3111, %v3098, %v1422
  %v3164 = vsel %vm3111, %v3099, %v1424
  %v3165 = vsel %vm3111, %v3100, %v1426
  %v3166 = vsel %vm3111, %v3101, %v1428
  %v3167 = vsel %vm3111, %v3102, %v1430
  %v3168 = vsel %vm3111, %v3103, %v1432
  %v3169 = vsel %vm3111, %v3104, %v1434
  %v3170 = vsel %vm3111, %v3105, %v1436
  %v3171 = vsel %vm3111, %v3106, %v1438
  %v3172 = vsel %vm3111, %v3107, %v1440
  %v3173 = vsel %vm3111, %v3108, %v1442
  %v3174 = vsel %vm3111, %v3109, %v1444
  %v3175 = vsel %vm3111, %v3110, %v1446
  %vm3176 = vcmask 97280
  %v3177 = vsel %vm3176, %v3112, %v1576
  %v3178 = vsel %vm3176, %v3113, %v1578
  %v3179 = vsel %vm3176, %v3114, %v1580
  %v3180 = vsel %vm3176, %v3115, %v1582
  %v3181 = vsel %vm3176, %v3116, %v1584
  %v3182 = vsel %vm3176, %v3117, %v1586
  %v3183 = vsel %vm3176, %v3118, %v1588
  %v3184 = vsel %vm3176, %v3119, %v1590
  %v3185 = vsel %vm3176, %v3120, %v1592
  %v3186 = vsel %vm3176, %v3121, %v1594
  %v3187 = vsel %vm3176, %v3122, %v1596
  %v3188 = vsel %vm3176, %v3123, %v1598
  %v3189 = vsel %vm3176, %v3124, %v1600
  %v3190 = vsel %vm3176, %v3125, %v1602
  %v3191 = vsel %vm3176, %v3126, %v1604
  %v3192 = vsel %vm3176, %v3127, %v1606
  %v3193 = vsel %vm3176, %v3128, %v1608
  %v3194 = vsel %vm3176, %v3129, %v1610
  %v3195 = vsel %vm3176, %v3130, %v1612
  %v3196 = vsel %vm3176, %v3131, %v1614
  %v3197 = vsel %vm3176, %v3132, %v1616
  %v3198 = vsel %vm3176, %v3133, %v1618
  %v3199 = vsel %vm3176, %v3134, %v1620
  %v3200 = vsel %vm3176, %v3135, %v1622
  %v3201 = vsel %vm3176, %v3136, %v1624
  %v3202 = vsel %vm3176, %v3137, %v1626
  %v3203 = vsel %vm3176, %v3138, %v1628
  %v3204 = vsel %vm3176, %v3139, %v1630
  %v3205 = vsel %vm3176, %v3140, %v1632
  %v3206 = vsel %vm3176, %v3141, %v1634
  %v3207 = vsel %vm3176, %v3142, %v1636
  %v3208 = vsel %vm3176, %v3143, %v1638
  %v3209 = vsel %vm3176, %v3144, %v1640
  %v3210 = vsel %vm3176, %v3145, %v1642
  %v3211 = vsel %vm3176, %v3146, %v1644
  %v3212 = vsel %vm3176, %v3147, %v1646
  %v3213 = vsel %vm3176, %v3148, %v1648
  %v3214 = vsel %vm3176, %v3149, %v1650
  %v3215 = vsel %vm3176, %v3150, %v1652
  %v3216 = vsel %vm3176, %v3151, %v1654
  %v3217 = vsel %vm3176, %v3152, %v1656
  %v3218 = vsel %vm3176, %v3153, %v1658
  %v3219 = vsel %vm3176, %v3154, %v1660
  %v3220 = vsel %vm3176, %v3155, %v1662
  %v3221 = vsel %vm3176, %v3156, %v1664
  %v3222 = vsel %vm3176, %v3157, %v1666
  %v3223 = vsel %vm3176, %v3158, %v1668
  %v3224 = vsel %vm3176, %v3159, %v1670
  %v3225 = vsel %vm3176, %v3160, %v1672
  %v3226 = vsel %vm3176, %v3161, %v1674
  %v3227 = vsel %vm3176, %v3162, %v1676
  %v3228 = vsel %vm3176, %v3163, %v1678
  %v3229 = vsel %vm3176, %v3164, %v1680
  %v3230 = vsel %vm3176, %v3165, %v1682
  %v3231 = vsel %vm3176, %v3166, %v1684
  %v3232 = vsel %vm3176, %v3167, %v1686
  %v3233 = vsel %vm3176, %v3168, %v1688
  %v3234 = vsel %vm3176, %v3169, %v1690
  %v3235 = vsel %vm3176, %v3170, %v1692
  %v3236 = vsel %vm3176, %v3171, %v1694
  %v3237 = vsel %vm3176, %v3172, %v1696
  %v3238 = vsel %vm3176, %v3173, %v1698
  %v3239 = vsel %vm3176, %v3174, %v1700
  %v3240 = vsel %vm3176, %v3175, %v1702
  %vm3241 = vcmask 130048
  %v3242 = vsel %vm3241, %v3177, %v1832
  %v3243 = vsel %vm3241, %v3178, %v1834
  %v3244 = vsel %vm3241, %v3179, %v1836
  %v3245 = vsel %vm3241, %v3180, %v1838
  %v3246 = vsel %vm3241, %v3181, %v1840
  %v3247 = vsel %vm3241, %v3182, %v1842
  %v3248 = vsel %vm3241, %v3183, %v1844
  %v3249 = vsel %vm3241, %v3184, %v1846
  %v3250 = vsel %vm3241, %v3185, %v1848
  %v3251 = vsel %vm3241, %v3186, %v1850
  %v3252 = vsel %vm3241, %v3187, %v1852
  %v3253 = vsel %vm3241, %v3188, %v1854
  %v3254 = vsel %vm3241, %v3189, %v1856
  %v3255 = vsel %vm3241, %v3190, %v1858
  %v3256 = vsel %vm3241, %v3191, %v1860
  %v3257 = vsel %vm3241, %v3192, %v1862
  %v3258 = vsel %vm3241, %v3193, %v1864
  %v3259 = vsel %vm3241, %v3194, %v1866
  %v3260 = vsel %vm3241, %v3195, %v1868
  %v3261 = vsel %vm3241, %v3196, %v1870
  %v3262 = vsel %vm3241, %v3197, %v1872
  %v3263 = vsel %vm3241, %v3198, %v1874
  %v3264 = vsel %vm3241, %v3199, %v1876
  %v3265 = vsel %vm3241, %v3200, %v1878
  %v3266 = vsel %vm3241, %v3201, %v1880
  %v3267 = vsel %vm3241, %v3202, %v1882
  %v3268 = vsel %vm3241, %v3203, %v1884
  %v3269 = vsel %vm3241, %v3204, %v1886
  %v3270 = vsel %vm3241, %v3205, %v1888
  %v3271 = vsel %vm3241, %v3206, %v1890
  %v3272 = vsel %vm3241, %v3207, %v1892
  %v3273 = vsel %vm3241, %v3208, %v1894
  %v3274 = vsel %vm3241, %v3209, %v1896
  %v3275 = vsel %vm3241, %v3210, %v1898
  %v3276 = vsel %vm3241, %v3211, %v1900
  %v3277 = vsel %vm3241, %v3212, %v1902
  %v3278 = vsel %vm3241, %v3213, %v1904
  %v3279 = vsel %vm3241, %v3214, %v1906
  %v3280 = vsel %vm3241, %v3215, %v1908
  %v3281 = vsel %vm3241, %v3216, %v1910
  %v3282 = vsel %vm3241, %v3217, %v1912
  %v3283 = vsel %vm3241, %v3218, %v1914
  %v3284 = vsel %vm3241, %v3219, %v1916
  %v3285 = vsel %vm3241, %v3220, %v1918
  %v3286 = vsel %vm3241, %v3221, %v1920
  %v3287 = vsel %vm3241, %v3222, %v1922
  %v3288 = vsel %vm3241, %v3223, %v1924
  %v3289 = vsel %vm3241, %v3224, %v1926
  %v3290 = vsel %vm3241, %v3225, %v1928
  %v3291 = vsel %vm3241, %v3226, %v1930
  %v3292 = vsel %vm3241, %v3227, %v1932
  %v3293 = vsel %vm3241, %v3228, %v1934
  %v3294 = vsel %vm3241, %v3229, %v1936
  %v3295 = vsel %vm3241, %v3230, %v1938
  %v3296 = vsel %vm3241, %v3231, %v1940
  %v3297 = vsel %vm3241, %v3232, %v1942
  %v3298 = vsel %vm3241, %v3233, %v1944
  %v3299 = vsel %vm3241, %v3234, %v1946
  %v3300 = vsel %vm3241, %v3235, %v1948
  %v3301 = vsel %vm3241, %v3236, %v1950
  %v3302 = vsel %vm3241, %v3237, %v1952
  %v3303 = vsel %vm3241, %v3238, %v1954
  %v3304 = vsel %vm3241, %v3239, %v1956
  %v3305 = vsel %vm3241, %v3240, %v1958
  %vm3306 = vcmask 162816
  %v3307 = vsel %vm3306, %v3242, %v2088
  %v3308 = vsel %vm3306, %v3243, %v2090
  %v3309 = vsel %vm3306, %v3244, %v2092
  %v3310 = vsel %vm3306, %v3245, %v2094
  %v3311 = vsel %vm3306, %v3246, %v2096
  %v3312 = vsel %vm3306, %v3247, %v2098
  %v3313 = vsel %vm3306, %v3248, %v2100
  %v3314 = vsel %vm3306, %v3249, %v2102
  %v3315 = vsel %vm3306, %v3250, %v2104
  %v3316 = vsel %vm3306, %v3251, %v2106
  %v3317 = vsel %vm3306, %v3252, %v2108
  %v3318 = vsel %vm3306, %v3253, %v2110
  %v3319 = vsel %vm3306, %v3254, %v2112
  %v3320 = vsel %vm3306, %v3255, %v2114
  %v3321 = vsel %vm3306, %v3256, %v2116
  %v3322 = vsel %vm3306, %v3257, %v2118
  %v3323 = vsel %vm3306, %v3258, %v2120
  %v3324 = vsel %vm3306, %v3259, %v2122
  %v3325 = vsel %vm3306, %v3260, %v2124
  %v3326 = vsel %vm3306, %v3261, %v2126
  %v3327 = vsel %vm3306, %v3262, %v2128
  %v3328 = vsel %vm3306, %v3263, %v2130
  %v3329 = vsel %vm3306, %v3264, %v2132
  %v3330 = vsel %vm3306, %v3265, %v2134
  %v3331 = vsel %vm3306, %v3266, %v2136
  %v3332 = vsel %vm3306, %v3267, %v2138
  %v3333 = vsel %vm3306, %v3268, %v2140
  %v3334 = vsel %vm3306, %v3269, %v2142
  %v3335 = vsel %vm3306, %v3270, %v2144
  %v3336 = vsel %vm3306, %v3271, %v2146
  %v3337 = vsel %vm3306, %v3272, %v2148
  %v3338 = vsel %vm3306, %v3273, %v2150
  %v3339 = vsel %vm3306, %v3274, %v2152
  %v3340 = vsel %vm3306, %v3275, %v2154
  %v3341 = vsel %vm3306, %v3276, %v2156
  %v3342 = vsel %vm3306, %v3277, %v2158
  %v3343 = vsel %vm3306, %v3278, %v2160
  %v3344 = vsel %vm3306, %v3279, %v2162
  %v3345 = vsel %vm3306, %v3280, %v2164
  %v3346 = vsel %vm3306, %v3281, %v2166
  %v3347 = vsel %vm3306, %v3282, %v2168
  %v3348 = vsel %vm3306, %v3283, %v2170
  %v3349 = vsel %vm3306, %v3284, %v2172
  %v3350 = vsel %vm3306, %v3285, %v2174
  %v3351 = vsel %vm3306, %v3286, %v2176
  %v3352 = vsel %vm3306, %v3287, %v2178
  %v3353 = vsel %vm3306, %v3288, %v2180
  %v3354 = vsel %vm3306, %v3289, %v2182
  %v3355 = vsel %vm3306, %v3290, %v2184
  %v3356 = vsel %vm3306, %v3291, %v2186
  %v3357 = vsel %vm3306, %v3292, %v2188
  %v3358 = vsel %vm3306, %v3293, %v2190
  %v3359 = vsel %vm3306, %v3294, %v2192
  %v3360 = vsel %vm3306, %v3295, %v2194
  %v3361 = vsel %vm3306, %v3296, %v2196
  %v3362 = vsel %vm3306, %v3297, %v2198
  %v3363 = vsel %vm3306, %v3298, %v2200
  %v3364 = vsel %vm3306, %v3299, %v2202
  %v3365 = vsel %vm3306, %v3300, %v2204
  %v3366 = vsel %vm3306, %v3301, %v2206
  %v3367 = vsel %vm3306, %v3302, %v2208
  %v3368 = vsel %vm3306, %v3303, %v2210
  %v3369 = vsel %vm3306, %v3304, %v2212
  %v3370 = vsel %vm3306, %v3305, %v2214
  %vm3371 = vcmask 195584
  %v3372 = vsel %vm3371, %v3307, %v2344
  %v3373 = vsel %vm3371, %v3308, %v2346
  %v3374 = vsel %vm3371, %v3309, %v2348
  %v3375 = vsel %vm3371, %v3310, %v2350
  %v3376 = vsel %vm3371, %v3311, %v2352
  %v3377 = vsel %vm3371, %v3312, %v2354
  %v3378 = vsel %vm3371, %v3313, %v2356
  %v3379 = vsel %vm3371, %v3314, %v2358
  %v3380 = vsel %vm3371, %v3315, %v2360
  %v3381 = vsel %vm3371, %v3316, %v2362
  %v3382 = vsel %vm3371, %v3317, %v2364
  %v3383 = vsel %vm3371, %v3318, %v2366
  %v3384 = vsel %vm3371, %v3319, %v2368
  %v3385 = vsel %vm3371, %v3320, %v2370
  %v3386 = vsel %vm3371, %v3321, %v2372
  %v3387 = vsel %vm3371, %v3322, %v2374
  %v3388 = vsel %vm3371, %v3323, %v2376
  %v3389 = vsel %vm3371, %v3324, %v2378
  %v3390 = vsel %vm3371, %v3325, %v2380
  %v3391 = vsel %vm3371, %v3326, %v2382
  %v3392 = vsel %vm3371, %v3327, %v2384
  %v3393 = vsel %vm3371, %v3328, %v2386
  %v3394 = vsel %vm3371, %v3329, %v2388
  %v3395 = vsel %vm3371, %v3330, %v2390
  %v3396 = vsel %vm3371, %v3331, %v2392
  %v3397 = vsel %vm3371, %v3332, %v2394
  %v3398 = vsel %vm3371, %v3333, %v2396
  %v3399 = vsel %vm3371, %v3334, %v2398
  %v3400 = vsel %vm3371, %v3335, %v2400
  %v3401 = vsel %vm3371, %v3336, %v2402
  %v3402 = vsel %vm3371, %v3337, %v2404
  %v3403 = vsel %vm3371, %v3338, %v2406
  %v3404 = vsel %vm3371, %v3339, %v2408
  %v3405 = vsel %vm3371, %v3340, %v2410
  %v3406 = vsel %vm3371, %v3341, %v2412
  %v3407 = vsel %vm3371, %v3342, %v2414
  %v3408 = vsel %vm3371, %v3343, %v2416
  %v3409 = vsel %vm3371, %v3344, %v2418
  %v3410 = vsel %vm3371, %v3345, %v2420
  %v3411 = vsel %vm3371, %v3346, %v2422
  %v3412 = vsel %vm3371, %v3347, %v2424
  %v3413 = vsel %vm3371, %v3348, %v2426
  %v3414 = vsel %vm3371, %v3349, %v2428
  %v3415 = vsel %vm3371, %v3350, %v2430
  %v3416 = vsel %vm3371, %v3351, %v2432
  %v3417 = vsel %vm3371, %v3352, %v2434
  %v3418 = vsel %vm3371, %v3353, %v2436
  %v3419 = vsel %vm3371, %v3354, %v2438
  %v3420 = vsel %vm3371, %v3355, %v2440
  %v3421 = vsel %vm3371, %v3356, %v2442
  %v3422 = vsel %vm3371, %v3357, %v2444
  %v3423 = vsel %vm3371, %v3358, %v2446
  %v3424 = vsel %vm3371, %v3359, %v2448
  %v3425 = vsel %vm3371, %v3360, %v2450
  %v3426 = vsel %vm3371, %v3361, %v2452
  %v3427 = vsel %vm3371, %v3362, %v2454
  %v3428 = vsel %vm3371, %v3363, %v2456
  %v3429 = vsel %vm3371, %v3364, %v2458
  %v3430 = vsel %vm3371, %v3365, %v2460
  %v3431 = vsel %vm3371, %v3366, %v2462
  %v3432 = vsel %vm3371, %v3367, %v2464
  %v3433 = vsel %vm3371, %v3368, %v2466
  %v3434 = vsel %vm3371, %v3369, %v2468
  %v3435 = vsel %vm3371, %v3370, %v2470
  %vm3436 = vcmask 228352
  %v3437 = vsel %vm3436, %v3372, %v2600
  %v3438 = vsel %vm3436, %v3373, %v2602
  %v3439 = vsel %vm3436, %v3374, %v2604
  %v3440 = vsel %vm3436, %v3375, %v2606
  %v3441 = vsel %vm3436, %v3376, %v2608
  %v3442 = vsel %vm3436, %v3377, %v2610
  %v3443 = vsel %vm3436, %v3378, %v2612
  %v3444 = vsel %vm3436, %v3379, %v2614
  %v3445 = vsel %vm3436, %v3380, %v2616
  %v3446 = vsel %vm3436, %v3381, %v2618
  %v3447 = vsel %vm3436, %v3382, %v2620
  %v3448 = vsel %vm3436, %v3383, %v2622
  %v3449 = vsel %vm3436, %v3384, %v2624
  %v3450 = vsel %vm3436, %v3385, %v2626
  %v3451 = vsel %vm3436, %v3386, %v2628
  %v3452 = vsel %vm3436, %v3387, %v2630
  %v3453 = vsel %vm3436, %v3388, %v2632
  %v3454 = vsel %vm3436, %v3389, %v2634
  %v3455 = vsel %vm3436, %v3390, %v2636
  %v3456 = vsel %vm3436, %v3391, %v2638
  %v3457 = vsel %vm3436, %v3392, %v2640
  %v3458 = vsel %vm3436, %v3393, %v2642
  %v3459 = vsel %vm3436, %v3394, %v2644
  %v3460 = vsel %vm3436, %v3395, %v2646
  %v3461 = vsel %vm3436, %v3396, %v2648
  %v3462 = vsel %vm3436, %v3397, %v2650
  %v3463 = vsel %vm3436, %v3398, %v2652
  %v3464 = vsel %vm3436, %v3399, %v2654
  %v3465 = vsel %vm3436, %v3400, %v2656
  %v3466 = vsel %vm3436, %v3401, %v2658
  %v3467 = vsel %vm3436, %v3402, %v2660
  %v3468 = vsel %vm3436, %v3403, %v2662
  %v3469 = vsel %vm3436, %v3404, %v2664
  %v3470 = vsel %vm3436, %v3405, %v2666
  %v3471 = vsel %vm3436, %v3406, %v2668
  %v3472 = vsel %vm3436, %v3407, %v2670
  %v3473 = vsel %vm3436, %v3408, %v2672
  %v3474 = vsel %vm3436, %v3409, %v2674
  %v3475 = vsel %vm3436, %v3410, %v2676
  %v3476 = vsel %vm3436, %v3411, %v2678
  %v3477 = vsel %vm3436, %v3412, %v2680
  %v3478 = vsel %vm3436, %v3413, %v2682
  %v3479 = vsel %vm3436, %v3414, %v2684
  %v3480 = vsel %vm3436, %v3415, %v2686
  %v3481 = vsel %vm3436, %v3416, %v2688
  %v3482 = vsel %vm3436, %v3417, %v2690
  %v3483 = vsel %vm3436, %v3418, %v2692
  %v3484 = vsel %vm3436, %v3419, %v2694
  %v3485 = vsel %vm3436, %v3420, %v2696
  %v3486 = vsel %vm3436, %v3421, %v2698
  %v3487 = vsel %vm3436, %v3422, %v2700
  %v3488 = vsel %vm3436, %v3423, %v2702
  %v3489 = vsel %vm3436, %v3424, %v2704
  %v3490 = vsel %vm3436, %v3425, %v2706
  %v3491 = vsel %vm3436, %v3426, %v2708
  %v3492 = vsel %vm3436, %v3427, %v2710
  %v3493 = vsel %vm3436, %v3428, %v2712
  %v3494 = vsel %vm3436, %v3429, %v2714
  %v3495 = vsel %vm3436, %v3430, %v2716
  %v3496 = vsel %vm3436, %v3431, %v2718
  %v3497 = vsel %vm3436, %v3432, %v2720
  %v3498 = vsel %vm3436, %v3433, %v2722
  %v3499 = vsel %vm3436, %v3434, %v2724
  %v3500 = vsel %vm3436, %v3435, %v2726
  %v3501 = vsel %vm136, %v3437, %v2856
  %v3502 = vsel %vm136, %v3438, %v2858
  %v3503 = vsel %vm136, %v3439, %v2860
  %v3504 = vsel %vm136, %v3440, %v2862
  %v3505 = vsel %vm136, %v3441, %v2864
  %v3506 = vsel %vm136, %v3442, %v2866
  %v3507 = vsel %vm136, %v3443, %v2868
  %v3508 = vsel %vm136, %v3444, %v2870
  %v3509 = vsel %vm136, %v3445, %v2872
  %v3510 = vsel %vm136, %v3446, %v2874
  %v3511 = vsel %vm136, %v3447, %v2876
  %v3512 = vsel %vm136, %v3448, %v2878
  %v3513 = vsel %vm136, %v3449, %v2880
  %v3514 = vsel %vm136, %v3450, %v2882
  %v3515 = vsel %vm136, %v3451, %v2884
  %v3516 = vsel %vm136, %v3452, %v2886
  %v3517 = vsel %vm136, %v3453, %v2888
  %v3518 = vsel %vm136, %v3454, %v2890
  %v3519 = vsel %vm136, %v3455, %v2892
  %v3520 = vsel %vm136, %v3456, %v2894
  %v3521 = vsel %vm136, %v3457, %v2896
  %v3522 = vsel %vm136, %v3458, %v2898
  %v3523 = vsel %vm136, %v3459, %v2900
  %v3524 = vsel %vm136, %v3460, %v2902
  %v3525 = vsel %vm136, %v3461, %v2904
  %v3526 = vsel %vm136, %v3462, %v2906
  %v3527 = vsel %vm136, %v3463, %v2908
  %v3528 = vsel %vm136, %v3464, %v2910
  %v3529 = vsel %vm136, %v3465, %v2912
  %v3530 = vsel %vm136, %v3466, %v2914
  %v3531 = vsel %vm136, %v3467, %v2916
  %v3532 = vsel %vm136, %v3468, %v2918
  %v3533 = vsel %vm136, %v3469, %v2920
  %v3534 = vsel %vm136, %v3470, %v2922
  %v3535 = vsel %vm136, %v3471, %v2924
  %v3536 = vsel %vm136, %v3472, %v2926
  %v3537 = vsel %vm136, %v3473, %v2928
  %v3538 = vsel %vm136, %v3474, %v2930
  %v3539 = vsel %vm136, %v3475, %v2932
  %v3540 = vsel %vm136, %v3476, %v2934
  %v3541 = vsel %vm136, %v3477, %v2936
  %v3542 = vsel %vm136, %v3478, %v2938
  %v3543 = vsel %vm136, %v3479, %v2940
  %v3544 = vsel %vm136, %v3480, %v2942
  %v3545 = vsel %vm136, %v3481, %v2944
  %v3546 = vsel %vm136, %v3482, %v2946
  %v3547 = vsel %vm136, %v3483, %v2948
  %v3548 = vsel %vm136, %v3484, %v2950
  %v3549 = vsel %vm136, %v3485, %v2952
  %v3550 = vsel %vm136, %v3486, %v2954
  %v3551 = vsel %vm136, %v3487, %v2956
  %v3552 = vsel %vm136, %v3488, %v2958
  %v3553 = vsel %vm136, %v3489, %v2960
  %v3554 = vsel %vm136, %v3490, %v2962
  %v3555 = vsel %vm136, %v3491, %v2964
  %v3556 = vsel %vm136, %v3492, %v2966
  %v3557 = vsel %vm136, %v3493, %v2968
  %v3558 = vsel %vm136, %v3494, %v2970
  %v3559 = vsel %vm136, %v3495, %v2972
  %v3560 = vsel %vm136, %v3496, %v2974
  %v3561 = vsel %vm136, %v3497, %v2976
  %v3562 = vsel %vm136, %v3498, %v2978
  %v3563 = vsel %vm136, %v3499, %v2980
  %v3564 = vsel %vm136, %v3500, %v2982
  %v3565 = vpack.c.bf16 %v3502, %v3501
  %v3566 = vpack.c.bf16 %v3504, %v3503
  %v3567 = vpack.c.bf16 %v3506, %v3505
  %v3568 = vpack.c.bf16 %v3508, %v3507
  %v3569 = vpack.c.bf16 %v3510, %v3509
  %v3570 = vpack.c.bf16 %v3512, %v3511
  %v3571 = vpack.c.bf16 %v3514, %v3513
  %v3572 = vpack.c.bf16 %v3516, %v3515
  %v3573 = vpack.c.bf16 %v3518, %v3517
  %v3574 = vpack.c.bf16 %v3520, %v3519
  %v3575 = vpack.c.bf16 %v3522, %v3521
  %v3576 = vpack.c.bf16 %v3524, %v3523
  %v3577 = vpack.c.bf16 %v3526, %v3525
  %v3578 = vpack.c.bf16 %v3528, %v3527
  %v3579 = vpack.c.bf16 %v3530, %v3529
  %v3580 = vpack.c.bf16 %v3532, %v3531
  %v3581 = vpack.c.bf16 %v3534, %v3533
  %v3582 = vpack.c.bf16 %v3536, %v3535
  %v3583 = vpack.c.bf16 %v3538, %v3537
  %v3584 = vpack.c.bf16 %v3540, %v3539
  %v3585 = vpack.c.bf16 %v3542, %v3541
  %v3586 = vpack.c.bf16 %v3544, %v3543
  %v3587 = vpack.c.bf16 %v3546, %v3545
  %v3588 = vpack.c.bf16 %v3548, %v3547
  %v3589 = vpack.c.bf16 %v3550, %v3549
  %v3590 = vpack.c.bf16 %v3552, %v3551
  %v3591 = vpack.c.bf16 %v3554, %v3553
  %v3592 = vpack.c.bf16 %v3556, %v3555
  %v3593 = vpack.c.bf16 %v3558, %v3557
  %v3594 = vpack.c.bf16 %v3560, %v3559
  %v3595 = vpack.c.bf16 %v3562, %v3561
  %v3596 = vpack.c.bf16 %v3564, %v3563
  %v3597 = vld [vmem:[%s4] sm:$0xf]
  %v3598 = vld [vmem:[%s4 + $0x4] sm:$0xf]
  %v3599 = vld [vmem:[%s4 + $0x8] sm:$0xf]
  %v3600 = vld [vmem:[%s4 + $0xc] sm:$0xf]
  %v3601 = vld [vmem:[%s4 + $0x10] sm:$0x3]
  %v3602 = vld [vmem:[%s5] sm:$0x1]
  %v3604 = vlaneseq
  %v3605 = vshrl.u32 %v3604, 7
  %v3606 = vsub.s32 0, %v3605
  %v3607 = vrot.slane %v3602, %v3606
  %v3614 = vunpack.c.l.b16 %v3597
  %v3615 = vunpack.c.l.b16 %v3598
  %v3616 = vunpack.c.l.b16 %v3599
  %v3617 = vunpack.c.l.b16 %v3600
  %v3618 = vunpack.c.l.b16 %v3601
  %v3619 = vpack.c.b16 %v3615, %v3614
  %v3620 = vpack.c.b16 %v3617, %v3616
  %v3621 = vpack.c.b16 %v3618, %v3618
  %vm3624 = vcmask 293888
  %v3626 = vsel %vm3624, %v3565, 0
  %v3629 = vsel %vm3624, %v3566, 0
  %v3632 = vsel %vm3624, %v3567, 0
  %v3635 = vsel %vm3624, %v3568, 0
  %v3638 = vsel %vm3624, %v3569, 0
  %v3641 = vsel %vm3624, %v3570, 0
  %v3644 = vsel %vm3624, %v3571, 0
  %v3647 = vsel %vm3624, %v3572, 0
  %v3650 = vsel %vm3624, %v3573, 0
  %v3653 = vsel %vm3624, %v3574, 0
  %v3656 = vsel %vm3624, %v3575, 0
  %v3659 = vsel %vm3624, %v3576, 0
  %v3662 = vsel %vm3624, %v3577, 0
  %v3665 = vsel %vm3624, %v3578, 0
  %v3668 = vsel %vm3624, %v3579, 0
  %v3671 = vsel %vm3624, %v3580, 0
  %v3674 = vsel %vm3624, %v3581, 0
  %v3677 = vsel %vm3624, %v3582, 0
  %v3680 = vsel %vm3624, %v3583, 0
  %v3683 = vsel %vm3624, %v3584, 0
  %v3686 = vsel %vm3624, %v3585, 0
  %v3689 = vsel %vm3624, %v3586, 0
  %v3692 = vsel %vm3624, %v3587, 0
  %v3695 = vsel %vm3624, %v3588, 0
  %v3698 = vsel %vm3624, %v3589, 0
  %v3701 = vsel %vm3624, %v3590, 0
  %v3704 = vsel %vm3624, %v3591, 0
  %v3707 = vsel %vm3624, %v3592, 0
  %v3710 = vsel %vm3624, %v3593, 0
  %v3713 = vsel %vm3624, %v3594, 0
  %v3716 = vsel %vm3624, %v3595, 0
  %v3719 = vsel %vm3624, %v3596, 0
  %vm3721 = vcmask 1041408
  %v3723 = vsel %vm3721, %v3621, 0
  %3725 = vmatprep.subr.bf16.mxu0 0
  %3726 = vmatpush1.bf16.msra.mxu0 %v3619
  %3727 = vmatprep.subr.bf16.mxu0 0
  %3728 = vmatpush1.bf16.msra.mxu0 %v3620
  %3729 = vmatprep.subr.bf16.mxu0 0
  %3730 = vmatpush1.bf16.msra.mxu0 %v3723
  %3731 = vmatprep.subr.bf16.mxu0 0
  %3732 = vmatpush1.bf16.msra.mxu0 0
  %3733 = vmatprep.subr.bf16.mxu0 0
  %3734 = vmatpush1.bf16.msra.mxu0 0
  %3735 = vmatprep.subr.bf16.mxu0 0
  %3736 = vmatpush1.bf16.msra.mxu0 0
  %3737 = vmatprep.subr.bf16.mxu0 0
  %3738 = vmatpush1.bf16.msra.mxu0 0
  %3739 = vmatprep.subr.bf16.mxu0 0
  %3740 = vmatpush1.bf16.msra.mxu0 0
  %3741 = vmatprep.subr.bf16.mxu0 0
  %3742 = vmatpush1.bf16.msra.mxu0 0
  %3743 = vmatprep.subr.bf16.mxu0 0
  %3744 = vmatpush1.bf16.msra.mxu0 0
  %3745 = vmatprep.subr.bf16.mxu0 0
  %3746 = vmatpush1.bf16.msra.mxu0 0
  %3747 = vmatprep.subr.bf16.mxu0 0
  %3748 = vmatpush1.bf16.msra.mxu0 0
  %3749 = vmatprep.subr.bf16.mxu0 0
  %3750 = vmatpush1.bf16.msra.mxu0 0
  %3751 = vmatprep.subr.bf16.mxu0 0
  %3752 = vmatpush1.bf16.msra.mxu0 0
  %3753 = vmatprep.subr.bf16.mxu0 0
  %3754 = vmatpush1.bf16.msra.mxu0 0
  %3755 = vmatprep.subr.bf16.mxu0 0
  %3756 = vmatpush1.bf16.msra.mxu0 0
  %3757 = vmatprep.mubr.bf16.mxu0 0
  %3758 = vmatmul.mubr.bf16.gmra.mrb[0].mxu0 %v3626
  %v3759 = vpop.f32.mrb[0].mxu0
  %v3760 = vadd.f32 %v3607, %v3759
  %v3761 = vpop.f32.mrb[0].mxu0
  %v3762 = vpop.f32.mrb[0].mxu0
  %v3763 = vadd.f32 %v3607, %v3762
  %v3764 = vpop.f32.mrb[0].mxu0
  %3765 = vmatprep.mubr.bf16.mxu0 0
  %3766 = vmatmul.mubr.bf16.gmra.mrb[0].mxu0 %v3629
  %v3767 = vpop.f32.mrb[0].mxu0
  %v3768 = vadd.f32 %v3607, %v3767
  %v3769 = vpop.f32.mrb[0].mxu0
  %v3770 = vpop.f32.mrb[0].mxu0
  %v3771 = vadd.f32 %v3607, %v3770
  %v3772 = vpop.f32.mrb[0].mxu0
  %3773 = vmatprep.mubr.bf16.mxu0 0
  %3774 = vmatmul.mubr.bf16.gmra.mrb[0].mxu0 %v3632
  %v3775 = vpop.f32.mrb[0].mxu0
  %v3776 = vadd.f32 %v3607, %v3775
  %v3777 = vpop.f32.mrb[0].mxu0
  %v3778 = vpop.f32.mrb[0].mxu0
  %v3779 = vadd.f32 %v3607, %v3778
  %v3780 = vpop.f32.mrb[0].mxu0
  %3781 = vmatprep.mubr.bf16.mxu0 0
  %3782 = vmatmul.mubr.bf16.gmra.mrb[0].mxu0 %v3635
  %v3783 = vpop.f32.mrb[0].mxu0
  %v3784 = vadd.f32 %v3607, %v3783
  %v3785 = vpop.f32.mrb[0].mxu0
  %v3786 = vpop.f32.mrb[0].mxu0
  %v3787 = vadd.f32 %v3607, %v3786
  %v3788 = vpop.f32.mrb[0].mxu0
  %3789 = vmatprep.mubr.bf16.mxu0 0
  %3790 = vmatmul.mubr.bf16.gmra.mrb[0].mxu0 %v3638
  %v3791 = vpop.f32.mrb[0].mxu0
  %v3792 = vadd.f32 %v3607, %v3791
  %v3793 = vpop.f32.mrb[0].mxu0
  %v3794 = vpop.f32.mrb[0].mxu0
  %v3795 = vadd.f32 %v3607, %v3794
  %v3796 = vpop.f32.mrb[0].mxu0
  %3797 = vmatprep.mubr.bf16.mxu0 0
  %3798 = vmatmul.mubr.bf16.gmra.mrb[0].mxu0 %v3641
  %v3799 = vpop.f32.mrb[0].mxu0
  %v3800 = vadd.f32 %v3607, %v3799
  %v3801 = vpop.f32.mrb[0].mxu0
  %v3802 = vpop.f32.mrb[0].mxu0
  %v3803 = vadd.f32 %v3607, %v3802
  %v3804 = vpop.f32.mrb[0].mxu0
  %3805 = vmatprep.mubr.bf16.mxu0 0
  %3806 = vmatmul.mubr.bf16.gmra.mrb[0].mxu0 %v3644
  %v3807 = vpop.f32.mrb[0].mxu0
  %v3808 = vadd.f32 %v3607, %v3807
  %v3809 = vpop.f32.mrb[0].mxu0
  %v3810 = vpop.f32.mrb[0].mxu0
  %v3811 = vadd.f32 %v3607, %v3810
  %v3812 = vpop.f32.mrb[0].mxu0
  %3813 = vmatprep.mubr.bf16.mxu0 0
  %3814 = vmatmul.mubr.bf16.gmra.mrb[0].mxu0 %v3647
  %v3815 = vpop.f32.mrb[0].mxu0
  %v3816 = vadd.f32 %v3607, %v3815
  %v3817 = vpop.f32.mrb[0].mxu0
  %v3818 = vpop.f32.mrb[0].mxu0
  %v3819 = vadd.f32 %v3607, %v3818
  %v3820 = vpop.f32.mrb[0].mxu0
  %3821 = vmatprep.mubr.bf16.mxu0 0
  %3822 = vmatmul.mubr.bf16.gmra.mrb[0].mxu0 %v3650
  %v3823 = vpop.f32.mrb[0].mxu0
  %v3824 = vadd.f32 %v3607, %v3823
  %v3825 = vpop.f32.mrb[0].mxu0
  %v3826 = vpop.f32.mrb[0].mxu0
  %v3827 = vadd.f32 %v3607, %v3826
  %v3828 = vpop.f32.mrb[0].mxu0
  %3829 = vmatprep.mubr.bf16.mxu0 0
  %3830 = vmatmul.mubr.bf16.gmra.mrb[0].mxu0 %v3653
  %v3831 = vpop.f32.mrb[0].mxu0
  %v3832 = vadd.f32 %v3607, %v3831
  %v3833 = vpop.f32.mrb[0].mxu0
  %v3834 = vpop.f32.mrb[0].mxu0
  %v3835 = vadd.f32 %v3607, %v3834
  %v3836 = vpop.f32.mrb[0].mxu0
  %3837 = vmatprep.mubr.bf16.mxu0 0
  %3838 = vmatmul.mubr.bf16.gmra.mrb[0].mxu0 %v3656
  %v3839 = vpop.f32.mrb[0].mxu0
  %v3840 = vadd.f32 %v3607, %v3839
  %v3841 = vpop.f32.mrb[0].mxu0
  %v3842 = vpop.f32.mrb[0].mxu0
  %v3843 = vadd.f32 %v3607, %v3842
  %v3844 = vpop.f32.mrb[0].mxu0
  %3845 = vmatprep.mubr.bf16.mxu0 0
  %3846 = vmatmul.mubr.bf16.gmra.mrb[0].mxu0 %v3659
  %v3847 = vpop.f32.mrb[0].mxu0
  %v3848 = vadd.f32 %v3607, %v3847
  %v3849 = vpop.f32.mrb[0].mxu0
  %v3850 = vpop.f32.mrb[0].mxu0
  %v3851 = vadd.f32 %v3607, %v3850
  %v3852 = vpop.f32.mrb[0].mxu0
  %3853 = vmatprep.mubr.bf16.mxu0 0
  %3854 = vmatmul.mubr.bf16.gmra.mrb[0].mxu0 %v3662
  %v3855 = vpop.f32.mrb[0].mxu0
  %v3856 = vadd.f32 %v3607, %v3855
  %v3857 = vpop.f32.mrb[0].mxu0
  %v3858 = vpop.f32.mrb[0].mxu0
  %v3859 = vadd.f32 %v3607, %v3858
  %v3860 = vpop.f32.mrb[0].mxu0
  %3861 = vmatprep.mubr.bf16.mxu0 0
  %3862 = vmatmul.mubr.bf16.gmra.mrb[0].mxu0 %v3665
  %v3863 = vpop.f32.mrb[0].mxu0
  %v3864 = vadd.f32 %v3607, %v3863
  %v3865 = vpop.f32.mrb[0].mxu0
  %v3866 = vpop.f32.mrb[0].mxu0
  %v3867 = vadd.f32 %v3607, %v3866
  %v3868 = vpop.f32.mrb[0].mxu0
  %3869 = vmatprep.mubr.bf16.mxu0 0
  %3870 = vmatmul.mubr.bf16.gmra.mrb[0].mxu0 %v3668
  %v3871 = vpop.f32.mrb[0].mxu0
  %v3872 = vadd.f32 %v3607, %v3871
  %v3873 = vpop.f32.mrb[0].mxu0
  %v3874 = vpop.f32.mrb[0].mxu0
  %v3875 = vadd.f32 %v3607, %v3874
  %v3876 = vpop.f32.mrb[0].mxu0
  %3877 = vmatprep.mubr.bf16.mxu0 0
  %3878 = vmatmul.mubr.bf16.gmra.mrb[0].mxu0 %v3671
  %v3879 = vpop.f32.mrb[0].mxu0
  %v3880 = vadd.f32 %v3607, %v3879
  %v3881 = vpop.f32.mrb[0].mxu0
  %v3882 = vpop.f32.mrb[0].mxu0
  %v3883 = vadd.f32 %v3607, %v3882
  %v3884 = vpop.f32.mrb[0].mxu0
  %3885 = vmatprep.mubr.bf16.mxu0 0
  %3886 = vmatmul.mubr.bf16.gmra.mrb[0].mxu0 %v3674
  %v3887 = vpop.f32.mrb[0].mxu0
  %v3888 = vadd.f32 %v3607, %v3887
  %v3889 = vpop.f32.mrb[0].mxu0
  %v3890 = vpop.f32.mrb[0].mxu0
  %v3891 = vadd.f32 %v3607, %v3890
  %v3892 = vpop.f32.mrb[0].mxu0
  %3893 = vmatprep.mubr.bf16.mxu0 0
  %3894 = vmatmul.mubr.bf16.gmra.mrb[0].mxu0 %v3677
  %v3895 = vpop.f32.mrb[0].mxu0
  %v3896 = vadd.f32 %v3607, %v3895
  %v3897 = vpop.f32.mrb[0].mxu0
  %v3898 = vpop.f32.mrb[0].mxu0
  %v3899 = vadd.f32 %v3607, %v3898
  %v3900 = vpop.f32.mrb[0].mxu0
  %3901 = vmatprep.mubr.bf16.mxu0 0
  %3902 = vmatmul.mubr.bf16.gmra.mrb[0].mxu0 %v3680
  %v3903 = vpop.f32.mrb[0].mxu0
  %v3904 = vadd.f32 %v3607, %v3903
  %v3905 = vpop.f32.mrb[0].mxu0
  %v3906 = vpop.f32.mrb[0].mxu0
  %v3907 = vadd.f32 %v3607, %v3906
  %v3908 = vpop.f32.mrb[0].mxu0
  %3909 = vmatprep.mubr.bf16.mxu0 0
  %3910 = vmatmul.mubr.bf16.gmra.mrb[0].mxu0 %v3683
  %v3911 = vpop.f32.mrb[0].mxu0
  %v3912 = vadd.f32 %v3607, %v3911
  %v3913 = vpop.f32.mrb[0].mxu0
  %v3914 = vpop.f32.mrb[0].mxu0
  %v3915 = vadd.f32 %v3607, %v3914
  %v3916 = vpop.f32.mrb[0].mxu0
  %3917 = vmatprep.mubr.bf16.mxu0 0
  %3918 = vmatmul.mubr.bf16.gmra.mrb[0].mxu0 %v3686
  %v3919 = vpop.f32.mrb[0].mxu0
  %v3920 = vadd.f32 %v3607, %v3919
  %v3921 = vpop.f32.mrb[0].mxu0
  %v3922 = vpop.f32.mrb[0].mxu0
  %v3923 = vadd.f32 %v3607, %v3922
  %v3924 = vpop.f32.mrb[0].mxu0
  %3925 = vmatprep.mubr.bf16.mxu0 0
  %3926 = vmatmul.mubr.bf16.gmra.mrb[0].mxu0 %v3689
  %v3927 = vpop.f32.mrb[0].mxu0
  %v3928 = vadd.f32 %v3607, %v3927
  %v3929 = vpop.f32.mrb[0].mxu0
  %v3930 = vpop.f32.mrb[0].mxu0
  %v3931 = vadd.f32 %v3607, %v3930
  %v3932 = vpop.f32.mrb[0].mxu0
  %3933 = vmatprep.mubr.bf16.mxu0 0
  %3934 = vmatmul.mubr.bf16.gmra.mrb[0].mxu0 %v3692
  %v3935 = vpop.f32.mrb[0].mxu0
  %v3936 = vadd.f32 %v3607, %v3935
  %v3937 = vpop.f32.mrb[0].mxu0
  %v3938 = vpop.f32.mrb[0].mxu0
  %v3939 = vadd.f32 %v3607, %v3938
  %v3940 = vpop.f32.mrb[0].mxu0
  %3941 = vmatprep.mubr.bf16.mxu0 0
  %3942 = vmatmul.mubr.bf16.gmra.mrb[0].mxu0 %v3695
  %v3943 = vpop.f32.mrb[0].mxu0
  %v3944 = vadd.f32 %v3607, %v3943
  %v3945 = vpop.f32.mrb[0].mxu0
  %v3946 = vpop.f32.mrb[0].mxu0
  %v3947 = vadd.f32 %v3607, %v3946
  %v3948 = vpop.f32.mrb[0].mxu0
  %3949 = vmatprep.mubr.bf16.mxu0 0
  %3950 = vmatmul.mubr.bf16.gmra.mrb[0].mxu0 %v3698
  %v3951 = vpop.f32.mrb[0].mxu0
  %v3952 = vadd.f32 %v3607, %v3951
  %v3953 = vpop.f32.mrb[0].mxu0
  %v3954 = vpop.f32.mrb[0].mxu0
  %v3955 = vadd.f32 %v3607, %v3954
  %v3956 = vpop.f32.mrb[0].mxu0
  %3957 = vmatprep.mubr.bf16.mxu0 0
  %3958 = vmatmul.mubr.bf16.gmra.mrb[0].mxu0 %v3701
  %v3959 = vpop.f32.mrb[0].mxu0
  %v3960 = vadd.f32 %v3607, %v3959
  %v3961 = vpop.f32.mrb[0].mxu0
  %v3962 = vpop.f32.mrb[0].mxu0
  %v3963 = vadd.f32 %v3607, %v3962
  %v3964 = vpop.f32.mrb[0].mxu0
  %3965 = vmatprep.mubr.bf16.mxu0 0
  %3966 = vmatmul.mubr.bf16.gmra.mrb[0].mxu0 %v3704
  %v3967 = vpop.f32.mrb[0].mxu0
  %v3968 = vadd.f32 %v3607, %v3967
  %v3969 = vpop.f32.mrb[0].mxu0
  %v3970 = vpop.f32.mrb[0].mxu0
  %v3971 = vadd.f32 %v3607, %v3970
  %v3972 = vpop.f32.mrb[0].mxu0
  %3973 = vmatprep.mubr.bf16.mxu0 0
  %3974 = vmatmul.mubr.bf16.gmra.mrb[0].mxu0 %v3707
  %v3975 = vpop.f32.mrb[0].mxu0
  %v3976 = vadd.f32 %v3607, %v3975
  %v3977 = vpop.f32.mrb[0].mxu0
  %v3978 = vpop.f32.mrb[0].mxu0
  %v3979 = vadd.f32 %v3607, %v3978
  %v3980 = vpop.f32.mrb[0].mxu0
  %3981 = vmatprep.mubr.bf16.mxu0 0
  %3982 = vmatmul.mubr.bf16.gmra.mrb[0].mxu0 %v3710
  %v3983 = vpop.f32.mrb[0].mxu0
  %v3984 = vadd.f32 %v3607, %v3983
  %v3985 = vpop.f32.mrb[0].mxu0
  %v3986 = vpop.f32.mrb[0].mxu0
  %v3987 = vadd.f32 %v3607, %v3986
  %v3988 = vpop.f32.mrb[0].mxu0
  %3989 = vmatprep.mubr.bf16.mxu0 0
  %3990 = vmatmul.mubr.bf16.gmra.mrb[0].mxu0 %v3713
  %v3991 = vpop.f32.mrb[0].mxu0
  %v3992 = vadd.f32 %v3607, %v3991
  %v3993 = vpop.f32.mrb[0].mxu0
  %v3994 = vpop.f32.mrb[0].mxu0
  %v3995 = vadd.f32 %v3607, %v3994
  %v3996 = vpop.f32.mrb[0].mxu0
  %3997 = vmatprep.mubr.bf16.mxu0 0
  %3998 = vmatmul.mubr.bf16.gmra.mrb[0].mxu0 %v3716
  %v3999 = vpop.f32.mrb[0].mxu0
  %v4000 = vadd.f32 %v3607, %v3999
  %v4001 = vpop.f32.mrb[0].mxu0
  %v4002 = vpop.f32.mrb[0].mxu0
  %v4003 = vadd.f32 %v3607, %v4002
  %v4004 = vpop.f32.mrb[0].mxu0
  %4005 = vmatprep.mubr.bf16.mxu0 0
  %4006 = vmatmul.mubr.bf16.gmra.mrb[0].mxu0 %v3719
  %v4007 = vpop.f32.mrb[0].mxu0
  %v4008 = vadd.f32 %v3607, %v4007
  %v4009 = vpop.f32.mrb[0].mxu0
  %v4010 = vpop.f32.mrb[0].mxu0
  %v4011 = vadd.f32 %v3607, %v4010
  %v4012 = vpop.f32.mrb[0].mxu0
  %4013 = vdwg.mxu0
  %v4014 = vld [vmem:[%s6] sm:$0x1]
  %v4015 = vld [vmem:[%s7] sm:$0x1]
  %v4016 = vsel %vm3111, %v3760, 0.0
  %v4017 = vsel %vm3111, %v3763, 0.0
  %v4018 = vadd.f32 %v4016, %v4017
  %v4019 = vsel %vm3111, %v3768, 0.0
  %v4020 = vadd.f32 %v4018, %v4019
  %v4021 = vsel %vm3111, %v3771, 0.0
  %v4022 = vadd.f32 %v4020, %v4021
  %v4023 = vsel %vm3111, %v3776, 0.0
  %v4024 = vadd.f32 %v4022, %v4023
  %v4025 = vsel %vm3111, %v3779, 0.0
  %v4026 = vadd.f32 %v4024, %v4025
  %v4027 = vsel %vm3111, %v3784, 0.0
  %v4028 = vadd.f32 %v4026, %v4027
  %v4029 = vsel %vm3111, %v3787, 0.0
  %v4030 = vadd.f32 %v4028, %v4029
  %v4031 = vsel %vm3111, %v3792, 0.0
  %v4032 = vadd.f32 %v4030, %v4031
  %v4033 = vsel %vm3111, %v3795, 0.0
  %v4034 = vadd.f32 %v4032, %v4033
  %v4035 = vsel %vm3111, %v3800, 0.0
  %v4036 = vadd.f32 %v4034, %v4035
  %v4037 = vsel %vm3111, %v3803, 0.0
  %v4038 = vadd.f32 %v4036, %v4037
  %v4039 = vsel %vm3111, %v3808, 0.0
  %v4040 = vadd.f32 %v4038, %v4039
  %v4041 = vsel %vm3111, %v3811, 0.0
  %v4042 = vadd.f32 %v4040, %v4041
  %v4043 = vsel %vm3111, %v3816, 0.0
  %v4044 = vadd.f32 %v4042, %v4043
  %v4045 = vsel %vm3111, %v3819, 0.0
  %v4046 = vadd.f32 %v4044, %v4045
  %v4047 = vsel %vm3111, %v3824, 0.0
  %v4048 = vadd.f32 %v4046, %v4047
  %v4049 = vsel %vm3111, %v3827, 0.0
  %v4050 = vadd.f32 %v4048, %v4049
  %v4051 = vsel %vm3111, %v3832, 0.0
  %v4052 = vadd.f32 %v4050, %v4051
  %v4053 = vsel %vm3111, %v3835, 0.0
  %v4054 = vadd.f32 %v4052, %v4053
  %v4055 = vsel %vm3111, %v3840, 0.0
  %v4056 = vadd.f32 %v4054, %v4055
  %v4057 = vsel %vm3111, %v3843, 0.0
  %v4058 = vadd.f32 %v4056, %v4057
  %v4059 = vsel %vm3111, %v3848, 0.0
  %v4060 = vadd.f32 %v4058, %v4059
  %v4061 = vsel %vm3111, %v3851, 0.0
  %v4062 = vadd.f32 %v4060, %v4061
  %v4063 = vsel %vm3111, %v3856, 0.0
  %v4064 = vadd.f32 %v4062, %v4063
  %v4065 = vsel %vm3111, %v3859, 0.0
  %v4066 = vadd.f32 %v4064, %v4065
  %v4067 = vsel %vm3111, %v3864, 0.0
  %v4068 = vadd.f32 %v4066, %v4067
  %v4069 = vsel %vm3111, %v3867, 0.0
  %v4070 = vadd.f32 %v4068, %v4069
  %v4071 = vsel %vm3111, %v3872, 0.0
  %v4072 = vadd.f32 %v4070, %v4071
  %v4073 = vsel %vm3111, %v3875, 0.0
  %v4074 = vadd.f32 %v4072, %v4073
  %v4075 = vsel %vm3111, %v3880, 0.0
  %v4076 = vadd.f32 %v4074, %v4075
  %v4077 = vsel %vm3111, %v3883, 0.0
  %v4078 = vadd.f32 %v4076, %v4077
  %v4079 = vsel %vm3111, %v3888, 0.0
  %v4080 = vadd.f32 %v4078, %v4079
  %v4081 = vsel %vm3111, %v3891, 0.0
  %v4082 = vadd.f32 %v4080, %v4081
  %v4083 = vsel %vm3111, %v3896, 0.0
  %v4084 = vadd.f32 %v4082, %v4083
  %v4085 = vsel %vm3111, %v3899, 0.0
  %v4086 = vadd.f32 %v4084, %v4085
  %v4087 = vsel %vm3111, %v3904, 0.0
  %v4088 = vadd.f32 %v4086, %v4087
  %v4089 = vsel %vm3111, %v3907, 0.0
  %v4090 = vadd.f32 %v4088, %v4089
  %v4091 = vsel %vm3111, %v3912, 0.0
  %v4092 = vadd.f32 %v4090, %v4091
  %v4093 = vsel %vm3111, %v3915, 0.0
  %v4094 = vadd.f32 %v4092, %v4093
  %v4095 = vsel %vm3111, %v3920, 0.0
  %v4096 = vadd.f32 %v4094, %v4095
  %v4097 = vsel %vm3111, %v3923, 0.0
  %v4098 = vadd.f32 %v4096, %v4097
  %v4099 = vsel %vm3111, %v3928, 0.0
  %v4100 = vadd.f32 %v4098, %v4099
  %v4101 = vsel %vm3111, %v3931, 0.0
  %v4102 = vadd.f32 %v4100, %v4101
  %v4103 = vsel %vm3111, %v3936, 0.0
  %v4104 = vadd.f32 %v4102, %v4103
  %v4105 = vsel %vm3111, %v3939, 0.0
  %v4106 = vadd.f32 %v4104, %v4105
  %v4107 = vsel %vm3111, %v3944, 0.0
  %v4108 = vadd.f32 %v4106, %v4107
  %v4109 = vsel %vm3111, %v3947, 0.0
  %v4110 = vadd.f32 %v4108, %v4109
  %v4111 = vsel %vm3111, %v3952, 0.0
  %v4112 = vadd.f32 %v4110, %v4111
  %v4113 = vsel %vm3111, %v3955, 0.0
  %v4114 = vadd.f32 %v4112, %v4113
  %v4115 = vsel %vm3111, %v3960, 0.0
  %v4116 = vadd.f32 %v4114, %v4115
  %v4117 = vsel %vm3111, %v3963, 0.0
  %v4118 = vadd.f32 %v4116, %v4117
  %v4119 = vsel %vm3111, %v3968, 0.0
  %v4120 = vadd.f32 %v4118, %v4119
  %v4121 = vsel %vm3111, %v3971, 0.0
  %v4122 = vadd.f32 %v4120, %v4121
  %v4123 = vsel %vm3111, %v3976, 0.0
  %v4124 = vadd.f32 %v4122, %v4123
  %v4125 = vsel %vm3111, %v3979, 0.0
  %v4126 = vadd.f32 %v4124, %v4125
  %v4127 = vsel %vm3111, %v3984, 0.0
  %v4128 = vadd.f32 %v4126, %v4127
  %v4129 = vsel %vm3111, %v3987, 0.0
  %v4130 = vadd.f32 %v4128, %v4129
  %v4131 = vsel %vm3111, %v3992, 0.0
  %v4132 = vadd.f32 %v4130, %v4131
  %v4133 = vsel %vm3111, %v3995, 0.0
  %v4134 = vadd.f32 %v4132, %v4133
  %v4135 = vsel %vm3111, %v4000, 0.0
  %v4136 = vadd.f32 %v4134, %v4135
  %v4137 = vsel %vm3111, %v4003, 0.0
  %v4138 = vadd.f32 %v4136, %v4137
  %v4139 = vsel %vm3111, %v4008, 0.0
  %v4140 = vadd.f32 %v4138, %v4139
  %v4141 = vsel %vm3111, %v4011, 0.0
  %v4142 = vadd.f32 %v4140, %v4141
  %v4143 = vrot.slane %v4142, 4
  %v4144 = vadd.f32 %v4142, %v4143
  %v4145 = vrot.slane %v4144, 2
  %v4146 = vadd.f32 %v4144, %v4145
  %v4147 = vrot.slane %v4146, 1
  %v4148 = vadd.f32 %v4146, %v4147
  %v4149 = vmul.f32 %v3760, %v3760
  %v4150 = vmul.f32 %v3763, %v3763
  %v4151 = vmul.f32 %v3768, %v3768
  %v4152 = vmul.f32 %v3771, %v3771
  %v4153 = vmul.f32 %v3776, %v3776
  %v4154 = vmul.f32 %v3779, %v3779
  %v4155 = vmul.f32 %v3784, %v3784
  %v4156 = vmul.f32 %v3787, %v3787
  %v4157 = vmul.f32 %v3792, %v3792
  %v4158 = vmul.f32 %v3795, %v3795
  %v4159 = vmul.f32 %v3800, %v3800
  %v4160 = vmul.f32 %v3803, %v3803
  %v4161 = vmul.f32 %v3808, %v3808
  %v4162 = vmul.f32 %v3811, %v3811
  %v4163 = vmul.f32 %v3816, %v3816
  %v4164 = vmul.f32 %v3819, %v3819
  %v4165 = vmul.f32 %v3824, %v3824
  %v4166 = vmul.f32 %v3827, %v3827
  %v4167 = vmul.f32 %v3832, %v3832
  %v4168 = vmul.f32 %v3835, %v3835
  %v4169 = vmul.f32 %v3840, %v3840
  %v4170 = vmul.f32 %v3843, %v3843
  %v4171 = vmul.f32 %v3848, %v3848
  %v4172 = vmul.f32 %v3851, %v3851
  %v4173 = vmul.f32 %v3856, %v3856
  %v4174 = vmul.f32 %v3859, %v3859
  %v4175 = vmul.f32 %v3864, %v3864
  %v4176 = vmul.f32 %v3867, %v3867
  %v4177 = vmul.f32 %v3872, %v3872
  %v4178 = vmul.f32 %v3875, %v3875
  %v4179 = vmul.f32 %v3880, %v3880
  %v4180 = vmul.f32 %v3883, %v3883
  %v4181 = vmul.f32 %v3888, %v3888
  %v4182 = vmul.f32 %v3891, %v3891
  %v4183 = vmul.f32 %v3896, %v3896
  %v4184 = vmul.f32 %v3899, %v3899
  %v4185 = vmul.f32 %v3904, %v3904
  %v4186 = vmul.f32 %v3907, %v3907
  %v4187 = vmul.f32 %v3912, %v3912
  %v4188 = vmul.f32 %v3915, %v3915
  %v4189 = vmul.f32 %v3920, %v3920
  %v4190 = vmul.f32 %v3923, %v3923
  %v4191 = vmul.f32 %v3928, %v3928
  %v4192 = vmul.f32 %v3931, %v3931
  %v4193 = vmul.f32 %v3936, %v3936
  %v4194 = vmul.f32 %v3939, %v3939
  %v4195 = vmul.f32 %v3944, %v3944
  %v4196 = vmul.f32 %v3947, %v3947
  %v4197 = vmul.f32 %v3952, %v3952
  %v4198 = vmul.f32 %v3955, %v3955
  %v4199 = vmul.f32 %v3960, %v3960
  %v4200 = vmul.f32 %v3963, %v3963
  %v4201 = vmul.f32 %v3968, %v3968
  %v4202 = vmul.f32 %v3971, %v3971
  %v4203 = vmul.f32 %v3976, %v3976
  %v4204 = vmul.f32 %v3979, %v3979
  %v4205 = vmul.f32 %v3984, %v3984
  %v4206 = vmul.f32 %v3987, %v3987
  %v4207 = vmul.f32 %v3992, %v3992
  %v4208 = vmul.f32 %v3995, %v3995
  %v4209 = vmul.f32 %v4000, %v4000
  %v4210 = vmul.f32 %v4003, %v4003
  %v4211 = vmul.f32 %v4008, %v4008
  %v4212 = vmul.f32 %v4011, %v4011
  %v4213 = vsel %vm3111, %v4149, 0.0
  %v4214 = vsel %vm3111, %v4150, 0.0
  %v4215 = vadd.f32 %v4213, %v4214
  %v4216 = vsel %vm3111, %v4151, 0.0
  %v4217 = vadd.f32 %v4215, %v4216
  %v4218 = vsel %vm3111, %v4152, 0.0
  %v4219 = vadd.f32 %v4217, %v4218
  %v4220 = vsel %vm3111, %v4153, 0.0
  %v4221 = vadd.f32 %v4219, %v4220
  %v4222 = vsel %vm3111, %v4154, 0.0
  %v4223 = vadd.f32 %v4221, %v4222
  %v4224 = vsel %vm3111, %v4155, 0.0
  %v4225 = vadd.f32 %v4223, %v4224
  %v4226 = vsel %vm3111, %v4156, 0.0
  %v4227 = vadd.f32 %v4225, %v4226
  %v4228 = vsel %vm3111, %v4157, 0.0
  %v4229 = vadd.f32 %v4227, %v4228
  %v4230 = vsel %vm3111, %v4158, 0.0
  %v4231 = vadd.f32 %v4229, %v4230
  %v4232 = vsel %vm3111, %v4159, 0.0
  %v4233 = vadd.f32 %v4231, %v4232
  %v4234 = vsel %vm3111, %v4160, 0.0
  %v4235 = vadd.f32 %v4233, %v4234
  %v4236 = vsel %vm3111, %v4161, 0.0
  %v4237 = vadd.f32 %v4235, %v4236
  %v4238 = vsel %vm3111, %v4162, 0.0
  %v4239 = vadd.f32 %v4237, %v4238
  %v4240 = vsel %vm3111, %v4163, 0.0
  %v4241 = vadd.f32 %v4239, %v4240
  %v4242 = vsel %vm3111, %v4164, 0.0
  %v4243 = vadd.f32 %v4241, %v4242
  %v4244 = vsel %vm3111, %v4165, 0.0
  %v4245 = vadd.f32 %v4243, %v4244
  %v4246 = vsel %vm3111, %v4166, 0.0
  %v4247 = vadd.f32 %v4245, %v4246
  %v4248 = vsel %vm3111, %v4167, 0.0
  %v4249 = vadd.f32 %v4247, %v4248
  %v4250 = vsel %vm3111, %v4168, 0.0
  %v4251 = vadd.f32 %v4249, %v4250
  %v4252 = vsel %vm3111, %v4169, 0.0
  %v4253 = vadd.f32 %v4251, %v4252
  %v4254 = vsel %vm3111, %v4170, 0.0
  %v4255 = vadd.f32 %v4253, %v4254
  %v4256 = vsel %vm3111, %v4171, 0.0
  %v4257 = vadd.f32 %v4255, %v4256
  %v4258 = vsel %vm3111, %v4172, 0.0
  %v4259 = vadd.f32 %v4257, %v4258
  %v4260 = vsel %vm3111, %v4173, 0.0
  %v4261 = vadd.f32 %v4259, %v4260
  %v4262 = vsel %vm3111, %v4174, 0.0
  %v4263 = vadd.f32 %v4261, %v4262
  %v4264 = vsel %vm3111, %v4175, 0.0
  %v4265 = vadd.f32 %v4263, %v4264
  %v4266 = vsel %vm3111, %v4176, 0.0
  %v4267 = vadd.f32 %v4265, %v4266
  %v4268 = vsel %vm3111, %v4177, 0.0
  %v4269 = vadd.f32 %v4267, %v4268
  %v4270 = vsel %vm3111, %v4178, 0.0
  %v4271 = vadd.f32 %v4269, %v4270
  %v4272 = vsel %vm3111, %v4179, 0.0
  %v4273 = vadd.f32 %v4271, %v4272
  %v4274 = vsel %vm3111, %v4180, 0.0
  %v4275 = vadd.f32 %v4273, %v4274
  %v4276 = vsel %vm3111, %v4181, 0.0
  %v4277 = vadd.f32 %v4275, %v4276
  %v4278 = vsel %vm3111, %v4182, 0.0
  %v4279 = vadd.f32 %v4277, %v4278
  %v4280 = vsel %vm3111, %v4183, 0.0
  %v4281 = vadd.f32 %v4279, %v4280
  %v4282 = vsel %vm3111, %v4184, 0.0
  %v4283 = vadd.f32 %v4281, %v4282
  %v4284 = vsel %vm3111, %v4185, 0.0
  %v4285 = vadd.f32 %v4283, %v4284
  %v4286 = vsel %vm3111, %v4186, 0.0
  %v4287 = vadd.f32 %v4285, %v4286
  %v4288 = vsel %vm3111, %v4187, 0.0
  %v4289 = vadd.f32 %v4287, %v4288
  %v4290 = vsel %vm3111, %v4188, 0.0
  %v4291 = vadd.f32 %v4289, %v4290
  %v4292 = vsel %vm3111, %v4189, 0.0
  %v4293 = vadd.f32 %v4291, %v4292
  %v4294 = vsel %vm3111, %v4190, 0.0
  %v4295 = vadd.f32 %v4293, %v4294
  %v4296 = vsel %vm3111, %v4191, 0.0
  %v4297 = vadd.f32 %v4295, %v4296
  %v4298 = vsel %vm3111, %v4192, 0.0
  %v4299 = vadd.f32 %v4297, %v4298
  %v4300 = vsel %vm3111, %v4193, 0.0
  %v4301 = vadd.f32 %v4299, %v4300
  %v4302 = vsel %vm3111, %v4194, 0.0
  %v4303 = vadd.f32 %v4301, %v4302
  %v4304 = vsel %vm3111, %v4195, 0.0
  %v4305 = vadd.f32 %v4303, %v4304
  %v4306 = vsel %vm3111, %v4196, 0.0
  %v4307 = vadd.f32 %v4305, %v4306
  %v4308 = vsel %vm3111, %v4197, 0.0
  %v4309 = vadd.f32 %v4307, %v4308
  %v4310 = vsel %vm3111, %v4198, 0.0
  %v4311 = vadd.f32 %v4309, %v4310
  %v4312 = vsel %vm3111, %v4199, 0.0
  %v4313 = vadd.f32 %v4311, %v4312
  %v4314 = vsel %vm3111, %v4200, 0.0
  %v4315 = vadd.f32 %v4313, %v4314
  %v4316 = vsel %vm3111, %v4201, 0.0
  %v4317 = vadd.f32 %v4315, %v4316
  %v4318 = vsel %vm3111, %v4202, 0.0
  %v4319 = vadd.f32 %v4317, %v4318
  %v4320 = vsel %vm3111, %v4203, 0.0
  %v4321 = vadd.f32 %v4319, %v4320
  %v4322 = vsel %vm3111, %v4204, 0.0
  %v4323 = vadd.f32 %v4321, %v4322
  %v4324 = vsel %vm3111, %v4205, 0.0
  %v4325 = vadd.f32 %v4323, %v4324
  %v4326 = vsel %vm3111, %v4206, 0.0
  %v4327 = vadd.f32 %v4325, %v4326
  %v4328 = vsel %vm3111, %v4207, 0.0
  %v4329 = vadd.f32 %v4327, %v4328
  %v4330 = vsel %vm3111, %v4208, 0.0
  %v4331 = vadd.f32 %v4329, %v4330
  %v4332 = vsel %vm3111, %v4209, 0.0
  %v4333 = vadd.f32 %v4331, %v4332
  %v4334 = vsel %vm3111, %v4210, 0.0
  %v4335 = vadd.f32 %v4333, %v4334
  %v4336 = vsel %vm3111, %v4211, 0.0
  %v4337 = vadd.f32 %v4335, %v4336
  %v4338 = vsel %vm3111, %v4212, 0.0
  %v4339 = vadd.f32 %v4337, %v4338
  %v4340 = vrot.slane %v4339, 4
  %v4341 = vadd.f32 %v4339, %v4340
  %v4342 = vrot.slane %v4341, 2
  %v4343 = vadd.f32 %v4341, %v4342
  %v4344 = vrot.slane %v4343, 1
  %v4345 = vadd.f32 %v4343, %v4344
  %v4346 = vmul.f32 %v4148, 0.001953125
  %v4347 = vmul.f32 %v4345, 0.001953125
  %v4348 = vmul.f32 %v4346, %v4346
  %v4349 = vsub.f32 %v4347, %v4348
  %v4350 = vadd.f32 %v4349, 1e-05
  %v4351 = vrsqrt.pop %v4350
  %v4352 = vmul.f32 %v4014, %v4351
  %v4353 = vmul.f32 %v4346, %v4352
  %v4354 = vsub.f32 %v4015, %v4353
  %v4356 = vlaneseq
  %v4357 = vshrl.u32 %v4356, 7
  %v4358 = vsub.s32 0, %v4357
  %v4359 = vrot.slane %v4352, %v4358
  %v4361 = vmul.f32 %v3760, %v4359
  %v4362 = vmul.f32 %v3763, %v4359
  %v4363 = vmul.f32 %v3768, %v4359
  %v4364 = vmul.f32 %v3771, %v4359
  %v4365 = vmul.f32 %v3776, %v4359
  %v4366 = vmul.f32 %v3779, %v4359
  %v4367 = vmul.f32 %v3784, %v4359
  %v4368 = vmul.f32 %v3787, %v4359
  %v4369 = vmul.f32 %v3792, %v4359
  %v4370 = vmul.f32 %v3795, %v4359
  %v4371 = vmul.f32 %v3800, %v4359
  %v4372 = vmul.f32 %v3803, %v4359
  %v4373 = vmul.f32 %v3808, %v4359
  %v4374 = vmul.f32 %v3811, %v4359
  %v4375 = vmul.f32 %v3816, %v4359
  %v4376 = vmul.f32 %v3819, %v4359
  %v4377 = vmul.f32 %v3824, %v4359
  %v4378 = vmul.f32 %v3827, %v4359
  %v4379 = vmul.f32 %v3832, %v4359
  %v4380 = vmul.f32 %v3835, %v4359
  %v4381 = vmul.f32 %v3840, %v4359
  %v4382 = vmul.f32 %v3843, %v4359
  %v4383 = vmul.f32 %v3848, %v4359
  %v4384 = vmul.f32 %v3851, %v4359
  %v4385 = vmul.f32 %v3856, %v4359
  %v4386 = vmul.f32 %v3859, %v4359
  %v4387 = vmul.f32 %v3864, %v4359
  %v4388 = vmul.f32 %v3867, %v4359
  %v4389 = vmul.f32 %v3872, %v4359
  %v4390 = vmul.f32 %v3875, %v4359
  %v4391 = vmul.f32 %v3880, %v4359
  %v4392 = vmul.f32 %v3883, %v4359
  %v4393 = vmul.f32 %v3888, %v4359
  %v4394 = vmul.f32 %v3891, %v4359
  %v4395 = vmul.f32 %v3896, %v4359
  %v4396 = vmul.f32 %v3899, %v4359
  %v4397 = vmul.f32 %v3904, %v4359
  %v4398 = vmul.f32 %v3907, %v4359
  %v4399 = vmul.f32 %v3912, %v4359
  %v4400 = vmul.f32 %v3915, %v4359
  %v4401 = vmul.f32 %v3920, %v4359
  %v4402 = vmul.f32 %v3923, %v4359
  %v4403 = vmul.f32 %v3928, %v4359
  %v4404 = vmul.f32 %v3931, %v4359
  %v4405 = vmul.f32 %v3936, %v4359
  %v4406 = vmul.f32 %v3939, %v4359
  %v4407 = vmul.f32 %v3944, %v4359
  %v4408 = vmul.f32 %v3947, %v4359
  %v4409 = vmul.f32 %v3952, %v4359
  %v4410 = vmul.f32 %v3955, %v4359
  %v4411 = vmul.f32 %v3960, %v4359
  %v4412 = vmul.f32 %v3963, %v4359
  %v4413 = vmul.f32 %v3968, %v4359
  %v4414 = vmul.f32 %v3971, %v4359
  %v4415 = vmul.f32 %v3976, %v4359
  %v4416 = vmul.f32 %v3979, %v4359
  %v4417 = vmul.f32 %v3984, %v4359
  %v4418 = vmul.f32 %v3987, %v4359
  %v4419 = vmul.f32 %v3992, %v4359
  %v4420 = vmul.f32 %v3995, %v4359
  %v4421 = vmul.f32 %v4000, %v4359
  %v4422 = vmul.f32 %v4003, %v4359
  %v4423 = vmul.f32 %v4008, %v4359
  %v4424 = vmul.f32 %v4011, %v4359
  %v4426 = vlaneseq
  %v4427 = vshrl.u32 %v4426, 7
  %v4428 = vsub.s32 0, %v4427
  %v4429 = vrot.slane %v4354, %v4428
  %v4431 = vadd.f32 %v4361, %v4429
  %v4432 = vadd.f32 %v4362, %v4429
  %v4433 = vadd.f32 %v4363, %v4429
  %v4434 = vadd.f32 %v4364, %v4429
  %v4435 = vadd.f32 %v4365, %v4429
  %v4436 = vadd.f32 %v4366, %v4429
  %v4437 = vadd.f32 %v4367, %v4429
  %v4438 = vadd.f32 %v4368, %v4429
  %v4439 = vadd.f32 %v4369, %v4429
  %v4440 = vadd.f32 %v4370, %v4429
  %v4441 = vadd.f32 %v4371, %v4429
  %v4442 = vadd.f32 %v4372, %v4429
  %v4443 = vadd.f32 %v4373, %v4429
  %v4444 = vadd.f32 %v4374, %v4429
  %v4445 = vadd.f32 %v4375, %v4429
  %v4446 = vadd.f32 %v4376, %v4429
  %v4447 = vadd.f32 %v4377, %v4429
  %v4448 = vadd.f32 %v4378, %v4429
  %v4449 = vadd.f32 %v4379, %v4429
  %v4450 = vadd.f32 %v4380, %v4429
  %v4451 = vadd.f32 %v4381, %v4429
  %v4452 = vadd.f32 %v4382, %v4429
  %v4453 = vadd.f32 %v4383, %v4429
  %v4454 = vadd.f32 %v4384, %v4429
  %v4455 = vadd.f32 %v4385, %v4429
  %v4456 = vadd.f32 %v4386, %v4429
  %v4457 = vadd.f32 %v4387, %v4429
  %v4458 = vadd.f32 %v4388, %v4429
  %v4459 = vadd.f32 %v4389, %v4429
  %v4460 = vadd.f32 %v4390, %v4429
  %v4461 = vadd.f32 %v4391, %v4429
  %v4462 = vadd.f32 %v4392, %v4429
  %v4463 = vadd.f32 %v4393, %v4429
  %v4464 = vadd.f32 %v4394, %v4429
  %v4465 = vadd.f32 %v4395, %v4429
  %v4466 = vadd.f32 %v4396, %v4429
  %v4467 = vadd.f32 %v4397, %v4429
  %v4468 = vadd.f32 %v4398, %v4429
  %v4469 = vadd.f32 %v4399, %v4429
  %v4470 = vadd.f32 %v4400, %v4429
  %v4471 = vadd.f32 %v4401, %v4429
  %v4472 = vadd.f32 %v4402, %v4429
  %v4473 = vadd.f32 %v4403, %v4429
  %v4474 = vadd.f32 %v4404, %v4429
  %v4475 = vadd.f32 %v4405, %v4429
  %v4476 = vadd.f32 %v4406, %v4429
  %v4477 = vadd.f32 %v4407, %v4429
  %v4478 = vadd.f32 %v4408, %v4429
  %v4479 = vadd.f32 %v4409, %v4429
  %v4480 = vadd.f32 %v4410, %v4429
  %v4481 = vadd.f32 %v4411, %v4429
  %v4482 = vadd.f32 %v4412, %v4429
  %v4483 = vadd.f32 %v4413, %v4429
  %v4484 = vadd.f32 %v4414, %v4429
  %v4485 = vadd.f32 %v4415, %v4429
  %v4486 = vadd.f32 %v4416, %v4429
  %v4487 = vadd.f32 %v4417, %v4429
  %v4488 = vadd.f32 %v4418, %v4429
  %v4489 = vadd.f32 %v4419, %v4429
  %v4490 = vadd.f32 %v4420, %v4429
  %v4491 = vadd.f32 %v4421, %v4429
  %v4492 = vadd.f32 %v4422, %v4429
  %v4493 = vadd.f32 %v4423, %v4429
  %v4494 = vadd.f32 %v4424, %v4429
  %v4495 = vsub.f32 0.0, %v4431
  %v4496 = vsub.f32 0.0, %v4432
  %v4497 = vsub.f32 0.0, %v4433
  %v4498 = vsub.f32 0.0, %v4434
  %v4499 = vsub.f32 0.0, %v4435
  %v4500 = vsub.f32 0.0, %v4436
  %v4501 = vsub.f32 0.0, %v4437
  %v4502 = vsub.f32 0.0, %v4438
  %v4503 = vsub.f32 0.0, %v4439
  %v4504 = vsub.f32 0.0, %v4440
  %v4505 = vsub.f32 0.0, %v4441
  %v4506 = vsub.f32 0.0, %v4442
  %v4507 = vsub.f32 0.0, %v4443
  %v4508 = vsub.f32 0.0, %v4444
  %v4509 = vsub.f32 0.0, %v4445
  %v4510 = vsub.f32 0.0, %v4446
  %v4511 = vsub.f32 0.0, %v4447
  %v4512 = vsub.f32 0.0, %v4448
  %v4513 = vsub.f32 0.0, %v4449
  %v4514 = vsub.f32 0.0, %v4450
  %v4515 = vsub.f32 0.0, %v4451
  %v4516 = vsub.f32 0.0, %v4452
  %v4517 = vsub.f32 0.0, %v4453
  %v4518 = vsub.f32 0.0, %v4454
  %v4519 = vsub.f32 0.0, %v4455
  %v4520 = vsub.f32 0.0, %v4456
  %v4521 = vsub.f32 0.0, %v4457
  %v4522 = vsub.f32 0.0, %v4458
  %v4523 = vsub.f32 0.0, %v4459
  %v4524 = vsub.f32 0.0, %v4460
  %v4525 = vsub.f32 0.0, %v4461
  %v4526 = vsub.f32 0.0, %v4462
  %v4527 = vsub.f32 0.0, %v4463
  %v4528 = vsub.f32 0.0, %v4464
  %v4529 = vsub.f32 0.0, %v4465
  %v4530 = vsub.f32 0.0, %v4466
  %v4531 = vsub.f32 0.0, %v4467
  %v4532 = vsub.f32 0.0, %v4468
  %v4533 = vsub.f32 0.0, %v4469
  %v4534 = vsub.f32 0.0, %v4470
  %v4535 = vsub.f32 0.0, %v4471
  %v4536 = vsub.f32 0.0, %v4472
  %v4537 = vsub.f32 0.0, %v4473
  %v4538 = vsub.f32 0.0, %v4474
  %v4539 = vsub.f32 0.0, %v4475
  %v4540 = vsub.f32 0.0, %v4476
  %v4541 = vsub.f32 0.0, %v4477
  %v4542 = vsub.f32 0.0, %v4478
  %v4543 = vsub.f32 0.0, %v4479
  %v4544 = vsub.f32 0.0, %v4480
  %v4545 = vsub.f32 0.0, %v4481
  %v4546 = vsub.f32 0.0, %v4482
  %v4547 = vsub.f32 0.0, %v4483
  %v4548 = vsub.f32 0.0, %v4484
  %v4549 = vsub.f32 0.0, %v4485
  %v4550 = vsub.f32 0.0, %v4486
  %v4551 = vsub.f32 0.0, %v4487
  %v4552 = vsub.f32 0.0, %v4488
  %v4553 = vsub.f32 0.0, %v4489
  %v4554 = vsub.f32 0.0, %v4490
  %v4555 = vsub.f32 0.0, %v4491
  %v4556 = vsub.f32 0.0, %v4492
  %v4557 = vsub.f32 0.0, %v4493
  %v4558 = vsub.f32 0.0, %v4494
  %v4559 = vmul.f32 %v4495, 1.442695
  %v4560 = vpow.pop %v4559
  %v4561 = vmul.f32 %v4496, 1.442695
  %v4562 = vpow.pop %v4561
  %v4563 = vmul.f32 %v4497, 1.442695
  %v4564 = vpow.pop %v4563
  %v4565 = vmul.f32 %v4498, 1.442695
  %v4566 = vpow.pop %v4565
  %v4567 = vmul.f32 %v4499, 1.442695
  %v4568 = vpow.pop %v4567
  %v4569 = vmul.f32 %v4500, 1.442695
  %v4570 = vpow.pop %v4569
  %v4571 = vmul.f32 %v4501, 1.442695
  %v4572 = vpow.pop %v4571
  %v4573 = vmul.f32 %v4502, 1.442695
  %v4574 = vpow.pop %v4573
  %v4575 = vmul.f32 %v4503, 1.442695
  %v4576 = vpow.pop %v4575
  %v4577 = vmul.f32 %v4504, 1.442695
  %v4578 = vpow.pop %v4577
  %v4579 = vmul.f32 %v4505, 1.442695
  %v4580 = vpow.pop %v4579
  %v4581 = vmul.f32 %v4506, 1.442695
  %v4582 = vpow.pop %v4581
  %v4583 = vmul.f32 %v4507, 1.442695
  %v4584 = vpow.pop %v4583
  %v4585 = vmul.f32 %v4508, 1.442695
  %v4586 = vpow.pop %v4585
  %v4587 = vmul.f32 %v4509, 1.442695
  %v4588 = vpow.pop %v4587
  %v4589 = vmul.f32 %v4510, 1.442695
  %v4590 = vpow.pop %v4589
  %v4591 = vmul.f32 %v4511, 1.442695
  %v4592 = vpow.pop %v4591
  %v4593 = vmul.f32 %v4512, 1.442695
  %v4594 = vpow.pop %v4593
  %v4595 = vmul.f32 %v4513, 1.442695
  %v4596 = vpow.pop %v4595
  %v4597 = vmul.f32 %v4514, 1.442695
  %v4598 = vpow.pop %v4597
  %v4599 = vmul.f32 %v4515, 1.442695
  %v4600 = vpow.pop %v4599
  %v4601 = vmul.f32 %v4516, 1.442695
  %v4602 = vpow.pop %v4601
  %v4603 = vmul.f32 %v4517, 1.442695
  %v4604 = vpow.pop %v4603
  %v4605 = vmul.f32 %v4518, 1.442695
  %v4606 = vpow.pop %v4605
  %v4607 = vmul.f32 %v4519, 1.442695
  %v4608 = vpow.pop %v4607
  %v4609 = vmul.f32 %v4520, 1.442695
  %v4610 = vpow.pop %v4609
  %v4611 = vmul.f32 %v4521, 1.442695
  %v4612 = vpow.pop %v4611
  %v4613 = vmul.f32 %v4522, 1.442695
  %v4614 = vpow.pop %v4613
  %v4615 = vmul.f32 %v4523, 1.442695
  %v4616 = vpow.pop %v4615
  %v4617 = vmul.f32 %v4524, 1.442695
  %v4618 = vpow.pop %v4617
  %v4619 = vmul.f32 %v4525, 1.442695
  %v4620 = vpow.pop %v4619
  %v4621 = vmul.f32 %v4526, 1.442695
  %v4622 = vpow.pop %v4621
  %v4623 = vmul.f32 %v4527, 1.442695
  %v4624 = vpow.pop %v4623
  %v4625 = vmul.f32 %v4528, 1.442695
  %v4626 = vpow.pop %v4625
  %v4627 = vmul.f32 %v4529, 1.442695
  %v4628 = vpow.pop %v4627
  %v4629 = vmul.f32 %v4530, 1.442695
  %v4630 = vpow.pop %v4629
  %v4631 = vmul.f32 %v4531, 1.442695
  %v4632 = vpow.pop %v4631
  %v4633 = vmul.f32 %v4532, 1.442695
  %v4634 = vpow.pop %v4633
  %v4635 = vmul.f32 %v4533, 1.442695
  %v4636 = vpow.pop %v4635
  %v4637 = vmul.f32 %v4534, 1.442695
  %v4638 = vpow.pop %v4637
  %v4639 = vmul.f32 %v4535, 1.442695
  %v4640 = vpow.pop %v4639
  %v4641 = vmul.f32 %v4536, 1.442695
  %v4642 = vpow.pop %v4641
  %v4643 = vmul.f32 %v4537, 1.442695
  %v4644 = vpow.pop %v4643
  %v4645 = vmul.f32 %v4538, 1.442695
  %v4646 = vpow.pop %v4645
  %v4647 = vmul.f32 %v4539, 1.442695
  %v4648 = vpow.pop %v4647
  %v4649 = vmul.f32 %v4540, 1.442695
  %v4650 = vpow.pop %v4649
  %v4651 = vmul.f32 %v4541, 1.442695
  %v4652 = vpow.pop %v4651
  %v4653 = vmul.f32 %v4542, 1.442695
  %v4654 = vpow.pop %v4653
  %v4655 = vmul.f32 %v4543, 1.442695
  %v4656 = vpow.pop %v4655
  %v4657 = vmul.f32 %v4544, 1.442695
  %v4658 = vpow.pop %v4657
  %v4659 = vmul.f32 %v4545, 1.442695
  %v4660 = vpow.pop %v4659
  %v4661 = vmul.f32 %v4546, 1.442695
  %v4662 = vpow.pop %v4661
  %v4663 = vmul.f32 %v4547, 1.442695
  %v4664 = vpow.pop %v4663
  %v4665 = vmul.f32 %v4548, 1.442695
  %v4666 = vpow.pop %v4665
  %v4667 = vmul.f32 %v4549, 1.442695
  %v4668 = vpow.pop %v4667
  %v4669 = vmul.f32 %v4550, 1.442695
  %v4670 = vpow.pop %v4669
  %v4671 = vmul.f32 %v4551, 1.442695
  %v4672 = vpow.pop %v4671
  %v4673 = vmul.f32 %v4552, 1.442695
  %v4674 = vpow.pop %v4673
  %v4675 = vmul.f32 %v4553, 1.442695
  %v4676 = vpow.pop %v4675
  %v4677 = vmul.f32 %v4554, 1.442695
  %v4678 = vpow.pop %v4677
  %v4679 = vmul.f32 %v4555, 1.442695
  %v4680 = vpow.pop %v4679
  %v4681 = vmul.f32 %v4556, 1.442695
  %v4682 = vpow.pop %v4681
  %v4683 = vmul.f32 %v4557, 1.442695
  %v4684 = vpow.pop %v4683
  %v4685 = vmul.f32 %v4558, 1.442695
  %v4686 = vpow.pop %v4685
  %v4687 = vadd.f32 %v4560, 1.0
  %v4688 = vadd.f32 %v4562, 1.0
  %v4689 = vadd.f32 %v4564, 1.0
  %v4690 = vadd.f32 %v4566, 1.0
  %v4691 = vadd.f32 %v4568, 1.0
  %v4692 = vadd.f32 %v4570, 1.0
  %v4693 = vadd.f32 %v4572, 1.0
  %v4694 = vadd.f32 %v4574, 1.0
  %v4695 = vadd.f32 %v4576, 1.0
  %v4696 = vadd.f32 %v4578, 1.0
  %v4697 = vadd.f32 %v4580, 1.0
  %v4698 = vadd.f32 %v4582, 1.0
  %v4699 = vadd.f32 %v4584, 1.0
  %v4700 = vadd.f32 %v4586, 1.0
  %v4701 = vadd.f32 %v4588, 1.0
  %v4702 = vadd.f32 %v4590, 1.0
  %v4703 = vadd.f32 %v4592, 1.0
  %v4704 = vadd.f32 %v4594, 1.0
  %v4705 = vadd.f32 %v4596, 1.0
  %v4706 = vadd.f32 %v4598, 1.0
  %v4707 = vadd.f32 %v4600, 1.0
  %v4708 = vadd.f32 %v4602, 1.0
  %v4709 = vadd.f32 %v4604, 1.0
  %v4710 = vadd.f32 %v4606, 1.0
  %v4711 = vadd.f32 %v4608, 1.0
  %v4712 = vadd.f32 %v4610, 1.0
  %v4713 = vadd.f32 %v4612, 1.0
  %v4714 = vadd.f32 %v4614, 1.0
  %v4715 = vadd.f32 %v4616, 1.0
  %v4716 = vadd.f32 %v4618, 1.0
  %v4717 = vadd.f32 %v4620, 1.0
  %v4718 = vadd.f32 %v4622, 1.0
  %v4719 = vadd.f32 %v4624, 1.0
  %v4720 = vadd.f32 %v4626, 1.0
  %v4721 = vadd.f32 %v4628, 1.0
  %v4722 = vadd.f32 %v4630, 1.0
  %v4723 = vadd.f32 %v4632, 1.0
  %v4724 = vadd.f32 %v4634, 1.0
  %v4725 = vadd.f32 %v4636, 1.0
  %v4726 = vadd.f32 %v4638, 1.0
  %v4727 = vadd.f32 %v4640, 1.0
  %v4728 = vadd.f32 %v4642, 1.0
  %v4729 = vadd.f32 %v4644, 1.0
  %v4730 = vadd.f32 %v4646, 1.0
  %v4731 = vadd.f32 %v4648, 1.0
  %v4732 = vadd.f32 %v4650, 1.0
  %v4733 = vadd.f32 %v4652, 1.0
  %v4734 = vadd.f32 %v4654, 1.0
  %v4735 = vadd.f32 %v4656, 1.0
  %v4736 = vadd.f32 %v4658, 1.0
  %v4737 = vadd.f32 %v4660, 1.0
  %v4738 = vadd.f32 %v4662, 1.0
  %v4739 = vadd.f32 %v4664, 1.0
  %v4740 = vadd.f32 %v4666, 1.0
  %v4741 = vadd.f32 %v4668, 1.0
  %v4742 = vadd.f32 %v4670, 1.0
  %v4743 = vadd.f32 %v4672, 1.0
  %v4744 = vadd.f32 %v4674, 1.0
  %v4745 = vadd.f32 %v4676, 1.0
  %v4746 = vadd.f32 %v4678, 1.0
  %v4747 = vadd.f32 %v4680, 1.0
  %v4748 = vadd.f32 %v4682, 1.0
  %v4749 = vadd.f32 %v4684, 1.0
  %v4750 = vadd.f32 %v4686, 1.0
  %v4751 = vrcp.pop %v4687
  %v4752 = vrcp.pop %v4688
  %v4753 = vrcp.pop %v4689
  %v4754 = vrcp.pop %v4690
  %v4755 = vrcp.pop %v4691
  %v4756 = vrcp.pop %v4692
  %v4757 = vrcp.pop %v4693
  %v4758 = vrcp.pop %v4694
  %v4759 = vrcp.pop %v4695
  %v4760 = vrcp.pop %v4696
  %v4761 = vrcp.pop %v4697
  %v4762 = vrcp.pop %v4698
  %v4763 = vrcp.pop %v4699
  %v4764 = vrcp.pop %v4700
  %v4765 = vrcp.pop %v4701
  %v4766 = vrcp.pop %v4702
  %v4767 = vrcp.pop %v4703
  %v4768 = vrcp.pop %v4704
  %v4769 = vrcp.pop %v4705
  %v4770 = vrcp.pop %v4706
  %v4771 = vrcp.pop %v4707
  %v4772 = vrcp.pop %v4708
  %v4773 = vrcp.pop %v4709
  %v4774 = vrcp.pop %v4710
  %v4775 = vrcp.pop %v4711
  %v4776 = vrcp.pop %v4712
  %v4777 = vrcp.pop %v4713
  %v4778 = vrcp.pop %v4714
  %v4779 = vrcp.pop %v4715
  %v4780 = vrcp.pop %v4716
  %v4781 = vrcp.pop %v4717
  %v4782 = vrcp.pop %v4718
  %v4783 = vrcp.pop %v4719
  %v4784 = vrcp.pop %v4720
  %v4785 = vrcp.pop %v4721
  %v4786 = vrcp.pop %v4722
  %v4787 = vrcp.pop %v4723
  %v4788 = vrcp.pop %v4724
  %v4789 = vrcp.pop %v4725
  %v4790 = vrcp.pop %v4726
  %v4791 = vrcp.pop %v4727
  %v4792 = vrcp.pop %v4728
  %v4793 = vrcp.pop %v4729
  %v4794 = vrcp.pop %v4730
  %v4795 = vrcp.pop %v4731
  %v4796 = vrcp.pop %v4732
  %v4797 = vrcp.pop %v4733
  %v4798 = vrcp.pop %v4734
  %v4799 = vrcp.pop %v4735
  %v4800 = vrcp.pop %v4736
  %v4801 = vrcp.pop %v4737
  %v4802 = vrcp.pop %v4738
  %v4803 = vrcp.pop %v4739
  %v4804 = vrcp.pop %v4740
  %v4805 = vrcp.pop %v4741
  %v4806 = vrcp.pop %v4742
  %v4807 = vrcp.pop %v4743
  %v4808 = vrcp.pop %v4744
  %v4809 = vrcp.pop %v4745
  %v4810 = vrcp.pop %v4746
  %v4811 = vrcp.pop %v4747
  %v4812 = vrcp.pop %v4748
  %v4813 = vrcp.pop %v4749
  %v4814 = vrcp.pop %v4750
  %v4815 = vmul.f32 %v4431, %v4751
  %v4816 = vmul.f32 %v4432, %v4752
  %v4817 = vmul.f32 %v4433, %v4753
  %v4818 = vmul.f32 %v4434, %v4754
  %v4819 = vmul.f32 %v4435, %v4755
  %v4820 = vmul.f32 %v4436, %v4756
  %v4821 = vmul.f32 %v4437, %v4757
  %v4822 = vmul.f32 %v4438, %v4758
  %v4823 = vmul.f32 %v4439, %v4759
  %v4824 = vmul.f32 %v4440, %v4760
  %v4825 = vmul.f32 %v4441, %v4761
  %v4826 = vmul.f32 %v4442, %v4762
  %v4827 = vmul.f32 %v4443, %v4763
  %v4828 = vmul.f32 %v4444, %v4764
  %v4829 = vmul.f32 %v4445, %v4765
  %v4830 = vmul.f32 %v4446, %v4766
  %v4831 = vmul.f32 %v4447, %v4767
  %v4832 = vmul.f32 %v4448, %v4768
  %v4833 = vmul.f32 %v4449, %v4769
  %v4834 = vmul.f32 %v4450, %v4770
  %v4835 = vmul.f32 %v4451, %v4771
  %v4836 = vmul.f32 %v4452, %v4772
  %v4837 = vmul.f32 %v4453, %v4773
  %v4838 = vmul.f32 %v4454, %v4774
  %v4839 = vmul.f32 %v4455, %v4775
  %v4840 = vmul.f32 %v4456, %v4776
  %v4841 = vmul.f32 %v4457, %v4777
  %v4842 = vmul.f32 %v4458, %v4778
  %v4843 = vmul.f32 %v4459, %v4779
  %v4844 = vmul.f32 %v4460, %v4780
  %v4845 = vmul.f32 %v4461, %v4781
  %v4846 = vmul.f32 %v4462, %v4782
  %v4847 = vmul.f32 %v4463, %v4783
  %v4848 = vmul.f32 %v4464, %v4784
  %v4849 = vmul.f32 %v4465, %v4785
  %v4850 = vmul.f32 %v4466, %v4786
  %v4851 = vmul.f32 %v4467, %v4787
  %v4852 = vmul.f32 %v4468, %v4788
  %v4853 = vmul.f32 %v4469, %v4789
  %v4854 = vmul.f32 %v4470, %v4790
  %v4855 = vmul.f32 %v4471, %v4791
  %v4856 = vmul.f32 %v4472, %v4792
  %v4857 = vmul.f32 %v4473, %v4793
  %v4858 = vmul.f32 %v4474, %v4794
  %v4859 = vmul.f32 %v4475, %v4795
  %v4860 = vmul.f32 %v4476, %v4796
  %v4861 = vmul.f32 %v4477, %v4797
  %v4862 = vmul.f32 %v4478, %v4798
  %v4863 = vmul.f32 %v4479, %v4799
  %v4864 = vmul.f32 %v4480, %v4800
  %v4865 = vmul.f32 %v4481, %v4801
  %v4866 = vmul.f32 %v4482, %v4802
  %v4867 = vmul.f32 %v4483, %v4803
  %v4868 = vmul.f32 %v4484, %v4804
  %v4869 = vmul.f32 %v4485, %v4805
  %v4870 = vmul.f32 %v4486, %v4806
  %v4871 = vmul.f32 %v4487, %v4807
  %v4872 = vmul.f32 %v4488, %v4808
  %v4873 = vmul.f32 %v4489, %v4809
  %v4874 = vmul.f32 %v4490, %v4810
  %v4875 = vmul.f32 %v4491, %v4811
  %v4876 = vmul.f32 %v4492, %v4812
  %v4877 = vmul.f32 %v4493, %v4813
  %v4878 = vmul.f32 %v4494, %v4814
  %4879 = vst.msk [vmem:[#allocation3] sm:$0xff] %vm3111, 0.0
  %4880 = vst.msk [vmem:[#allocation3 + $0x8] sm:$0xff] %vm3111, 0.0
  %vm4881 = vcmask 58368
  %4882 = vst.msk [vmem:[#allocation3 + $0x10] sm:$0x3] %vm4881, 0.0
  %4883 = vst.msk [vmem:[#allocation3 + $0x1b0] sm:$0xff] %vm3111, 0.0
  %4884 = vst.msk [vmem:[#allocation3 + $0x1b8] sm:$0xff] %vm3111, 0.0
  %4885 = vst.msk [vmem:[#allocation3 + $0x1c0] sm:$0x3] %vm4881, 0.0
  %s4886 = scalar_lea.vmem [#allocation3], 408
  %4887 = vst.msk [vmem:[%s4886] sm:$0xff] %vm3111, 0.0
  %4888 = vst.msk [vmem:[%s4886 + $0x8] sm:$0xff] %vm3111, 0.0
  %4889 = vst.msk [vmem:[%s4886 + $0x10] sm:$0x3] %vm4881, 0.0
  %4890 = vst.msk [vmem:[%s4886 + $0x1b0] sm:$0xff] %vm3111, 0.0
  %4891 = vst.msk [vmem:[%s4886 + $0x1b8] sm:$0xff] %vm3111, 0.0
  %4892 = vst.msk [vmem:[%s4886 + $0x1c0] sm:$0x3] %vm4881, 0.0
  %s4893 = scalar_lea.vmem [#allocation3], 24
  %vm4894 = vcmask 57344
  %4895 = vst.msk [vmem:[%s4893] sm:$0x1] %vm4894, 0.0
  %4896 = vst.msk [vmem:[%s4893 + $0x18] sm:$0x1] %vm4894, 0.0
  %4897 = vst.msk [vmem:[%s4893 + $0x30] sm:$0x1] %vm4894, 0.0
  %4898 = vst.msk [vmem:[%s4893 + $0x48] sm:$0x1] %vm4894, 0.0
  %4899 = vst.msk [vmem:[%s4893 + $0x60] sm:$0x1] %vm4894, 0.0
  %4900 = vst.msk [vmem:[%s4893 + $0x78] sm:$0x1] %vm4894, 0.0
  %4901 = vst.msk [vmem:[%s4893 + $0x90] sm:$0x1] %vm4894, 0.0
  %4902 = vst.msk [vmem:[%s4893 + $0xa8] sm:$0x1] %vm4894, 0.0
  %4903 = vst.msk [vmem:[%s4893 + $0xc0] sm:$0x1] %vm4894, 0.0
  %4904 = vst.msk [vmem:[%s4893 + $0xd8] sm:$0x1] %vm4894, 0.0
  %4905 = vst.msk [vmem:[%s4893 + $0xf0] sm:$0x1] %vm4894, 0.0
  %4906 = vst.msk [vmem:[%s4893 + $0x108] sm:$0x1] %vm4894, 0.0
  %4907 = vst.msk [vmem:[%s4893 + $0x120] sm:$0x1] %vm4894, 0.0
  %4908 = vst.msk [vmem:[%s4893 + $0x138] sm:$0x1] %vm4894, 0.0
  %4909 = vst.msk [vmem:[%s4893 + $0x150] sm:$0x1] %vm4894, 0.0
  %4910 = vst.msk [vmem:[%s4893 + $0x168] sm:$0x1] %vm4894, 0.0
  %4911 = vst.msk [vmem:[%s4893 + $0x1b0] sm:$0x1] %vm4894, 0.0
  %4912 = vst.msk [vmem:[%s4893 + $0x1c8] sm:$0x1] %vm4894, 0.0
  %4913 = vst.msk [vmem:[%s4893 + $0x1e0] sm:$0x1] %vm4894, 0.0
  %4914 = vst.msk [vmem:[%s4893 + $0x1f8] sm:$0x1] %vm4894, 0.0
  %4915 = vst.msk [vmem:[%s4893 + $0x210] sm:$0x1] %vm4894, 0.0
  %4916 = vst.msk [vmem:[%s4893 + $0x228] sm:$0x1] %vm4894, 0.0
  %4917 = vst.msk [vmem:[%s4893 + $0x240] sm:$0x1] %vm4894, 0.0
  %4918 = vst.msk [vmem:[%s4893 + $0x258] sm:$0x1] %vm4894, 0.0
  %4919 = vst.msk [vmem:[%s4893 + $0x270] sm:$0x1] %vm4894, 0.0
  %4920 = vst.msk [vmem:[%s4893 + $0x288] sm:$0x1] %vm4894, 0.0
  %4921 = vst.msk [vmem:[%s4893 + $0x2a0] sm:$0x1] %vm4894, 0.0
  %4922 = vst.msk [vmem:[%s4893 + $0x2b8] sm:$0x1] %vm4894, 0.0
  %4923 = vst.msk [vmem:[%s4893 + $0x2d0] sm:$0x1] %vm4894, 0.0
  %4924 = vst.msk [vmem:[%s4893 + $0x2e8] sm:$0x1] %vm4894, 0.0
  %4925 = vst.msk [vmem:[%s4893 + $0x300] sm:$0x1] %vm4894, 0.0
  %4926 = vst.msk [vmem:[%s4893 + $0x318] sm:$0x1] %vm4894, 0.0
  %4927 = vst.msk [vmem:[%s4893 + $0x11] sm:$0x1] %vm4894, 0.0
  %4928 = vst.msk [vmem:[%s4893 + $0x29] sm:$0x1] %vm4894, 0.0
  %4929 = vst.msk [vmem:[%s4893 + $0x41] sm:$0x1] %vm4894, 0.0
  %4930 = vst.msk [vmem:[%s4893 + $0x59] sm:$0x1] %vm4894, 0.0
  %4931 = vst.msk [vmem:[%s4893 + $0x71] sm:$0x1] %vm4894, 0.0
  %4932 = vst.msk [vmem:[%s4893 + $0x89] sm:$0x1] %vm4894, 0.0
  %4933 = vst.msk [vmem:[%s4893 + $0xa1] sm:$0x1] %vm4894, 0.0
  %4934 = vst.msk [vmem:[%s4893 + $0xb9] sm:$0x1] %vm4894, 0.0
  %4935 = vst.msk [vmem:[%s4893 + $0xd1] sm:$0x1] %vm4894, 0.0
  %4936 = vst.msk [vmem:[%s4893 + $0xe9] sm:$0x1] %vm4894, 0.0
  %4937 = vst.msk [vmem:[%s4893 + $0x101] sm:$0x1] %vm4894, 0.0
  %4938 = vst.msk [vmem:[%s4893 + $0x119] sm:$0x1] %vm4894, 0.0
  %4939 = vst.msk [vmem:[%s4893 + $0x131] sm:$0x1] %vm4894, 0.0
  %4940 = vst.msk [vmem:[%s4893 + $0x149] sm:$0x1] %vm4894, 0.0
  %4941 = vst.msk [vmem:[%s4893 + $0x161] sm:$0x1] %vm4894, 0.0
  %4942 = vst.msk [vmem:[%s4893 + $0x179] sm:$0x1] %vm4894, 0.0
  %4943 = vst.msk [vmem:[%s4893 + $0x1c1] sm:$0x1] %vm4894, 0.0
  %4944 = vst.msk [vmem:[%s4893 + $0x1d9] sm:$0x1] %vm4894, 0.0
  %4945 = vst.msk [vmem:[%s4893 + $0x1f1] sm:$0x1] %vm4894, 0.0
  %4946 = vst.msk [vmem:[%s4893 + $0x209] sm:$0x1] %vm4894, 0.0
  %4947 = vst.msk [vmem:[%s4893 + $0x221] sm:$0x1] %vm4894, 0.0
  %4948 = vst.msk [vmem:[%s4893 + $0x239] sm:$0x1] %vm4894, 0.0
  %4949 = vst.msk [vmem:[%s4893 + $0x251] sm:$0x1] %vm4894, 0.0
  %4950 = vst.msk [vmem:[%s4893 + $0x269] sm:$0x1] %vm4894, 0.0
  %4951 = vst.msk [vmem:[%s4893 + $0x281] sm:$0x1] %vm4894, 0.0
  %4952 = vst.msk [vmem:[%s4893 + $0x299] sm:$0x1] %vm4894, 0.0
  %4953 = vst.msk [vmem:[%s4893 + $0x2b1] sm:$0x1] %vm4894, 0.0
  %4954 = vst.msk [vmem:[%s4893 + $0x2c9] sm:$0x1] %vm4894, 0.0
  %4955 = vst.msk [vmem:[%s4893 + $0x2e1] sm:$0x1] %vm4894, 0.0
  %4956 = vst.msk [vmem:[%s4893 + $0x2f9] sm:$0x1] %vm4894, 0.0
  %4957 = vst.msk [vmem:[%s4893 + $0x311] sm:$0x1] %vm4894, 0.0
  %4958 = vst.msk [vmem:[%s4893 + $0x329] sm:$0x1] %vm4894, 0.0
  %4959 = vst.msk [vmem:[%s4893 + $0x1] sm:$0xff] %vm3111, %v4815
  %4960 = vst.msk [vmem:[%s4893 + $0x9] sm:$0xff] %vm3111, %v4816
  %4961 = vst.msk [vmem:[%s4893 + $0x19] sm:$0xff] %vm3111, %v4817
  %4962 = vst.msk [vmem:[%s4893 + $0x21] sm:$0xff] %vm3111, %v4818
  %4963 = vst.msk [vmem:[%s4893 + $0x31] sm:$0xff] %vm3111, %v4819
  %4964 = vst.msk [vmem:[%s4893 + $0x39] sm:$0xff] %vm3111, %v4820
  %4965 = vst.msk [vmem:[%s4893 + $0x49] sm:$0xff] %vm3111, %v4821
  %4966 = vst.msk [vmem:[%s4893 + $0x51] sm:$0xff] %vm3111, %v4822
  %4967 = vst.msk [vmem:[%s4893 + $0x61] sm:$0xff] %vm3111, %v4823
  %4968 = vst.msk [vmem:[%s4893 + $0x69] sm:$0xff] %vm3111, %v4824
  %4969 = vst.msk [vmem:[%s4893 + $0x79] sm:$0xff] %vm3111, %v4825
  %4970 = vst.msk [vmem:[%s4893 + $0x81] sm:$0xff] %vm3111, %v4826
  %4971 = vst.msk [vmem:[%s4893 + $0x91] sm:$0xff] %vm3111, %v4827
  %4972 = vst.msk [vmem:[%s4893 + $0x99] sm:$0xff] %vm3111, %v4828
  %4973 = vst.msk [vmem:[%s4893 + $0xa9] sm:$0xff] %vm3111, %v4829
  %4974 = vst.msk [vmem:[%s4893 + $0xb1] sm:$0xff] %vm3111, %v4830
  %4975 = vst.msk [vmem:[%s4893 + $0xc1] sm:$0xff] %vm3111, %v4831
  %4976 = vst.msk [vmem:[%s4893 + $0xc9] sm:$0xff] %vm3111, %v4832
  %4977 = vst.msk [vmem:[%s4893 + $0xd9] sm:$0xff] %vm3111, %v4833
  %4978 = vst.msk [vmem:[%s4893 + $0xe1] sm:$0xff] %vm3111, %v4834
  %4979 = vst.msk [vmem:[%s4893 + $0xf1] sm:$0xff] %vm3111, %v4835
  %4980 = vst.msk [vmem:[%s4893 + $0xf9] sm:$0xff] %vm3111, %v4836
  %4981 = vst.msk [vmem:[%s4893 + $0x109] sm:$0xff] %vm3111, %v4837
  %4982 = vst.msk [vmem:[%s4893 + $0x111] sm:$0xff] %vm3111, %v4838
  %4983 = vst.msk [vmem:[%s4893 + $0x121] sm:$0xff] %vm3111, %v4839
  %4984 = vst.msk [vmem:[%s4893 + $0x129] sm:$0xff] %vm3111, %v4840
  %4985 = vst.msk [vmem:[%s4893 + $0x139] sm:$0xff] %vm3111, %v4841
  %4986 = vst.msk [vmem:[%s4893 + $0x141] sm:$0xff] %vm3111, %v4842
  %4987 = vst.msk [vmem:[%s4893 + $0x151] sm:$0xff] %vm3111, %v4843
  %4988 = vst.msk [vmem:[%s4893 + $0x159] sm:$0xff] %vm3111, %v4844
  %4989 = vst.msk [vmem:[%s4893 + $0x169] sm:$0xff] %vm3111, %v4845
  %4990 = vst.msk [vmem:[%s4893 + $0x171] sm:$0xff] %vm3111, %v4846
  %4991 = vst.msk [vmem:[%s4893 + $0x1b1] sm:$0xff] %vm3111, %v4847
  %4992 = vst.msk [vmem:[%s4893 + $0x1b9] sm:$0xff] %vm3111, %v4848
  %4993 = vst.msk [vmem:[%s4893 + $0x1c9] sm:$0xff] %vm3111, %v4849
  %4994 = vst.msk [vmem:[%s4893 + $0x1d1] sm:$0xff] %vm3111, %v4850
  %4995 = vst.msk [vmem:[%s4893 + $0x1e1] sm:$0xff] %vm3111, %v4851
  %4996 = vst.msk [vmem:[%s4893 + $0x1e9] sm:$0xff] %vm3111, %v4852
  %4997 = vst.msk [vmem:[%s4893 + $0x1f9] sm:$0xff] %vm3111, %v4853
  %4998 = vst.msk [vmem:[%s4893 + $0x201] sm:$0xff] %vm3111, %v4854
  %4999 = vst.msk [vmem:[%s4893 + $0x211] sm:$0xff] %vm3111, %v4855
  %5000 = vst.msk [vmem:[%s4893 + $0x219] sm:$0xff] %vm3111, %v4856
  %5001 = vst.msk [vmem:[%s4893 + $0x229] sm:$0xff] %vm3111, %v4857
  %5002 = vst.msk [vmem:[%s4893 + $0x231] sm:$0xff] %vm3111, %v4858
  %5003 = vst.msk [vmem:[%s4893 + $0x241] sm:$0xff] %vm3111, %v4859
  %5004 = vst.msk [vmem:[%s4893 + $0x249] sm:$0xff] %vm3111, %v4860
  %5005 = vst.msk [vmem:[%s4893 + $0x259] sm:$0xff] %vm3111, %v4861
  %5006 = vst.msk [vmem:[%s4893 + $0x261] sm:$0xff] %vm3111, %v4862
  %5007 = vst.msk [vmem:[%s4893 + $0x271] sm:$0xff] %vm3111, %v4863
  %5008 = vst.msk [vmem:[%s4893 + $0x279] sm:$0xff] %vm3111, %v4864
  %5009 = vst.msk [vmem:[%s4893 + $0x289] sm:$0xff] %vm3111, %v4865
  %5010 = vst.msk [vmem:[%s4893 + $0x291] sm:$0xff] %vm3111, %v4866
  %5011 = vst.msk [vmem:[%s4893 + $0x2a1] sm:$0xff] %vm3111, %v4867
  %5012 = vst.msk [vmem:[%s4893 + $0x2a9] sm:$0xff] %vm3111, %v4868
  %5013 = vst.msk [vmem:[%s4893 + $0x2b9] sm:$0xff] %vm3111, %v4869
  %5014 = vst.msk [vmem:[%s4893 + $0x2c1] sm:$0xff] %vm3111, %v4870
  %5015 = vst.msk [vmem:[%s4893 + $0x2d1] sm:$0xff] %vm3111, %v4871
  %5016 = vst.msk [vmem:[%s4893 + $0x2d9] sm:$0xff] %vm3111, %v4872
  %5017 = vst.msk [vmem:[%s4893 + $0x2e9] sm:$0xff] %vm3111, %v4873
  %5018 = vst.msk [vmem:[%s4893 + $0x2f1] sm:$0xff] %vm3111, %v4874
  %5019 = vst.msk [vmem:[%s4893 + $0x301] sm:$0xff] %vm3111, %v4875
  %5020 = vst.msk [vmem:[%s4893 + $0x309] sm:$0xff] %vm3111, %v4876
  %5021 = vst.msk [vmem:[%s4893 + $0x319] sm:$0xff] %vm3111, %v4877
  %5022 = vst.msk [vmem:[%s4893 + $0x321] sm:$0xff] %vm3111, %v4878
  %v5023 = vld [vmem:[#allocation3] sm:$0xff]
  %v5024 = vld [vmem:[#allocation3 + $0x8] sm:$0xff]
  %v5025 = vld [vmem:[#allocation3 + $0x18] sm:$0xff]
  %v5026 = vld [vmem:[#allocation3 + $0x20] sm:$0xff]
  %v5027 = vld [vmem:[#allocation3 + $0x30] sm:$0xff]
  %v5028 = vld [vmem:[#allocation3 + $0x38] sm:$0xff]
  %v5029 = vld [vmem:[#allocation3 + $0x48] sm:$0xff]
  %v5030 = vld [vmem:[#allocation3 + $0x50] sm:$0xff]
  %v5031 = vld [vmem:[#allocation3 + $0x60] sm:$0xff]
  %v5032 = vld [vmem:[#allocation3 + $0x68] sm:$0xff]
  %v5033 = vld [vmem:[#allocation3 + $0x78] sm:$0xff]
  %v5034 = vld [vmem:[#allocation3 + $0x80] sm:$0xff]
  %v5035 = vld [vmem:[#allocation3 + $0x90] sm:$0xff]
  %v5036 = vld [vmem:[#allocation3 + $0x98] sm:$0xff]
  %v5037 = vld [vmem:[#allocation3 + $0xa8] sm:$0xff]
  %v5038 = vld [vmem:[#allocation3 + $0xb0] sm:$0xff]
  %v5039 = vld [vmem:[#allocation3 + $0xc0] sm:$0xff]
  %v5040 = vld [vmem:[#allocation3 + $0xc8] sm:$0xff]
  %v5041 = vld [vmem:[#allocation3 + $0xd8] sm:$0xff]
  %v5042 = vld [vmem:[#allocation3 + $0xe0] sm:$0xff]
  %v5043 = vld [vmem:[#allocation3 + $0xf0] sm:$0xff]
  %v5044 = vld [vmem:[#allocation3 + $0xf8] sm:$0xff]
  %v5045 = vld [vmem:[#allocation3 + $0x108] sm:$0xff]
  %v5046 = vld [vmem:[#allocation3 + $0x110] sm:$0xff]
  %v5047 = vld [vmem:[#allocation3 + $0x120] sm:$0xff]
  %v5048 = vld [vmem:[#allocation3 + $0x128] sm:$0xff]
  %v5049 = vld [vmem:[#allocation3 + $0x138] sm:$0xff]
  %v5050 = vld [vmem:[#allocation3 + $0x140] sm:$0xff]
  %v5051 = vld [vmem:[#allocation3 + $0x150] sm:$0xff]
  %v5052 = vld [vmem:[#allocation3 + $0x158] sm:$0xff]
  %v5053 = vld [vmem:[#allocation3 + $0x168] sm:$0xff]
  %v5054 = vld [vmem:[#allocation3 + $0x170] sm:$0xff]
  %v5055 = vld [vmem:[#allocation3 + $0x1b0] sm:$0xff]
  %v5056 = vld [vmem:[#allocation3 + $0x1b8] sm:$0xff]
  %v5057 = vld [vmem:[#allocation3 + $0x1c8] sm:$0xff]
  %v5058 = vld [vmem:[#allocation3 + $0x1d0] sm:$0xff]
  %v5059 = vld [vmem:[#allocation3 + $0x1e0] sm:$0xff]
  %v5060 = vld [vmem:[#allocation3 + $0x1e8] sm:$0xff]
  %v5061 = vld [vmem:[#allocation3 + $0x1f8] sm:$0xff]
  %v5062 = vld [vmem:[#allocation3 + $0x200] sm:$0xff]
  %v5063 = vld [vmem:[#allocation3 + $0x210] sm:$0xff]
  %v5064 = vld [vmem:[#allocation3 + $0x218] sm:$0xff]
  %v5065 = vld [vmem:[#allocation3 + $0x228] sm:$0xff]
  %v5066 = vld [vmem:[#allocation3 + $0x230] sm:$0xff]
  %v5067 = vld [vmem:[#allocation3 + $0x240] sm:$0xff]
  %v5068 = vld [vmem:[#allocation3 + $0x248] sm:$0xff]
  %v5069 = vld [vmem:[#allocation3 + $0x258] sm:$0xff]
  %v5070 = vld [vmem:[#allocation3 + $0x260] sm:$0xff]
  %v5071 = vld [vmem:[#allocation3 + $0x270] sm:$0xff]
  %v5072 = vld [vmem:[#allocation3 + $0x278] sm:$0xff]
  %v5073 = vld [vmem:[#allocation3 + $0x288] sm:$0xff]
  %v5074 = vld [vmem:[#allocation3 + $0x290] sm:$0xff]
  %v5075 = vld [vmem:[#allocation3 + $0x2a0] sm:$0xff]
  %v5076 = vld [vmem:[#allocation3 + $0x2a8] sm:$0xff]
  %v5077 = vld [vmem:[#allocation3 + $0x2b8] sm:$0xff]
  %v5078 = vld [vmem:[#allocation3 + $0x2c0] sm:$0xff]
  %v5079 = vld [vmem:[#allocation3 + $0x2d0] sm:$0xff]
  %v5080 = vld [vmem:[#allocation3 + $0x2d8] sm:$0xff]
  %v5081 = vld [vmem:[#allocation3 + $0x2e8] sm:$0xff]
  %v5082 = vld [vmem:[#allocation3 + $0x2f0] sm:$0xff]
  %v5083 = vld [vmem:[#allocation3 + $0x300] sm:$0xff]
  %v5084 = vld [vmem:[#allocation3 + $0x308] sm:$0xff]
  %v5085 = vld [vmem:[#allocation3 + $0x318] sm:$0xff]
  %v5086 = vld [vmem:[#allocation3 + $0x320] sm:$0xff]
  %v5087 = vld [vmem:[#allocation3 + $0x1] sm:$0xff]
  %v5088 = vld [vmem:[#allocation3 + $0x9] sm:$0xff]
  %v5089 = vld [vmem:[#allocation3 + $0x19] sm:$0xff]
  %v5090 = vld [vmem:[#allocation3 + $0x21] sm:$0xff]
  %v5091 = vld [vmem:[#allocation3 + $0x31] sm:$0xff]
  %v5092 = vld [vmem:[#allocation3 + $0x39] sm:$0xff]
  %v5093 = vld [vmem:[#allocation3 + $0x49] sm:$0xff]
  %v5094 = vld [vmem:[#allocation3 + $0x51] sm:$0xff]
  %v5095 = vld [vmem:[#allocation3 + $0x61] sm:$0xff]
  %v5096 = vld [vmem:[#allocation3 + $0x69] sm:$0xff]
  %v5097 = vld [vmem:[#allocation3 + $0x79] sm:$0xff]
  %v5098 = vld [vmem:[#allocation3 + $0x81] sm:$0xff]
  %v5099 = vld [vmem:[#allocation3 + $0x91] sm:$0xff]
  %v5100 = vld [vmem:[#allocation3 + $0x99] sm:$0xff]
  %v5101 = vld [vmem:[#allocation3 + $0xa9] sm:$0xff]
  %v5102 = vld [vmem:[#allocation3 + $0xb1] sm:$0xff]
  %v5103 = vld [vmem:[#allocation3 + $0xc1] sm:$0xff]
  %v5104 = vld [vmem:[#allocation3 + $0xc9] sm:$0xff]
  %v5105 = vld [vmem:[#allocation3 + $0xd9] sm:$0xff]
  %v5106 = vld [vmem:[#allocation3 + $0xe1] sm:$0xff]
  %v5107 = vld [vmem:[#allocation3 + $0xf1] sm:$0xff]
  %v5108 = vld [vmem:[#allocation3 + $0xf9] sm:$0xff]
  %v5109 = vld [vmem:[#allocation3 + $0x109] sm:$0xff]
  %v5110 = vld [vmem:[#allocation3 + $0x111] sm:$0xff]
  %v5111 = vld [vmem:[#allocation3 + $0x121] sm:$0xff]
  %v5112 = vld [vmem:[#allocation3 + $0x129] sm:$0xff]
  %v5113 = vld [vmem:[#allocation3 + $0x139] sm:$0xff]
  %v5114 = vld [vmem:[#allocation3 + $0x141] sm:$0xff]
  %v5115 = vld [vmem:[#allocation3 + $0x151] sm:$0xff]
  %v5116 = vld [vmem:[#allocation3 + $0x159] sm:$0xff]
  %v5117 = vld [vmem:[#allocation3 + $0x169] sm:$0xff]
  %v5118 = vld [vmem:[#allocation3 + $0x171] sm:$0xff]
  %v5119 = vld [vmem:[#allocation3 + $0x1b1] sm:$0xff]
  %v5120 = vld [vmem:[#allocation3 + $0x1b9] sm:$0xff]
  %v5121 = vld [vmem:[#allocation3 + $0x1c9] sm:$0xff]
  %v5122 = vld [vmem:[#allocation3 + $0x1d1] sm:$0xff]
  %v5123 = vld [vmem:[#allocation3 + $0x1e1] sm:$0xff]
  %v5124 = vld [vmem:[#allocation3 + $0x1e9] sm:$0xff]
  %v5125 = vld [vmem:[#allocation3 + $0x1f9] sm:$0xff]
  %v5126 = vld [vmem:[#allocation3 + $0x201] sm:$0xff]
  %v5127 = vld [vmem:[#allocation3 + $0x211] sm:$0xff]
  %v5128 = vld [vmem:[#allocation3 + $0x219] sm:$0xff]
  %v5129 = vld [vmem:[#allocation3 + $0x229] sm:$0xff]
  %v5130 = vld [vmem:[#allocation3 + $0x231] sm:$0xff]
  %v5131 = vld [vmem:[#allocation3 + $0x241] sm:$0xff]
  %v5132 = vld [vmem:[#allocation3 + $0x249] sm:$0xff]
  %v5133 = vld [vmem:[#allocation3 + $0x259] sm:$0xff]
  %v5134 = vld [vmem:[#allocation3 + $0x261] sm:$0xff]
  %v5135 = vld [vmem:[#allocation3 + $0x271] sm:$0xff]
  %v5136 = vld [vmem:[#allocation3 + $0x279] sm:$0xff]
  %v5137 = vld [vmem:[#allocation3 + $0x289] sm:$0xff]
  %v5138 = vld [vmem:[#allocation3 + $0x291] sm:$0xff]
  %v5139 = vld [vmem:[#allocation3 + $0x2a1] sm:$0xff]
  %v5140 = vld [vmem:[#allocation3 + $0x2a9] sm:$0xff]
  %v5141 = vld [vmem:[#allocation3 + $0x2b9] sm:$0xff]
  %v5142 = vld [vmem:[#allocation3 + $0x2c1] sm:$0xff]
  %v5143 = vld [vmem:[#allocation3 + $0x2d1] sm:$0xff]
  %v5144 = vld [vmem:[#allocation3 + $0x2d9] sm:$0xff]
  %v5145 = vld [vmem:[#allocation3 + $0x2e9] sm:$0xff]
  %v5146 = vld [vmem:[#allocation3 + $0x2f1] sm:$0xff]
  %v5147 = vld [vmem:[#allocation3 + $0x301] sm:$0xff]
  %v5148 = vld [vmem:[#allocation3 + $0x309] sm:$0xff]
  %v5149 = vld [vmem:[#allocation3 + $0x319] sm:$0xff]
  %v5150 = vld [vmem:[#allocation3 + $0x321] sm:$0xff]
  %v5151 = vld [vmem:[#allocation3 + $0x2] sm:$0xff]
  %v5152 = vld [vmem:[#allocation3 + $0xa] sm:$0xff]
  %v5153 = vld [vmem:[#allocation3 + $0x1a] sm:$0xff]
  %v5154 = vld [vmem:[#allocation3 + $0x22] sm:$0xff]
  %v5155 = vld [vmem:[#allocation3 + $0x32] sm:$0xff]
  %v5156 = vld [vmem:[#allocation3 + $0x3a] sm:$0xff]
  %v5157 = vld [vmem:[#allocation3 + $0x4a] sm:$0xff]
  %v5158 = vld [vmem:[#allocation3 + $0x52] sm:$0xff]
  %v5159 = vld [vmem:[#allocation3 + $0x62] sm:$0xff]
  %v5160 = vld [vmem:[#allocation3 + $0x6a] sm:$0xff]
  %v5161 = vld [vmem:[#allocation3 + $0x7a] sm:$0xff]
  %v5162 = vld [vmem:[#allocation3 + $0x82] sm:$0xff]
  %v5163 = vld [vmem:[#allocation3 + $0x92] sm:$0xff]
  %v5164 = vld [vmem:[#allocation3 + $0x9a] sm:$0xff]
  %v5165 = vld [vmem:[#allocation3 + $0xaa] sm:$0xff]
  %v5166 = vld [vmem:[#allocation3 + $0xb2] sm:$0xff]
  %v5167 = vld [vmem:[#allocation3 + $0xc2] sm:$0xff]
  %v5168 = vld [vmem:[#allocation3 + $0xca] sm:$0xff]
  %v5169 = vld [vmem:[#allocation3 + $0xda] sm:$0xff]
  %v5170 = vld [vmem:[#allocation3 + $0xe2] sm:$0xff]
  %v5171 = vld [vmem:[#allocation3 + $0xf2] sm:$0xff]
  %v5172 = vld [vmem:[#allocation3 + $0xfa] sm:$0xff]
  %v5173 = vld [vmem:[#allocation3 + $0x10a] sm:$0xff]
  %v5174 = vld [vmem:[#allocation3 + $0x112] sm:$0xff]
  %v5175 = vld [vmem:[#allocation3 + $0x122] sm:$0xff]
  %v5176 = vld [vmem:[#allocation3 + $0x12a] sm:$0xff]
  %v5177 = vld [vmem:[#allocation3 + $0x13a] sm:$0xff]
  %v5178 = vld [vmem:[#allocation3 + $0x142] sm:$0xff]
  %v5179 = vld [vmem:[#allocation3 + $0x152] sm:$0xff]
  %v5180 = vld [vmem:[#allocation3 + $0x15a] sm:$0xff]
  %v5181 = vld [vmem:[#allocation3 + $0x16a] sm:$0xff]
  %v5182 = vld [vmem:[#allocation3 + $0x172] sm:$0xff]
  %v5183 = vld [vmem:[#allocation3 + $0x1b2] sm:$0xff]
  %v5184 = vld [vmem:[#allocation3 + $0x1ba] sm:$0xff]
  %v5185 = vld [vmem:[#allocation3 + $0x1ca] sm:$0xff]
  %v5186 = vld [vmem:[#allocation3 + $0x1d2] sm:$0xff]
  %v5187 = vld [vmem:[#allocation3 + $0x1e2] sm:$0xff]
  %v5188 = vld [vmem:[#allocation3 + $0x1ea] sm:$0xff]
  %v5189 = vld [vmem:[#allocation3 + $0x1fa] sm:$0xff]
  %v5190 = vld [vmem:[#allocation3 + $0x202] sm:$0xff]
  %v5191 = vld [vmem:[#allocation3 + $0x212] sm:$0xff]
  %v5192 = vld [vmem:[#allocation3 + $0x21a] sm:$0xff]
  %v5193 = vld [vmem:[#allocation3 + $0x22a] sm:$0xff]
  %v5194 = vld [vmem:[#allocation3 + $0x232] sm:$0xff]
  %v5195 = vld [vmem:[#allocation3 + $0x242] sm:$0xff]
  %v5196 = vld [vmem:[#allocation3 + $0x24a] sm:$0xff]
  %v5197 = vld [vmem:[#allocation3 + $0x25a] sm:$0xff]
  %v5198 = vld [vmem:[#allocation3 + $0x262] sm:$0xff]
  %v5199 = vld [vmem:[#allocation3 + $0x272] sm:$0xff]
  %v5200 = vld [vmem:[#allocation3 + $0x27a] sm:$0xff]
  %v5201 = vld [vmem:[#allocation3 + $0x28a] sm:$0xff]
  %v5202 = vld [vmem:[#allocation3 + $0x292] sm:$0xff]
  %v5203 = vld [vmem:[#allocation3 + $0x2a2] sm:$0xff]
  %v5204 = vld [vmem:[#allocation3 + $0x2aa] sm:$0xff]
  %v5205 = vld [vmem:[#allocation3 + $0x2ba] sm:$0xff]
  %v5206 = vld [vmem:[#allocation3 + $0x2c2] sm:$0xff]
  %v5207 = vld [vmem:[#allocation3 + $0x2d2] sm:$0xff]
  %v5208 = vld [vmem:[#allocation3 + $0x2da] sm:$0xff]
  %v5209 = vld [vmem:[#allocation3 + $0x2ea] sm:$0xff]
  %v5210 = vld [vmem:[#allocation3 + $0x2f2] sm:$0xff]
  %v5211 = vld [vmem:[#allocation3 + $0x302] sm:$0xff]
  %v5212 = vld [vmem:[#allocation3 + $0x30a] sm:$0xff]
  %v5213 = vld [vmem:[#allocation3 + $0x31a] sm:$0xff]
  %v5214 = vld [vmem:[#allocation3 + $0x322] sm:$0xff]
  %v5215 = vld [vmem:[%s4893] sm:$0xff]
  %v5216 = vld [vmem:[%s4893 + $0x8] sm:$0xff]
  %v5217 = vld [vmem:[%s4893 + $0x18] sm:$0xff]
  %v5218 = vld [vmem:[%s4893 + $0x20] sm:$0xff]
  %v5219 = vld [vmem:[%s4893 + $0x30] sm:$0xff]
  %v5220 = vld [vmem:[%s4893 + $0x38] sm:$0xff]
  %v5221 = vld [vmem:[%s4893 + $0x48] sm:$0xff]
  %v5222 = vld [vmem:[%s4893 + $0x50] sm:$0xff]
  %v5223 = vld [vmem:[%s4893 + $0x60] sm:$0xff]
  %v5224 = vld [vmem:[%s4893 + $0x68] sm:$0xff]
  %v5225 = vld [vmem:[%s4893 + $0x78] sm:$0xff]
  %v5226 = vld [vmem:[%s4893 + $0x80] sm:$0xff]
  %v5227 = vld [vmem:[%s4893 + $0x90] sm:$0xff]
  %v5228 = vld [vmem:[%s4893 + $0x98] sm:$0xff]
  %v5229 = vld [vmem:[%s4893 + $0xa8] sm:$0xff]
  %v5230 = vld [vmem:[%s4893 + $0xb0] sm:$0xff]
  %v5231 = vld [vmem:[%s4893 + $0xc0] sm:$0xff]
  %v5232 = vld [vmem:[%s4893 + $0xc8] sm:$0xff]
  %v5233 = vld [vmem:[%s4893 + $0xd8] sm:$0xff]
  %v5234 = vld [vmem:[%s4893 + $0xe0] sm:$0xff]
  %v5235 = vld [vmem:[%s4893 + $0xf0] sm:$0xff]
  %v5236 = vld [vmem:[%s4893 + $0xf8] sm:$0xff]
  %v5237 = vld [vmem:[%s4893 + $0x108] sm:$0xff]
  %v5238 = vld [vmem:[%s4893 + $0x110] sm:$0xff]
  %v5239 = vld [vmem:[%s4893 + $0x120] sm:$0xff]
  %v5240 = vld [vmem:[%s4893 + $0x128] sm:$0xff]
  %v5241 = vld [vmem:[%s4893 + $0x138] sm:$0xff]
  %v5242 = vld [vmem:[%s4893 + $0x140] sm:$0xff]
  %v5243 = vld [vmem:[%s4893 + $0x150] sm:$0xff]
  %v5244 = vld [vmem:[%s4893 + $0x158] sm:$0xff]
  %v5245 = vld [vmem:[%s4893 + $0x168] sm:$0xff]
  %v5246 = vld [vmem:[%s4893 + $0x170] sm:$0xff]
  %v5247 = vld [vmem:[%s4893 + $0x1b0] sm:$0xff]
  %v5248 = vld [vmem:[%s4893 + $0x1b8] sm:$0xff]
  %v5249 = vld [vmem:[%s4893 + $0x1c8] sm:$0xff]
  %v5250 = vld [vmem:[%s4893 + $0x1d0] sm:$0xff]
  %v5251 = vld [vmem:[%s4893 + $0x1e0] sm:$0xff]
  %v5252 = vld [vmem:[%s4893 + $0x1e8] sm:$0xff]
  %v5253 = vld [vmem:[%s4893 + $0x1f8] sm:$0xff]
  %v5254 = vld [vmem:[%s4893 + $0x200] sm:$0xff]
  %v5255 = vld [vmem:[%s4893 + $0x210] sm:$0xff]
  %v5256 = vld [vmem:[%s4893 + $0x218] sm:$0xff]
  %v5257 = vld [vmem:[%s4893 + $0x228] sm:$0xff]
  %v5258 = vld [vmem:[%s4893 + $0x230] sm:$0xff]
  %v5259 = vld [vmem:[%s4893 + $0x240] sm:$0xff]
  %v5260 = vld [vmem:[%s4893 + $0x248] sm:$0xff]
  %v5261 = vld [vmem:[%s4893 + $0x258] sm:$0xff]
  %v5262 = vld [vmem:[%s4893 + $0x260] sm:$0xff]
  %v5263 = vld [vmem:[%s4893 + $0x270] sm:$0xff]
  %v5264 = vld [vmem:[%s4893 + $0x278] sm:$0xff]
  %v5265 = vld [vmem:[%s4893 + $0x288] sm:$0xff]
  %v5266 = vld [vmem:[%s4893 + $0x290] sm:$0xff]
  %v5267 = vld [vmem:[%s4893 + $0x2a0] sm:$0xff]
  %v5268 = vld [vmem:[%s4893 + $0x2a8] sm:$0xff]
  %v5269 = vld [vmem:[%s4893 + $0x2b8] sm:$0xff]
  %v5270 = vld [vmem:[%s4893 + $0x2c0] sm:$0xff]
  %v5271 = vld [vmem:[%s4893 + $0x2d0] sm:$0xff]
  %v5272 = vld [vmem:[%s4893 + $0x2d8] sm:$0xff]
  %v5273 = vld [vmem:[%s4893 + $0x2e8] sm:$0xff]
  %v5274 = vld [vmem:[%s4893 + $0x2f0] sm:$0xff]
  %v5275 = vld [vmem:[%s4893 + $0x300] sm:$0xff]
  %v5276 = vld [vmem:[%s4893 + $0x308] sm:$0xff]
  %v5277 = vld [vmem:[%s4893 + $0x318] sm:$0xff]
  %v5278 = vld [vmem:[%s4893 + $0x320] sm:$0xff]
  %v5279 = vld [vmem:[%s4893 + $0x1] sm:$0xff]
  %v5280 = vld [vmem:[%s4893 + $0x9] sm:$0xff]
  %v5281 = vld [vmem:[%s4893 + $0x19] sm:$0xff]
  %v5282 = vld [vmem:[%s4893 + $0x21] sm:$0xff]
  %v5283 = vld [vmem:[%s4893 + $0x31] sm:$0xff]
  %v5284 = vld [vmem:[%s4893 + $0x39] sm:$0xff]
  %v5285 = vld [vmem:[%s4893 + $0x49] sm:$0xff]
  %v5286 = vld [vmem:[%s4893 + $0x51] sm:$0xff]
  %v5287 = vld [vmem:[%s4893 + $0x61] sm:$0xff]
  %v5288 = vld [vmem:[%s4893 + $0x69] sm:$0xff]
  %v5289 = vld [vmem:[%s4893 + $0x79] sm:$0xff]
  %v5290 = vld [vmem:[%s4893 + $0x81] sm:$0xff]
  %v5291 = vld [vmem:[%s4893 + $0x91] sm:$0xff]
  %v5292 = vld [vmem:[%s4893 + $0x99] sm:$0xff]
  %v5293 = vld [vmem:[%s4893 + $0xa9] sm:$0xff]
  %v5294 = vld [vmem:[%s4893 + $0xb1] sm:$0xff]
  %v5295 = vld [vmem:[%s4893 + $0xc1] sm:$0xff]
  %v5296 = vld [vmem:[%s4893 + $0xc9] sm:$0xff]
  %v5297 = vld [vmem:[%s4893 + $0xd9] sm:$0xff]
  %v5298 = vld [vmem:[%s4893 + $0xe1] sm:$0xff]
  %v5299 = vld [vmem:[%s4893 + $0xf1] sm:$0xff]
  %v5300 = vld [vmem:[%s4893 + $0xf9] sm:$0xff]
  %v5301 = vld [vmem:[%s4893 + $0x109] sm:$0xff]
  %v5302 = vld [vmem:[%s4893 + $0x111] sm:$0xff]
  %v5303 = vld [vmem:[%s4893 + $0x121] sm:$0xff]
  %v5304 = vld [vmem:[%s4893 + $0x129] sm:$0xff]
  %v5305 = vld [vmem:[%s4893 + $0x139] sm:$0xff]
  %v5306 = vld [vmem:[%s4893 + $0x141] sm:$0xff]
  %v5307 = vld [vmem:[%s4893 + $0x151] sm:$0xff]
  %v5308 = vld [vmem:[%s4893 + $0x159] sm:$0xff]
  %v5309 = vld [vmem:[%s4893 + $0x169] sm:$0xff]
  %v5310 = vld [vmem:[%s4893 + $0x171] sm:$0xff]
  %v5311 = vld [vmem:[%s4893 + $0x1b1] sm:$0xff]
  %v5312 = vld [vmem:[%s4893 + $0x1b9] sm:$0xff]
  %v5313 = vld [vmem:[%s4893 + $0x1c9] sm:$0xff]
  %v5314 = vld [vmem:[%s4893 + $0x1d1] sm:$0xff]
  %v5315 = vld [vmem:[%s4893 + $0x1e1] sm:$0xff]
  %v5316 = vld [vmem:[%s4893 + $0x1e9] sm:$0xff]
  %v5317 = vld [vmem:[%s4893 + $0x1f9] sm:$0xff]
  %v5318 = vld [vmem:[%s4893 + $0x201] sm:$0xff]
  %v5319 = vld [vmem:[%s4893 + $0x211] sm:$0xff]
  %v5320 = vld [vmem:[%s4893 + $0x219] sm:$0xff]
  %v5321 = vld [vmem:[%s4893 + $0x229] sm:$0xff]
  %v5322 = vld [vmem:[%s4893 + $0x231] sm:$0xff]
  %v5323 = vld [vmem:[%s4893 + $0x241] sm:$0xff]
  %v5324 = vld [vmem:[%s4893 + $0x249] sm:$0xff]
  %v5325 = vld [vmem:[%s4893 + $0x259] sm:$0xff]
  %v5326 = vld [vmem:[%s4893 + $0x261] sm:$0xff]
  %v5327 = vld [vmem:[%s4893 + $0x271] sm:$0xff]
  %v5328 = vld [vmem:[%s4893 + $0x279] sm:$0xff]
  %v5329 = vld [vmem:[%s4893 + $0x289] sm:$0xff]
  %v5330 = vld [vmem:[%s4893 + $0x291] sm:$0xff]
  %v5331 = vld [vmem:[%s4893 + $0x2a1] sm:$0xff]
  %v5332 = vld [vmem:[%s4893 + $0x2a9] sm:$0xff]
  %v5333 = vld [vmem:[%s4893 + $0x2b9] sm:$0xff]
  %v5334 = vld [vmem:[%s4893 + $0x2c1] sm:$0xff]
  %v5335 = vld [vmem:[%s4893 + $0x2d1] sm:$0xff]
  %v5336 = vld [vmem:[%s4893 + $0x2d9] sm:$0xff]
  %v5337 = vld [vmem:[%s4893 + $0x2e9] sm:$0xff]
  %v5338 = vld [vmem:[%s4893 + $0x2f1] sm:$0xff]
  %v5339 = vld [vmem:[%s4893 + $0x301] sm:$0xff]
  %v5340 = vld [vmem:[%s4893 + $0x309] sm:$0xff]
  %v5341 = vld [vmem:[%s4893 + $0x319] sm:$0xff]
  %v5342 = vld [vmem:[%s4893 + $0x321] sm:$0xff]
  %v5343 = vld [vmem:[%s4893 + $0x2] sm:$0xff]
  %v5344 = vld [vmem:[%s4893 + $0xa] sm:$0xff]
  %v5345 = vld [vmem:[%s4893 + $0x1a] sm:$0xff]
  %v5346 = vld [vmem:[%s4893 + $0x22] sm:$0xff]
  %v5347 = vld [vmem:[%s4893 + $0x32] sm:$0xff]
  %v5348 = vld [vmem:[%s4893 + $0x3a] sm:$0xff]
  %v5349 = vld [vmem:[%s4893 + $0x4a] sm:$0xff]
  %v5350 = vld [vmem:[%s4893 + $0x52] sm:$0xff]
  %v5351 = vld [vmem:[%s4893 + $0x62] sm:$0xff]
  %v5352 = vld [vmem:[%s4893 + $0x6a] sm:$0xff]
  %v5353 = vld [vmem:[%s4893 + $0x7a] sm:$0xff]
  %v5354 = vld [vmem:[%s4893 + $0x82] sm:$0xff]
  %v5355 = vld [vmem:[%s4893 + $0x92] sm:$0xff]
  %v5356 = vld [vmem:[%s4893 + $0x9a] sm:$0xff]
  %v5357 = vld [vmem:[%s4893 + $0xaa] sm:$0xff]
  %v5358 = vld [vmem:[%s4893 + $0xb2] sm:$0xff]
  %v5359 = vld [vmem:[%s4893 + $0xc2] sm:$0xff]
  %v5360 = vld [vmem:[%s4893 + $0xca] sm:$0xff]
  %v5361 = vld [vmem:[%s4893 + $0xda] sm:$0xff]
  %v5362 = vld [vmem:[%s4893 + $0xe2] sm:$0xff]
  %v5363 = vld [vmem:[%s4893 + $0xf2] sm:$0xff]
  %v5364 = vld [vmem:[%s4893 + $0xfa] sm:$0xff]
  %v5365 = vld [vmem:[%s4893 + $0x10a] sm:$0xff]
  %v5366 = vld [vmem:[%s4893 + $0x112] sm:$0xff]
  %v5367 = vld [vmem:[%s4893 + $0x122] sm:$0xff]
  %v5368 = vld [vmem:[%s4893 + $0x12a] sm:$0xff]
  %v5369 = vld [vmem:[%s4893 + $0x13a] sm:$0xff]
  %v5370 = vld [vmem:[%s4893 + $0x142] sm:$0xff]
  %v5371 = vld [vmem:[%s4893 + $0x152] sm:$0xff]
  %v5372 = vld [vmem:[%s4893 + $0x15a] sm:$0xff]
  %v5373 = vld [vmem:[%s4893 + $0x16a] sm:$0xff]
  %v5374 = vld [vmem:[%s4893 + $0x172] sm:$0xff]
  %v5375 = vld [vmem:[%s4893 + $0x1b2] sm:$0xff]
  %v5376 = vld [vmem:[%s4893 + $0x1ba] sm:$0xff]
  %v5377 = vld [vmem:[%s4893 + $0x1ca] sm:$0xff]
  %v5378 = vld [vmem:[%s4893 + $0x1d2] sm:$0xff]
  %v5379 = vld [vmem:[%s4893 + $0x1e2] sm:$0xff]
  %v5380 = vld [vmem:[%s4893 + $0x1ea] sm:$0xff]
  %v5381 = vld [vmem:[%s4893 + $0x1fa] sm:$0xff]
  %v5382 = vld [vmem:[%s4893 + $0x202] sm:$0xff]
  %v5383 = vld [vmem:[%s4893 + $0x212] sm:$0xff]
  %v5384 = vld [vmem:[%s4893 + $0x21a] sm:$0xff]
  %v5385 = vld [vmem:[%s4893 + $0x22a] sm:$0xff]
  %v5386 = vld [vmem:[%s4893 + $0x232] sm:$0xff]
  %v5387 = vld [vmem:[%s4893 + $0x242] sm:$0xff]
  %v5388 = vld [vmem:[%s4893 + $0x24a] sm:$0xff]
  %v5389 = vld [vmem:[%s4893 + $0x25a] sm:$0xff]
  %v5390 = vld [vmem:[%s4893 + $0x262] sm:$0xff]
  %v5391 = vld [vmem:[%s4893 + $0x272] sm:$0xff]
  %v5392 = vld [vmem:[%s4893 + $0x27a] sm:$0xff]
  %v5393 = vld [vmem:[%s4893 + $0x28a] sm:$0xff]
  %v5394 = vld [vmem:[%s4893 + $0x292] sm:$0xff]
  %v5395 = vld [vmem:[%s4893 + $0x2a2] sm:$0xff]
  %v5396 = vld [vmem:[%s4893 + $0x2aa] sm:$0xff]
  %v5397 = vld [vmem:[%s4893 + $0x2ba] sm:$0xff]
  %v5398 = vld [vmem:[%s4893 + $0x2c2] sm:$0xff]
  %v5399 = vld [vmem:[%s4893 + $0x2d2] sm:$0xff]
  %v5400 = vld [vmem:[%s4893 + $0x2da] sm:$0xff]
  %v5401 = vld [vmem:[%s4893 + $0x2ea] sm:$0xff]
  %v5402 = vld [vmem:[%s4893 + $0x2f2] sm:$0xff]
  %v5403 = vld [vmem:[%s4893 + $0x302] sm:$0xff]
  %v5404 = vld [vmem:[%s4893 + $0x30a] sm:$0xff]
  %v5405 = vld [vmem:[%s4893 + $0x31a] sm:$0xff]
  %v5406 = vld [vmem:[%s4893 + $0x322] sm:$0xff]
  %s5407 = scalar_lea.vmem [#allocation3], 48
  %v5408 = vld [vmem:[%s5407] sm:$0xff]
  %v5409 = vld [vmem:[%s5407 + $0x8] sm:$0xff]
  %v5410 = vld [vmem:[%s5407 + $0x18] sm:$0xff]
  %v5411 = vld [vmem:[%s5407 + $0x20] sm:$0xff]
  %v5412 = vld [vmem:[%s5407 + $0x30] sm:$0xff]
  %v5413 = vld [vmem:[%s5407 + $0x38] sm:$0xff]
  %v5414 = vld [vmem:[%s5407 + $0x48] sm:$0xff]
  %v5415 = vld [vmem:[%s5407 + $0x50] sm:$0xff]
  %v5416 = vld [vmem:[%s5407 + $0x60] sm:$0xff]
  %v5417 = vld [vmem:[%s5407 + $0x68] sm:$0xff]
  %v5418 = vld [vmem:[%s5407 + $0x78] sm:$0xff]
  %v5419 = vld [vmem:[%s5407 + $0x80] sm:$0xff]
  %v5420 = vld [vmem:[%s5407 + $0x90] sm:$0xff]
  %v5421 = vld [vmem:[%s5407 + $0x98] sm:$0xff]
  %v5422 = vld [vmem:[%s5407 + $0xa8] sm:$0xff]
  %v5423 = vld [vmem:[%s5407 + $0xb0] sm:$0xff]
  %v5424 = vld [vmem:[%s5407 + $0xc0] sm:$0xff]
  %v5425 = vld [vmem:[%s5407 + $0xc8] sm:$0xff]
  %v5426 = vld [vmem:[%s5407 + $0xd8] sm:$0xff]
  %v5427 = vld [vmem:[%s5407 + $0xe0] sm:$0xff]
  %v5428 = vld [vmem:[%s5407 + $0xf0] sm:$0xff]
  %v5429 = vld [vmem:[%s5407 + $0xf8] sm:$0xff]
  %v5430 = vld [vmem:[%s5407 + $0x108] sm:$0xff]
  %v5431 = vld [vmem:[%s5407 + $0x110] sm:$0xff]
  %v5432 = vld [vmem:[%s5407 + $0x120] sm:$0xff]
  %v5433 = vld [vmem:[%s5407 + $0x128] sm:$0xff]
  %v5434 = vld [vmem:[%s5407 + $0x138] sm:$0xff]
  %v5435 = vld [vmem:[%s5407 + $0x140] sm:$0xff]
  %v5436 = vld [vmem:[%s5407 + $0x150] sm:$0xff]
  %v5437 = vld [vmem:[%s5407 + $0x158] sm:$0xff]
  %v5438 = vld [vmem:[%s5407 + $0x168] sm:$0xff]
  %v5439 = vld [vmem:[%s5407 + $0x170] sm:$0xff]
  %v5440 = vld [vmem:[%s5407 + $0x1b0] sm:$0xff]
  %v5441 = vld [vmem:[%s5407 + $0x1b8] sm:$0xff]
  %v5442 = vld [vmem:[%s5407 + $0x1c8] sm:$0xff]
  %v5443 = vld [vmem:[%s5407 + $0x1d0] sm:$0xff]
  %v5444 = vld [vmem:[%s5407 + $0x1e0] sm:$0xff]
  %v5445 = vld [vmem:[%s5407 + $0x1e8] sm:$0xff]
  %v5446 = vld [vmem:[%s5407 + $0x1f8] sm:$0xff]
  %v5447 = vld [vmem:[%s5407 + $0x200] sm:$0xff]
  %v5448 = vld [vmem:[%s5407 + $0x210] sm:$0xff]
  %v5449 = vld [vmem:[%s5407 + $0x218] sm:$0xff]
  %v5450 = vld [vmem:[%s5407 + $0x228] sm:$0xff]
  %v5451 = vld [vmem:[%s5407 + $0x230] sm:$0xff]
  %v5452 = vld [vmem:[%s5407 + $0x240] sm:$0xff]
  %v5453 = vld [vmem:[%s5407 + $0x248] sm:$0xff]
  %v5454 = vld [vmem:[%s5407 + $0x258] sm:$0xff]
  %v5455 = vld [vmem:[%s5407 + $0x260] sm:$0xff]
  %v5456 = vld [vmem:[%s5407 + $0x270] sm:$0xff]
  %v5457 = vld [vmem:[%s5407 + $0x278] sm:$0xff]
  %v5458 = vld [vmem:[%s5407 + $0x288] sm:$0xff]
  %v5459 = vld [vmem:[%s5407 + $0x290] sm:$0xff]
  %v5460 = vld [vmem:[%s5407 + $0x2a0] sm:$0xff]
  %v5461 = vld [vmem:[%s5407 + $0x2a8] sm:$0xff]
  %v5462 = vld [vmem:[%s5407 + $0x2b8] sm:$0xff]
  %v5463 = vld [vmem:[%s5407 + $0x2c0] sm:$0xff]
  %v5464 = vld [vmem:[%s5407 + $0x2d0] sm:$0xff]
  %v5465 = vld [vmem:[%s5407 + $0x2d8] sm:$0xff]
  %v5466 = vld [vmem:[%s5407 + $0x2e8] sm:$0xff]
  %v5467 = vld [vmem:[%s5407 + $0x2f0] sm:$0xff]
  %v5468 = vld [vmem:[%s5407 + $0x300] sm:$0xff]
  %v5469 = vld [vmem:[%s5407 + $0x308] sm:$0xff]
  %v5470 = vld [vmem:[%s5407 + $0x318] sm:$0xff]
  %v5471 = vld [vmem:[%s5407 + $0x320] sm:$0xff]
  %v5472 = vld [vmem:[%s5407 + $0x1] sm:$0xff]
  %v5473 = vld [vmem:[%s5407 + $0x9] sm:$0xff]
  %v5474 = vld [vmem:[%s5407 + $0x19] sm:$0xff]
  %v5475 = vld [vmem:[%s5407 + $0x21] sm:$0xff]
  %v5476 = vld [vmem:[%s5407 + $0x31] sm:$0xff]
  %v5477 = vld [vmem:[%s5407 + $0x39] sm:$0xff]
  %v5478 = vld [vmem:[%s5407 + $0x49] sm:$0xff]
  %v5479 = vld [vmem:[%s5407 + $0x51] sm:$0xff]
  %v5480 = vld [vmem:[%s5407 + $0x61] sm:$0xff]
  %v5481 = vld [vmem:[%s5407 + $0x69] sm:$0xff]
  %v5482 = vld [vmem:[%s5407 + $0x79] sm:$0xff]
  %v5483 = vld [vmem:[%s5407 + $0x81] sm:$0xff]
  %v5484 = vld [vmem:[%s5407 + $0x91] sm:$0xff]
  %v5485 = vld [vmem:[%s5407 + $0x99] sm:$0xff]
  %v5486 = vld [vmem:[%s5407 + $0xa9] sm:$0xff]
  %v5487 = vld [vmem:[%s5407 + $0xb1] sm:$0xff]
  %v5488 = vld [vmem:[%s5407 + $0xc1] sm:$0xff]
  %v5489 = vld [vmem:[%s5407 + $0xc9] sm:$0xff]
  %v5490 = vld [vmem:[%s5407 + $0xd9] sm:$0xff]
  %v5491 = vld [vmem:[%s5407 + $0xe1] sm:$0xff]
  %v5492 = vld [vmem:[%s5407 + $0xf1] sm:$0xff]
  %v5493 = vld [vmem:[%s5407 + $0xf9] sm:$0xff]
  %v5494 = vld [vmem:[%s5407 + $0x109] sm:$0xff]
  %v5495 = vld [vmem:[%s5407 + $0x111] sm:$0xff]
  %v5496 = vld [vmem:[%s5407 + $0x121] sm:$0xff]
  %v5497 = vld [vmem:[%s5407 + $0x129] sm:$0xff]
  %v5498 = vld [vmem:[%s5407 + $0x139] sm:$0xff]
  %v5499 = vld [vmem:[%s5407 + $0x141] sm:$0xff]
  %v5500 = vld [vmem:[%s5407 + $0x151] sm:$0xff]
  %v5501 = vld [vmem:[%s5407 + $0x159] sm:$0xff]
  %v5502 = vld [vmem:[%s5407 + $0x169] sm:$0xff]
  %v5503 = vld [vmem:[%s5407 + $0x171] sm:$0xff]
  %v5504 = vld [vmem:[%s5407 + $0x1b1] sm:$0xff]
  %v5505 = vld [vmem:[%s5407 + $0x1b9] sm:$0xff]
  %v5506 = vld [vmem:[%s5407 + $0x1c9] sm:$0xff]
  %v5507 = vld [vmem:[%s5407 + $0x1d1] sm:$0xff]
  %v5508 = vld [vmem:[%s5407 + $0x1e1] sm:$0xff]
  %v5509 = vld [vmem:[%s5407 + $0x1e9] sm:$0xff]
  %v5510 = vld [vmem:[%s5407 + $0x1f9] sm:$0xff]
  %v5511 = vld [vmem:[%s5407 + $0x201] sm:$0xff]
  %v5512 = vld [vmem:[%s5407 + $0x211] sm:$0xff]
  %v5513 = vld [vmem:[%s5407 + $0x219] sm:$0xff]
  %v5514 = vld [vmem:[%s5407 + $0x229] sm:$0xff]
  %v5515 = vld [vmem:[%s5407 + $0x231] sm:$0xff]
  %v5516 = vld [vmem:[%s5407 + $0x241] sm:$0xff]
  %v5517 = vld [vmem:[%s5407 + $0x249] sm:$0xff]
  %v5518 = vld [vmem:[%s5407 + $0x259] sm:$0xff]
  %v5519 = vld [vmem:[%s5407 + $0x261] sm:$0xff]
  %v5520 = vld [vmem:[%s5407 + $0x271] sm:$0xff]
  %v5521 = vld [vmem:[%s5407 + $0x279] sm:$0xff]
  %v5522 = vld [vmem:[%s5407 + $0x289] sm:$0xff]
  %v5523 = vld [vmem:[%s5407 + $0x291] sm:$0xff]
  %v5524 = vld [vmem:[%s5407 + $0x2a1] sm:$0xff]
  %v5525 = vld [vmem:[%s5407 + $0x2a9] sm:$0xff]
  %v5526 = vld [vmem:[%s5407 + $0x2b9] sm:$0xff]
  %v5527 = vld [vmem:[%s5407 + $0x2c1] sm:$0xff]
  %v5528 = vld [vmem:[%s5407 + $0x2d1] sm:$0xff]
  %v5529 = vld [vmem:[%s5407 + $0x2d9] sm:$0xff]
  %v5530 = vld [vmem:[%s5407 + $0x2e9] sm:$0xff]
  %v5531 = vld [vmem:[%s5407 + $0x2f1] sm:$0xff]
  %v5532 = vld [vmem:[%s5407 + $0x301] sm:$0xff]
  %v5533 = vld [vmem:[%s5407 + $0x309] sm:$0xff]
  %v5534 = vld [vmem:[%s5407 + $0x319] sm:$0xff]
  %v5535 = vld [vmem:[%s5407 + $0x321] sm:$0xff]
  %v5536 = vld [vmem:[%s5407 + $0x2] sm:$0xff]
  %v5537 = vld [vmem:[%s5407 + $0xa] sm:$0xff]
  %v5538 = vld [vmem:[%s5407 + $0x1a] sm:$0xff]
  %v5539 = vld [vmem:[%s5407 + $0x22] sm:$0xff]
  %v5540 = vld [vmem:[%s5407 + $0x32] sm:$0xff]
  %v5541 = vld [vmem:[%s5407 + $0x3a] sm:$0xff]
  %v5542 = vld [vmem:[%s5407 + $0x4a] sm:$0xff]
  %v5543 = vld [vmem:[%s5407 + $0x52] sm:$0xff]
  %v5544 = vld [vmem:[%s5407 + $0x62] sm:$0xff]
  %v5545 = vld [vmem:[%s5407 + $0x6a] sm:$0xff]
  %v5546 = vld [vmem:[%s5407 + $0x7a] sm:$0xff]
  %v5547 = vld [vmem:[%s5407 + $0x82] sm:$0xff]
  %v5548 = vld [vmem:[%s5407 + $0x92] sm:$0xff]
  %v5549 = vld [vmem:[%s5407 + $0x9a] sm:$0xff]
  %v5550 = vld [vmem:[%s5407 + $0xaa] sm:$0xff]
  %v5551 = vld [vmem:[%s5407 + $0xb2] sm:$0xff]
  %v5552 = vld [vmem:[%s5407 + $0xc2] sm:$0xff]
  %v5553 = vld [vmem:[%s5407 + $0xca] sm:$0xff]
  %v5554 = vld [vmem:[%s5407 + $0xda] sm:$0xff]
  %v5555 = vld [vmem:[%s5407 + $0xe2] sm:$0xff]
  %v5556 = vld [vmem:[%s5407 + $0xf2] sm:$0xff]
  %v5557 = vld [vmem:[%s5407 + $0xfa] sm:$0xff]
  %v5558 = vld [vmem:[%s5407 + $0x10a] sm:$0xff]
  %v5559 = vld [vmem:[%s5407 + $0x112] sm:$0xff]
  %v5560 = vld [vmem:[%s5407 + $0x122] sm:$0xff]
  %v5561 = vld [vmem:[%s5407 + $0x12a] sm:$0xff]
  %v5562 = vld [vmem:[%s5407 + $0x13a] sm:$0xff]
  %v5563 = vld [vmem:[%s5407 + $0x142] sm:$0xff]
  %v5564 = vld [vmem:[%s5407 + $0x152] sm:$0xff]
  %v5565 = vld [vmem:[%s5407 + $0x15a] sm:$0xff]
  %v5566 = vld [vmem:[%s5407 + $0x16a] sm:$0xff]
  %v5567 = vld [vmem:[%s5407 + $0x172] sm:$0xff]
  %v5568 = vld [vmem:[%s5407 + $0x1b2] sm:$0xff]
  %v5569 = vld [vmem:[%s5407 + $0x1ba] sm:$0xff]
  %v5570 = vld [vmem:[%s5407 + $0x1ca] sm:$0xff]
  %v5571 = vld [vmem:[%s5407 + $0x1d2] sm:$0xff]
  %v5572 = vld [vmem:[%s5407 + $0x1e2] sm:$0xff]
  %v5573 = vld [vmem:[%s5407 + $0x1ea] sm:$0xff]
  %v5574 = vld [vmem:[%s5407 + $0x1fa] sm:$0xff]
  %v5575 = vld [vmem:[%s5407 + $0x202] sm:$0xff]
  %v5576 = vld [vmem:[%s5407 + $0x212] sm:$0xff]
  %v5577 = vld [vmem:[%s5407 + $0x21a] sm:$0xff]
  %v5578 = vld [vmem:[%s5407 + $0x22a] sm:$0xff]
  %v5579 = vld [vmem:[%s5407 + $0x232] sm:$0xff]
  %v5580 = vld [vmem:[%s5407 + $0x242] sm:$0xff]
  %v5581 = vld [vmem:[%s5407 + $0x24a] sm:$0xff]
  %v5582 = vld [vmem:[%s5407 + $0x25a] sm:$0xff]
  %v5583 = vld [vmem:[%s5407 + $0x262] sm:$0xff]
  %v5584 = vld [vmem:[%s5407 + $0x272] sm:$0xff]
  %v5585 = vld [vmem:[%s5407 + $0x27a] sm:$0xff]
  %v5586 = vld [vmem:[%s5407 + $0x28a] sm:$0xff]
  %v5587 = vld [vmem:[%s5407 + $0x292] sm:$0xff]
  %v5588 = vld [vmem:[%s5407 + $0x2a2] sm:$0xff]
  %v5589 = vld [vmem:[%s5407 + $0x2aa] sm:$0xff]
  %v5590 = vld [vmem:[%s5407 + $0x2ba] sm:$0xff]
  %v5591 = vld [vmem:[%s5407 + $0x2c2] sm:$0xff]
  %v5592 = vld [vmem:[%s5407 + $0x2d2] sm:$0xff]
  %v5593 = vld [vmem:[%s5407 + $0x2da] sm:$0xff]
  %v5594 = vld [vmem:[%s5407 + $0x2ea] sm:$0xff]
  %v5595 = vld [vmem:[%s5407 + $0x2f2] sm:$0xff]
  %v5596 = vld [vmem:[%s5407 + $0x302] sm:$0xff]
  %v5597 = vld [vmem:[%s5407 + $0x30a] sm:$0xff]
  %v5598 = vld [vmem:[%s5407 + $0x31a] sm:$0xff]
  %v5599 = vld [vmem:[%s5407 + $0x322] sm:$0xff]
  %5664 = vrot.lane.b32.xlu0 %v5087, 8
  %v5665 = vpop.permute.xlu0 %5664
  %5666 = vrot.lane.b32.xlu0 %v5088, 8
  %v5667 = vpop.permute.xlu0 %5666
  %5668 = vrot.lane.b32.xlu0 %v5089, 8
  %v5669 = vpop.permute.xlu0 %5668
  %5670 = vrot.lane.b32.xlu0 %v5090, 8
  %v5671 = vpop.permute.xlu0 %5670
  %5672 = vrot.lane.b32.xlu0 %v5091, 8
  %v5673 = vpop.permute.xlu0 %5672
  %5674 = vrot.lane.b32.xlu0 %v5092, 8
  %v5675 = vpop.permute.xlu0 %5674
  %5676 = vrot.lane.b32.xlu0 %v5093, 8
  %v5677 = vpop.permute.xlu0 %5676
  %5678 = vrot.lane.b32.xlu0 %v5094, 8
  %v5679 = vpop.permute.xlu0 %5678
  %5680 = vrot.lane.b32.xlu0 %v5095, 8
  %v5681 = vpop.permute.xlu0 %5680
  %5682 = vrot.lane.b32.xlu0 %v5096, 8
  %v5683 = vpop.permute.xlu0 %5682
  %5684 = vrot.lane.b32.xlu0 %v5097, 8
  %v5685 = vpop.permute.xlu0 %5684
  %5686 = vrot.lane.b32.xlu0 %v5098, 8
  %v5687 = vpop.permute.xlu0 %5686
  %5688 = vrot.lane.b32.xlu0 %v5099, 8
  %v5689 = vpop.permute.xlu0 %5688
  %5690 = vrot.lane.b32.xlu0 %v5100, 8
  %v5691 = vpop.permute.xlu0 %5690
  %5692 = vrot.lane.b32.xlu0 %v5101, 8
  %v5693 = vpop.permute.xlu0 %5692
  %5694 = vrot.lane.b32.xlu0 %v5102, 8
  %v5695 = vpop.permute.xlu0 %5694
  %5696 = vrot.lane.b32.xlu0 %v5103, 8
  %v5697 = vpop.permute.xlu0 %5696
  %5698 = vrot.lane.b32.xlu0 %v5104, 8
  %v5699 = vpop.permute.xlu0 %5698
  %5700 = vrot.lane.b32.xlu0 %v5105, 8
  %v5701 = vpop.permute.xlu0 %5700
  %5702 = vrot.lane.b32.xlu0 %v5106, 8
  %v5703 = vpop.permute.xlu0 %5702
  %5704 = vrot.lane.b32.xlu0 %v5107, 8
  %v5705 = vpop.permute.xlu0 %5704
  %5706 = vrot.lane.b32.xlu0 %v5108, 8
  %v5707 = vpop.permute.xlu0 %5706
  %5708 = vrot.lane.b32.xlu0 %v5109, 8
  %v5709 = vpop.permute.xlu0 %5708
  %5710 = vrot.lane.b32.xlu0 %v5110, 8
  %v5711 = vpop.permute.xlu0 %5710
  %5712 = vrot.lane.b32.xlu0 %v5111, 8
  %v5713 = vpop.permute.xlu0 %5712
  %5714 = vrot.lane.b32.xlu0 %v5112, 8
  %v5715 = vpop.permute.xlu0 %5714
  %5716 = vrot.lane.b32.xlu0 %v5113, 8
  %v5717 = vpop.permute.xlu0 %5716
  %5718 = vrot.lane.b32.xlu0 %v5114, 8
  %v5719 = vpop.permute.xlu0 %5718
  %5720 = vrot.lane.b32.xlu0 %v5115, 8
  %v5721 = vpop.permute.xlu0 %5720
  %5722 = vrot.lane.b32.xlu0 %v5116, 8
  %v5723 = vpop.permute.xlu0 %5722
  %5724 = vrot.lane.b32.xlu0 %v5117, 8
  %v5725 = vpop.permute.xlu0 %5724
  %5726 = vrot.lane.b32.xlu0 %v5118, 8
  %v5727 = vpop.permute.xlu0 %5726
  %5728 = vrot.lane.b32.xlu0 %v5119, 8
  %v5729 = vpop.permute.xlu0 %5728
  %5730 = vrot.lane.b32.xlu0 %v5120, 8
  %v5731 = vpop.permute.xlu0 %5730
  %5732 = vrot.lane.b32.xlu0 %v5121, 8
  %v5733 = vpop.permute.xlu0 %5732
  %5734 = vrot.lane.b32.xlu0 %v5122, 8
  %v5735 = vpop.permute.xlu0 %5734
  %5736 = vrot.lane.b32.xlu0 %v5123, 8
  %v5737 = vpop.permute.xlu0 %5736
  %5738 = vrot.lane.b32.xlu0 %v5124, 8
  %v5739 = vpop.permute.xlu0 %5738
  %5740 = vrot.lane.b32.xlu0 %v5125, 8
  %v5741 = vpop.permute.xlu0 %5740
  %5742 = vrot.lane.b32.xlu0 %v5126, 8
  %v5743 = vpop.permute.xlu0 %5742
  %5744 = vrot.lane.b32.xlu0 %v5127, 8
  %v5745 = vpop.permute.xlu0 %5744
  %5746 = vrot.lane.b32.xlu0 %v5128, 8
  %v5747 = vpop.permute.xlu0 %5746
  %5748 = vrot.lane.b32.xlu0 %v5129, 8
  %v5749 = vpop.permute.xlu0 %5748
  %5750 = vrot.lane.b32.xlu0 %v5130, 8
  %v5751 = vpop.permute.xlu0 %5750
  %5752 = vrot.lane.b32.xlu0 %v5131, 8
  %v5753 = vpop.permute.xlu0 %5752
  %5754 = vrot.lane.b32.xlu0 %v5132, 8
  %v5755 = vpop.permute.xlu0 %5754
  %5756 = vrot.lane.b32.xlu0 %v5133, 8
  %v5757 = vpop.permute.xlu0 %5756
  %5758 = vrot.lane.b32.xlu0 %v5134, 8
  %v5759 = vpop.permute.xlu0 %5758
  %5760 = vrot.lane.b32.xlu0 %v5135, 8
  %v5761 = vpop.permute.xlu0 %5760
  %5762 = vrot.lane.b32.xlu0 %v5136, 8
  %v5763 = vpop.permute.xlu0 %5762
  %5764 = vrot.lane.b32.xlu0 %v5137, 8
  %v5765 = vpop.permute.xlu0 %5764
  %5766 = vrot.lane.b32.xlu0 %v5138, 8
  %v5767 = vpop.permute.xlu0 %5766
  %5768 = vrot.lane.b32.xlu0 %v5139, 8
  %v5769 = vpop.permute.xlu0 %5768
  %5770 = vrot.lane.b32.xlu0 %v5140, 8
  %v5771 = vpop.permute.xlu0 %5770
  %5772 = vrot.lane.b32.xlu0 %v5141, 8
  %v5773 = vpop.permute.xlu0 %5772
  %5774 = vrot.lane.b32.xlu0 %v5142, 8
  %v5775 = vpop.permute.xlu0 %5774
  %5776 = vrot.lane.b32.xlu0 %v5143, 8
  %v5777 = vpop.permute.xlu0 %5776
  %5778 = vrot.lane.b32.xlu0 %v5144, 8
  %v5779 = vpop.permute.xlu0 %5778
  %5780 = vrot.lane.b32.xlu0 %v5145, 8
  %v5781 = vpop.permute.xlu0 %5780
  %5782 = vrot.lane.b32.xlu0 %v5146, 8
  %v5783 = vpop.permute.xlu0 %5782
  %5784 = vrot.lane.b32.xlu0 %v5147, 8
  %v5785 = vpop.permute.xlu0 %5784
  %5786 = vrot.lane.b32.xlu0 %v5148, 8
  %v5787 = vpop.permute.xlu0 %5786
  %5788 = vrot.lane.b32.xlu0 %v5149, 8
  %v5789 = vpop.permute.xlu0 %5788
  %5790 = vrot.lane.b32.xlu0 %v5150, 8
  %v5791 = vpop.permute.xlu0 %5790
  %5920 = vrot.lane.b32.xlu0 %v5151, 16
  %v5921 = vpop.permute.xlu0 %5920
  %5922 = vrot.lane.b32.xlu0 %v5152, 16
  %v5923 = vpop.permute.xlu0 %5922
  %5924 = vrot.lane.b32.xlu0 %v5153, 16
  %v5925 = vpop.permute.xlu0 %5924
  %5926 = vrot.lane.b32.xlu0 %v5154, 16
  %v5927 = vpop.permute.xlu0 %5926
  %5928 = vrot.lane.b32.xlu0 %v5155, 16
  %v5929 = vpop.permute.xlu0 %5928
  %5930 = vrot.lane.b32.xlu0 %v5156, 16
  %v5931 = vpop.permute.xlu0 %5930
  %5932 = vrot.lane.b32.xlu0 %v5157, 16
  %v5933 = vpop.permute.xlu0 %5932
  %5934 = vrot.lane.b32.xlu0 %v5158, 16
  %v5935 = vpop.permute.xlu0 %5934
  %5936 = vrot.lane.b32.xlu0 %v5159, 16
  %v5937 = vpop.permute.xlu0 %5936
  %5938 = vrot.lane.b32.xlu0 %v5160, 16
  %v5939 = vpop.permute.xlu0 %5938
  %5940 = vrot.lane.b32.xlu0 %v5161, 16
  %v5941 = vpop.permute.xlu0 %5940
  %5942 = vrot.lane.b32.xlu0 %v5162, 16
  %v5943 = vpop.permute.xlu0 %5942
  %5944 = vrot.lane.b32.xlu0 %v5163, 16
  %v5945 = vpop.permute.xlu0 %5944
  %5946 = vrot.lane.b32.xlu0 %v5164, 16
  %v5947 = vpop.permute.xlu0 %5946
  %5948 = vrot.lane.b32.xlu0 %v5165, 16
  %v5949 = vpop.permute.xlu0 %5948
  %5950 = vrot.lane.b32.xlu0 %v5166, 16
  %v5951 = vpop.permute.xlu0 %5950
  %5952 = vrot.lane.b32.xlu0 %v5167, 16
  %v5953 = vpop.permute.xlu0 %5952
  %5954 = vrot.lane.b32.xlu0 %v5168, 16
  %v5955 = vpop.permute.xlu0 %5954
  %5956 = vrot.lane.b32.xlu0 %v5169, 16
  %v5957 = vpop.permute.xlu0 %5956
  %5958 = vrot.lane.b32.xlu0 %v5170, 16
  %v5959 = vpop.permute.xlu0 %5958
  %5960 = vrot.lane.b32.xlu0 %v5171, 16
  %v5961 = vpop.permute.xlu0 %5960
  %5962 = vrot.lane.b32.xlu0 %v5172, 16
  %v5963 = vpop.permute.xlu0 %5962
  %5964 = vrot.lane.b32.xlu0 %v5173, 16
  %v5965 = vpop.permute.xlu0 %5964
  %5966 = vrot.lane.b32.xlu0 %v5174, 16
  %v5967 = vpop.permute.xlu0 %5966
  %5968 = vrot.lane.b32.xlu0 %v5175, 16
  %v5969 = vpop.permute.xlu0 %5968
  %5970 = vrot.lane.b32.xlu0 %v5176, 16
  %v5971 = vpop.permute.xlu0 %5970
  %5972 = vrot.lane.b32.xlu0 %v5177, 16
  %v5973 = vpop.permute.xlu0 %5972
  %5974 = vrot.lane.b32.xlu0 %v5178, 16
  %v5975 = vpop.permute.xlu0 %5974
  %5976 = vrot.lane.b32.xlu0 %v5179, 16
  %v5977 = vpop.permute.xlu0 %5976
  %5978 = vrot.lane.b32.xlu0 %v5180, 16
  %v5979 = vpop.permute.xlu0 %5978
  %5980 = vrot.lane.b32.xlu0 %v5181, 16
  %v5981 = vpop.permute.xlu0 %5980
  %5982 = vrot.lane.b32.xlu0 %v5182, 16
  %v5983 = vpop.permute.xlu0 %5982
  %5984 = vrot.lane.b32.xlu0 %v5183, 16
  %v5985 = vpop.permute.xlu0 %5984
  %5986 = vrot.lane.b32.xlu0 %v5184, 16
  %v5987 = vpop.permute.xlu0 %5986
  %5988 = vrot.lane.b32.xlu0 %v5185, 16
  %v5989 = vpop.permute.xlu0 %5988
  %5990 = vrot.lane.b32.xlu0 %v5186, 16
  %v5991 = vpop.permute.xlu0 %5990
  %5992 = vrot.lane.b32.xlu0 %v5187, 16
  %v5993 = vpop.permute.xlu0 %5992
  %5994 = vrot.lane.b32.xlu0 %v5188, 16
  %v5995 = vpop.permute.xlu0 %5994
  %5996 = vrot.lane.b32.xlu0 %v5189, 16
  %v5997 = vpop.permute.xlu0 %5996
  %5998 = vrot.lane.b32.xlu0 %v5190, 16
  %v5999 = vpop.permute.xlu0 %5998
  %6000 = vrot.lane.b32.xlu0 %v5191, 16
  %v6001 = vpop.permute.xlu0 %6000
  %6002 = vrot.lane.b32.xlu0 %v5192, 16
  %v6003 = vpop.permute.xlu0 %6002
  %6004 = vrot.lane.b32.xlu0 %v5193, 16
  %v6005 = vpop.permute.xlu0 %6004
  %6006 = vrot.lane.b32.xlu0 %v5194, 16
  %v6007 = vpop.permute.xlu0 %6006
  %6008 = vrot.lane.b32.xlu0 %v5195, 16
  %v6009 = vpop.permute.xlu0 %6008
  %6010 = vrot.lane.b32.xlu0 %v5196, 16
  %v6011 = vpop.permute.xlu0 %6010
  %6012 = vrot.lane.b32.xlu0 %v5197, 16
  %v6013 = vpop.permute.xlu0 %6012
  %6014 = vrot.lane.b32.xlu0 %v5198, 16
  %v6015 = vpop.permute.xlu0 %6014
  %6016 = vrot.lane.b32.xlu0 %v5199, 16
  %v6017 = vpop.permute.xlu0 %6016
  %6018 = vrot.lane.b32.xlu0 %v5200, 16
  %v6019 = vpop.permute.xlu0 %6018
  %6020 = vrot.lane.b32.xlu0 %v5201, 16
  %v6021 = vpop.permute.xlu0 %6020
  %6022 = vrot.lane.b32.xlu0 %v5202, 16
  %v6023 = vpop.permute.xlu0 %6022
  %6024 = vrot.lane.b32.xlu0 %v5203, 16
  %v6025 = vpop.permute.xlu0 %6024
  %6026 = vrot.lane.b32.xlu0 %v5204, 16
  %v6027 = vpop.permute.xlu0 %6026
  %6028 = vrot.lane.b32.xlu0 %v5205, 16
  %v6029 = vpop.permute.xlu0 %6028
  %6030 = vrot.lane.b32.xlu0 %v5206, 16
  %v6031 = vpop.permute.xlu0 %6030
  %6032 = vrot.lane.b32.xlu0 %v5207, 16
  %v6033 = vpop.permute.xlu0 %6032
  %6034 = vrot.lane.b32.xlu0 %v5208, 16
  %v6035 = vpop.permute.xlu0 %6034
  %6036 = vrot.lane.b32.xlu0 %v5209, 16
  %v6037 = vpop.permute.xlu0 %6036
  %6038 = vrot.lane.b32.xlu0 %v5210, 16
  %v6039 = vpop.permute.xlu0 %6038
  %6040 = vrot.lane.b32.xlu0 %v5211, 16
  %v6041 = vpop.permute.xlu0 %6040
  %6042 = vrot.lane.b32.xlu0 %v5212, 16
  %v6043 = vpop.permute.xlu0 %6042
  %6044 = vrot.lane.b32.xlu0 %v5213, 16
  %v6045 = vpop.permute.xlu0 %6044
  %6046 = vrot.lane.b32.xlu0 %v5214, 16
  %v6047 = vpop.permute.xlu0 %6046
  %6176 = vrot.lane.b32.xlu0 %v5215, 24
  %v6177 = vpop.permute.xlu0 %6176
  %6178 = vrot.lane.b32.xlu0 %v5216, 24
  %v6179 = vpop.permute.xlu0 %6178
  %6180 = vrot.lane.b32.xlu0 %v5217, 24
  %v6181 = vpop.permute.xlu0 %6180
  %6182 = vrot.lane.b32.xlu0 %v5218, 24
  %v6183 = vpop.permute.xlu0 %6182
  %6184 = vrot.lane.b32.xlu0 %v5219, 24
  %v6185 = vpop.permute.xlu0 %6184
  %6186 = vrot.lane.b32.xlu0 %v5220, 24
  %v6187 = vpop.permute.xlu0 %6186
  %6188 = vrot.lane.b32.xlu0 %v5221, 24
  %v6189 = vpop.permute.xlu0 %6188
  %6190 = vrot.lane.b32.xlu0 %v5222, 24
  %v6191 = vpop.permute.xlu0 %6190
  %6192 = vrot.lane.b32.xlu0 %v5223, 24
  %v6193 = vpop.permute.xlu0 %6192
  %6194 = vrot.lane.b32.xlu0 %v5224, 24
  %v6195 = vpop.permute.xlu0 %6194
  %6196 = vrot.lane.b32.xlu0 %v5225, 24
  %v6197 = vpop.permute.xlu0 %6196
  %6198 = vrot.lane.b32.xlu0 %v5226, 24
  %v6199 = vpop.permute.xlu0 %6198
  %6200 = vrot.lane.b32.xlu0 %v5227, 24
  %v6201 = vpop.permute.xlu0 %6200
  %6202 = vrot.lane.b32.xlu0 %v5228, 24
  %v6203 = vpop.permute.xlu0 %6202
  %6204 = vrot.lane.b32.xlu0 %v5229, 24
  %v6205 = vpop.permute.xlu0 %6204
  %6206 = vrot.lane.b32.xlu0 %v5230, 24
  %v6207 = vpop.permute.xlu0 %6206
  %6208 = vrot.lane.b32.xlu0 %v5231, 24
  %v6209 = vpop.permute.xlu0 %6208
  %6210 = vrot.lane.b32.xlu0 %v5232, 24
  %v6211 = vpop.permute.xlu0 %6210
  %6212 = vrot.lane.b32.xlu0 %v5233, 24
  %v6213 = vpop.permute.xlu0 %6212
  %6214 = vrot.lane.b32.xlu0 %v5234, 24
  %v6215 = vpop.permute.xlu0 %6214
  %6216 = vrot.lane.b32.xlu0 %v5235, 24
  %v6217 = vpop.permute.xlu0 %6216
  %6218 = vrot.lane.b32.xlu0 %v5236, 24
  %v6219 = vpop.permute.xlu0 %6218
  %6220 = vrot.lane.b32.xlu0 %v5237, 24
  %v6221 = vpop.permute.xlu0 %6220
  %6222 = vrot.lane.b32.xlu0 %v5238, 24
  %v6223 = vpop.permute.xlu0 %6222
  %6224 = vrot.lane.b32.xlu0 %v5239, 24
  %v6225 = vpop.permute.xlu0 %6224
  %6226 = vrot.lane.b32.xlu0 %v5240, 24
  %v6227 = vpop.permute.xlu0 %6226
  %6228 = vrot.lane.b32.xlu0 %v5241, 24
  %v6229 = vpop.permute.xlu0 %6228
  %6230 = vrot.lane.b32.xlu0 %v5242, 24
  %v6231 = vpop.permute.xlu0 %6230
  %6232 = vrot.lane.b32.xlu0 %v5243, 24
  %v6233 = vpop.permute.xlu0 %6232
  %6234 = vrot.lane.b32.xlu0 %v5244, 24
  %v6235 = vpop.permute.xlu0 %6234
  %6236 = vrot.lane.b32.xlu0 %v5245, 24
  %v6237 = vpop.permute.xlu0 %6236
  %6238 = vrot.lane.b32.xlu0 %v5246, 24
  %v6239 = vpop.permute.xlu0 %6238
  %6240 = vrot.lane.b32.xlu0 %v5247, 24
  %v6241 = vpop.permute.xlu0 %6240
  %6242 = vrot.lane.b32.xlu0 %v5248, 24
  %v6243 = vpop.permute.xlu0 %6242
  %6244 = vrot.lane.b32.xlu0 %v5249, 24
  %v6245 = vpop.permute.xlu0 %6244
  %6246 = vrot.lane.b32.xlu0 %v5250, 24
  %v6247 = vpop.permute.xlu0 %6246
  %6248 = vrot.lane.b32.xlu0 %v5251, 24
  %v6249 = vpop.permute.xlu0 %6248
  %6250 = vrot.lane.b32.xlu0 %v5252, 24
  %v6251 = vpop.permute.xlu0 %6250
  %6252 = vrot.lane.b32.xlu0 %v5253, 24
  %v6253 = vpop.permute.xlu0 %6252
  %6254 = vrot.lane.b32.xlu0 %v5254, 24
  %v6255 = vpop.permute.xlu0 %6254
  %6256 = vrot.lane.b32.xlu0 %v5255, 24
  %v6257 = vpop.permute.xlu0 %6256
  %6258 = vrot.lane.b32.xlu0 %v5256, 24
  %v6259 = vpop.permute.xlu0 %6258
  %6260 = vrot.lane.b32.xlu0 %v5257, 24
  %v6261 = vpop.permute.xlu0 %6260
  %6262 = vrot.lane.b32.xlu0 %v5258, 24
  %v6263 = vpop.permute.xlu0 %6262
  %6264 = vrot.lane.b32.xlu0 %v5259, 24
  %v6265 = vpop.permute.xlu0 %6264
  %6266 = vrot.lane.b32.xlu0 %v5260, 24
  %v6267 = vpop.permute.xlu0 %6266
  %6268 = vrot.lane.b32.xlu0 %v5261, 24
  %v6269 = vpop.permute.xlu0 %6268
  %6270 = vrot.lane.b32.xlu0 %v5262, 24
  %v6271 = vpop.permute.xlu0 %6270
  %6272 = vrot.lane.b32.xlu0 %v5263, 24
  %v6273 = vpop.permute.xlu0 %6272
  %6274 = vrot.lane.b32.xlu0 %v5264, 24
  %v6275 = vpop.permute.xlu0 %6274
  %6276 = vrot.lane.b32.xlu0 %v5265, 24
  %v6277 = vpop.permute.xlu0 %6276
  %6278 = vrot.lane.b32.xlu0 %v5266, 24
  %v6279 = vpop.permute.xlu0 %6278
  %6280 = vrot.lane.b32.xlu0 %v5267, 24
  %v6281 = vpop.permute.xlu0 %6280
  %6282 = vrot.lane.b32.xlu0 %v5268, 24
  %v6283 = vpop.permute.xlu0 %6282
  %6284 = vrot.lane.b32.xlu0 %v5269, 24
  %v6285 = vpop.permute.xlu0 %6284
  %6286 = vrot.lane.b32.xlu0 %v5270, 24
  %v6287 = vpop.permute.xlu0 %6286
  %6288 = vrot.lane.b32.xlu0 %v5271, 24
  %v6289 = vpop.permute.xlu0 %6288
  %6290 = vrot.lane.b32.xlu0 %v5272, 24
  %v6291 = vpop.permute.xlu0 %6290
  %6292 = vrot.lane.b32.xlu0 %v5273, 24
  %v6293 = vpop.permute.xlu0 %6292
  %6294 = vrot.lane.b32.xlu0 %v5274, 24
  %v6295 = vpop.permute.xlu0 %6294
  %6296 = vrot.lane.b32.xlu0 %v5275, 24
  %v6297 = vpop.permute.xlu0 %6296
  %6298 = vrot.lane.b32.xlu0 %v5276, 24
  %v6299 = vpop.permute.xlu0 %6298
  %6300 = vrot.lane.b32.xlu0 %v5277, 24
  %v6301 = vpop.permute.xlu0 %6300
  %6302 = vrot.lane.b32.xlu0 %v5278, 24
  %v6303 = vpop.permute.xlu0 %6302
  %6432 = vrot.lane.b32.xlu0 %v5279, 32
  %v6433 = vpop.permute.xlu0 %6432
  %6434 = vrot.lane.b32.xlu0 %v5280, 32
  %v6435 = vpop.permute.xlu0 %6434
  %6436 = vrot.lane.b32.xlu0 %v5281, 32
  %v6437 = vpop.permute.xlu0 %6436
  %6438 = vrot.lane.b32.xlu0 %v5282, 32
  %v6439 = vpop.permute.xlu0 %6438
  %6440 = vrot.lane.b32.xlu0 %v5283, 32
  %v6441 = vpop.permute.xlu0 %6440
  %6442 = vrot.lane.b32.xlu0 %v5284, 32
  %v6443 = vpop.permute.xlu0 %6442
  %6444 = vrot.lane.b32.xlu0 %v5285, 32
  %v6445 = vpop.permute.xlu0 %6444
  %6446 = vrot.lane.b32.xlu0 %v5286, 32
  %v6447 = vpop.permute.xlu0 %6446
  %6448 = vrot.lane.b32.xlu0 %v5287, 32
  %v6449 = vpop.permute.xlu0 %6448
  %6450 = vrot.lane.b32.xlu0 %v5288, 32
  %v6451 = vpop.permute.xlu0 %6450
  %6452 = vrot.lane.b32.xlu0 %v5289, 32
  %v6453 = vpop.permute.xlu0 %6452
  %6454 = vrot.lane.b32.xlu0 %v5290, 32
  %v6455 = vpop.permute.xlu0 %6454
  %6456 = vrot.lane.b32.xlu0 %v5291, 32
  %v6457 = vpop.permute.xlu0 %6456
  %6458 = vrot.lane.b32.xlu0 %v5292, 32
  %v6459 = vpop.permute.xlu0 %6458
  %6460 = vrot.lane.b32.xlu0 %v5293, 32
  %v6461 = vpop.permute.xlu0 %6460
  %6462 = vrot.lane.b32.xlu0 %v5294, 32
  %v6463 = vpop.permute.xlu0 %6462
  %6464 = vrot.lane.b32.xlu0 %v5295, 32
  %v6465 = vpop.permute.xlu0 %6464
  %6466 = vrot.lane.b32.xlu0 %v5296, 32
  %v6467 = vpop.permute.xlu0 %6466
  %6468 = vrot.lane.b32.xlu0 %v5297, 32
  %v6469 = vpop.permute.xlu0 %6468
  %6470 = vrot.lane.b32.xlu0 %v5298, 32
  %v6471 = vpop.permute.xlu0 %6470
  %6472 = vrot.lane.b32.xlu0 %v5299, 32
  %v6473 = vpop.permute.xlu0 %6472
  %6474 = vrot.lane.b32.xlu0 %v5300, 32
  %v6475 = vpop.permute.xlu0 %6474
  %6476 = vrot.lane.b32.xlu0 %v5301, 32
  %v6477 = vpop.permute.xlu0 %6476
  %6478 = vrot.lane.b32.xlu0 %v5302, 32
  %v6479 = vpop.permute.xlu0 %6478
  %6480 = vrot.lane.b32.xlu0 %v5303, 32
  %v6481 = vpop.permute.xlu0 %6480
  %6482 = vrot.lane.b32.xlu0 %v5304, 32
  %v6483 = vpop.permute.xlu0 %6482
  %6484 = vrot.lane.b32.xlu0 %v5305, 32
  %v6485 = vpop.permute.xlu0 %6484
  %6486 = vrot.lane.b32.xlu0 %v5306, 32
  %v6487 = vpop.permute.xlu0 %6486
  %6488 = vrot.lane.b32.xlu0 %v5307, 32
  %v6489 = vpop.permute.xlu0 %6488
  %6490 = vrot.lane.b32.xlu0 %v5308, 32
  %v6491 = vpop.permute.xlu0 %6490
  %6492 = vrot.lane.b32.xlu0 %v5309, 32
  %v6493 = vpop.permute.xlu0 %6492
  %6494 = vrot.lane.b32.xlu0 %v5310, 32
  %v6495 = vpop.permute.xlu0 %6494
  %6496 = vrot.lane.b32.xlu0 %v5311, 32
  %v6497 = vpop.permute.xlu0 %6496
  %6498 = vrot.lane.b32.xlu0 %v5312, 32
  %v6499 = vpop.permute.xlu0 %6498
  %6500 = vrot.lane.b32.xlu0 %v5313, 32
  %v6501 = vpop.permute.xlu0 %6500
  %6502 = vrot.lane.b32.xlu0 %v5314, 32
  %v6503 = vpop.permute.xlu0 %6502
  %6504 = vrot.lane.b32.xlu0 %v5315, 32
  %v6505 = vpop.permute.xlu0 %6504
  %6506 = vrot.lane.b32.xlu0 %v5316, 32
  %v6507 = vpop.permute.xlu0 %6506
  %6508 = vrot.lane.b32.xlu0 %v5317, 32
  %v6509 = vpop.permute.xlu0 %6508
  %6510 = vrot.lane.b32.xlu0 %v5318, 32
  %v6511 = vpop.permute.xlu0 %6510
  %6512 = vrot.lane.b32.xlu0 %v5319, 32
  %v6513 = vpop.permute.xlu0 %6512
  %6514 = vrot.lane.b32.xlu0 %v5320, 32
  %v6515 = vpop.permute.xlu0 %6514
  %6516 = vrot.lane.b32.xlu0 %v5321, 32
  %v6517 = vpop.permute.xlu0 %6516
  %6518 = vrot.lane.b32.xlu0 %v5322, 32
  %v6519 = vpop.permute.xlu0 %6518
  %6520 = vrot.lane.b32.xlu0 %v5323, 32
  %v6521 = vpop.permute.xlu0 %6520
  %6522 = vrot.lane.b32.xlu0 %v5324, 32
  %v6523 = vpop.permute.xlu0 %6522
  %6524 = vrot.lane.b32.xlu0 %v5325, 32
  %v6525 = vpop.permute.xlu0 %6524
  %6526 = vrot.lane.b32.xlu0 %v5326, 32
  %v6527 = vpop.permute.xlu0 %6526
  %6528 = vrot.lane.b32.xlu0 %v5327, 32
  %v6529 = vpop.permute.xlu0 %6528
  %6530 = vrot.lane.b32.xlu0 %v5328, 32
  %v6531 = vpop.permute.xlu0 %6530
  %6532 = vrot.lane.b32.xlu0 %v5329, 32
  %v6533 = vpop.permute.xlu0 %6532
  %6534 = vrot.lane.b32.xlu0 %v5330, 32
  %v6535 = vpop.permute.xlu0 %6534
  %6536 = vrot.lane.b32.xlu0 %v5331, 32
  %v6537 = vpop.permute.xlu0 %6536
  %6538 = vrot.lane.b32.xlu0 %v5332, 32
  %v6539 = vpop.permute.xlu0 %6538
  %6540 = vrot.lane.b32.xlu0 %v5333, 32
  %v6541 = vpop.permute.xlu0 %6540
  %6542 = vrot.lane.b32.xlu0 %v5334, 32
  %v6543 = vpop.permute.xlu0 %6542
  %6544 = vrot.lane.b32.xlu0 %v5335, 32
  %v6545 = vpop.permute.xlu0 %6544
  %6546 = vrot.lane.b32.xlu0 %v5336, 32
  %v6547 = vpop.permute.xlu0 %6546
  %6548 = vrot.lane.b32.xlu0 %v5337, 32
  %v6549 = vpop.permute.xlu0 %6548
  %6550 = vrot.lane.b32.xlu0 %v5338, 32
  %v6551 = vpop.permute.xlu0 %6550
  %6552 = vrot.lane.b32.xlu0 %v5339, 32
  %v6553 = vpop.permute.xlu0 %6552
  %6554 = vrot.lane.b32.xlu0 %v5340, 32
  %v6555 = vpop.permute.xlu0 %6554
  %6556 = vrot.lane.b32.xlu0 %v5341, 32
  %v6557 = vpop.permute.xlu0 %6556
  %6558 = vrot.lane.b32.xlu0 %v5342, 32
  %v6559 = vpop.permute.xlu0 %6558
  %6688 = vrot.lane.b32.xlu0 %v5343, 40
  %v6689 = vpop.permute.xlu0 %6688
  %6690 = vrot.lane.b32.xlu0 %v5344, 40
  %v6691 = vpop.permute.xlu0 %6690
  %6692 = vrot.lane.b32.xlu0 %v5345, 40
  %v6693 = vpop.permute.xlu0 %6692
  %6694 = vrot.lane.b32.xlu0 %v5346, 40
  %v6695 = vpop.permute.xlu0 %6694
  %6696 = vrot.lane.b32.xlu0 %v5347, 40
  %v6697 = vpop.permute.xlu0 %6696
  %6698 = vrot.lane.b32.xlu0 %v5348, 40
  %v6699 = vpop.permute.xlu0 %6698
  %6700 = vrot.lane.b32.xlu0 %v5349, 40
  %v6701 = vpop.permute.xlu0 %6700
  %6702 = vrot.lane.b32.xlu0 %v5350, 40
  %v6703 = vpop.permute.xlu0 %6702
  %6704 = vrot.lane.b32.xlu0 %v5351, 40
  %v6705 = vpop.permute.xlu0 %6704
  %6706 = vrot.lane.b32.xlu0 %v5352, 40
  %v6707 = vpop.permute.xlu0 %6706
  %6708 = vrot.lane.b32.xlu0 %v5353, 40
  %v6709 = vpop.permute.xlu0 %6708
  %6710 = vrot.lane.b32.xlu0 %v5354, 40
  %v6711 = vpop.permute.xlu0 %6710
  %6712 = vrot.lane.b32.xlu0 %v5355, 40
  %v6713 = vpop.permute.xlu0 %6712
  %6714 = vrot.lane.b32.xlu0 %v5356, 40
  %v6715 = vpop.permute.xlu0 %6714
  %6716 = vrot.lane.b32.xlu0 %v5357, 40
  %v6717 = vpop.permute.xlu0 %6716
  %6718 = vrot.lane.b32.xlu0 %v5358, 40
  %v6719 = vpop.permute.xlu0 %6718
  %6720 = vrot.lane.b32.xlu0 %v5359, 40
  %v6721 = vpop.permute.xlu0 %6720
  %6722 = vrot.lane.b32.xlu0 %v5360, 40
  %v6723 = vpop.permute.xlu0 %6722
  %6724 = vrot.lane.b32.xlu0 %v5361, 40
  %v6725 = vpop.permute.xlu0 %6724
  %6726 = vrot.lane.b32.xlu0 %v5362, 40
  %v6727 = vpop.permute.xlu0 %6726
  %6728 = vrot.lane.b32.xlu0 %v5363, 40
  %v6729 = vpop.permute.xlu0 %6728
  %6730 = vrot.lane.b32.xlu0 %v5364, 40
  %v6731 = vpop.permute.xlu0 %6730
  %6732 = vrot.lane.b32.xlu0 %v5365, 40
  %v6733 = vpop.permute.xlu0 %6732
  %6734 = vrot.lane.b32.xlu0 %v5366, 40
  %v6735 = vpop.permute.xlu0 %6734
  %6736 = vrot.lane.b32.xlu0 %v5367, 40
  %v6737 = vpop.permute.xlu0 %6736
  %6738 = vrot.lane.b32.xlu0 %v5368, 40
  %v6739 = vpop.permute.xlu0 %6738
  %6740 = vrot.lane.b32.xlu0 %v5369, 40
  %v6741 = vpop.permute.xlu0 %6740
  %6742 = vrot.lane.b32.xlu0 %v5370, 40
  %v6743 = vpop.permute.xlu0 %6742
  %6744 = vrot.lane.b32.xlu0 %v5371, 40
  %v6745 = vpop.permute.xlu0 %6744
  %6746 = vrot.lane.b32.xlu0 %v5372, 40
  %v6747 = vpop.permute.xlu0 %6746
  %6748 = vrot.lane.b32.xlu0 %v5373, 40
  %v6749 = vpop.permute.xlu0 %6748
  %6750 = vrot.lane.b32.xlu0 %v5374, 40
  %v6751 = vpop.permute.xlu0 %6750
  %6752 = vrot.lane.b32.xlu0 %v5375, 40
  %v6753 = vpop.permute.xlu0 %6752
  %6754 = vrot.lane.b32.xlu0 %v5376, 40
  %v6755 = vpop.permute.xlu0 %6754
  %6756 = vrot.lane.b32.xlu0 %v5377, 40
  %v6757 = vpop.permute.xlu0 %6756
  %6758 = vrot.lane.b32.xlu0 %v5378, 40
  %v6759 = vpop.permute.xlu0 %6758
  %6760 = vrot.lane.b32.xlu0 %v5379, 40
  %v6761 = vpop.permute.xlu0 %6760
  %6762 = vrot.lane.b32.xlu0 %v5380, 40
  %v6763 = vpop.permute.xlu0 %6762
  %6764 = vrot.lane.b32.xlu0 %v5381, 40
  %v6765 = vpop.permute.xlu0 %6764
  %6766 = vrot.lane.b32.xlu0 %v5382, 40
  %v6767 = vpop.permute.xlu0 %6766
  %6768 = vrot.lane.b32.xlu0 %v5383, 40
  %v6769 = vpop.permute.xlu0 %6768
  %6770 = vrot.lane.b32.xlu0 %v5384, 40
  %v6771 = vpop.permute.xlu0 %6770
  %6772 = vrot.lane.b32.xlu0 %v5385, 40
  %v6773 = vpop.permute.xlu0 %6772
  %6774 = vrot.lane.b32.xlu0 %v5386, 40
  %v6775 = vpop.permute.xlu0 %6774
  %6776 = vrot.lane.b32.xlu0 %v5387, 40
  %v6777 = vpop.permute.xlu0 %6776
  %6778 = vrot.lane.b32.xlu0 %v5388, 40
  %v6779 = vpop.permute.xlu0 %6778
  %6780 = vrot.lane.b32.xlu0 %v5389, 40
  %v6781 = vpop.permute.xlu0 %6780
  %6782 = vrot.lane.b32.xlu0 %v5390, 40
  %v6783 = vpop.permute.xlu0 %6782
  %6784 = vrot.lane.b32.xlu0 %v5391, 40
  %v6785 = vpop.permute.xlu0 %6784
  %6786 = vrot.lane.b32.xlu0 %v5392, 40
  %v6787 = vpop.permute.xlu0 %6786
  %6788 = vrot.lane.b32.xlu0 %v5393, 40
  %v6789 = vpop.permute.xlu0 %6788
  %6790 = vrot.lane.b32.xlu0 %v5394, 40
  %v6791 = vpop.permute.xlu0 %6790
  %6792 = vrot.lane.b32.xlu0 %v5395, 40
  %v6793 = vpop.permute.xlu0 %6792
  %6794 = vrot.lane.b32.xlu0 %v5396, 40
  %v6795 = vpop.permute.xlu0 %6794
  %6796 = vrot.lane.b32.xlu0 %v5397, 40
  %v6797 = vpop.permute.xlu0 %6796
  %6798 = vrot.lane.b32.xlu0 %v5398, 40
  %v6799 = vpop.permute.xlu0 %6798
  %6800 = vrot.lane.b32.xlu0 %v5399, 40
  %v6801 = vpop.permute.xlu0 %6800
  %6802 = vrot.lane.b32.xlu0 %v5400, 40
  %v6803 = vpop.permute.xlu0 %6802
  %6804 = vrot.lane.b32.xlu0 %v5401, 40
  %v6805 = vpop.permute.xlu0 %6804
  %6806 = vrot.lane.b32.xlu0 %v5402, 40
  %v6807 = vpop.permute.xlu0 %6806
  %6808 = vrot.lane.b32.xlu0 %v5403, 40
  %v6809 = vpop.permute.xlu0 %6808
  %6810 = vrot.lane.b32.xlu0 %v5404, 40
  %v6811 = vpop.permute.xlu0 %6810
  %6812 = vrot.lane.b32.xlu0 %v5405, 40
  %v6813 = vpop.permute.xlu0 %6812
  %6814 = vrot.lane.b32.xlu0 %v5406, 40
  %v6815 = vpop.permute.xlu0 %6814
  %6944 = vrot.lane.b32.xlu0 %v5408, 48
  %v6945 = vpop.permute.xlu0 %6944
  %6946 = vrot.lane.b32.xlu0 %v5409, 48
  %v6947 = vpop.permute.xlu0 %6946
  %6948 = vrot.lane.b32.xlu0 %v5410, 48
  %v6949 = vpop.permute.xlu0 %6948
  %6950 = vrot.lane.b32.xlu0 %v5411, 48
  %v6951 = vpop.permute.xlu0 %6950
  %6952 = vrot.lane.b32.xlu0 %v5412, 48
  %v6953 = vpop.permute.xlu0 %6952
  %6954 = vrot.lane.b32.xlu0 %v5413, 48
  %v6955 = vpop.permute.xlu0 %6954
  %6956 = vrot.lane.b32.xlu0 %v5414, 48
  %v6957 = vpop.permute.xlu0 %6956
  %6958 = vrot.lane.b32.xlu0 %v5415, 48
  %v6959 = vpop.permute.xlu0 %6958
  %6960 = vrot.lane.b32.xlu0 %v5416, 48
  %v6961 = vpop.permute.xlu0 %6960
  %6962 = vrot.lane.b32.xlu0 %v5417, 48
  %v6963 = vpop.permute.xlu0 %6962
  %6964 = vrot.lane.b32.xlu0 %v5418, 48
  %v6965 = vpop.permute.xlu0 %6964
  %6966 = vrot.lane.b32.xlu0 %v5419, 48
  %v6967 = vpop.permute.xlu0 %6966
  %6968 = vrot.lane.b32.xlu0 %v5420, 48
  %v6969 = vpop.permute.xlu0 %6968
  %6970 = vrot.lane.b32.xlu0 %v5421, 48
  %v6971 = vpop.permute.xlu0 %6970
  %6972 = vrot.lane.b32.xlu0 %v5422, 48
  %v6973 = vpop.permute.xlu0 %6972
  %6974 = vrot.lane.b32.xlu0 %v5423, 48
  %v6975 = vpop.permute.xlu0 %6974
  %6976 = vrot.lane.b32.xlu0 %v5424, 48
  %v6977 = vpop.permute.xlu0 %6976
  %6978 = vrot.lane.b32.xlu0 %v5425, 48
  %v6979 = vpop.permute.xlu0 %6978
  %6980 = vrot.lane.b32.xlu0 %v5426, 48
  %v6981 = vpop.permute.xlu0 %6980
  %6982 = vrot.lane.b32.xlu0 %v5427, 48
  %v6983 = vpop.permute.xlu0 %6982
  %6984 = vrot.lane.b32.xlu0 %v5428, 48
  %v6985 = vpop.permute.xlu0 %6984
  %6986 = vrot.lane.b32.xlu0 %v5429, 48
  %v6987 = vpop.permute.xlu0 %6986
  %6988 = vrot.lane.b32.xlu0 %v5430, 48
  %v6989 = vpop.permute.xlu0 %6988
  %6990 = vrot.lane.b32.xlu0 %v5431, 48
  %v6991 = vpop.permute.xlu0 %6990
  %6992 = vrot.lane.b32.xlu0 %v5432, 48
  %v6993 = vpop.permute.xlu0 %6992
  %6994 = vrot.lane.b32.xlu0 %v5433, 48
  %v6995 = vpop.permute.xlu0 %6994
  %6996 = vrot.lane.b32.xlu0 %v5434, 48
  %v6997 = vpop.permute.xlu0 %6996
  %6998 = vrot.lane.b32.xlu0 %v5435, 48
  %v6999 = vpop.permute.xlu0 %6998
  %7000 = vrot.lane.b32.xlu0 %v5436, 48
  %v7001 = vpop.permute.xlu0 %7000
  %7002 = vrot.lane.b32.xlu0 %v5437, 48
  %v7003 = vpop.permute.xlu0 %7002
  %7004 = vrot.lane.b32.xlu0 %v5438, 48
  %v7005 = vpop.permute.xlu0 %7004
  %7006 = vrot.lane.b32.xlu0 %v5439, 48
  %v7007 = vpop.permute.xlu0 %7006
  %7008 = vrot.lane.b32.xlu0 %v5440, 48
  %v7009 = vpop.permute.xlu0 %7008
  %7010 = vrot.lane.b32.xlu0 %v5441, 48
  %v7011 = vpop.permute.xlu0 %7010
  %7012 = vrot.lane.b32.xlu0 %v5442, 48
  %v7013 = vpop.permute.xlu0 %7012
  %7014 = vrot.lane.b32.xlu0 %v5443, 48
  %v7015 = vpop.permute.xlu0 %7014
  %7016 = vrot.lane.b32.xlu0 %v5444, 48
  %v7017 = vpop.permute.xlu0 %7016
  %7018 = vrot.lane.b32.xlu0 %v5445, 48
  %v7019 = vpop.permute.xlu0 %7018
  %7020 = vrot.lane.b32.xlu0 %v5446, 48
  %v7021 = vpop.permute.xlu0 %7020
  %7022 = vrot.lane.b32.xlu0 %v5447, 48
  %v7023 = vpop.permute.xlu0 %7022
  %7024 = vrot.lane.b32.xlu0 %v5448, 48
  %v7025 = vpop.permute.xlu0 %7024
  %7026 = vrot.lane.b32.xlu0 %v5449, 48
  %v7027 = vpop.permute.xlu0 %7026
  %7028 = vrot.lane.b32.xlu0 %v5450, 48
  %v7029 = vpop.permute.xlu0 %7028
  %7030 = vrot.lane.b32.xlu0 %v5451, 48
  %v7031 = vpop.permute.xlu0 %7030
  %7032 = vrot.lane.b32.xlu0 %v5452, 48
  %v7033 = vpop.permute.xlu0 %7032
  %7034 = vrot.lane.b32.xlu0 %v5453, 48
  %v7035 = vpop.permute.xlu0 %7034
  %7036 = vrot.lane.b32.xlu0 %v5454, 48
  %v7037 = vpop.permute.xlu0 %7036
  %7038 = vrot.lane.b32.xlu0 %v5455, 48
  %v7039 = vpop.permute.xlu0 %7038
  %7040 = vrot.lane.b32.xlu0 %v5456, 48
  %v7041 = vpop.permute.xlu0 %7040
  %7042 = vrot.lane.b32.xlu0 %v5457, 48
  %v7043 = vpop.permute.xlu0 %7042
  %7044 = vrot.lane.b32.xlu0 %v5458, 48
  %v7045 = vpop.permute.xlu0 %7044
  %7046 = vrot.lane.b32.xlu0 %v5459, 48
  %v7047 = vpop.permute.xlu0 %7046
  %7048 = vrot.lane.b32.xlu0 %v5460, 48
  %v7049 = vpop.permute.xlu0 %7048
  %7050 = vrot.lane.b32.xlu0 %v5461, 48
  %v7051 = vpop.permute.xlu0 %7050
  %7052 = vrot.lane.b32.xlu0 %v5462, 48
  %v7053 = vpop.permute.xlu0 %7052
  %7054 = vrot.lane.b32.xlu0 %v5463, 48
  %v7055 = vpop.permute.xlu0 %7054
  %7056 = vrot.lane.b32.xlu0 %v5464, 48
  %v7057 = vpop.permute.xlu0 %7056
  %7058 = vrot.lane.b32.xlu0 %v5465, 48
  %v7059 = vpop.permute.xlu0 %7058
  %7060 = vrot.lane.b32.xlu0 %v5466, 48
  %v7061 = vpop.permute.xlu0 %7060
  %7062 = vrot.lane.b32.xlu0 %v5467, 48
  %v7063 = vpop.permute.xlu0 %7062
  %7064 = vrot.lane.b32.xlu0 %v5468, 48
  %v7065 = vpop.permute.xlu0 %7064
  %7066 = vrot.lane.b32.xlu0 %v5469, 48
  %v7067 = vpop.permute.xlu0 %7066
  %7068 = vrot.lane.b32.xlu0 %v5470, 48
  %v7069 = vpop.permute.xlu0 %7068
  %7070 = vrot.lane.b32.xlu0 %v5471, 48
  %v7071 = vpop.permute.xlu0 %7070
  %7200 = vrot.lane.b32.xlu0 %v5472, 56
  %v7201 = vpop.permute.xlu0 %7200
  %7202 = vrot.lane.b32.xlu0 %v5473, 56
  %v7203 = vpop.permute.xlu0 %7202
  %7204 = vrot.lane.b32.xlu0 %v5474, 56
  %v7205 = vpop.permute.xlu0 %7204
  %7206 = vrot.lane.b32.xlu0 %v5475, 56
  %v7207 = vpop.permute.xlu0 %7206
  %7208 = vrot.lane.b32.xlu0 %v5476, 56
  %v7209 = vpop.permute.xlu0 %7208
  %7210 = vrot.lane.b32.xlu0 %v5477, 56
  %v7211 = vpop.permute.xlu0 %7210
  %7212 = vrot.lane.b32.xlu0 %v5478, 56
  %v7213 = vpop.permute.xlu0 %7212
  %7214 = vrot.lane.b32.xlu0 %v5479, 56
  %v7215 = vpop.permute.xlu0 %7214
  %7216 = vrot.lane.b32.xlu0 %v5480, 56
  %v7217 = vpop.permute.xlu0 %7216
  %7218 = vrot.lane.b32.xlu0 %v5481, 56
  %v7219 = vpop.permute.xlu0 %7218
  %7220 = vrot.lane.b32.xlu0 %v5482, 56
  %v7221 = vpop.permute.xlu0 %7220
  %7222 = vrot.lane.b32.xlu0 %v5483, 56
  %v7223 = vpop.permute.xlu0 %7222
  %7224 = vrot.lane.b32.xlu0 %v5484, 56
  %v7225 = vpop.permute.xlu0 %7224
  %7226 = vrot.lane.b32.xlu0 %v5485, 56
  %v7227 = vpop.permute.xlu0 %7226
  %7228 = vrot.lane.b32.xlu0 %v5486, 56
  %v7229 = vpop.permute.xlu0 %7228
  %7230 = vrot.lane.b32.xlu0 %v5487, 56
  %v7231 = vpop.permute.xlu0 %7230
  %7232 = vrot.lane.b32.xlu0 %v5488, 56
  %v7233 = vpop.permute.xlu0 %7232
  %7234 = vrot.lane.b32.xlu0 %v5489, 56
  %v7235 = vpop.permute.xlu0 %7234
  %7236 = vrot.lane.b32.xlu0 %v5490, 56
  %v7237 = vpop.permute.xlu0 %7236
  %7238 = vrot.lane.b32.xlu0 %v5491, 56
  %v7239 = vpop.permute.xlu0 %7238
  %7240 = vrot.lane.b32.xlu0 %v5492, 56
  %v7241 = vpop.permute.xlu0 %7240
  %7242 = vrot.lane.b32.xlu0 %v5493, 56
  %v7243 = vpop.permute.xlu0 %7242
  %7244 = vrot.lane.b32.xlu0 %v5494, 56
  %v7245 = vpop.permute.xlu0 %7244
  %7246 = vrot.lane.b32.xlu0 %v5495, 56
  %v7247 = vpop.permute.xlu0 %7246
  %7248 = vrot.lane.b32.xlu0 %v5496, 56
  %v7249 = vpop.permute.xlu0 %7248
  %7250 = vrot.lane.b32.xlu0 %v5497, 56
  %v7251 = vpop.permute.xlu0 %7250
  %7252 = vrot.lane.b32.xlu0 %v5498, 56
  %v7253 = vpop.permute.xlu0 %7252
  %7254 = vrot.lane.b32.xlu0 %v5499, 56
  %v7255 = vpop.permute.xlu0 %7254
  %7256 = vrot.lane.b32.xlu0 %v5500, 56
  %v7257 = vpop.permute.xlu0 %7256
  %7258 = vrot.lane.b32.xlu0 %v5501, 56
  %v7259 = vpop.permute.xlu0 %7258
  %7260 = vrot.lane.b32.xlu0 %v5502, 56
  %v7261 = vpop.permute.xlu0 %7260
  %7262 = vrot.lane.b32.xlu0 %v5503, 56
  %v7263 = vpop.permute.xlu0 %7262
  %7264 = vrot.lane.b32.xlu0 %v5504, 56
  %v7265 = vpop.permute.xlu0 %7264
  %7266 = vrot.lane.b32.xlu0 %v5505, 56
  %v7267 = vpop.permute.xlu0 %7266
  %7268 = vrot.lane.b32.xlu0 %v5506, 56
  %v7269 = vpop.permute.xlu0 %7268
  %7270 = vrot.lane.b32.xlu0 %v5507, 56
  %v7271 = vpop.permute.xlu0 %7270
  %7272 = vrot.lane.b32.xlu0 %v5508, 56
  %v7273 = vpop.permute.xlu0 %7272
  %7274 = vrot.lane.b32.xlu0 %v5509, 56
  %v7275 = vpop.permute.xlu0 %7274
  %7276 = vrot.lane.b32.xlu0 %v5510, 56
  %v7277 = vpop.permute.xlu0 %7276
  %7278 = vrot.lane.b32.xlu0 %v5511, 56
  %v7279 = vpop.permute.xlu0 %7278
  %7280 = vrot.lane.b32.xlu0 %v5512, 56
  %v7281 = vpop.permute.xlu0 %7280
  %7282 = vrot.lane.b32.xlu0 %v5513, 56
  %v7283 = vpop.permute.xlu0 %7282
  %7284 = vrot.lane.b32.xlu0 %v5514, 56
  %v7285 = vpop.permute.xlu0 %7284
  %7286 = vrot.lane.b32.xlu0 %v5515, 56
  %v7287 = vpop.permute.xlu0 %7286
  %7288 = vrot.lane.b32.xlu0 %v5516, 56
  %v7289 = vpop.permute.xlu0 %7288
  %7290 = vrot.lane.b32.xlu0 %v5517, 56
  %v7291 = vpop.permute.xlu0 %7290
  %7292 = vrot.lane.b32.xlu0 %v5518, 56
  %v7293 = vpop.permute.xlu0 %7292
  %7294 = vrot.lane.b32.xlu0 %v5519, 56
  %v7295 = vpop.permute.xlu0 %7294
  %7296 = vrot.lane.b32.xlu0 %v5520, 56
  %v7297 = vpop.permute.xlu0 %7296
  %7298 = vrot.lane.b32.xlu0 %v5521, 56
  %v7299 = vpop.permute.xlu0 %7298
  %7300 = vrot.lane.b32.xlu0 %v5522, 56
  %v7301 = vpop.permute.xlu0 %7300
  %7302 = vrot.lane.b32.xlu0 %v5523, 56
  %v7303 = vpop.permute.xlu0 %7302
  %7304 = vrot.lane.b32.xlu0 %v5524, 56
  %v7305 = vpop.permute.xlu0 %7304
  %7306 = vrot.lane.b32.xlu0 %v5525, 56
  %v7307 = vpop.permute.xlu0 %7306
  %7308 = vrot.lane.b32.xlu0 %v5526, 56
  %v7309 = vpop.permute.xlu0 %7308
  %7310 = vrot.lane.b32.xlu0 %v5527, 56
  %v7311 = vpop.permute.xlu0 %7310
  %7312 = vrot.lane.b32.xlu0 %v5528, 56
  %v7313 = vpop.permute.xlu0 %7312
  %7314 = vrot.lane.b32.xlu0 %v5529, 56
  %v7315 = vpop.permute.xlu0 %7314
  %7316 = vrot.lane.b32.xlu0 %v5530, 56
  %v7317 = vpop.permute.xlu0 %7316
  %7318 = vrot.lane.b32.xlu0 %v5531, 56
  %v7319 = vpop.permute.xlu0 %7318
  %7320 = vrot.lane.b32.xlu0 %v5532, 56
  %v7321 = vpop.permute.xlu0 %7320
  %7322 = vrot.lane.b32.xlu0 %v5533, 56
  %v7323 = vpop.permute.xlu0 %7322
  %7324 = vrot.lane.b32.xlu0 %v5534, 56
  %v7325 = vpop.permute.xlu0 %7324
  %7326 = vrot.lane.b32.xlu0 %v5535, 56
  %v7327 = vpop.permute.xlu0 %7326
  %7456 = vrot.lane.b32.xlu0 %v5536, 64
  %v7457 = vpop.permute.xlu0 %7456
  %7458 = vrot.lane.b32.xlu0 %v5537, 64
  %v7459 = vpop.permute.xlu0 %7458
  %7460 = vrot.lane.b32.xlu0 %v5538, 64
  %v7461 = vpop.permute.xlu0 %7460
  %7462 = vrot.lane.b32.xlu0 %v5539, 64
  %v7463 = vpop.permute.xlu0 %7462
  %7464 = vrot.lane.b32.xlu0 %v5540, 64
  %v7465 = vpop.permute.xlu0 %7464
  %7466 = vrot.lane.b32.xlu0 %v5541, 64
  %v7467 = vpop.permute.xlu0 %7466
  %7468 = vrot.lane.b32.xlu0 %v5542, 64
  %v7469 = vpop.permute.xlu0 %7468
  %7470 = vrot.lane.b32.xlu0 %v5543, 64
  %v7471 = vpop.permute.xlu0 %7470
  %7472 = vrot.lane.b32.xlu0 %v5544, 64
  %v7473 = vpop.permute.xlu0 %7472
  %7474 = vrot.lane.b32.xlu0 %v5545, 64
  %v7475 = vpop.permute.xlu0 %7474
  %7476 = vrot.lane.b32.xlu0 %v5546, 64
  %v7477 = vpop.permute.xlu0 %7476
  %7478 = vrot.lane.b32.xlu0 %v5547, 64
  %v7479 = vpop.permute.xlu0 %7478
  %7480 = vrot.lane.b32.xlu0 %v5548, 64
  %v7481 = vpop.permute.xlu0 %7480
  %7482 = vrot.lane.b32.xlu0 %v5549, 64
  %v7483 = vpop.permute.xlu0 %7482
  %7484 = vrot.lane.b32.xlu0 %v5550, 64
  %v7485 = vpop.permute.xlu0 %7484
  %7486 = vrot.lane.b32.xlu0 %v5551, 64
  %v7487 = vpop.permute.xlu0 %7486
  %7488 = vrot.lane.b32.xlu0 %v5552, 64
  %v7489 = vpop.permute.xlu0 %7488
  %7490 = vrot.lane.b32.xlu0 %v5553, 64
  %v7491 = vpop.permute.xlu0 %7490
  %7492 = vrot.lane.b32.xlu0 %v5554, 64
  %v7493 = vpop.permute.xlu0 %7492
  %7494 = vrot.lane.b32.xlu0 %v5555, 64
  %v7495 = vpop.permute.xlu0 %7494
  %7496 = vrot.lane.b32.xlu0 %v5556, 64
  %v7497 = vpop.permute.xlu0 %7496
  %7498 = vrot.lane.b32.xlu0 %v5557, 64
  %v7499 = vpop.permute.xlu0 %7498
  %7500 = vrot.lane.b32.xlu0 %v5558, 64
  %v7501 = vpop.permute.xlu0 %7500
  %7502 = vrot.lane.b32.xlu0 %v5559, 64
  %v7503 = vpop.permute.xlu0 %7502
  %7504 = vrot.lane.b32.xlu0 %v5560, 64
  %v7505 = vpop.permute.xlu0 %7504
  %7506 = vrot.lane.b32.xlu0 %v5561, 64
  %v7507 = vpop.permute.xlu0 %7506
  %7508 = vrot.lane.b32.xlu0 %v5562, 64
  %v7509 = vpop.permute.xlu0 %7508
  %7510 = vrot.lane.b32.xlu0 %v5563, 64
  %v7511 = vpop.permute.xlu0 %7510
  %7512 = vrot.lane.b32.xlu0 %v5564, 64
  %v7513 = vpop.permute.xlu0 %7512
  %7514 = vrot.lane.b32.xlu0 %v5565, 64
  %v7515 = vpop.permute.xlu0 %7514
  %7516 = vrot.lane.b32.xlu0 %v5566, 64
  %v7517 = vpop.permute.xlu0 %7516
  %7518 = vrot.lane.b32.xlu0 %v5567, 64
  %v7519 = vpop.permute.xlu0 %7518
  %7520 = vrot.lane.b32.xlu0 %v5568, 64
  %v7521 = vpop.permute.xlu0 %7520
  %7522 = vrot.lane.b32.xlu0 %v5569, 64
  %v7523 = vpop.permute.xlu0 %7522
  %7524 = vrot.lane.b32.xlu0 %v5570, 64
  %v7525 = vpop.permute.xlu0 %7524
  %7526 = vrot.lane.b32.xlu0 %v5571, 64
  %v7527 = vpop.permute.xlu0 %7526
  %7528 = vrot.lane.b32.xlu0 %v5572, 64
  %v7529 = vpop.permute.xlu0 %7528
  %7530 = vrot.lane.b32.xlu0 %v5573, 64
  %v7531 = vpop.permute.xlu0 %7530
  %7532 = vrot.lane.b32.xlu0 %v5574, 64
  %v7533 = vpop.permute.xlu0 %7532
  %7534 = vrot.lane.b32.xlu0 %v5575, 64
  %v7535 = vpop.permute.xlu0 %7534
  %7536 = vrot.lane.b32.xlu0 %v5576, 64
  %v7537 = vpop.permute.xlu0 %7536
  %7538 = vrot.lane.b32.xlu0 %v5577, 64
  %v7539 = vpop.permute.xlu0 %7538
  %7540 = vrot.lane.b32.xlu0 %v5578, 64
  %v7541 = vpop.permute.xlu0 %7540
  %7542 = vrot.lane.b32.xlu0 %v5579, 64
  %v7543 = vpop.permute.xlu0 %7542
  %7544 = vrot.lane.b32.xlu0 %v5580, 64
  %v7545 = vpop.permute.xlu0 %7544
  %7546 = vrot.lane.b32.xlu0 %v5581, 64
  %v7547 = vpop.permute.xlu0 %7546
  %7548 = vrot.lane.b32.xlu0 %v5582, 64
  %v7549 = vpop.permute.xlu0 %7548
  %7550 = vrot.lane.b32.xlu0 %v5583, 64
  %v7551 = vpop.permute.xlu0 %7550
  %7552 = vrot.lane.b32.xlu0 %v5584, 64
  %v7553 = vpop.permute.xlu0 %7552
  %7554 = vrot.lane.b32.xlu0 %v5585, 64
  %v7555 = vpop.permute.xlu0 %7554
  %7556 = vrot.lane.b32.xlu0 %v5586, 64
  %v7557 = vpop.permute.xlu0 %7556
  %7558 = vrot.lane.b32.xlu0 %v5587, 64
  %v7559 = vpop.permute.xlu0 %7558
  %7560 = vrot.lane.b32.xlu0 %v5588, 64
  %v7561 = vpop.permute.xlu0 %7560
  %7562 = vrot.lane.b32.xlu0 %v5589, 64
  %v7563 = vpop.permute.xlu0 %7562
  %7564 = vrot.lane.b32.xlu0 %v5590, 64
  %v7565 = vpop.permute.xlu0 %7564
  %7566 = vrot.lane.b32.xlu0 %v5591, 64
  %v7567 = vpop.permute.xlu0 %7566
  %7568 = vrot.lane.b32.xlu0 %v5592, 64
  %v7569 = vpop.permute.xlu0 %7568
  %7570 = vrot.lane.b32.xlu0 %v5593, 64
  %v7571 = vpop.permute.xlu0 %7570
  %7572 = vrot.lane.b32.xlu0 %v5594, 64
  %v7573 = vpop.permute.xlu0 %7572
  %7574 = vrot.lane.b32.xlu0 %v5595, 64
  %v7575 = vpop.permute.xlu0 %7574
  %7576 = vrot.lane.b32.xlu0 %v5596, 64
  %v7577 = vpop.permute.xlu0 %7576
  %7578 = vrot.lane.b32.xlu0 %v5597, 64
  %v7579 = vpop.permute.xlu0 %7578
  %7580 = vrot.lane.b32.xlu0 %v5598, 64
  %v7581 = vpop.permute.xlu0 %7580
  %7582 = vrot.lane.b32.xlu0 %v5599, 64
  %v7583 = vpop.permute.xlu0 %7582
  %v7648 = vsel %vm3111, %v5023, %v5665
  %v7649 = vsel %vm3111, %v5024, %v5667
  %v7650 = vsel %vm3111, %v5025, %v5669
  %v7651 = vsel %vm3111, %v5026, %v5671
  %v7652 = vsel %vm3111, %v5027, %v5673
  %v7653 = vsel %vm3111, %v5028, %v5675
  %v7654 = vsel %vm3111, %v5029, %v5677
  %v7655 = vsel %vm3111, %v5030, %v5679
  %v7656 = vsel %vm3111, %v5031, %v5681
  %v7657 = vsel %vm3111, %v5032, %v5683
  %v7658 = vsel %vm3111, %v5033, %v5685
  %v7659 = vsel %vm3111, %v5034, %v5687
  %v7660 = vsel %vm3111, %v5035, %v5689
  %v7661 = vsel %vm3111, %v5036, %v5691
  %v7662 = vsel %vm3111, %v5037, %v5693
  %v7663 = vsel %vm3111, %v5038, %v5695
  %v7664 = vsel %vm3111, %v5039, %v5697
  %v7665 = vsel %vm3111, %v5040, %v5699
  %v7666 = vsel %vm3111, %v5041, %v5701
  %v7667 = vsel %vm3111, %v5042, %v5703
  %v7668 = vsel %vm3111, %v5043, %v5705
  %v7669 = vsel %vm3111, %v5044, %v5707
  %v7670 = vsel %vm3111, %v5045, %v5709
  %v7671 = vsel %vm3111, %v5046, %v5711
  %v7672 = vsel %vm3111, %v5047, %v5713
  %v7673 = vsel %vm3111, %v5048, %v5715
  %v7674 = vsel %vm3111, %v5049, %v5717
  %v7675 = vsel %vm3111, %v5050, %v5719
  %v7676 = vsel %vm3111, %v5051, %v5721
  %v7677 = vsel %vm3111, %v5052, %v5723
  %v7678 = vsel %vm3111, %v5053, %v5725
  %v7679 = vsel %vm3111, %v5054, %v5727
  %v7680 = vsel %vm3111, %v5055, %v5729
  %v7681 = vsel %vm3111, %v5056, %v5731
  %v7682 = vsel %vm3111, %v5057, %v5733
  %v7683 = vsel %vm3111, %v5058, %v5735
  %v7684 = vsel %vm3111, %v5059, %v5737
  %v7685 = vsel %vm3111, %v5060, %v5739
  %v7686 = vsel %vm3111, %v5061, %v5741
  %v7687 = vsel %vm3111, %v5062, %v5743
  %v7688 = vsel %vm3111, %v5063, %v5745
  %v7689 = vsel %vm3111, %v5064, %v5747
  %v7690 = vsel %vm3111, %v5065, %v5749
  %v7691 = vsel %vm3111, %v5066, %v5751
  %v7692 = vsel %vm3111, %v5067, %v5753
  %v7693 = vsel %vm3111, %v5068, %v5755
  %v7694 = vsel %vm3111, %v5069, %v5757
  %v7695 = vsel %vm3111, %v5070, %v5759
  %v7696 = vsel %vm3111, %v5071, %v5761
  %v7697 = vsel %vm3111, %v5072, %v5763
  %v7698 = vsel %vm3111, %v5073, %v5765
  %v7699 = vsel %vm3111, %v5074, %v5767
  %v7700 = vsel %vm3111, %v5075, %v5769
  %v7701 = vsel %vm3111, %v5076, %v5771
  %v7702 = vsel %vm3111, %v5077, %v5773
  %v7703 = vsel %vm3111, %v5078, %v5775
  %v7704 = vsel %vm3111, %v5079, %v5777
  %v7705 = vsel %vm3111, %v5080, %v5779
  %v7706 = vsel %vm3111, %v5081, %v5781
  %v7707 = vsel %vm3111, %v5082, %v5783
  %v7708 = vsel %vm3111, %v5083, %v5785
  %v7709 = vsel %vm3111, %v5084, %v5787
  %v7710 = vsel %vm3111, %v5085, %v5789
  %v7711 = vsel %vm3111, %v5086, %v5791
  %v7712 = vsel %vm3241, %v7648, %v5921
  %v7713 = vsel %vm3241, %v7649, %v5923
  %v7714 = vsel %vm3241, %v7650, %v5925
  %v7715 = vsel %vm3241, %v7651, %v5927
  %v7716 = vsel %vm3241, %v7652, %v5929
  %v7717 = vsel %vm3241, %v7653, %v5931
  %v7718 = vsel %vm3241, %v7654, %v5933
  %v7719 = vsel %vm3241, %v7655, %v5935
  %v7720 = vsel %vm3241, %v7656, %v5937
  %v7721 = vsel %vm3241, %v7657, %v5939
  %v7722 = vsel %vm3241, %v7658, %v5941
  %v7723 = vsel %vm3241, %v7659, %v5943
  %v7724 = vsel %vm3241, %v7660, %v5945
  %v7725 = vsel %vm3241, %v7661, %v5947
  %v7726 = vsel %vm3241, %v7662, %v5949
  %v7727 = vsel %vm3241, %v7663, %v5951
  %v7728 = vsel %vm3241, %v7664, %v5953
  %v7729 = vsel %vm3241, %v7665, %v5955
  %v7730 = vsel %vm3241, %v7666, %v5957
  %v7731 = vsel %vm3241, %v7667, %v5959
  %v7732 = vsel %vm3241, %v7668, %v5961
  %v7733 = vsel %vm3241, %v7669, %v5963
  %v7734 = vsel %vm3241, %v7670, %v5965
  %v7735 = vsel %vm3241, %v7671, %v5967
  %v7736 = vsel %vm3241, %v7672, %v5969
  %v7737 = vsel %vm3241, %v7673, %v5971
  %v7738 = vsel %vm3241, %v7674, %v5973
  %v7739 = vsel %vm3241, %v7675, %v5975
  %v7740 = vsel %vm3241, %v7676, %v5977
  %v7741 = vsel %vm3241, %v7677, %v5979
  %v7742 = vsel %vm3241, %v7678, %v5981
  %v7743 = vsel %vm3241, %v7679, %v5983
  %v7744 = vsel %vm3241, %v7680, %v5985
  %v7745 = vsel %vm3241, %v7681, %v5987
  %v7746 = vsel %vm3241, %v7682, %v5989
  %v7747 = vsel %vm3241, %v7683, %v5991
  %v7748 = vsel %vm3241, %v7684, %v5993
  %v7749 = vsel %vm3241, %v7685, %v5995
  %v7750 = vsel %vm3241, %v7686, %v5997
  %v7751 = vsel %vm3241, %v7687, %v5999
  %v7752 = vsel %vm3241, %v7688, %v6001
  %v7753 = vsel %vm3241, %v7689, %v6003
  %v7754 = vsel %vm3241, %v7690, %v6005
  %v7755 = vsel %vm3241, %v7691, %v6007
  %v7756 = vsel %vm3241, %v7692, %v6009
  %v7757 = vsel %vm3241, %v7693, %v6011
  %v7758 = vsel %vm3241, %v7694, %v6013
  %v7759 = vsel %vm3241, %v7695, %v6015
  %v7760 = vsel %vm3241, %v7696, %v6017
  %v7761 = vsel %vm3241, %v7697, %v6019
  %v7762 = vsel %vm3241, %v7698, %v6021
  %v7763 = vsel %vm3241, %v7699, %v6023
  %v7764 = vsel %vm3241, %v7700, %v6025
  %v7765 = vsel %vm3241, %v7701, %v6027
  %v7766 = vsel %vm3241, %v7702, %v6029
  %v7767 = vsel %vm3241, %v7703, %v6031
  %v7768 = vsel %vm3241, %v7704, %v6033
  %v7769 = vsel %vm3241, %v7705, %v6035
  %v7770 = vsel %vm3241, %v7706, %v6037
  %v7771 = vsel %vm3241, %v7707, %v6039
  %v7772 = vsel %vm3241, %v7708, %v6041
  %v7773 = vsel %vm3241, %v7709, %v6043
  %v7774 = vsel %vm3241, %v7710, %v6045
  %v7775 = vsel %vm3241, %v7711, %v6047
  %v7776 = vsel %vm3371, %v7712, %v6177
  %v7777 = vsel %vm3371, %v7713, %v6179
  %v7778 = vsel %vm3371, %v7714, %v6181
  %v7779 = vsel %vm3371, %v7715, %v6183
  %v7780 = vsel %vm3371, %v7716, %v6185
  %v7781 = vsel %vm3371, %v7717, %v6187
  %v7782 = vsel %vm3371, %v7718, %v6189
  %v7783 = vsel %vm3371, %v7719, %v6191
  %v7784 = vsel %vm3371, %v7720, %v6193
  %v7785 = vsel %vm3371, %v7721, %v6195
  %v7786 = vsel %vm3371, %v7722, %v6197
  %v7787 = vsel %vm3371, %v7723, %v6199
  %v7788 = vsel %vm3371, %v7724, %v6201
  %v7789 = vsel %vm3371, %v7725, %v6203
  %v7790 = vsel %vm3371, %v7726, %v6205
  %v7791 = vsel %vm3371, %v7727, %v6207
  %v7792 = vsel %vm3371, %v7728, %v6209
  %v7793 = vsel %vm3371, %v7729, %v6211
  %v7794 = vsel %vm3371, %v7730, %v6213
  %v7795 = vsel %vm3371, %v7731, %v6215
  %v7796 = vsel %vm3371, %v7732, %v6217
  %v7797 = vsel %vm3371, %v7733, %v6219
  %v7798 = vsel %vm3371, %v7734, %v6221
  %v7799 = vsel %vm3371, %v7735, %v6223
  %v7800 = vsel %vm3371, %v7736, %v6225
  %v7801 = vsel %vm3371, %v7737, %v6227
  %v7802 = vsel %vm3371, %v7738, %v6229
  %v7803 = vsel %vm3371, %v7739, %v6231
  %v7804 = vsel %vm3371, %v7740, %v6233
  %v7805 = vsel %vm3371, %v7741, %v6235
  %v7806 = vsel %vm3371, %v7742, %v6237
  %v7807 = vsel %vm3371, %v7743, %v6239
  %v7808 = vsel %vm3371, %v7744, %v6241
  %v7809 = vsel %vm3371, %v7745, %v6243
  %v7810 = vsel %vm3371, %v7746, %v6245
  %v7811 = vsel %vm3371, %v7747, %v6247
  %v7812 = vsel %vm3371, %v7748, %v6249
  %v7813 = vsel %vm3371, %v7749, %v6251
  %v7814 = vsel %vm3371, %v7750, %v6253
  %v7815 = vsel %vm3371, %v7751, %v6255
  %v7816 = vsel %vm3371, %v7752, %v6257
  %v7817 = vsel %vm3371, %v7753, %v6259
  %v7818 = vsel %vm3371, %v7754, %v6261
  %v7819 = vsel %vm3371, %v7755, %v6263
  %v7820 = vsel %vm3371, %v7756, %v6265
  %v7821 = vsel %vm3371, %v7757, %v6267
  %v7822 = vsel %vm3371, %v7758, %v6269
  %v7823 = vsel %vm3371, %v7759, %v6271
  %v7824 = vsel %vm3371, %v7760, %v6273
  %v7825 = vsel %vm3371, %v7761, %v6275
  %v7826 = vsel %vm3371, %v7762, %v6277
  %v7827 = vsel %vm3371, %v7763, %v6279
  %v7828 = vsel %vm3371, %v7764, %v6281
  %v7829 = vsel %vm3371, %v7765, %v6283
  %v7830 = vsel %vm3371, %v7766, %v6285
  %v7831 = vsel %vm3371, %v7767, %v6287
  %v7832 = vsel %vm3371, %v7768, %v6289
  %v7833 = vsel %vm3371, %v7769, %v6291
  %v7834 = vsel %vm3371, %v7770, %v6293
  %v7835 = vsel %vm3371, %v7771, %v6295
  %v7836 = vsel %vm3371, %v7772, %v6297
  %v7837 = vsel %vm3371, %v7773, %v6299
  %v7838 = vsel %vm3371, %v7774, %v6301
  %v7839 = vsel %vm3371, %v7775, %v6303
  %v7840 = vsel %vm136, %v7776, %v6433
  %v7841 = vsel %vm136, %v7777, %v6435
  %v7842 = vsel %vm136, %v7778, %v6437
  %v7843 = vsel %vm136, %v7779, %v6439
  %v7844 = vsel %vm136, %v7780, %v6441
  %v7845 = vsel %vm136, %v7781, %v6443
  %v7846 = vsel %vm136, %v7782, %v6445
  %v7847 = vsel %vm136, %v7783, %v6447
  %v7848 = vsel %vm136, %v7784, %v6449
  %v7849 = vsel %vm136, %v7785, %v6451
  %v7850 = vsel %vm136, %v7786, %v6453
  %v7851 = vsel %vm136, %v7787, %v6455
  %v7852 = vsel %vm136, %v7788, %v6457
  %v7853 = vsel %vm136, %v7789, %v6459
  %v7854 = vsel %vm136, %v7790, %v6461
  %v7855 = vsel %vm136, %v7791, %v6463
  %v7856 = vsel %vm136, %v7792, %v6465
  %v7857 = vsel %vm136, %v7793, %v6467
  %v7858 = vsel %vm136, %v7794, %v6469
  %v7859 = vsel %vm136, %v7795, %v6471
  %v7860 = vsel %vm136, %v7796, %v6473
  %v7861 = vsel %vm136, %v7797, %v6475
  %v7862 = vsel %vm136, %v7798, %v6477
  %v7863 = vsel %vm136, %v7799, %v6479
  %v7864 = vsel %vm136, %v7800, %v6481
  %v7865 = vsel %vm136, %v7801, %v6483
  %v7866 = vsel %vm136, %v7802, %v6485
  %v7867 = vsel %vm136, %v7803, %v6487
  %v7868 = vsel %vm136, %v7804, %v6489
  %v7869 = vsel %vm136, %v7805, %v6491
  %v7870 = vsel %vm136, %v7806, %v6493
  %v7871 = vsel %vm136, %v7807, %v6495
  %v7872 = vsel %vm136, %v7808, %v6497
  %v7873 = vsel %vm136, %v7809, %v6499
  %v7874 = vsel %vm136, %v7810, %v6501
  %v7875 = vsel %vm136, %v7811, %v6503
  %v7876 = vsel %vm136, %v7812, %v6505
  %v7877 = vsel %vm136, %v7813, %v6507
  %v7878 = vsel %vm136, %v7814, %v6509
  %v7879 = vsel %vm136, %v7815, %v6511
  %v7880 = vsel %vm136, %v7816, %v6513
  %v7881 = vsel %vm136, %v7817, %v6515
  %v7882 = vsel %vm136, %v7818, %v6517
  %v7883 = vsel %vm136, %v7819, %v6519
  %v7884 = vsel %vm136, %v7820, %v6521
  %v7885 = vsel %vm136, %v7821, %v6523
  %v7886 = vsel %vm136, %v7822, %v6525
  %v7887 = vsel %vm136, %v7823, %v6527
  %v7888 = vsel %vm136, %v7824, %v6529
  %v7889 = vsel %vm136, %v7825, %v6531
  %v7890 = vsel %vm136, %v7826, %v6533
  %v7891 = vsel %vm136, %v7827, %v6535
  %v7892 = vsel %vm136, %v7828, %v6537
  %v7893 = vsel %vm136, %v7829, %v6539
  %v7894 = vsel %vm136, %v7830, %v6541
  %v7895 = vsel %vm136, %v7831, %v6543
  %v7896 = vsel %vm136, %v7832, %v6545
  %v7897 = vsel %vm136, %v7833, %v6547
  %v7898 = vsel %vm136, %v7834, %v6549
  %v7899 = vsel %vm136, %v7835, %v6551
  %v7900 = vsel %vm136, %v7836, %v6553
  %v7901 = vsel %vm136, %v7837, %v6555
  %v7902 = vsel %vm136, %v7838, %v6557
  %v7903 = vsel %vm136, %v7839, %v6559
  %vm7904 = vcmask 326656
  %v7905 = vsel %vm7904, %v7840, %v6689
  %v7906 = vsel %vm7904, %v7841, %v6691
  %v7907 = vsel %vm7904, %v7842, %v6693
  %v7908 = vsel %vm7904, %v7843, %v6695
  %v7909 = vsel %vm7904, %v7844, %v6697
  %v7910 = vsel %vm7904, %v7845, %v6699
  %v7911 = vsel %vm7904, %v7846, %v6701
  %v7912 = vsel %vm7904, %v7847, %v6703
  %v7913 = vsel %vm7904, %v7848, %v6705
  %v7914 = vsel %vm7904, %v7849, %v6707
  %v7915 = vsel %vm7904, %v7850, %v6709
  %v7916 = vsel %vm7904, %v7851, %v6711
  %v7917 = vsel %vm7904, %v7852, %v6713
  %v7918 = vsel %vm7904, %v7853, %v6715
  %v7919 = vsel %vm7904, %v7854, %v6717
  %v7920 = vsel %vm7904, %v7855, %v6719
  %v7921 = vsel %vm7904, %v7856, %v6721
  %v7922 = vsel %vm7904, %v7857, %v6723
  %v7923 = vsel %vm7904, %v7858, %v6725
  %v7924 = vsel %vm7904, %v7859, %v6727
  %v7925 = vsel %vm7904, %v7860, %v6729
  %v7926 = vsel %vm7904, %v7861, %v6731
  %v7927 = vsel %vm7904, %v7862, %v6733
  %v7928 = vsel %vm7904, %v7863, %v6735
  %v7929 = vsel %vm7904, %v7864, %v6737
  %v7930 = vsel %vm7904, %v7865, %v6739
  %v7931 = vsel %vm7904, %v7866, %v6741
  %v7932 = vsel %vm7904, %v7867, %v6743
  %v7933 = vsel %vm7904, %v7868, %v6745
  %v7934 = vsel %vm7904, %v7869, %v6747
  %v7935 = vsel %vm7904, %v7870, %v6749
  %v7936 = vsel %vm7904, %v7871, %v6751
  %v7937 = vsel %vm7904, %v7872, %v6753
  %v7938 = vsel %vm7904, %v7873, %v6755
  %v7939 = vsel %vm7904, %v7874, %v6757
  %v7940 = vsel %vm7904, %v7875, %v6759
  %v7941 = vsel %vm7904, %v7876, %v6761
  %v7942 = vsel %vm7904, %v7877, %v6763
  %v7943 = vsel %vm7904, %v7878, %v6765
  %v7944 = vsel %vm7904, %v7879, %v6767
  %v7945 = vsel %vm7904, %v7880, %v6769
  %v7946 = vsel %vm7904, %v7881, %v6771
  %v7947 = vsel %vm7904, %v7882, %v6773
  %v7948 = vsel %vm7904, %v7883, %v6775
  %v7949 = vsel %vm7904, %v7884, %v6777
  %v7950 = vsel %vm7904, %v7885, %v6779
  %v7951 = vsel %vm7904, %v7886, %v6781
  %v7952 = vsel %vm7904, %v7887, %v6783
  %v7953 = vsel %vm7904, %v7888, %v6785
  %v7954 = vsel %vm7904, %v7889, %v6787
  %v7955 = vsel %vm7904, %v7890, %v6789
  %v7956 = vsel %vm7904, %v7891, %v6791
  %v7957 = vsel %vm7904, %v7892, %v6793
  %v7958 = vsel %vm7904, %v7893, %v6795
  %v7959 = vsel %vm7904, %v7894, %v6797
  %v7960 = vsel %vm7904, %v7895, %v6799
  %v7961 = vsel %vm7904, %v7896, %v6801
  %v7962 = vsel %vm7904, %v7897, %v6803
  %v7963 = vsel %vm7904, %v7898, %v6805
  %v7964 = vsel %vm7904, %v7899, %v6807
  %v7965 = vsel %vm7904, %v7900, %v6809
  %v7966 = vsel %vm7904, %v7901, %v6811
  %v7967 = vsel %vm7904, %v7902, %v6813
  %v7968 = vsel %vm7904, %v7903, %v6815
  %vm7969 = vcmask 392192
  %v7970 = vsel %vm7969, %v7905, %v6945
  %v7971 = vsel %vm7969, %v7906, %v6947
  %v7972 = vsel %vm7969, %v7907, %v6949
  %v7973 = vsel %vm7969, %v7908, %v6951
  %v7974 = vsel %vm7969, %v7909, %v6953
  %v7975 = vsel %vm7969, %v7910, %v6955
  %v7976 = vsel %vm7969, %v7911, %v6957
  %v7977 = vsel %vm7969, %v7912, %v6959
  %v7978 = vsel %vm7969, %v7913, %v6961
  %v7979 = vsel %vm7969, %v7914, %v6963
  %v7980 = vsel %vm7969, %v7915, %v6965
  %v7981 = vsel %vm7969, %v7916, %v6967
  %v7982 = vsel %vm7969, %v7917, %v6969
  %v7983 = vsel %vm7969, %v7918, %v6971
  %v7984 = vsel %vm7969, %v7919, %v6973
  %v7985 = vsel %vm7969, %v7920, %v6975
  %v7986 = vsel %vm7969, %v7921, %v6977
  %v7987 = vsel %vm7969, %v7922, %v6979
  %v7988 = vsel %vm7969, %v7923, %v6981
  %v7989 = vsel %vm7969, %v7924, %v6983
  %v7990 = vsel %vm7969, %v7925, %v6985
  %v7991 = vsel %vm7969, %v7926, %v6987
  %v7992 = vsel %vm7969, %v7927, %v6989
  %v7993 = vsel %vm7969, %v7928, %v6991
  %v7994 = vsel %vm7969, %v7929, %v6993
  %v7995 = vsel %vm7969, %v7930, %v6995
  %v7996 = vsel %vm7969, %v7931, %v6997
  %v7997 = vsel %vm7969, %v7932, %v6999
  %v7998 = vsel %vm7969, %v7933, %v7001
  %v7999 = vsel %vm7969, %v7934, %v7003
  %v8000 = vsel %vm7969, %v7935, %v7005
  %v8001 = vsel %vm7969, %v7936, %v7007
  %v8002 = vsel %vm7969, %v7937, %v7009
  %v8003 = vsel %vm7969, %v7938, %v7011
  %v8004 = vsel %vm7969, %v7939, %v7013
  %v8005 = vsel %vm7969, %v7940, %v7015
  %v8006 = vsel %vm7969, %v7941, %v7017
  %v8007 = vsel %vm7969, %v7942, %v7019
  %v8008 = vsel %vm7969, %v7943, %v7021
  %v8009 = vsel %vm7969, %v7944, %v7023
  %v8010 = vsel %vm7969, %v7945, %v7025
  %v8011 = vsel %vm7969, %v7946, %v7027
  %v8012 = vsel %vm7969, %v7947, %v7029
  %v8013 = vsel %vm7969, %v7948, %v7031
  %v8014 = vsel %vm7969, %v7949, %v7033
  %v8015 = vsel %vm7969, %v7950, %v7035
  %v8016 = vsel %vm7969, %v7951, %v7037
  %v8017 = vsel %vm7969, %v7952, %v7039
  %v8018 = vsel %vm7969, %v7953, %v7041
  %v8019 = vsel %vm7969, %v7954, %v7043
  %v8020 = vsel %vm7969, %v7955, %v7045
  %v8021 = vsel %vm7969, %v7956, %v7047
  %v8022 = vsel %vm7969, %v7957, %v7049
  %v8023 = vsel %vm7969, %v7958, %v7051
  %v8024 = vsel %vm7969, %v7959, %v7053
  %v8025 = vsel %vm7969, %v7960, %v7055
  %v8026 = vsel %vm7969, %v7961, %v7057
  %v8027 = vsel %vm7969, %v7962, %v7059
  %v8028 = vsel %vm7969, %v7963, %v7061
  %v8029 = vsel %vm7969, %v7964, %v7063
  %v8030 = vsel %vm7969, %v7965, %v7065
  %v8031 = vsel %vm7969, %v7966, %v7067
  %v8032 = vsel %vm7969, %v7967, %v7069
  %v8033 = vsel %vm7969, %v7968, %v7071
  %vm8034 = vcmask 457728
  %v8035 = vsel %vm8034, %v7970, %v7201
  %v8036 = vsel %vm8034, %v7971, %v7203
  %v8037 = vsel %vm8034, %v7972, %v7205
  %v8038 = vsel %vm8034, %v7973, %v7207
  %v8039 = vsel %vm8034, %v7974, %v7209
  %v8040 = vsel %vm8034, %v7975, %v7211
  %v8041 = vsel %vm8034, %v7976, %v7213
  %v8042 = vsel %vm8034, %v7977, %v7215
  %v8043 = vsel %vm8034, %v7978, %v7217
  %v8044 = vsel %vm8034, %v7979, %v7219
  %v8045 = vsel %vm8034, %v7980, %v7221
  %v8046 = vsel %vm8034, %v7981, %v7223
  %v8047 = vsel %vm8034, %v7982, %v7225
  %v8048 = vsel %vm8034, %v7983, %v7227
  %v8049 = vsel %vm8034, %v7984, %v7229
  %v8050 = vsel %vm8034, %v7985, %v7231
  %v8051 = vsel %vm8034, %v7986, %v7233
  %v8052 = vsel %vm8034, %v7987, %v7235
  %v8053 = vsel %vm8034, %v7988, %v7237
  %v8054 = vsel %vm8034, %v7989, %v7239
  %v8055 = vsel %vm8034, %v7990, %v7241
  %v8056 = vsel %vm8034, %v7991, %v7243
  %v8057 = vsel %vm8034, %v7992, %v7245
  %v8058 = vsel %vm8034, %v7993, %v7247
  %v8059 = vsel %vm8034, %v7994, %v7249
  %v8060 = vsel %vm8034, %v7995, %v7251
  %v8061 = vsel %vm8034, %v7996, %v7253
  %v8062 = vsel %vm8034, %v7997, %v7255
  %v8063 = vsel %vm8034, %v7998, %v7257
  %v8064 = vsel %vm8034, %v7999, %v7259
  %v8065 = vsel %vm8034, %v8000, %v7261
  %v8066 = vsel %vm8034, %v8001, %v7263
  %v8067 = vsel %vm8034, %v8002, %v7265
  %v8068 = vsel %vm8034, %v8003, %v7267
  %v8069 = vsel %vm8034, %v8004, %v7269
  %v8070 = vsel %vm8034, %v8005, %v7271
  %v8071 = vsel %vm8034, %v8006, %v7273
  %v8072 = vsel %vm8034, %v8007, %v7275
  %v8073 = vsel %vm8034, %v8008, %v7277
  %v8074 = vsel %vm8034, %v8009, %v7279
  %v8075 = vsel %vm8034, %v8010, %v7281
  %v8076 = vsel %vm8034, %v8011, %v7283
  %v8077 = vsel %vm8034, %v8012, %v7285
  %v8078 = vsel %vm8034, %v8013, %v7287
  %v8079 = vsel %vm8034, %v8014, %v7289
  %v8080 = vsel %vm8034, %v8015, %v7291
  %v8081 = vsel %vm8034, %v8016, %v7293
  %v8082 = vsel %vm8034, %v8017, %v7295
  %v8083 = vsel %vm8034, %v8018, %v7297
  %v8084 = vsel %vm8034, %v8019, %v7299
  %v8085 = vsel %vm8034, %v8020, %v7301
  %v8086 = vsel %vm8034, %v8021, %v7303
  %v8087 = vsel %vm8034, %v8022, %v7305
  %v8088 = vsel %vm8034, %v8023, %v7307
  %v8089 = vsel %vm8034, %v8024, %v7309
  %v8090 = vsel %vm8034, %v8025, %v7311
  %v8091 = vsel %vm8034, %v8026, %v7313
  %v8092 = vsel %vm8034, %v8027, %v7315
  %v8093 = vsel %vm8034, %v8028, %v7317
  %v8094 = vsel %vm8034, %v8029, %v7319
  %v8095 = vsel %vm8034, %v8030, %v7321
  %v8096 = vsel %vm8034, %v8031, %v7323
  %v8097 = vsel %vm8034, %v8032, %v7325
  %v8098 = vsel %vm8034, %v8033, %v7327
  %vm8099 = vcmask 523264
  %v8100 = vsel %vm8099, %v8035, %v7457
  %v8101 = vsel %vm8099, %v8036, %v7459
  %v8102 = vsel %vm8099, %v8037, %v7461
  %v8103 = vsel %vm8099, %v8038, %v7463
  %v8104 = vsel %vm8099, %v8039, %v7465
  %v8105 = vsel %vm8099, %v8040, %v7467
  %v8106 = vsel %vm8099, %v8041, %v7469
  %v8107 = vsel %vm8099, %v8042, %v7471
  %v8108 = vsel %vm8099, %v8043, %v7473
  %v8109 = vsel %vm8099, %v8044, %v7475
  %v8110 = vsel %vm8099, %v8045, %v7477
  %v8111 = vsel %vm8099, %v8046, %v7479
  %v8112 = vsel %vm8099, %v8047, %v7481
  %v8113 = vsel %vm8099, %v8048, %v7483
  %v8114 = vsel %vm8099, %v8049, %v7485
  %v8115 = vsel %vm8099, %v8050, %v7487
  %v8116 = vsel %vm8099, %v8051, %v7489
  %v8117 = vsel %vm8099, %v8052, %v7491
  %v8118 = vsel %vm8099, %v8053, %v7493
  %v8119 = vsel %vm8099, %v8054, %v7495
  %v8120 = vsel %vm8099, %v8055, %v7497
  %v8121 = vsel %vm8099, %v8056, %v7499
  %v8122 = vsel %vm8099, %v8057, %v7501
  %v8123 = vsel %vm8099, %v8058, %v7503
  %v8124 = vsel %vm8099, %v8059, %v7505
  %v8125 = vsel %vm8099, %v8060, %v7507
  %v8126 = vsel %vm8099, %v8061, %v7509
  %v8127 = vsel %vm8099, %v8062, %v7511
  %v8128 = vsel %vm8099, %v8063, %v7513
  %v8129 = vsel %vm8099, %v8064, %v7515
  %v8130 = vsel %vm8099, %v8065, %v7517
  %v8131 = vsel %vm8099, %v8066, %v7519
  %v8132 = vsel %vm8099, %v8067, %v7521
  %v8133 = vsel %vm8099, %v8068, %v7523
  %v8134 = vsel %vm8099, %v8069, %v7525
  %v8135 = vsel %vm8099, %v8070, %v7527
  %v8136 = vsel %vm8099, %v8071, %v7529
  %v8137 = vsel %vm8099, %v8072, %v7531
  %v8138 = vsel %vm8099, %v8073, %v7533
  %v8139 = vsel %vm8099, %v8074, %v7535
  %v8140 = vsel %vm8099, %v8075, %v7537
  %v8141 = vsel %vm8099, %v8076, %v7539
  %v8142 = vsel %vm8099, %v8077, %v7541
  %v8143 = vsel %vm8099, %v8078, %v7543
  %v8144 = vsel %vm8099, %v8079, %v7545
  %v8145 = vsel %vm8099, %v8080, %v7547
  %v8146 = vsel %vm8099, %v8081, %v7549
  %v8147 = vsel %vm8099, %v8082, %v7551
  %v8148 = vsel %vm8099, %v8083, %v7553
  %v8149 = vsel %vm8099, %v8084, %v7555
  %v8150 = vsel %vm8099, %v8085, %v7557
  %v8151 = vsel %vm8099, %v8086, %v7559
  %v8152 = vsel %vm8099, %v8087, %v7561
  %v8153 = vsel %vm8099, %v8088, %v7563
  %v8154 = vsel %vm8099, %v8089, %v7565
  %v8155 = vsel %vm8099, %v8090, %v7567
  %v8156 = vsel %vm8099, %v8091, %v7569
  %v8157 = vsel %vm8099, %v8092, %v7571
  %v8158 = vsel %vm8099, %v8093, %v7573
  %v8159 = vsel %vm8099, %v8094, %v7575
  %v8160 = vsel %vm8099, %v8095, %v7577
  %v8161 = vsel %vm8099, %v8096, %v7579
  %v8162 = vsel %vm8099, %v8097, %v7581
  %v8163 = vsel %vm8099, %v8098, %v7583
  %v8164 = vpack.c.bf16 %v8101, %v8100
  %v8165 = vpack.c.bf16 %v8103, %v8102
  %v8166 = vpack.c.bf16 %v8105, %v8104
  %v8167 = vpack.c.bf16 %v8107, %v8106
  %v8168 = vpack.c.bf16 %v8109, %v8108
  %v8169 = vpack.c.bf16 %v8111, %v8110
  %v8170 = vpack.c.bf16 %v8113, %v8112
  %v8171 = vpack.c.bf16 %v8115, %v8114
  %v8172 = vpack.c.bf16 %v8117, %v8116
  %v8173 = vpack.c.bf16 %v8119, %v8118
  %v8174 = vpack.c.bf16 %v8121, %v8120
  %v8175 = vpack.c.bf16 %v8123, %v8122
  %v8176 = vpack.c.bf16 %v8125, %v8124
  %v8177 = vpack.c.bf16 %v8127, %v8126
  %v8178 = vpack.c.bf16 %v8129, %v8128
  %v8179 = vpack.c.bf16 %v8131, %v8130
  %v8180 = vpack.c.bf16 %v8133, %v8132
  %v8181 = vpack.c.bf16 %v8135, %v8134
  %v8182 = vpack.c.bf16 %v8137, %v8136
  %v8183 = vpack.c.bf16 %v8139, %v8138
  %v8184 = vpack.c.bf16 %v8141, %v8140
  %v8185 = vpack.c.bf16 %v8143, %v8142
  %v8186 = vpack.c.bf16 %v8145, %v8144
  %v8187 = vpack.c.bf16 %v8147, %v8146
  %v8188 = vpack.c.bf16 %v8149, %v8148
  %v8189 = vpack.c.bf16 %v8151, %v8150
  %v8190 = vpack.c.bf16 %v8153, %v8152
  %v8191 = vpack.c.bf16 %v8155, %v8154
  %v8192 = vpack.c.bf16 %v8157, %v8156
  %v8193 = vpack.c.bf16 %v8159, %v8158
  %v8194 = vpack.c.bf16 %v8161, %v8160
  %v8195 = vpack.c.bf16 %v8163, %v8162
  %v8196 = vld [vmem:[%s8] sm:$0xf]
  %v8197 = vld [vmem:[%s8 + $0x4] sm:$0xf]
  %v8198 = vld [vmem:[%s8 + $0x8] sm:$0xf]
  %v8199 = vld [vmem:[%s8 + $0xc] sm:$0xf]
  %v8200 = vld [vmem:[%s8 + $0x10] sm:$0xf]
  %v8201 = vld [vmem:[%s8 + $0x14] sm:$0xf]
  %v8202 = vld [vmem:[%s8 + $0x18] sm:$0xf]
  %v8203 = vld [vmem:[%s8 + $0x1c] sm:$0xf]
  %v8204 = vld [vmem:[%s8 + $0x20] sm:$0xf]
  %v8205 = vld [vmem:[%s9] sm:$0x1]
  %v8207 = vlaneseq
  %v8208 = vshrl.u32 %v8207, 7
  %v8209 = vsub.s32 0, %v8208
  %v8210 = vrot.slane %v8205, %v8209
  %v8221 = vunpack.c.l.b16 %v8196
  %v8222 = vunpack.c.l.b16 %v8197
  %v8223 = vunpack.c.l.b16 %v8198
  %v8224 = vunpack.c.l.b16 %v8199
  %v8225 = vunpack.c.l.b16 %v8200
  %v8226 = vunpack.c.l.b16 %v8201
  %v8227 = vunpack.c.l.b16 %v8202
  %v8228 = vunpack.c.l.b16 %v8203
  %v8229 = vunpack.c.l.b16 %v8204
  %v8230 = vpack.c.b16 %v8222, %v8221
  %v8231 = vpack.c.b16 %v8224, %v8223
  %v8232 = vpack.c.b16 %v8226, %v8225
  %v8233 = vpack.c.b16 %v8228, %v8227
  %v8234 = vpack.c.b16 %v8229, %v8229
  %vm8239 = vcmask 588800
  %v8241 = vsel %vm8239, %v8164, 0
  %v8244 = vsel %vm8239, %v8165, 0
  %v8247 = vsel %vm8239, %v8166, 0
  %v8250 = vsel %vm8239, %v8167, 0
  %v8253 = vsel %vm8239, %v8168, 0
  %v8256 = vsel %vm8239, %v8169, 0
  %v8259 = vsel %vm8239, %v8170, 0
  %v8262 = vsel %vm8239, %v8171, 0
  %v8265 = vsel %vm8239, %v8172, 0
  %v8268 = vsel %vm8239, %v8173, 0
  %v8271 = vsel %vm8239, %v8174, 0
  %v8274 = vsel %vm8239, %v8175, 0
  %v8277 = vsel %vm8239, %v8176, 0
  %v8280 = vsel %vm8239, %v8177, 0
  %v8283 = vsel %vm8239, %v8178, 0
  %v8286 = vsel %vm8239, %v8179, 0
  %v8289 = vsel %vm8239, %v8180, 0
  %v8292 = vsel %vm8239, %v8181, 0
  %v8295 = vsel %vm8239, %v8182, 0
  %v8298 = vsel %vm8239, %v8183, 0
  %v8301 = vsel %vm8239, %v8184, 0
  %v8304 = vsel %vm8239, %v8185, 0
  %v8307 = vsel %vm8239, %v8186, 0
  %v8310 = vsel %vm8239, %v8187, 0
  %v8313 = vsel %vm8239, %v8188, 0
  %v8316 = vsel %vm8239, %v8189, 0
  %v8319 = vsel %vm8239, %v8190, 0
  %v8322 = vsel %vm8239, %v8191, 0
  %v8325 = vsel %vm8239, %v8192, 0
  %v8328 = vsel %vm8239, %v8193, 0
  %v8331 = vsel %vm8239, %v8194, 0
  %v8334 = vsel %vm8239, %v8195, 0
  %vm8336 = vcmask 1043456
  %v8338 = vsel %vm8336, %v8234, 0
  %8340 = vmatprep.subr.bf16.mxu0 0
  %8341 = vmatpush1.bf16.msra.mxu0 %v8230
  %8342 = vmatprep.subr.bf16.mxu0 0
  %8343 = vmatpush1.bf16.msra.mxu0 %v8231
  %8344 = vmatprep.subr.bf16.mxu0 0
  %8345 = vmatpush1.bf16.msra.mxu0 %v8232
  %8346 = vmatprep.subr.bf16.mxu0 0
  %8347 = vmatpush1.bf16.msra.mxu0 %v8233
  %8348 = vmatprep.subr.bf16.mxu0 0
  %8349 = vmatpush1.bf16.msra.mxu0 %v8338
  %8350 = vmatprep.subr.bf16.mxu0 0
  %8351 = vmatpush1.bf16.msra.mxu0 0
  %8352 = vmatprep.subr.bf16.mxu0 0
  %8353 = vmatpush1.bf16.msra.mxu0 0
  %8354 = vmatprep.subr.bf16.mxu0 0
  %8355 = vmatpush1.bf16.msra.mxu0 0
  %8356 = vmatprep.subr.bf16.mxu0 0
  %8357 = vmatpush1.bf16.msra.mxu0 0
  %8358 = vmatprep.subr.bf16.mxu0 0
  %8359 = vmatpush1.bf16.msra.mxu0 0
  %8360 = vmatprep.subr.bf16.mxu0 0
  %8361 = vmatpush1.bf16.msra.mxu0 0
  %8362 = vmatprep.subr.bf16.mxu0 0
  %8363 = vmatpush1.bf16.msra.mxu0 0
  %8364 = vmatprep.subr.bf16.mxu0 0
  %8365 = vmatpush1.bf16.msra.mxu0 0
  %8366 = vmatprep.subr.bf16.mxu0 0
  %8367 = vmatpush1.bf16.msra.mxu0 0
  %8368 = vmatprep.subr.bf16.mxu0 0
  %8369 = vmatpush1.bf16.msra.mxu0 0
  %8370 = vmatprep.subr.bf16.mxu0 0
  %8371 = vmatpush1.bf16.msra.mxu0 0
  %8372 = vmatprep.mubr.bf16.mxu0 0
  %8373 = vmatmul.mubr.bf16.gmra.mrb[0].mxu0 %v8241
  %v8374 = vpop.f32.mrb[0].mxu0
  %v8375 = vadd.f32 %v8210, %v8374
  %v8376 = vpop.f32.mrb[0].mxu0
  %v8377 = vpop.f32.mrb[0].mxu0
  %v8378 = vadd.f32 %v8210, %v8377
  %v8379 = vpop.f32.mrb[0].mxu0
  %8380 = vmatprep.mubr.bf16.mxu0 0
  %8381 = vmatmul.mubr.bf16.gmra.mrb[0].mxu0 %v8244
  %v8382 = vpop.f32.mrb[0].mxu0
  %v8383 = vadd.f32 %v8210, %v8382
  %v8384 = vpop.f32.mrb[0].mxu0
  %v8385 = vpop.f32.mrb[0].mxu0
  %v8386 = vadd.f32 %v8210, %v8385
  %v8387 = vpop.f32.mrb[0].mxu0
  %8388 = vmatprep.mubr.bf16.mxu0 0
  %8389 = vmatmul.mubr.bf16.gmra.mrb[0].mxu0 %v8247
  %v8390 = vpop.f32.mrb[0].mxu0
  %v8391 = vadd.f32 %v8210, %v8390
  %v8392 = vpop.f32.mrb[0].mxu0
  %v8393 = vpop.f32.mrb[0].mxu0
  %v8394 = vadd.f32 %v8210, %v8393
  %v8395 = vpop.f32.mrb[0].mxu0
  %8396 = vmatprep.mubr.bf16.mxu0 0
  %8397 = vmatmul.mubr.bf16.gmra.mrb[0].mxu0 %v8250
  %v8398 = vpop.f32.mrb[0].mxu0
  %v8399 = vadd.f32 %v8210, %v8398
  %v8400 = vpop.f32.mrb[0].mxu0
  %v8401 = vpop.f32.mrb[0].mxu0
  %v8402 = vadd.f32 %v8210, %v8401
  %v8403 = vpop.f32.mrb[0].mxu0
  %8404 = vmatprep.mubr.bf16.mxu0 0
  %8405 = vmatmul.mubr.bf16.gmra.mrb[0].mxu0 %v8253
  %v8406 = vpop.f32.mrb[0].mxu0
  %v8407 = vadd.f32 %v8210, %v8406
  %v8408 = vpop.f32.mrb[0].mxu0
  %v8409 = vpop.f32.mrb[0].mxu0
  %v8410 = vadd.f32 %v8210, %v8409
  %v8411 = vpop.f32.mrb[0].mxu0
  %8412 = vmatprep.mubr.bf16.mxu0 0
  %8413 = vmatmul.mubr.bf16.gmra.mrb[0].mxu0 %v8256
  %v8414 = vpop.f32.mrb[0].mxu0
  %v8415 = vadd.f32 %v8210, %v8414
  %v8416 = vpop.f32.mrb[0].mxu0
  %v8417 = vpop.f32.mrb[0].mxu0
  %v8418 = vadd.f32 %v8210, %v8417
  %v8419 = vpop.f32.mrb[0].mxu0
  %8420 = vmatprep.mubr.bf16.mxu0 0
  %8421 = vmatmul.mubr.bf16.gmra.mrb[0].mxu0 %v8259
  %v8422 = vpop.f32.mrb[0].mxu0
  %v8423 = vadd.f32 %v8210, %v8422
  %v8424 = vpop.f32.mrb[0].mxu0
  %v8425 = vpop.f32.mrb[0].mxu0
  %v8426 = vadd.f32 %v8210, %v8425
  %v8427 = vpop.f32.mrb[0].mxu0
  %8428 = vmatprep.mubr.bf16.mxu0 0
  %8429 = vmatmul.mubr.bf16.gmra.mrb[0].mxu0 %v8262
  %v8430 = vpop.f32.mrb[0].mxu0
  %v8431 = vadd.f32 %v8210, %v8430
  %v8432 = vpop.f32.mrb[0].mxu0
  %v8433 = vpop.f32.mrb[0].mxu0
  %v8434 = vadd.f32 %v8210, %v8433
  %v8435 = vpop.f32.mrb[0].mxu0
  %8436 = vmatprep.mubr.bf16.mxu0 0
  %8437 = vmatmul.mubr.bf16.gmra.mrb[0].mxu0 %v8265
  %v8438 = vpop.f32.mrb[0].mxu0
  %v8439 = vadd.f32 %v8210, %v8438
  %v8440 = vpop.f32.mrb[0].mxu0
  %v8441 = vpop.f32.mrb[0].mxu0
  %v8442 = vadd.f32 %v8210, %v8441
  %v8443 = vpop.f32.mrb[0].mxu0
  %8444 = vmatprep.mubr.bf16.mxu0 0
  %8445 = vmatmul.mubr.bf16.gmra.mrb[0].mxu0 %v8268
  %v8446 = vpop.f32.mrb[0].mxu0
  %v8447 = vadd.f32 %v8210, %v8446
  %v8448 = vpop.f32.mrb[0].mxu0
  %v8449 = vpop.f32.mrb[0].mxu0
  %v8450 = vadd.f32 %v8210, %v8449
  %v8451 = vpop.f32.mrb[0].mxu0
  %8452 = vmatprep.mubr.bf16.mxu0 0
  %8453 = vmatmul.mubr.bf16.gmra.mrb[0].mxu0 %v8271
  %v8454 = vpop.f32.mrb[0].mxu0
  %v8455 = vadd.f32 %v8210, %v8454
  %v8456 = vpop.f32.mrb[0].mxu0
  %v8457 = vpop.f32.mrb[0].mxu0
  %v8458 = vadd.f32 %v8210, %v8457
  %v8459 = vpop.f32.mrb[0].mxu0
  %8460 = vmatprep.mubr.bf16.mxu0 0
  %8461 = vmatmul.mubr.bf16.gmra.mrb[0].mxu0 %v8274
  %v8462 = vpop.f32.mrb[0].mxu0
  %v8463 = vadd.f32 %v8210, %v8462
  %v8464 = vpop.f32.mrb[0].mxu0
  %v8465 = vpop.f32.mrb[0].mxu0
  %v8466 = vadd.f32 %v8210, %v8465
  %v8467 = vpop.f32.mrb[0].mxu0
  %8468 = vmatprep.mubr.bf16.mxu0 0
  %8469 = vmatmul.mubr.bf16.gmra.mrb[0].mxu0 %v8277
  %v8470 = vpop.f32.mrb[0].mxu0
  %v8471 = vadd.f32 %v8210, %v8470
  %v8472 = vpop.f32.mrb[0].mxu0
  %v8473 = vpop.f32.mrb[0].mxu0
  %v8474 = vadd.f32 %v8210, %v8473
  %v8475 = vpop.f32.mrb[0].mxu0
  %8476 = vmatprep.mubr.bf16.mxu0 0
  %8477 = vmatmul.mubr.bf16.gmra.mrb[0].mxu0 %v8280
  %v8478 = vpop.f32.mrb[0].mxu0
  %v8479 = vadd.f32 %v8210, %v8478
  %v8480 = vpop.f32.mrb[0].mxu0
  %v8481 = vpop.f32.mrb[0].mxu0
  %v8482 = vadd.f32 %v8210, %v8481
  %v8483 = vpop.f32.mrb[0].mxu0
  %8484 = vmatprep.mubr.bf16.mxu0 0
  %8485 = vmatmul.mubr.bf16.gmra.mrb[0].mxu0 %v8283
  %v8486 = vpop.f32.mrb[0].mxu0
  %v8487 = vadd.f32 %v8210, %v8486
  %v8488 = vpop.f32.mrb[0].mxu0
  %v8489 = vpop.f32.mrb[0].mxu0
  %v8490 = vadd.f32 %v8210, %v8489
  %v8491 = vpop.f32.mrb[0].mxu0
  %8492 = vmatprep.mubr.bf16.mxu0 0
  %8493 = vmatmul.mubr.bf16.gmra.mrb[0].mxu0 %v8286
  %v8494 = vpop.f32.mrb[0].mxu0
  %v8495 = vadd.f32 %v8210, %v8494
  %v8496 = vpop.f32.mrb[0].mxu0
  %v8497 = vpop.f32.mrb[0].mxu0
  %v8498 = vadd.f32 %v8210, %v8497
  %v8499 = vpop.f32.mrb[0].mxu0
  %8500 = vmatprep.mubr.bf16.mxu0 0
  %8501 = vmatmul.mubr.bf16.gmra.mrb[0].mxu0 %v8289
  %v8502 = vpop.f32.mrb[0].mxu0
  %v8503 = vadd.f32 %v8210, %v8502
  %v8504 = vpop.f32.mrb[0].mxu0
  %v8505 = vpop.f32.mrb[0].mxu0
  %v8506 = vadd.f32 %v8210, %v8505
  %v8507 = vpop.f32.mrb[0].mxu0
  %8508 = vmatprep.mubr.bf16.mxu0 0
  %8509 = vmatmul.mubr.bf16.gmra.mrb[0].mxu0 %v8292
  %v8510 = vpop.f32.mrb[0].mxu0
  %v8511 = vadd.f32 %v8210, %v8510
  %v8512 = vpop.f32.mrb[0].mxu0
  %v8513 = vpop.f32.mrb[0].mxu0
  %v8514 = vadd.f32 %v8210, %v8513
  %v8515 = vpop.f32.mrb[0].mxu0
  %8516 = vmatprep.mubr.bf16.mxu0 0
  %8517 = vmatmul.mubr.bf16.gmra.mrb[0].mxu0 %v8295
  %v8518 = vpop.f32.mrb[0].mxu0
  %v8519 = vadd.f32 %v8210, %v8518
  %v8520 = vpop.f32.mrb[0].mxu0
  %v8521 = vpop.f32.mrb[0].mxu0
  %v8522 = vadd.f32 %v8210, %v8521
  %v8523 = vpop.f32.mrb[0].mxu0
  %8524 = vmatprep.mubr.bf16.mxu0 0
  %8525 = vmatmul.mubr.bf16.gmra.mrb[0].mxu0 %v8298
  %v8526 = vpop.f32.mrb[0].mxu0
  %v8527 = vadd.f32 %v8210, %v8526
  %v8528 = vpop.f32.mrb[0].mxu0
  %v8529 = vpop.f32.mrb[0].mxu0
  %v8530 = vadd.f32 %v8210, %v8529
  %v8531 = vpop.f32.mrb[0].mxu0
  %8532 = vmatprep.mubr.bf16.mxu0 0
  %8533 = vmatmul.mubr.bf16.gmra.mrb[0].mxu0 %v8301
  %v8534 = vpop.f32.mrb[0].mxu0
  %v8535 = vadd.f32 %v8210, %v8534
  %v8536 = vpop.f32.mrb[0].mxu0
  %v8537 = vpop.f32.mrb[0].mxu0
  %v8538 = vadd.f32 %v8210, %v8537
  %v8539 = vpop.f32.mrb[0].mxu0
  %8540 = vmatprep.mubr.bf16.mxu0 0
  %8541 = vmatmul.mubr.bf16.gmra.mrb[0].mxu0 %v8304
  %v8542 = vpop.f32.mrb[0].mxu0
  %v8543 = vadd.f32 %v8210, %v8542
  %v8544 = vpop.f32.mrb[0].mxu0
  %v8545 = vpop.f32.mrb[0].mxu0
  %v8546 = vadd.f32 %v8210, %v8545
  %v8547 = vpop.f32.mrb[0].mxu0
  %8548 = vmatprep.mubr.bf16.mxu0 0
  %8549 = vmatmul.mubr.bf16.gmra.mrb[0].mxu0 %v8307
  %v8550 = vpop.f32.mrb[0].mxu0
  %v8551 = vadd.f32 %v8210, %v8550
  %v8552 = vpop.f32.mrb[0].mxu0
  %v8553 = vpop.f32.mrb[0].mxu0
  %v8554 = vadd.f32 %v8210, %v8553
  %v8555 = vpop.f32.mrb[0].mxu0
  %8556 = vmatprep.mubr.bf16.mxu0 0
  %8557 = vmatmul.mubr.bf16.gmra.mrb[0].mxu0 %v8310
  %v8558 = vpop.f32.mrb[0].mxu0
  %v8559 = vadd.f32 %v8210, %v8558
  %v8560 = vpop.f32.mrb[0].mxu0
  %v8561 = vpop.f32.mrb[0].mxu0
  %v8562 = vadd.f32 %v8210, %v8561
  %v8563 = vpop.f32.mrb[0].mxu0
  %8564 = vmatprep.mubr.bf16.mxu0 0
  %8565 = vmatmul.mubr.bf16.gmra.mrb[0].mxu0 %v8313
  %v8566 = vpop.f32.mrb[0].mxu0
  %v8567 = vadd.f32 %v8210, %v8566
  %v8568 = vpop.f32.mrb[0].mxu0
  %v8569 = vpop.f32.mrb[0].mxu0
  %v8570 = vadd.f32 %v8210, %v8569
  %v8571 = vpop.f32.mrb[0].mxu0
  %8572 = vmatprep.mubr.bf16.mxu0 0
  %8573 = vmatmul.mubr.bf16.gmra.mrb[0].mxu0 %v8316
  %v8574 = vpop.f32.mrb[0].mxu0
  %v8575 = vadd.f32 %v8210, %v8574
  %v8576 = vpop.f32.mrb[0].mxu0
  %v8577 = vpop.f32.mrb[0].mxu0
  %v8578 = vadd.f32 %v8210, %v8577
  %v8579 = vpop.f32.mrb[0].mxu0
  %8580 = vmatprep.mubr.bf16.mxu0 0
  %8581 = vmatmul.mubr.bf16.gmra.mrb[0].mxu0 %v8319
  %v8582 = vpop.f32.mrb[0].mxu0
  %v8583 = vadd.f32 %v8210, %v8582
  %v8584 = vpop.f32.mrb[0].mxu0
  %v8585 = vpop.f32.mrb[0].mxu0
  %v8586 = vadd.f32 %v8210, %v8585
  %v8587 = vpop.f32.mrb[0].mxu0
  %8588 = vmatprep.mubr.bf16.mxu0 0
  %8589 = vmatmul.mubr.bf16.gmra.mrb[0].mxu0 %v8322
  %v8590 = vpop.f32.mrb[0].mxu0
  %v8591 = vadd.f32 %v8210, %v8590
  %v8592 = vpop.f32.mrb[0].mxu0
  %v8593 = vpop.f32.mrb[0].mxu0
  %v8594 = vadd.f32 %v8210, %v8593
  %v8595 = vpop.f32.mrb[0].mxu0
  %8596 = vmatprep.mubr.bf16.mxu0 0
  %8597 = vmatmul.mubr.bf16.gmra.mrb[0].mxu0 %v8325
  %v8598 = vpop.f32.mrb[0].mxu0
  %v8599 = vadd.f32 %v8210, %v8598
  %v8600 = vpop.f32.mrb[0].mxu0
  %v8601 = vpop.f32.mrb[0].mxu0
  %v8602 = vadd.f32 %v8210, %v8601
  %v8603 = vpop.f32.mrb[0].mxu0
  %8604 = vmatprep.mubr.bf16.mxu0 0
  %8605 = vmatmul.mubr.bf16.gmra.mrb[0].mxu0 %v8328
  %v8606 = vpop.f32.mrb[0].mxu0
  %v8607 = vadd.f32 %v8210, %v8606
  %v8608 = vpop.f32.mrb[0].mxu0
  %v8609 = vpop.f32.mrb[0].mxu0
  %v8610 = vadd.f32 %v8210, %v8609
  %v8611 = vpop.f32.mrb[0].mxu0
  %8612 = vmatprep.mubr.bf16.mxu0 0
  %8613 = vmatmul.mubr.bf16.gmra.mrb[0].mxu0 %v8331
  %v8614 = vpop.f32.mrb[0].mxu0
  %v8615 = vadd.f32 %v8210, %v8614
  %v8616 = vpop.f32.mrb[0].mxu0
  %v8617 = vpop.f32.mrb[0].mxu0
  %v8618 = vadd.f32 %v8210, %v8617
  %v8619 = vpop.f32.mrb[0].mxu0
  %8620 = vmatprep.mubr.bf16.mxu0 0
  %8621 = vmatmul.mubr.bf16.gmra.mrb[0].mxu0 %v8334
  %v8622 = vpop.f32.mrb[0].mxu0
  %v8623 = vadd.f32 %v8210, %v8622
  %v8624 = vpop.f32.mrb[0].mxu0
  %v8625 = vpop.f32.mrb[0].mxu0
  %v8626 = vadd.f32 %v8210, %v8625
  %v8627 = vpop.f32.mrb[0].mxu0
  %8628 = vdwg.mxu0
  %v8629 = vld [vmem:[%s10] sm:$0x1]
  %v8630 = vld [vmem:[%s11] sm:$0x1]
  %v8631 = vsel %vm3111, %v8375, 0.0
  %v8632 = vsel %vm3111, %v8378, 0.0
  %v8633 = vadd.f32 %v8631, %v8632
  %v8634 = vsel %vm3111, %v8383, 0.0
  %v8635 = vadd.f32 %v8633, %v8634
  %v8636 = vsel %vm3111, %v8386, 0.0
  %v8637 = vadd.f32 %v8635, %v8636
  %v8638 = vsel %vm3111, %v8391, 0.0
  %v8639 = vadd.f32 %v8637, %v8638
  %v8640 = vsel %vm3111, %v8394, 0.0
  %v8641 = vadd.f32 %v8639, %v8640
  %v8642 = vsel %vm3111, %v8399, 0.0
  %v8643 = vadd.f32 %v8641, %v8642
  %v8644 = vsel %vm3111, %v8402, 0.0
  %v8645 = vadd.f32 %v8643, %v8644
  %v8646 = vsel %vm3111, %v8407, 0.0
  %v8647 = vadd.f32 %v8645, %v8646
  %v8648 = vsel %vm3111, %v8410, 0.0
  %v8649 = vadd.f32 %v8647, %v8648
  %v8650 = vsel %vm3111, %v8415, 0.0
  %v8651 = vadd.f32 %v8649, %v8650
  %v8652 = vsel %vm3111, %v8418, 0.0
  %v8653 = vadd.f32 %v8651, %v8652
  %v8654 = vsel %vm3111, %v8423, 0.0
  %v8655 = vadd.f32 %v8653, %v8654
  %v8656 = vsel %vm3111, %v8426, 0.0
  %v8657 = vadd.f32 %v8655, %v8656
  %v8658 = vsel %vm3111, %v8431, 0.0
  %v8659 = vadd.f32 %v8657, %v8658
  %v8660 = vsel %vm3111, %v8434, 0.0
  %v8661 = vadd.f32 %v8659, %v8660
  %v8662 = vsel %vm3111, %v8439, 0.0
  %v8663 = vadd.f32 %v8661, %v8662
  %v8664 = vsel %vm3111, %v8442, 0.0
  %v8665 = vadd.f32 %v8663, %v8664
  %v8666 = vsel %vm3111, %v8447, 0.0
  %v8667 = vadd.f32 %v8665, %v8666
  %v8668 = vsel %vm3111, %v8450, 0.0
  %v8669 = vadd.f32 %v8667, %v8668
  %v8670 = vsel %vm3111, %v8455, 0.0
  %v8671 = vadd.f32 %v8669, %v8670
  %v8672 = vsel %vm3111, %v8458, 0.0
  %v8673 = vadd.f32 %v8671, %v8672
  %v8674 = vsel %vm3111, %v8463, 0.0
  %v8675 = vadd.f32 %v8673, %v8674
  %v8676 = vsel %vm3111, %v8466, 0.0
  %v8677 = vadd.f32 %v8675, %v8676
  %v8678 = vsel %vm3111, %v8471, 0.0
  %v8679 = vadd.f32 %v8677, %v8678
  %v8680 = vsel %vm3111, %v8474, 0.0
  %v8681 = vadd.f32 %v8679, %v8680
  %v8682 = vsel %vm3111, %v8479, 0.0
  %v8683 = vadd.f32 %v8681, %v8682
  %v8684 = vsel %vm3111, %v8482, 0.0
  %v8685 = vadd.f32 %v8683, %v8684
  %v8686 = vsel %vm3111, %v8487, 0.0
  %v8687 = vadd.f32 %v8685, %v8686
  %v8688 = vsel %vm3111, %v8490, 0.0
  %v8689 = vadd.f32 %v8687, %v8688
  %v8690 = vsel %vm3111, %v8495, 0.0
  %v8691 = vadd.f32 %v8689, %v8690
  %v8692 = vsel %vm3111, %v8498, 0.0
  %v8693 = vadd.f32 %v8691, %v8692
  %v8694 = vsel %vm3111, %v8503, 0.0
  %v8695 = vadd.f32 %v8693, %v8694
  %v8696 = vsel %vm3111, %v8506, 0.0
  %v8697 = vadd.f32 %v8695, %v8696
  %v8698 = vsel %vm3111, %v8511, 0.0
  %v8699 = vadd.f32 %v8697, %v8698
  %v8700 = vsel %vm3111, %v8514, 0.0
  %v8701 = vadd.f32 %v8699, %v8700
  %v8702 = vsel %vm3111, %v8519, 0.0
  %v8703 = vadd.f32 %v8701, %v8702
  %v8704 = vsel %vm3111, %v8522, 0.0
  %v8705 = vadd.f32 %v8703, %v8704
  %v8706 = vsel %vm3111, %v8527, 0.0
  %v8707 = vadd.f32 %v8705, %v8706
  %v8708 = vsel %vm3111, %v8530, 0.0
  %v8709 = vadd.f32 %v8707, %v8708
  %v8710 = vsel %vm3111, %v8535, 0.0
  %v8711 = vadd.f32 %v8709, %v8710
  %v8712 = vsel %vm3111, %v8538, 0.0
  %v8713 = vadd.f32 %v8711, %v8712
  %v8714 = vsel %vm3111, %v8543, 0.0
  %v8715 = vadd.f32 %v8713, %v8714
  %v8716 = vsel %vm3111, %v8546, 0.0
  %v8717 = vadd.f32 %v8715, %v8716
  %v8718 = vsel %vm3111, %v8551, 0.0
  %v8719 = vadd.f32 %v8717, %v8718
  %v8720 = vsel %vm3111, %v8554, 0.0
  %v8721 = vadd.f32 %v8719, %v8720
  %v8722 = vsel %vm3111, %v8559, 0.0
  %v8723 = vadd.f32 %v8721, %v8722
  %v8724 = vsel %vm3111, %v8562, 0.0
  %v8725 = vadd.f32 %v8723, %v8724
  %v8726 = vsel %vm3111, %v8567, 0.0
  %v8727 = vadd.f32 %v8725, %v8726
  %v8728 = vsel %vm3111, %v8570, 0.0
  %v8729 = vadd.f32 %v8727, %v8728
  %v8730 = vsel %vm3111, %v8575, 0.0
  %v8731 = vadd.f32 %v8729, %v8730
  %v8732 = vsel %vm3111, %v8578, 0.0
  %v8733 = vadd.f32 %v8731, %v8732
  %v8734 = vsel %vm3111, %v8583, 0.0
  %v8735 = vadd.f32 %v8733, %v8734
  %v8736 = vsel %vm3111, %v8586, 0.0
  %v8737 = vadd.f32 %v8735, %v8736
  %v8738 = vsel %vm3111, %v8591, 0.0
  %v8739 = vadd.f32 %v8737, %v8738
  %v8740 = vsel %vm3111, %v8594, 0.0
  %v8741 = vadd.f32 %v8739, %v8740
  %v8742 = vsel %vm3111, %v8599, 0.0
  %v8743 = vadd.f32 %v8741, %v8742
  %v8744 = vsel %vm3111, %v8602, 0.0
  %v8745 = vadd.f32 %v8743, %v8744
  %v8746 = vsel %vm3111, %v8607, 0.0
  %v8747 = vadd.f32 %v8745, %v8746
  %v8748 = vsel %vm3111, %v8610, 0.0
  %v8749 = vadd.f32 %v8747, %v8748
  %v8750 = vsel %vm3111, %v8615, 0.0
  %v8751 = vadd.f32 %v8749, %v8750
  %v8752 = vsel %vm3111, %v8618, 0.0
  %v8753 = vadd.f32 %v8751, %v8752
  %v8754 = vsel %vm3111, %v8623, 0.0
  %v8755 = vadd.f32 %v8753, %v8754
  %v8756 = vsel %vm3111, %v8626, 0.0
  %v8757 = vadd.f32 %v8755, %v8756
  %v8758 = vrot.slane %v8757, 4
  %v8759 = vadd.f32 %v8757, %v8758
  %v8760 = vrot.slane %v8759, 2
  %v8761 = vadd.f32 %v8759, %v8760
  %v8762 = vrot.slane %v8761, 1
  %v8763 = vadd.f32 %v8761, %v8762
  %v8764 = vmul.f32 %v8375, %v8375
  %v8765 = vmul.f32 %v8378, %v8378
  %v8766 = vmul.f32 %v8383, %v8383
  %v8767 = vmul.f32 %v8386, %v8386
  %v8768 = vmul.f32 %v8391, %v8391
  %v8769 = vmul.f32 %v8394, %v8394
  %v8770 = vmul.f32 %v8399, %v8399
  %v8771 = vmul.f32 %v8402, %v8402
  %v8772 = vmul.f32 %v8407, %v8407
  %v8773 = vmul.f32 %v8410, %v8410
  %v8774 = vmul.f32 %v8415, %v8415
  %v8775 = vmul.f32 %v8418, %v8418
  %v8776 = vmul.f32 %v8423, %v8423
  %v8777 = vmul.f32 %v8426, %v8426
  %v8778 = vmul.f32 %v8431, %v8431
  %v8779 = vmul.f32 %v8434, %v8434
  %v8780 = vmul.f32 %v8439, %v8439
  %v8781 = vmul.f32 %v8442, %v8442
  %v8782 = vmul.f32 %v8447, %v8447
  %v8783 = vmul.f32 %v8450, %v8450
  %v8784 = vmul.f32 %v8455, %v8455
  %v8785 = vmul.f32 %v8458, %v8458
  %v8786 = vmul.f32 %v8463, %v8463
  %v8787 = vmul.f32 %v8466, %v8466
  %v8788 = vmul.f32 %v8471, %v8471
  %v8789 = vmul.f32 %v8474, %v8474
  %v8790 = vmul.f32 %v8479, %v8479
  %v8791 = vmul.f32 %v8482, %v8482
  %v8792 = vmul.f32 %v8487, %v8487
  %v8793 = vmul.f32 %v8490, %v8490
  %v8794 = vmul.f32 %v8495, %v8495
  %v8795 = vmul.f32 %v8498, %v8498
  %v8796 = vmul.f32 %v8503, %v8503
  %v8797 = vmul.f32 %v8506, %v8506
  %v8798 = vmul.f32 %v8511, %v8511
  %v8799 = vmul.f32 %v8514, %v8514
  %v8800 = vmul.f32 %v8519, %v8519
  %v8801 = vmul.f32 %v8522, %v8522
  %v8802 = vmul.f32 %v8527, %v8527
  %v8803 = vmul.f32 %v8530, %v8530
  %v8804 = vmul.f32 %v8535, %v8535
  %v8805 = vmul.f32 %v8538, %v8538
  %v8806 = vmul.f32 %v8543, %v8543
  %v8807 = vmul.f32 %v8546, %v8546
  %v8808 = vmul.f32 %v8551, %v8551
  %v8809 = vmul.f32 %v8554, %v8554
  %v8810 = vmul.f32 %v8559, %v8559
  %v8811 = vmul.f32 %v8562, %v8562
  %v8812 = vmul.f32 %v8567, %v8567
  %v8813 = vmul.f32 %v8570, %v8570
  %v8814 = vmul.f32 %v8575, %v8575
  %v8815 = vmul.f32 %v8578, %v8578
  %v8816 = vmul.f32 %v8583, %v8583
  %v8817 = vmul.f32 %v8586, %v8586
  %v8818 = vmul.f32 %v8591, %v8591
  %v8819 = vmul.f32 %v8594, %v8594
  %v8820 = vmul.f32 %v8599, %v8599
  %v8821 = vmul.f32 %v8602, %v8602
  %v8822 = vmul.f32 %v8607, %v8607
  %v8823 = vmul.f32 %v8610, %v8610
  %v8824 = vmul.f32 %v8615, %v8615
  %v8825 = vmul.f32 %v8618, %v8618
  %v8826 = vmul.f32 %v8623, %v8623
  %v8827 = vmul.f32 %v8626, %v8626
  %v8828 = vsel %vm3111, %v8764, 0.0
  %v8829 = vsel %vm3111, %v8765, 0.0
  %v8830 = vadd.f32 %v8828, %v8829
  %v8831 = vsel %vm3111, %v8766, 0.0
  %v8832 = vadd.f32 %v8830, %v8831
  %v8833 = vsel %vm3111, %v8767, 0.0
  %v8834 = vadd.f32 %v8832, %v8833
  %v8835 = vsel %vm3111, %v8768, 0.0
  %v8836 = vadd.f32 %v8834, %v8835
  %v8837 = vsel %vm3111, %v8769, 0.0
  %v8838 = vadd.f32 %v8836, %v8837
  %v8839 = vsel %vm3111, %v8770, 0.0
  %v8840 = vadd.f32 %v8838, %v8839
  %v8841 = vsel %vm3111, %v8771, 0.0
  %v8842 = vadd.f32 %v8840, %v8841
  %v8843 = vsel %vm3111, %v8772, 0.0
  %v8844 = vadd.f32 %v8842, %v8843
  %v8845 = vsel %vm3111, %v8773, 0.0
  %v8846 = vadd.f32 %v8844, %v8845
  %v8847 = vsel %vm3111, %v8774, 0.0
  %v8848 = vadd.f32 %v8846, %v8847
  %v8849 = vsel %vm3111, %v8775, 0.0
  %v8850 = vadd.f32 %v8848, %v8849
  %v8851 = vsel %vm3111, %v8776, 0.0
  %v8852 = vadd.f32 %v8850, %v8851
  %v8853 = vsel %vm3111, %v8777, 0.0
  %v8854 = vadd.f32 %v8852, %v8853
  %v8855 = vsel %vm3111, %v8778, 0.0
  %v8856 = vadd.f32 %v8854, %v8855
  %v8857 = vsel %vm3111, %v8779, 0.0
  %v8858 = vadd.f32 %v8856, %v8857
  %v8859 = vsel %vm3111, %v8780, 0.0
  %v8860 = vadd.f32 %v8858, %v8859
  %v8861 = vsel %vm3111, %v8781, 0.0
  %v8862 = vadd.f32 %v8860, %v8861
  %v8863 = vsel %vm3111, %v8782, 0.0
  %v8864 = vadd.f32 %v8862, %v8863
  %v8865 = vsel %vm3111, %v8783, 0.0
  %v8866 = vadd.f32 %v8864, %v8865
  %v8867 = vsel %vm3111, %v8784, 0.0
  %v8868 = vadd.f32 %v8866, %v8867
  %v8869 = vsel %vm3111, %v8785, 0.0
  %v8870 = vadd.f32 %v8868, %v8869
  %v8871 = vsel %vm3111, %v8786, 0.0
  %v8872 = vadd.f32 %v8870, %v8871
  %v8873 = vsel %vm3111, %v8787, 0.0
  %v8874 = vadd.f32 %v8872, %v8873
  %v8875 = vsel %vm3111, %v8788, 0.0
  %v8876 = vadd.f32 %v8874, %v8875
  %v8877 = vsel %vm3111, %v8789, 0.0
  %v8878 = vadd.f32 %v8876, %v8877
  %v8879 = vsel %vm3111, %v8790, 0.0
  %v8880 = vadd.f32 %v8878, %v8879
  %v8881 = vsel %vm3111, %v8791, 0.0
  %v8882 = vadd.f32 %v8880, %v8881
  %v8883 = vsel %vm3111, %v8792, 0.0
  %v8884 = vadd.f32 %v8882, %v8883
  %v8885 = vsel %vm3111, %v8793, 0.0
  %v8886 = vadd.f32 %v8884, %v8885
  %v8887 = vsel %vm3111, %v8794, 0.0
  %v8888 = vadd.f32 %v8886, %v8887
  %v8889 = vsel %vm3111, %v8795, 0.0
  %v8890 = vadd.f32 %v8888, %v8889
  %v8891 = vsel %vm3111, %v8796, 0.0
  %v8892 = vadd.f32 %v8890, %v8891
  %v8893 = vsel %vm3111, %v8797, 0.0
  %v8894 = vadd.f32 %v8892, %v8893
  %v8895 = vsel %vm3111, %v8798, 0.0
  %v8896 = vadd.f32 %v8894, %v8895
  %v8897 = vsel %vm3111, %v8799, 0.0
  %v8898 = vadd.f32 %v8896, %v8897
  %v8899 = vsel %vm3111, %v8800, 0.0
  %v8900 = vadd.f32 %v8898, %v8899
  %v8901 = vsel %vm3111, %v8801, 0.0
  %v8902 = vadd.f32 %v8900, %v8901
  %v8903 = vsel %vm3111, %v8802, 0.0
  %v8904 = vadd.f32 %v8902, %v8903
  %v8905 = vsel %vm3111, %v8803, 0.0
  %v8906 = vadd.f32 %v8904, %v8905
  %v8907 = vsel %vm3111, %v8804, 0.0
  %v8908 = vadd.f32 %v8906, %v8907
  %v8909 = vsel %vm3111, %v8805, 0.0
  %v8910 = vadd.f32 %v8908, %v8909
  %v8911 = vsel %vm3111, %v8806, 0.0
  %v8912 = vadd.f32 %v8910, %v8911
  %v8913 = vsel %vm3111, %v8807, 0.0
  %v8914 = vadd.f32 %v8912, %v8913
  %v8915 = vsel %vm3111, %v8808, 0.0
  %v8916 = vadd.f32 %v8914, %v8915
  %v8917 = vsel %vm3111, %v8809, 0.0
  %v8918 = vadd.f32 %v8916, %v8917
  %v8919 = vsel %vm3111, %v8810, 0.0
  %v8920 = vadd.f32 %v8918, %v8919
  %v8921 = vsel %vm3111, %v8811, 0.0
  %v8922 = vadd.f32 %v8920, %v8921
  %v8923 = vsel %vm3111, %v8812, 0.0
  %v8924 = vadd.f32 %v8922, %v8923
  %v8925 = vsel %vm3111, %v8813, 0.0
  %v8926 = vadd.f32 %v8924, %v8925
  %v8927 = vsel %vm3111, %v8814, 0.0
  %v8928 = vadd.f32 %v8926, %v8927
  %v8929 = vsel %vm3111, %v8815, 0.0
  %v8930 = vadd.f32 %v8928, %v8929
  %v8931 = vsel %vm3111, %v8816, 0.0
  %v8932 = vadd.f32 %v8930, %v8931
  %v8933 = vsel %vm3111, %v8817, 0.0
  %v8934 = vadd.f32 %v8932, %v8933
  %v8935 = vsel %vm3111, %v8818, 0.0
  %v8936 = vadd.f32 %v8934, %v8935
  %v8937 = vsel %vm3111, %v8819, 0.0
  %v8938 = vadd.f32 %v8936, %v8937
  %v8939 = vsel %vm3111, %v8820, 0.0
  %v8940 = vadd.f32 %v8938, %v8939
  %v8941 = vsel %vm3111, %v8821, 0.0
  %v8942 = vadd.f32 %v8940, %v8941
  %v8943 = vsel %vm3111, %v8822, 0.0
  %v8944 = vadd.f32 %v8942, %v8943
  %v8945 = vsel %vm3111, %v8823, 0.0
  %v8946 = vadd.f32 %v8944, %v8945
  %v8947 = vsel %vm3111, %v8824, 0.0
  %v8948 = vadd.f32 %v8946, %v8947
  %v8949 = vsel %vm3111, %v8825, 0.0
  %v8950 = vadd.f32 %v8948, %v8949
  %v8951 = vsel %vm3111, %v8826, 0.0
  %v8952 = vadd.f32 %v8950, %v8951
  %v8953 = vsel %vm3111, %v8827, 0.0
  %v8954 = vadd.f32 %v8952, %v8953
  %v8955 = vrot.slane %v8954, 4
  %v8956 = vadd.f32 %v8954, %v8955
  %v8957 = vrot.slane %v8956, 2
  %v8958 = vadd.f32 %v8956, %v8957
  %v8959 = vrot.slane %v8958, 1
  %v8960 = vadd.f32 %v8958, %v8959
  %v8961 = vmul.f32 %v8763, 0.001953125
  %v8962 = vmul.f32 %v8960, 0.001953125
  %v8963 = vmul.f32 %v8961, %v8961
  %v8964 = vsub.f32 %v8962, %v8963
  %v8965 = vadd.f32 %v8964, 1e-05
  %v8966 = vrsqrt.pop %v8965
  %v8967 = vmul.f32 %v8629, %v8966
  %v8968 = vmul.f32 %v8961, %v8967
  %v8969 = vsub.f32 %v8630, %v8968
  %v8971 = vlaneseq
  %v8972 = vshrl.u32 %v8971, 7
  %v8973 = vsub.s32 0, %v8972
  %v8974 = vrot.slane %v8967, %v8973
  %v8976 = vmul.f32 %v8375, %v8974
  %v8977 = vmul.f32 %v8378, %v8974
  %v8978 = vmul.f32 %v8383, %v8974
  %v8979 = vmul.f32 %v8386, %v8974
  %v8980 = vmul.f32 %v8391, %v8974
  %v8981 = vmul.f32 %v8394, %v8974
  %v8982 = vmul.f32 %v8399, %v8974
  %v8983 = vmul.f32 %v8402, %v8974
  %v8984 = vmul.f32 %v8407, %v8974
  %v8985 = vmul.f32 %v8410, %v8974
  %v8986 = vmul.f32 %v8415, %v8974
  %v8987 = vmul.f32 %v8418, %v8974
  %v8988 = vmul.f32 %v8423, %v8974
  %v8989 = vmul.f32 %v8426, %v8974
  %v8990 = vmul.f32 %v8431, %v8974
  %v8991 = vmul.f32 %v8434, %v8974
  %v8992 = vmul.f32 %v8439, %v8974
  %v8993 = vmul.f32 %v8442, %v8974
  %v8994 = vmul.f32 %v8447, %v8974
  %v8995 = vmul.f32 %v8450, %v8974
  %v8996 = vmul.f32 %v8455, %v8974
  %v8997 = vmul.f32 %v8458, %v8974
  %v8998 = vmul.f32 %v8463, %v8974
  %v8999 = vmul.f32 %v8466, %v8974
  %v9000 = vmul.f32 %v8471, %v8974
  %v9001 = vmul.f32 %v8474, %v8974
  %v9002 = vmul.f32 %v8479, %v8974
  %v9003 = vmul.f32 %v8482, %v8974
  %v9004 = vmul.f32 %v8487, %v8974
  %v9005 = vmul.f32 %v8490, %v8974
  %v9006 = vmul.f32 %v8495, %v8974
  %v9007 = vmul.f32 %v8498, %v8974
  %v9008 = vmul.f32 %v8503, %v8974
  %v9009 = vmul.f32 %v8506, %v8974
  %v9010 = vmul.f32 %v8511, %v8974
  %v9011 = vmul.f32 %v8514, %v8974
  %v9012 = vmul.f32 %v8519, %v8974
  %v9013 = vmul.f32 %v8522, %v8974
  %v9014 = vmul.f32 %v8527, %v8974
  %v9015 = vmul.f32 %v8530, %v8974
  %v9016 = vmul.f32 %v8535, %v8974
  %v9017 = vmul.f32 %v8538, %v8974
  %v9018 = vmul.f32 %v8543, %v8974
  %v9019 = vmul.f32 %v8546, %v8974
  %v9020 = vmul.f32 %v8551, %v8974
  %v9021 = vmul.f32 %v8554, %v8974
  %v9022 = vmul.f32 %v8559, %v8974
  %v9023 = vmul.f32 %v8562, %v8974
  %v9024 = vmul.f32 %v8567, %v8974
  %v9025 = vmul.f32 %v8570, %v8974
  %v9026 = vmul.f32 %v8575, %v8974
  %v9027 = vmul.f32 %v8578, %v8974
  %v9028 = vmul.f32 %v8583, %v8974
  %v9029 = vmul.f32 %v8586, %v8974
  %v9030 = vmul.f32 %v8591, %v8974
  %v9031 = vmul.f32 %v8594, %v8974
  %v9032 = vmul.f32 %v8599, %v8974
  %v9033 = vmul.f32 %v8602, %v8974
  %v9034 = vmul.f32 %v8607, %v8974
  %v9035 = vmul.f32 %v8610, %v8974
  %v9036 = vmul.f32 %v8615, %v8974
  %v9037 = vmul.f32 %v8618, %v8974
  %v9038 = vmul.f32 %v8623, %v8974
  %v9039 = vmul.f32 %v8626, %v8974
  %v9041 = vlaneseq
  %v9042 = vshrl.u32 %v9041, 7
  %v9043 = vsub.s32 0, %v9042
  %v9044 = vrot.slane %v8969, %v9043
  %v9046 = vadd.f32 %v8976, %v9044
  %v9047 = vadd.f32 %v8977, %v9044
  %v9048 = vadd.f32 %v8978, %v9044
  %v9049 = vadd.f32 %v8979, %v9044
  %v9050 = vadd.f32 %v8980, %v9044
  %v9051 = vadd.f32 %v8981, %v9044
  %v9052 = vadd.f32 %v8982, %v9044
  %v9053 = vadd.f32 %v8983, %v9044
  %v9054 = vadd.f32 %v8984, %v9044
  %v9055 = vadd.f32 %v8985, %v9044
  %v9056 = vadd.f32 %v8986, %v9044
  %v9057 = vadd.f32 %v8987, %v9044
  %v9058 = vadd.f32 %v8988, %v9044
  %v9059 = vadd.f32 %v8989, %v9044
  %v9060 = vadd.f32 %v8990, %v9044
  %v9061 = vadd.f32 %v8991, %v9044
  %v9062 = vadd.f32 %v8992, %v9044
  %v9063 = vadd.f32 %v8993, %v9044
  %v9064 = vadd.f32 %v8994, %v9044
  %v9065 = vadd.f32 %v8995, %v9044
  %v9066 = vadd.f32 %v8996, %v9044
  %v9067 = vadd.f32 %v8997, %v9044
  %v9068 = vadd.f32 %v8998, %v9044
  %v9069 = vadd.f32 %v8999, %v9044
  %v9070 = vadd.f32 %v9000, %v9044
  %v9071 = vadd.f32 %v9001, %v9044
  %v9072 = vadd.f32 %v9002, %v9044
  %v9073 = vadd.f32 %v9003, %v9044
  %v9074 = vadd.f32 %v9004, %v9044
  %v9075 = vadd.f32 %v9005, %v9044
  %v9076 = vadd.f32 %v9006, %v9044
  %v9077 = vadd.f32 %v9007, %v9044
  %v9078 = vadd.f32 %v9008, %v9044
  %v9079 = vadd.f32 %v9009, %v9044
  %v9080 = vadd.f32 %v9010, %v9044
  %v9081 = vadd.f32 %v9011, %v9044
  %v9082 = vadd.f32 %v9012, %v9044
  %v9083 = vadd.f32 %v9013, %v9044
  %v9084 = vadd.f32 %v9014, %v9044
  %v9085 = vadd.f32 %v9015, %v9044
  %v9086 = vadd.f32 %v9016, %v9044
  %v9087 = vadd.f32 %v9017, %v9044
  %v9088 = vadd.f32 %v9018, %v9044
  %v9089 = vadd.f32 %v9019, %v9044
  %v9090 = vadd.f32 %v9020, %v9044
  %v9091 = vadd.f32 %v9021, %v9044
  %v9092 = vadd.f32 %v9022, %v9044
  %v9093 = vadd.f32 %v9023, %v9044
  %v9094 = vadd.f32 %v9024, %v9044
  %v9095 = vadd.f32 %v9025, %v9044
  %v9096 = vadd.f32 %v9026, %v9044
  %v9097 = vadd.f32 %v9027, %v9044
  %v9098 = vadd.f32 %v9028, %v9044
  %v9099 = vadd.f32 %v9029, %v9044
  %v9100 = vadd.f32 %v9030, %v9044
  %v9101 = vadd.f32 %v9031, %v9044
  %v9102 = vadd.f32 %v9032, %v9044
  %v9103 = vadd.f32 %v9033, %v9044
  %v9104 = vadd.f32 %v9034, %v9044
  %v9105 = vadd.f32 %v9035, %v9044
  %v9106 = vadd.f32 %v9036, %v9044
  %v9107 = vadd.f32 %v9037, %v9044
  %v9108 = vadd.f32 %v9038, %v9044
  %v9109 = vadd.f32 %v9039, %v9044
  %v9110 = vsub.f32 0.0, %v9046
  %v9111 = vsub.f32 0.0, %v9047
  %v9112 = vsub.f32 0.0, %v9048
  %v9113 = vsub.f32 0.0, %v9049
  %v9114 = vsub.f32 0.0, %v9050
  %v9115 = vsub.f32 0.0, %v9051
  %v9116 = vsub.f32 0.0, %v9052
  %v9117 = vsub.f32 0.0, %v9053
  %v9118 = vsub.f32 0.0, %v9054
  %v9119 = vsub.f32 0.0, %v9055
  %v9120 = vsub.f32 0.0, %v9056
  %v9121 = vsub.f32 0.0, %v9057
  %v9122 = vsub.f32 0.0, %v9058
  %v9123 = vsub.f32 0.0, %v9059
  %v9124 = vsub.f32 0.0, %v9060
  %v9125 = vsub.f32 0.0, %v9061
  %v9126 = vsub.f32 0.0, %v9062
  %v9127 = vsub.f32 0.0, %v9063
  %v9128 = vsub.f32 0.0, %v9064
  %v9129 = vsub.f32 0.0, %v9065
  %v9130 = vsub.f32 0.0, %v9066
  %v9131 = vsub.f32 0.0, %v9067
  %v9132 = vsub.f32 0.0, %v9068
  %v9133 = vsub.f32 0.0, %v9069
  %v9134 = vsub.f32 0.0, %v9070
  %v9135 = vsub.f32 0.0, %v9071
  %v9136 = vsub.f32 0.0, %v9072
  %v9137 = vsub.f32 0.0, %v9073
  %v9138 = vsub.f32 0.0, %v9074
  %v9139 = vsub.f32 0.0, %v9075
  %v9140 = vsub.f32 0.0, %v9076
  %v9141 = vsub.f32 0.0, %v9077
  %v9142 = vsub.f32 0.0, %v9078
  %v9143 = vsub.f32 0.0, %v9079
  %v9144 = vsub.f32 0.0, %v9080
  %v9145 = vsub.f32 0.0, %v9081
  %v9146 = vsub.f32 0.0, %v9082
  %v9147 = vsub.f32 0.0, %v9083
  %v9148 = vsub.f32 0.0, %v9084
  %v9149 = vsub.f32 0.0, %v9085
  %v9150 = vsub.f32 0.0, %v9086
  %v9151 = vsub.f32 0.0, %v9087
  %v9152 = vsub.f32 0.0, %v9088
  %v9153 = vsub.f32 0.0, %v9089
  %v9154 = vsub.f32 0.0, %v9090
  %v9155 = vsub.f32 0.0, %v9091
  %v9156 = vsub.f32 0.0, %v9092
  %v9157 = vsub.f32 0.0, %v9093
  %v9158 = vsub.f32 0.0, %v9094
  %v9159 = vsub.f32 0.0, %v9095
  %v9160 = vsub.f32 0.0, %v9096
  %v9161 = vsub.f32 0.0, %v9097
  %v9162 = vsub.f32 0.0, %v9098
  %v9163 = vsub.f32 0.0, %v9099
  %v9164 = vsub.f32 0.0, %v9100
  %v9165 = vsub.f32 0.0, %v9101
  %v9166 = vsub.f32 0.0, %v9102
  %v9167 = vsub.f32 0.0, %v9103
  %v9168 = vsub.f32 0.0, %v9104
  %v9169 = vsub.f32 0.0, %v9105
  %v9170 = vsub.f32 0.0, %v9106
  %v9171 = vsub.f32 0.0, %v9107
  %v9172 = vsub.f32 0.0, %v9108
  %v9173 = vsub.f32 0.0, %v9109
  %v9174 = vmul.f32 %v9110, 1.442695
  %v9175 = vpow.pop %v9174
  %v9176 = vmul.f32 %v9111, 1.442695
  %v9177 = vpow.pop %v9176
  %v9178 = vmul.f32 %v9112, 1.442695
  %v9179 = vpow.pop %v9178
  %v9180 = vmul.f32 %v9113, 1.442695
  %v9181 = vpow.pop %v9180
  %v9182 = vmul.f32 %v9114, 1.442695
  %v9183 = vpow.pop %v9182
  %v9184 = vmul.f32 %v9115, 1.442695
  %v9185 = vpow.pop %v9184
  %v9186 = vmul.f32 %v9116, 1.442695
  %v9187 = vpow.pop %v9186
  %v9188 = vmul.f32 %v9117, 1.442695
  %v9189 = vpow.pop %v9188
  %v9190 = vmul.f32 %v9118, 1.442695
  %v9191 = vpow.pop %v9190
  %v9192 = vmul.f32 %v9119, 1.442695
  %v9193 = vpow.pop %v9192
  %v9194 = vmul.f32 %v9120, 1.442695
  %v9195 = vpow.pop %v9194
  %v9196 = vmul.f32 %v9121, 1.442695
  %v9197 = vpow.pop %v9196
  %v9198 = vmul.f32 %v9122, 1.442695
  %v9199 = vpow.pop %v9198
  %v9200 = vmul.f32 %v9123, 1.442695
  %v9201 = vpow.pop %v9200
  %v9202 = vmul.f32 %v9124, 1.442695
  %v9203 = vpow.pop %v9202
  %v9204 = vmul.f32 %v9125, 1.442695
  %v9205 = vpow.pop %v9204
  %v9206 = vmul.f32 %v9126, 1.442695
  %v9207 = vpow.pop %v9206
  %v9208 = vmul.f32 %v9127, 1.442695
  %v9209 = vpow.pop %v9208
  %v9210 = vmul.f32 %v9128, 1.442695
  %v9211 = vpow.pop %v9210
  %v9212 = vmul.f32 %v9129, 1.442695
  %v9213 = vpow.pop %v9212
  %v9214 = vmul.f32 %v9130, 1.442695
  %v9215 = vpow.pop %v9214
  %v9216 = vmul.f32 %v9131, 1.442695
  %v9217 = vpow.pop %v9216
  %v9218 = vmul.f32 %v9132, 1.442695
  %v9219 = vpow.pop %v9218
  %v9220 = vmul.f32 %v9133, 1.442695
  %v9221 = vpow.pop %v9220
  %v9222 = vmul.f32 %v9134, 1.442695
  %v9223 = vpow.pop %v9222
  %v9224 = vmul.f32 %v9135, 1.442695
  %v9225 = vpow.pop %v9224
  %v9226 = vmul.f32 %v9136, 1.442695
  %v9227 = vpow.pop %v9226
  %v9228 = vmul.f32 %v9137, 1.442695
  %v9229 = vpow.pop %v9228
  %v9230 = vmul.f32 %v9138, 1.442695
  %v9231 = vpow.pop %v9230
  %v9232 = vmul.f32 %v9139, 1.442695
  %v9233 = vpow.pop %v9232
  %v9234 = vmul.f32 %v9140, 1.442695
  %v9235 = vpow.pop %v9234
  %v9236 = vmul.f32 %v9141, 1.442695
  %v9237 = vpow.pop %v9236
  %v9238 = vmul.f32 %v9142, 1.442695
  %v9239 = vpow.pop %v9238
  %v9240 = vmul.f32 %v9143, 1.442695
  %v9241 = vpow.pop %v9240
  %v9242 = vmul.f32 %v9144, 1.442695
  %v9243 = vpow.pop %v9242
  %v9244 = vmul.f32 %v9145, 1.442695
  %v9245 = vpow.pop %v9244
  %v9246 = vmul.f32 %v9146, 1.442695
  %v9247 = vpow.pop %v9246
  %v9248 = vmul.f32 %v9147, 1.442695
  %v9249 = vpow.pop %v9248
  %v9250 = vmul.f32 %v9148, 1.442695
  %v9251 = vpow.pop %v9250
  %v9252 = vmul.f32 %v9149, 1.442695
  %v9253 = vpow.pop %v9252
  %v9254 = vmul.f32 %v9150, 1.442695
  %v9255 = vpow.pop %v9254
  %v9256 = vmul.f32 %v9151, 1.442695
  %v9257 = vpow.pop %v9256
  %v9258 = vmul.f32 %v9152, 1.442695
  %v9259 = vpow.pop %v9258
  %v9260 = vmul.f32 %v9153, 1.442695
  %v9261 = vpow.pop %v9260
  %v9262 = vmul.f32 %v9154, 1.442695
  %v9263 = vpow.pop %v9262
  %v9264 = vmul.f32 %v9155, 1.442695
  %v9265 = vpow.pop %v9264
  %v9266 = vmul.f32 %v9156, 1.442695
  %v9267 = vpow.pop %v9266
  %v9268 = vmul.f32 %v9157, 1.442695
  %v9269 = vpow.pop %v9268
  %v9270 = vmul.f32 %v9158, 1.442695
  %v9271 = vpow.pop %v9270
  %v9272 = vmul.f32 %v9159, 1.442695
  %v9273 = vpow.pop %v9272
  %v9274 = vmul.f32 %v9160, 1.442695
  %v9275 = vpow.pop %v9274
  %v9276 = vmul.f32 %v9161, 1.442695
  %v9277 = vpow.pop %v9276
  %v9278 = vmul.f32 %v9162, 1.442695
  %v9279 = vpow.pop %v9278
  %v9280 = vmul.f32 %v9163, 1.442695
  %v9281 = vpow.pop %v9280
  %v9282 = vmul.f32 %v9164, 1.442695
  %v9283 = vpow.pop %v9282
  %v9284 = vmul.f32 %v9165, 1.442695
  %v9285 = vpow.pop %v9284
  %v9286 = vmul.f32 %v9166, 1.442695
  %v9287 = vpow.pop %v9286
  %v9288 = vmul.f32 %v9167, 1.442695
  %v9289 = vpow.pop %v9288
  %v9290 = vmul.f32 %v9168, 1.442695
  %v9291 = vpow.pop %v9290
  %v9292 = vmul.f32 %v9169, 1.442695
  %v9293 = vpow.pop %v9292
  %v9294 = vmul.f32 %v9170, 1.442695
  %v9295 = vpow.pop %v9294
  %v9296 = vmul.f32 %v9171, 1.442695
  %v9297 = vpow.pop %v9296
  %v9298 = vmul.f32 %v9172, 1.442695
  %v9299 = vpow.pop %v9298
  %v9300 = vmul.f32 %v9173, 1.442695
  %v9301 = vpow.pop %v9300
  %v9302 = vadd.f32 %v9175, 1.0
  %v9303 = vadd.f32 %v9177, 1.0
  %v9304 = vadd.f32 %v9179, 1.0
  %v9305 = vadd.f32 %v9181, 1.0
  %v9306 = vadd.f32 %v9183, 1.0
  %v9307 = vadd.f32 %v9185, 1.0
  %v9308 = vadd.f32 %v9187, 1.0
  %v9309 = vadd.f32 %v9189, 1.0
  %v9310 = vadd.f32 %v9191, 1.0
  %v9311 = vadd.f32 %v9193, 1.0
  %v9312 = vadd.f32 %v9195, 1.0
  %v9313 = vadd.f32 %v9197, 1.0
  %v9314 = vadd.f32 %v9199, 1.0
  %v9315 = vadd.f32 %v9201, 1.0
  %v9316 = vadd.f32 %v9203, 1.0
  %v9317 = vadd.f32 %v9205, 1.0
  %v9318 = vadd.f32 %v9207, 1.0
  %v9319 = vadd.f32 %v9209, 1.0
  %v9320 = vadd.f32 %v9211, 1.0
  %v9321 = vadd.f32 %v9213, 1.0
  %v9322 = vadd.f32 %v9215, 1.0
  %v9323 = vadd.f32 %v9217, 1.0
  %v9324 = vadd.f32 %v9219, 1.0
  %v9325 = vadd.f32 %v9221, 1.0
  %v9326 = vadd.f32 %v9223, 1.0
  %v9327 = vadd.f32 %v9225, 1.0
  %v9328 = vadd.f32 %v9227, 1.0
  %v9329 = vadd.f32 %v9229, 1.0
  %v9330 = vadd.f32 %v9231, 1.0
  %v9331 = vadd.f32 %v9233, 1.0
  %v9332 = vadd.f32 %v9235, 1.0
  %v9333 = vadd.f32 %v9237, 1.0
  %v9334 = vadd.f32 %v9239, 1.0
  %v9335 = vadd.f32 %v9241, 1.0
  %v9336 = vadd.f32 %v9243, 1.0
  %v9337 = vadd.f32 %v9245, 1.0
  %v9338 = vadd.f32 %v9247, 1.0
  %v9339 = vadd.f32 %v9249, 1.0
  %v9340 = vadd.f32 %v9251, 1.0
  %v9341 = vadd.f32 %v9253, 1.0
  %v9342 = vadd.f32 %v9255, 1.0
  %v9343 = vadd.f32 %v9257, 1.0
  %v9344 = vadd.f32 %v9259, 1.0
  %v9345 = vadd.f32 %v9261, 1.0
  %v9346 = vadd.f32 %v9263, 1.0
  %v9347 = vadd.f32 %v9265, 1.0
  %v9348 = vadd.f32 %v9267, 1.0
  %v9349 = vadd.f32 %v9269, 1.0
  %v9350 = vadd.f32 %v9271, 1.0
  %v9351 = vadd.f32 %v9273, 1.0
  %v9352 = vadd.f32 %v9275, 1.0
  %v9353 = vadd.f32 %v9277, 1.0
  %v9354 = vadd.f32 %v9279, 1.0
  %v9355 = vadd.f32 %v9281, 1.0
  %v9356 = vadd.f32 %v9283, 1.0
  %v9357 = vadd.f32 %v9285, 1.0
  %v9358 = vadd.f32 %v9287, 1.0
  %v9359 = vadd.f32 %v9289, 1.0
  %v9360 = vadd.f32 %v9291, 1.0
  %v9361 = vadd.f32 %v9293, 1.0
  %v9362 = vadd.f32 %v9295, 1.0
  %v9363 = vadd.f32 %v9297, 1.0
  %v9364 = vadd.f32 %v9299, 1.0
  %v9365 = vadd.f32 %v9301, 1.0
  %v9366 = vrcp.pop %v9302
  %v9367 = vrcp.pop %v9303
  %v9368 = vrcp.pop %v9304
  %v9369 = vrcp.pop %v9305
  %v9370 = vrcp.pop %v9306
  %v9371 = vrcp.pop %v9307
  %v9372 = vrcp.pop %v9308
  %v9373 = vrcp.pop %v9309
  %v9374 = vrcp.pop %v9310
  %v9375 = vrcp.pop %v9311
  %v9376 = vrcp.pop %v9312
  %v9377 = vrcp.pop %v9313
  %v9378 = vrcp.pop %v9314
  %v9379 = vrcp.pop %v9315
  %v9380 = vrcp.pop %v9316
  %v9381 = vrcp.pop %v9317
  %v9382 = vrcp.pop %v9318
  %v9383 = vrcp.pop %v9319
  %v9384 = vrcp.pop %v9320
  %v9385 = vrcp.pop %v9321
  %v9386 = vrcp.pop %v9322
  %v9387 = vrcp.pop %v9323
  %v9388 = vrcp.pop %v9324
  %v9389 = vrcp.pop %v9325
  %v9390 = vrcp.pop %v9326
  %v9391 = vrcp.pop %v9327
  %v9392 = vrcp.pop %v9328
  %v9393 = vrcp.pop %v9329
  %v9394 = vrcp.pop %v9330
  %v9395 = vrcp.pop %v9331
  %v9396 = vrcp.pop %v9332
  %v9397 = vrcp.pop %v9333
  %v9398 = vrcp.pop %v9334
  %v9399 = vrcp.pop %v9335
  %v9400 = vrcp.pop %v9336
  %v9401 = vrcp.pop %v9337
  %v9402 = vrcp.pop %v9338
  %v9403 = vrcp.pop %v9339
  %v9404 = vrcp.pop %v9340
  %v9405 = vrcp.pop %v9341
  %v9406 = vrcp.pop %v9342
  %v9407 = vrcp.pop %v9343
  %v9408 = vrcp.pop %v9344
  %v9409 = vrcp.pop %v9345
  %v9410 = vrcp.pop %v9346
  %v9411 = vrcp.pop %v9347
  %v9412 = vrcp.pop %v9348
  %v9413 = vrcp.pop %v9349
  %v9414 = vrcp.pop %v9350
  %v9415 = vrcp.pop %v9351
  %v9416 = vrcp.pop %v9352
  %v9417 = vrcp.pop %v9353
  %v9418 = vrcp.pop %v9354
  %v9419 = vrcp.pop %v9355
  %v9420 = vrcp.pop %v9356
  %v9421 = vrcp.pop %v9357
  %v9422 = vrcp.pop %v9358
  %v9423 = vrcp.pop %v9359
  %v9424 = vrcp.pop %v9360
  %v9425 = vrcp.pop %v9361
  %v9426 = vrcp.pop %v9362
  %v9427 = vrcp.pop %v9363
  %v9428 = vrcp.pop %v9364
  %v9429 = vrcp.pop %v9365
  %v9430 = vmul.f32 %v9046, %v9366
  %v9431 = vmul.f32 %v9047, %v9367
  %v9432 = vmul.f32 %v9048, %v9368
  %v9433 = vmul.f32 %v9049, %v9369
  %v9434 = vmul.f32 %v9050, %v9370
  %v9435 = vmul.f32 %v9051, %v9371
  %v9436 = vmul.f32 %v9052, %v9372
  %v9437 = vmul.f32 %v9053, %v9373
  %v9438 = vmul.f32 %v9054, %v9374
  %v9439 = vmul.f32 %v9055, %v9375
  %v9440 = vmul.f32 %v9056, %v9376
  %v9441 = vmul.f32 %v9057, %v9377
  %v9442 = vmul.f32 %v9058, %v9378
  %v9443 = vmul.f32 %v9059, %v9379
  %v9444 = vmul.f32 %v9060, %v9380
  %v9445 = vmul.f32 %v9061, %v9381
  %v9446 = vmul.f32 %v9062, %v9382
  %v9447 = vmul.f32 %v9063, %v9383
  %v9448 = vmul.f32 %v9064, %v9384
  %v9449 = vmul.f32 %v9065, %v9385
  %v9450 = vmul.f32 %v9066, %v9386
  %v9451 = vmul.f32 %v9067, %v9387
  %v9452 = vmul.f32 %v9068, %v9388
  %v9453 = vmul.f32 %v9069, %v9389
  %v9454 = vmul.f32 %v9070, %v9390
  %v9455 = vmul.f32 %v9071, %v9391
  %v9456 = vmul.f32 %v9072, %v9392
  %v9457 = vmul.f32 %v9073, %v9393
  %v9458 = vmul.f32 %v9074, %v9394
  %v9459 = vmul.f32 %v9075, %v9395
  %v9460 = vmul.f32 %v9076, %v9396
  %v9461 = vmul.f32 %v9077, %v9397
  %v9462 = vmul.f32 %v9078, %v9398
  %v9463 = vmul.f32 %v9079, %v9399
  %v9464 = vmul.f32 %v9080, %v9400
  %v9465 = vmul.f32 %v9081, %v9401
  %v9466 = vmul.f32 %v9082, %v9402
  %v9467 = vmul.f32 %v9083, %v9403
  %v9468 = vmul.f32 %v9084, %v9404
  %v9469 = vmul.f32 %v9085, %v9405
  %v9470 = vmul.f32 %v9086, %v9406
  %v9471 = vmul.f32 %v9087, %v9407
  %v9472 = vmul.f32 %v9088, %v9408
  %v9473 = vmul.f32 %v9089, %v9409
  %v9474 = vmul.f32 %v9090, %v9410
  %v9475 = vmul.f32 %v9091, %v9411
  %v9476 = vmul.f32 %v9092, %v9412
  %v9477 = vmul.f32 %v9093, %v9413
  %v9478 = vmul.f32 %v9094, %v9414
  %v9479 = vmul.f32 %v9095, %v9415
  %v9480 = vmul.f32 %v9096, %v9416
  %v9481 = vmul.f32 %v9097, %v9417
  %v9482 = vmul.f32 %v9098, %v9418
  %v9483 = vmul.f32 %v9099, %v9419
  %v9484 = vmul.f32 %v9100, %v9420
  %v9485 = vmul.f32 %v9101, %v9421
  %v9486 = vmul.f32 %v9102, %v9422
  %v9487 = vmul.f32 %v9103, %v9423
  %v9488 = vmul.f32 %v9104, %v9424
  %v9489 = vmul.f32 %v9105, %v9425
  %v9490 = vmul.f32 %v9106, %v9426
  %v9491 = vmul.f32 %v9107, %v9427
  %v9492 = vmul.f32 %v9108, %v9428
  %v9493 = vmul.f32 %v9109, %v9429
  %v9494 = vpack.c.bf16 %v49, %v48
  %v9495 = vpack.c.bf16 %v51, %v50
  %v9496 = vpack.c.bf16 %v53, %v52
  %v9497 = vpack.c.bf16 %v55, %v54
  %v9498 = vpack.c.bf16 %v57, %v56
  %v9499 = vpack.c.bf16 %v59, %v58
  %v9500 = vpack.c.bf16 %v61, %v60
  %v9501 = vpack.c.bf16 %v63, %v62
  %v9502 = vpack.c.bf16 %v65, %v64
  %v9503 = vpack.c.bf16 %v67, %v66
  %v9504 = vpack.c.bf16 %v69, %v68
  %v9505 = vpack.c.bf16 %v71, %v70
  %v9506 = vpack.c.bf16 %v73, %v72
  %v9507 = vpack.c.bf16 %v75, %v74
  %v9508 = vpack.c.bf16 %v77, %v76
  %v9509 = vpack.c.bf16 %v79, %v78
  %v9510 = vpack.c.bf16 %v81, %v80
  %v9511 = vpack.c.bf16 %v83, %v82
  %v9512 = vpack.c.bf16 %v85, %v84
  %v9513 = vpack.c.bf16 %v87, %v86
  %v9514 = vpack.c.bf16 %v89, %v88
  %v9515 = vpack.c.bf16 %v91, %v90
  %v9516 = vpack.c.bf16 %v93, %v92
  %v9517 = vpack.c.bf16 %v95, %v94
  %v9518 = vpack.c.bf16 %v97, %v96
  %v9519 = vpack.c.bf16 %v99, %v98
  %v9520 = vpack.c.bf16 %v101, %v100
  %v9521 = vpack.c.bf16 %v103, %v102
  %v9522 = vpack.c.bf16 %v105, %v104
  %v9523 = vpack.c.bf16 %v107, %v106
  %v9524 = vpack.c.bf16 %v109, %v108
  %v9525 = vpack.c.bf16 %v111, %v110
  %v9526 = vld [vmem:[%s12] sm:$0x3]
  %v9527 = vld [vmem:[%s13] sm:$0x1]
  %v9529 = vlaneseq
  %v9530 = vshrl.u32 %v9529, 7
  %v9531 = vsub.s32 0, %v9530
  %v9532 = vrot.slane %v9527, %v9531
  %v9535 = vsel %vm277, %v9494, 0
  %v9538 = vsel %vm277, %v9495, 0
  %v9541 = vsel %vm277, %v9496, 0
  %v9544 = vsel %vm277, %v9497, 0
  %v9547 = vsel %vm277, %v9498, 0
  %v9550 = vsel %vm277, %v9499, 0
  %v9553 = vsel %vm277, %v9500, 0
  %v9556 = vsel %vm277, %v9501, 0
  %v9559 = vsel %vm277, %v9502, 0
  %v9562 = vsel %vm277, %v9503, 0
  %v9565 = vsel %vm277, %v9504, 0
  %v9568 = vsel %vm277, %v9505, 0
  %v9571 = vsel %vm277, %v9506, 0
  %v9574 = vsel %vm277, %v9507, 0
  %v9577 = vsel %vm277, %v9508, 0
  %v9580 = vsel %vm277, %v9509, 0
  %v9583 = vsel %vm277, %v9510, 0
  %v9586 = vsel %vm277, %v9511, 0
  %v9589 = vsel %vm277, %v9512, 0
  %v9592 = vsel %vm277, %v9513, 0
  %v9595 = vsel %vm277, %v9514, 0
  %v9598 = vsel %vm277, %v9515, 0
  %v9601 = vsel %vm277, %v9516, 0
  %v9604 = vsel %vm277, %v9517, 0
  %v9607 = vsel %vm277, %v9518, 0
  %v9610 = vsel %vm277, %v9519, 0
  %v9613 = vsel %vm277, %v9520, 0
  %v9616 = vsel %vm277, %v9521, 0
  %v9619 = vsel %vm277, %v9522, 0
  %v9622 = vsel %vm277, %v9523, 0
  %v9625 = vsel %vm277, %v9524, 0
  %v9628 = vsel %vm277, %v9525, 0
  %v9631 = vsel %vm3721, %v9526, 0
  %9633 = vmatprep.subr.bf16.mxu0 0
  %9634 = vmatpush1.bf16.msra.mxu0 %v9631
  %9635 = vmatprep.subr.bf16.mxu0 0
  %9636 = vmatpush1.bf16.msra.mxu0 0
  %9637 = vmatprep.subr.bf16.mxu0 0
  %9638 = vmatpush1.bf16.msra.mxu0 0
  %9639 = vmatprep.subr.bf16.mxu0 0
  %9640 = vmatpush1.bf16.msra.mxu0 0
  %9641 = vmatprep.subr.bf16.mxu0 0
  %9642 = vmatpush1.bf16.msra.mxu0 0
  %9643 = vmatprep.subr.bf16.mxu0 0
  %9644 = vmatpush1.bf16.msra.mxu0 0
  %9645 = vmatprep.subr.bf16.mxu0 0
  %9646 = vmatpush1.bf16.msra.mxu0 0
  %9647 = vmatprep.subr.bf16.mxu0 0
  %9648 = vmatpush1.bf16.msra.mxu0 0
  %9649 = vmatprep.subr.bf16.mxu0 0
  %9650 = vmatpush1.bf16.msra.mxu0 0
  %9651 = vmatprep.subr.bf16.mxu0 0
  %9652 = vmatpush1.bf16.msra.mxu0 0
  %9653 = vmatprep.subr.bf16.mxu0 0
  %9654 = vmatpush1.bf16.msra.mxu0 0
  %9655 = vmatprep.subr.bf16.mxu0 0
  %9656 = vmatpush1.bf16.msra.mxu0 0
  %9657 = vmatprep.subr.bf16.mxu0 0
  %9658 = vmatpush1.bf16.msra.mxu0 0
  %9659 = vmatprep.subr.bf16.mxu0 0
  %9660 = vmatpush1.bf16.msra.mxu0 0
  %9661 = vmatprep.subr.bf16.mxu0 0
  %9662 = vmatpush1.bf16.msra.mxu0 0
  %9663 = vmatprep.subr.bf16.mxu0 0
  %9664 = vmatpush1.bf16.msra.mxu0 0
  %9665 = vmatprep.mubr.bf16.mxu0 0
  %9666 = vmatmul.mubr.bf16.gmra.mrb[0].mxu0 %v9535
  %v9667 = vpop.f32.mrb[0].mxu0
  %v9668 = vadd.f32 %v9532, %v9667
  %v9669 = vpop.f32.mrb[0].mxu0
  %v9670 = vpop.f32.mrb[0].mxu0
  %v9671 = vadd.f32 %v9532, %v9670
  %v9672 = vpop.f32.mrb[0].mxu0
  %9673 = vmatprep.mubr.bf16.mxu0 0
  %9674 = vmatmul.mubr.bf16.gmra.mrb[0].mxu0 %v9538
  %v9675 = vpop.f32.mrb[0].mxu0
  %v9676 = vadd.f32 %v9532, %v9675
  %v9677 = vpop.f32.mrb[0].mxu0
  %v9678 = vpop.f32.mrb[0].mxu0
  %v9679 = vadd.f32 %v9532, %v9678
  %v9680 = vpop.f32.mrb[0].mxu0
  %9681 = vmatprep.mubr.bf16.mxu0 0
  %9682 = vmatmul.mubr.bf16.gmra.mrb[0].mxu0 %v9541
  %v9683 = vpop.f32.mrb[0].mxu0
  %v9684 = vadd.f32 %v9532, %v9683
  %v9685 = vpop.f32.mrb[0].mxu0
  %v9686 = vpop.f32.mrb[0].mxu0
  %v9687 = vadd.f32 %v9532, %v9686
  %v9688 = vpop.f32.mrb[0].mxu0
  %9689 = vmatprep.mubr.bf16.mxu0 0
  %9690 = vmatmul.mubr.bf16.gmra.mrb[0].mxu0 %v9544
  %v9691 = vpop.f32.mrb[0].mxu0
  %v9692 = vadd.f32 %v9532, %v9691
  %v9693 = vpop.f32.mrb[0].mxu0
  %v9694 = vpop.f32.mrb[0].mxu0
  %v9695 = vadd.f32 %v9532, %v9694
  %v9696 = vpop.f32.mrb[0].mxu0
  %9697 = vmatprep.mubr.bf16.mxu0 0
  %9698 = vmatmul.mubr.bf16.gmra.mrb[0].mxu0 %v9547
  %v9699 = vpop.f32.mrb[0].mxu0
  %v9700 = vadd.f32 %v9532, %v9699
  %v9701 = vpop.f32.mrb[0].mxu0
  %v9702 = vpop.f32.mrb[0].mxu0
  %v9703 = vadd.f32 %v9532, %v9702
  %v9704 = vpop.f32.mrb[0].mxu0
  %9705 = vmatprep.mubr.bf16.mxu0 0
  %9706 = vmatmul.mubr.bf16.gmra.mrb[0].mxu0 %v9550
  %v9707 = vpop.f32.mrb[0].mxu0
  %v9708 = vadd.f32 %v9532, %v9707
  %v9709 = vpop.f32.mrb[0].mxu0
  %v9710 = vpop.f32.mrb[0].mxu0
  %v9711 = vadd.f32 %v9532, %v9710
  %v9712 = vpop.f32.mrb[0].mxu0
  %9713 = vmatprep.mubr.bf16.mxu0 0
  %9714 = vmatmul.mubr.bf16.gmra.mrb[0].mxu0 %v9553
  %v9715 = vpop.f32.mrb[0].mxu0
  %v9716 = vadd.f32 %v9532, %v9715
  %v9717 = vpop.f32.mrb[0].mxu0
  %v9718 = vpop.f32.mrb[0].mxu0
  %v9719 = vadd.f32 %v9532, %v9718
  %v9720 = vpop.f32.mrb[0].mxu0
  %9721 = vmatprep.mubr.bf16.mxu0 0
  %9722 = vmatmul.mubr.bf16.gmra.mrb[0].mxu0 %v9556
  %v9723 = vpop.f32.mrb[0].mxu0
  %v9724 = vadd.f32 %v9532, %v9723
  %v9725 = vpop.f32.mrb[0].mxu0
  %v9726 = vpop.f32.mrb[0].mxu0
  %v9727 = vadd.f32 %v9532, %v9726
  %v9728 = vpop.f32.mrb[0].mxu0
  %9729 = vmatprep.mubr.bf16.mxu0 0
  %9730 = vmatmul.mubr.bf16.gmra.mrb[0].mxu0 %v9559
  %v9731 = vpop.f32.mrb[0].mxu0
  %v9732 = vadd.f32 %v9532, %v9731
  %v9733 = vpop.f32.mrb[0].mxu0
  %v9734 = vpop.f32.mrb[0].mxu0
  %v9735 = vadd.f32 %v9532, %v9734
  %v9736 = vpop.f32.mrb[0].mxu0
  %9737 = vmatprep.mubr.bf16.mxu0 0
  %9738 = vmatmul.mubr.bf16.gmra.mrb[0].mxu0 %v9562
  %v9739 = vpop.f32.mrb[0].mxu0
  %v9740 = vadd.f32 %v9532, %v9739
  %v9741 = vpop.f32.mrb[0].mxu0
  %v9742 = vpop.f32.mrb[0].mxu0
  %v9743 = vadd.f32 %v9532, %v9742
  %v9744 = vpop.f32.mrb[0].mxu0
  %9745 = vmatprep.mubr.bf16.mxu0 0
  %9746 = vmatmul.mubr.bf16.gmra.mrb[0].mxu0 %v9565
  %v9747 = vpop.f32.mrb[0].mxu0
  %v9748 = vadd.f32 %v9532, %v9747
  %v9749 = vpop.f32.mrb[0].mxu0
  %v9750 = vpop.f32.mrb[0].mxu0
  %v9751 = vadd.f32 %v9532, %v9750
  %v9752 = vpop.f32.mrb[0].mxu0
  %9753 = vmatprep.mubr.bf16.mxu0 0
  %9754 = vmatmul.mubr.bf16.gmra.mrb[0].mxu0 %v9568
  %v9755 = vpop.f32.mrb[0].mxu0
  %v9756 = vadd.f32 %v9532, %v9755
  %v9757 = vpop.f32.mrb[0].mxu0
  %v9758 = vpop.f32.mrb[0].mxu0
  %v9759 = vadd.f32 %v9532, %v9758
  %v9760 = vpop.f32.mrb[0].mxu0
  %9761 = vmatprep.mubr.bf16.mxu0 0
  %9762 = vmatmul.mubr.bf16.gmra.mrb[0].mxu0 %v9571
  %v9763 = vpop.f32.mrb[0].mxu0
  %v9764 = vadd.f32 %v9532, %v9763
  %v9765 = vpop.f32.mrb[0].mxu0
  %v9766 = vpop.f32.mrb[0].mxu0
  %v9767 = vadd.f32 %v9532, %v9766
  %v9768 = vpop.f32.mrb[0].mxu0
  %9769 = vmatprep.mubr.bf16.mxu0 0
  %9770 = vmatmul.mubr.bf16.gmra.mrb[0].mxu0 %v9574
  %v9771 = vpop.f32.mrb[0].mxu0
  %v9772 = vadd.f32 %v9532, %v9771
  %v9773 = vpop.f32.mrb[0].mxu0
  %v9774 = vpop.f32.mrb[0].mxu0
  %v9775 = vadd.f32 %v9532, %v9774
  %v9776 = vpop.f32.mrb[0].mxu0
  %9777 = vmatprep.mubr.bf16.mxu0 0
  %9778 = vmatmul.mubr.bf16.gmra.mrb[0].mxu0 %v9577
  %v9779 = vpop.f32.mrb[0].mxu0
  %v9780 = vadd.f32 %v9532, %v9779
  %v9781 = vpop.f32.mrb[0].mxu0
  %v9782 = vpop.f32.mrb[0].mxu0
  %v9783 = vadd.f32 %v9532, %v9782
  %v9784 = vpop.f32.mrb[0].mxu0
  %9785 = vmatprep.mubr.bf16.mxu0 0
  %9786 = vmatmul.mubr.bf16.gmra.mrb[0].mxu0 %v9580
  %v9787 = vpop.f32.mrb[0].mxu0
  %v9788 = vadd.f32 %v9532, %v9787
  %v9789 = vpop.f32.mrb[0].mxu0
  %v9790 = vpop.f32.mrb[0].mxu0
  %v9791 = vadd.f32 %v9532, %v9790
  %v9792 = vpop.f32.mrb[0].mxu0
  %9793 = vmatprep.mubr.bf16.mxu0 0
  %9794 = vmatmul.mubr.bf16.gmra.mrb[0].mxu0 %v9583
  %v9795 = vpop.f32.mrb[0].mxu0
  %v9796 = vadd.f32 %v9532, %v9795
  %v9797 = vpop.f32.mrb[0].mxu0
  %v9798 = vpop.f32.mrb[0].mxu0
  %v9799 = vadd.f32 %v9532, %v9798
  %v9800 = vpop.f32.mrb[0].mxu0
  %9801 = vmatprep.mubr.bf16.mxu0 0
  %9802 = vmatmul.mubr.bf16.gmra.mrb[0].mxu0 %v9586
  %v9803 = vpop.f32.mrb[0].mxu0
  %v9804 = vadd.f32 %v9532, %v9803
  %v9805 = vpop.f32.mrb[0].mxu0
  %v9806 = vpop.f32.mrb[0].mxu0
  %v9807 = vadd.f32 %v9532, %v9806
  %v9808 = vpop.f32.mrb[0].mxu0
  %9809 = vmatprep.mubr.bf16.mxu0 0
  %9810 = vmatmul.mubr.bf16.gmra.mrb[0].mxu0 %v9589
  %v9811 = vpop.f32.mrb[0].mxu0
  %v9812 = vadd.f32 %v9532, %v9811
  %v9813 = vpop.f32.mrb[0].mxu0
  %v9814 = vpop.f32.mrb[0].mxu0
  %v9815 = vadd.f32 %v9532, %v9814
  %v9816 = vpop.f32.mrb[0].mxu0
  %9817 = vmatprep.mubr.bf16.mxu0 0
  %9818 = vmatmul.mubr.bf16.gmra.mrb[0].mxu0 %v9592
  %v9819 = vpop.f32.mrb[0].mxu0
  %v9820 = vadd.f32 %v9532, %v9819
  %v9821 = vpop.f32.mrb[0].mxu0
  %v9822 = vpop.f32.mrb[0].mxu0
  %v9823 = vadd.f32 %v9532, %v9822
  %v9824 = vpop.f32.mrb[0].mxu0
  %9825 = vmatprep.mubr.bf16.mxu0 0
  %9826 = vmatmul.mubr.bf16.gmra.mrb[0].mxu0 %v9595
  %v9827 = vpop.f32.mrb[0].mxu0
  %v9828 = vadd.f32 %v9532, %v9827
  %v9829 = vpop.f32.mrb[0].mxu0
  %v9830 = vpop.f32.mrb[0].mxu0
  %v9831 = vadd.f32 %v9532, %v9830
  %v9832 = vpop.f32.mrb[0].mxu0
  %9833 = vmatprep.mubr.bf16.mxu0 0
  %9834 = vmatmul.mubr.bf16.gmra.mrb[0].mxu0 %v9598
  %v9835 = vpop.f32.mrb[0].mxu0
  %v9836 = vadd.f32 %v9532, %v9835
  %v9837 = vpop.f32.mrb[0].mxu0
  %v9838 = vpop.f32.mrb[0].mxu0
  %v9839 = vadd.f32 %v9532, %v9838
  %v9840 = vpop.f32.mrb[0].mxu0
  %9841 = vmatprep.mubr.bf16.mxu0 0
  %9842 = vmatmul.mubr.bf16.gmra.mrb[0].mxu0 %v9601
  %v9843 = vpop.f32.mrb[0].mxu0
  %v9844 = vadd.f32 %v9532, %v9843
  %v9845 = vpop.f32.mrb[0].mxu0
  %v9846 = vpop.f32.mrb[0].mxu0
  %v9847 = vadd.f32 %v9532, %v9846
  %v9848 = vpop.f32.mrb[0].mxu0
  %9849 = vmatprep.mubr.bf16.mxu0 0
  %9850 = vmatmul.mubr.bf16.gmra.mrb[0].mxu0 %v9604
  %v9851 = vpop.f32.mrb[0].mxu0
  %v9852 = vadd.f32 %v9532, %v9851
  %v9853 = vpop.f32.mrb[0].mxu0
  %v9854 = vpop.f32.mrb[0].mxu0
  %v9855 = vadd.f32 %v9532, %v9854
  %v9856 = vpop.f32.mrb[0].mxu0
  %9857 = vmatprep.mubr.bf16.mxu0 0
  %9858 = vmatmul.mubr.bf16.gmra.mrb[0].mxu0 %v9607
  %v9859 = vpop.f32.mrb[0].mxu0
  %v9860 = vadd.f32 %v9532, %v9859
  %v9861 = vpop.f32.mrb[0].mxu0
  %v9862 = vpop.f32.mrb[0].mxu0
  %v9863 = vadd.f32 %v9532, %v9862
  %v9864 = vpop.f32.mrb[0].mxu0
  %9865 = vmatprep.mubr.bf16.mxu0 0
  %9866 = vmatmul.mubr.bf16.gmra.mrb[0].mxu0 %v9610
  %v9867 = vpop.f32.mrb[0].mxu0
  %v9868 = vadd.f32 %v9532, %v9867
  %v9869 = vpop.f32.mrb[0].mxu0
  %v9870 = vpop.f32.mrb[0].mxu0
  %v9871 = vadd.f32 %v9532, %v9870
  %v9872 = vpop.f32.mrb[0].mxu0
  %9873 = vmatprep.mubr.bf16.mxu0 0
  %9874 = vmatmul.mubr.bf16.gmra.mrb[0].mxu0 %v9613
  %v9875 = vpop.f32.mrb[0].mxu0
  %v9876 = vadd.f32 %v9532, %v9875
  %v9877 = vpop.f32.mrb[0].mxu0
  %v9878 = vpop.f32.mrb[0].mxu0
  %v9879 = vadd.f32 %v9532, %v9878
  %v9880 = vpop.f32.mrb[0].mxu0
  %9881 = vmatprep.mubr.bf16.mxu0 0
  %9882 = vmatmul.mubr.bf16.gmra.mrb[0].mxu0 %v9616
  %v9883 = vpop.f32.mrb[0].mxu0
  %v9884 = vadd.f32 %v9532, %v9883
  %v9885 = vpop.f32.mrb[0].mxu0
  %v9886 = vpop.f32.mrb[0].mxu0
  %v9887 = vadd.f32 %v9532, %v9886
  %v9888 = vpop.f32.mrb[0].mxu0
  %9889 = vmatprep.mubr.bf16.mxu0 0
  %9890 = vmatmul.mubr.bf16.gmra.mrb[0].mxu0 %v9619
  %v9891 = vpop.f32.mrb[0].mxu0
  %v9892 = vadd.f32 %v9532, %v9891
  %v9893 = vpop.f32.mrb[0].mxu0
  %v9894 = vpop.f32.mrb[0].mxu0
  %v9895 = vadd.f32 %v9532, %v9894
  %v9896 = vpop.f32.mrb[0].mxu0
  %9897 = vmatprep.mubr.bf16.mxu0 0
  %9898 = vmatmul.mubr.bf16.gmra.mrb[0].mxu0 %v9622
  %v9899 = vpop.f32.mrb[0].mxu0
  %v9900 = vadd.f32 %v9532, %v9899
  %v9901 = vpop.f32.mrb[0].mxu0
  %v9902 = vpop.f32.mrb[0].mxu0
  %v9903 = vadd.f32 %v9532, %v9902
  %v9904 = vpop.f32.mrb[0].mxu0
  %9905 = vmatprep.mubr.bf16.mxu0 0
  %9906 = vmatmul.mubr.bf16.gmra.mrb[0].mxu0 %v9625
  %v9907 = vpop.f32.mrb[0].mxu0
  %v9908 = vadd.f32 %v9532, %v9907
  %v9909 = vpop.f32.mrb[0].mxu0
  %v9910 = vpop.f32.mrb[0].mxu0
  %v9911 = vadd.f32 %v9532, %v9910
  %v9912 = vpop.f32.mrb[0].mxu0
  %9913 = vmatprep.mubr.bf16.mxu0 0
  %9914 = vmatmul.mubr.bf16.gmra.mrb[0].mxu0 %v9628
  %v9915 = vpop.f32.mrb[0].mxu0
  %v9916 = vadd.f32 %v9532, %v9915
  %v9917 = vpop.f32.mrb[0].mxu0
  %v9918 = vpop.f32.mrb[0].mxu0
  %v9919 = vadd.f32 %v9532, %v9918
  %v9920 = vpop.f32.mrb[0].mxu0
  %9921 = vdwg.mxu0
  %v9922 = vadd.f32 %v9430, %v9668
  %v9923 = vadd.f32 %v9431, %v9671
  %v9924 = vadd.f32 %v9432, %v9676
  %v9925 = vadd.f32 %v9433, %v9679
  %v9926 = vadd.f32 %v9434, %v9684
  %v9927 = vadd.f32 %v9435, %v9687
  %v9928 = vadd.f32 %v9436, %v9692
  %v9929 = vadd.f32 %v9437, %v9695
  %v9930 = vadd.f32 %v9438, %v9700
  %v9931 = vadd.f32 %v9439, %v9703
  %v9932 = vadd.f32 %v9440, %v9708
  %v9933 = vadd.f32 %v9441, %v9711
  %v9934 = vadd.f32 %v9442, %v9716
  %v9935 = vadd.f32 %v9443, %v9719
  %v9936 = vadd.f32 %v9444, %v9724
  %v9937 = vadd.f32 %v9445, %v9727
  %v9938 = vadd.f32 %v9446, %v9732
  %v9939 = vadd.f32 %v9447, %v9735
  %v9940 = vadd.f32 %v9448, %v9740
  %v9941 = vadd.f32 %v9449, %v9743
  %v9942 = vadd.f32 %v9450, %v9748
  %v9943 = vadd.f32 %v9451, %v9751
  %v9944 = vadd.f32 %v9452, %v9756
  %v9945 = vadd.f32 %v9453, %v9759
  %v9946 = vadd.f32 %v9454, %v9764
  %v9947 = vadd.f32 %v9455, %v9767
  %v9948 = vadd.f32 %v9456, %v9772
  %v9949 = vadd.f32 %v9457, %v9775
  %v9950 = vadd.f32 %v9458, %v9780
  %v9951 = vadd.f32 %v9459, %v9783
  %v9952 = vadd.f32 %v9460, %v9788
  %v9953 = vadd.f32 %v9461, %v9791
  %v9954 = vadd.f32 %v9462, %v9796
  %v9955 = vadd.f32 %v9463, %v9799
  %v9956 = vadd.f32 %v9464, %v9804
  %v9957 = vadd.f32 %v9465, %v9807
  %v9958 = vadd.f32 %v9466, %v9812
  %v9959 = vadd.f32 %v9467, %v9815
  %v9960 = vadd.f32 %v9468, %v9820
  %v9961 = vadd.f32 %v9469, %v9823
  %v9962 = vadd.f32 %v9470, %v9828
  %v9963 = vadd.f32 %v9471, %v9831
  %v9964 = vadd.f32 %v9472, %v9836
  %v9965 = vadd.f32 %v9473, %v9839
  %v9966 = vadd.f32 %v9474, %v9844
  %v9967 = vadd.f32 %v9475, %v9847
  %v9968 = vadd.f32 %v9476, %v9852
  %v9969 = vadd.f32 %v9477, %v9855
  %v9970 = vadd.f32 %v9478, %v9860
  %v9971 = vadd.f32 %v9479, %v9863
  %v9972 = vadd.f32 %v9480, %v9868
  %v9973 = vadd.f32 %v9481, %v9871
  %v9974 = vadd.f32 %v9482, %v9876
  %v9975 = vadd.f32 %v9483, %v9879
  %v9976 = vadd.f32 %v9484, %v9884
  %v9977 = vadd.f32 %v9485, %v9887
  %v9978 = vadd.f32 %v9486, %v9892
  %v9979 = vadd.f32 %v9487, %v9895
  %v9980 = vadd.f32 %v9488, %v9900
  %v9981 = vadd.f32 %v9489, %v9903
  %v9982 = vadd.f32 %v9490, %v9908
  %v9983 = vadd.f32 %v9491, %v9911
  %v9984 = vadd.f32 %v9492, %v9916
  %v9985 = vadd.f32 %v9493, %v9919
  %9986 = vst.msk [vmem:[%s14] sm:$0xff] %vm3111, %v9922
  %9987 = vst.msk [vmem:[%s14 + $0x8] sm:$0xff] %vm3111, %v9923
  %9988 = vst.msk [vmem:[%s14 + $0x10] sm:$0xff] %vm3111, %v9924
  %9989 = vst.msk [vmem:[%s14 + $0x18] sm:$0xff] %vm3111, %v9925
  %9990 = vst.msk [vmem:[%s14 + $0x20] sm:$0xff] %vm3111, %v9926
  %9991 = vst.msk [vmem:[%s14 + $0x28] sm:$0xff] %vm3111, %v9927
  %9992 = vst.msk [vmem:[%s14 + $0x30] sm:$0xff] %vm3111, %v9928
  %9993 = vst.msk [vmem:[%s14 + $0x38] sm:$0xff] %vm3111, %v9929
  %9994 = vst.msk [vmem:[%s14 + $0x40] sm:$0xff] %vm3111, %v9930
  %9995 = vst.msk [vmem:[%s14 + $0x48] sm:$0xff] %vm3111, %v9931
  %9996 = vst.msk [vmem:[%s14 + $0x50] sm:$0xff] %vm3111, %v9932
  %9997 = vst.msk [vmem:[%s14 + $0x58] sm:$0xff] %vm3111, %v9933
  %9998 = vst.msk [vmem:[%s14 + $0x60] sm:$0xff] %vm3111, %v9934
  %9999 = vst.msk [vmem:[%s14 + $0x68] sm:$0xff] %vm3111, %v9935
  %10000 = vst.msk [vmem:[%s14 + $0x70] sm:$0xff] %vm3111, %v9936
  %10001 = vst.msk [vmem:[%s14 + $0x78] sm:$0xff] %vm3111, %v9937
  %10002 = vst.msk [vmem:[%s14 + $0x80] sm:$0xff] %vm3111, %v9938
  %10003 = vst.msk [vmem:[%s14 + $0x88] sm:$0xff] %vm3111, %v9939
  %10004 = vst.msk [vmem:[%s14 + $0x90] sm:$0xff] %vm3111, %v9940
  %10005 = vst.msk [vmem:[%s14 + $0x98] sm:$0xff] %vm3111, %v9941
  %10006 = vst.msk [vmem:[%s14 + $0xa0] sm:$0xff] %vm3111, %v9942
  %10007 = vst.msk [vmem:[%s14 + $0xa8] sm:$0xff] %vm3111, %v9943
  %10008 = vst.msk [vmem:[%s14 + $0xb0] sm:$0xff] %vm3111, %v9944
  %10009 = vst.msk [vmem:[%s14 + $0xb8] sm:$0xff] %vm3111, %v9945
  %10010 = vst.msk [vmem:[%s14 + $0xc0] sm:$0xff] %vm3111, %v9946
  %10011 = vst.msk [vmem:[%s14 + $0xc8] sm:$0xff] %vm3111, %v9947
  %10012 = vst.msk [vmem:[%s14 + $0xd0] sm:$0xff] %vm3111, %v9948
  %10013 = vst.msk [vmem:[%s14 + $0xd8] sm:$0xff] %vm3111, %v9949
  %10014 = vst.msk [vmem:[%s14 + $0xe0] sm:$0xff] %vm3111, %v9950
  %10015 = vst.msk [vmem:[%s14 + $0xe8] sm:$0xff] %vm3111, %v9951
  %10016 = vst.msk [vmem:[%s14 + $0xf0] sm:$0xff] %vm3111, %v9952
  %10017 = vst.msk [vmem:[%s14 + $0xf8] sm:$0xff] %vm3111, %v9953
  %10018 = vst.msk [vmem:[%s14 + $0x100] sm:$0xff] %vm3111, %v9954
  %10019 = vst.msk [vmem:[%s14 + $0x108] sm:$0xff] %vm3111, %v9955
  %10020 = vst.msk [vmem:[%s14 + $0x110] sm:$0xff] %vm3111, %v9956
  %10021 = vst.msk [vmem:[%s14 + $0x118] sm:$0xff] %vm3111, %v9957
  %10022 = vst.msk [vmem:[%s14 + $0x120] sm:$0xff] %vm3111, %v9958
  %10023 = vst.msk [vmem:[%s14 + $0x128] sm:$0xff] %vm3111, %v9959
  %10024 = vst.msk [vmem:[%s14 + $0x130] sm:$0xff] %vm3111, %v9960
  %10025 = vst.msk [vmem:[%s14 + $0x138] sm:$0xff] %vm3111, %v9961
  %10026 = vst.msk [vmem:[%s14 + $0x140] sm:$0xff] %vm3111, %v9962
  %10027 = vst.msk [vmem:[%s14 + $0x148] sm:$0xff] %vm3111, %v9963
  %10028 = vst.msk [vmem:[%s14 + $0x150] sm:$0xff] %vm3111, %v9964
  %10029 = vst.msk [vmem:[%s14 + $0x158] sm:$0xff] %vm3111, %v9965
  %10030 = vst.msk [vmem:[%s14 + $0x160] sm:$0xff] %vm3111, %v9966
  %10031 = vst.msk [vmem:[%s14 + $0x168] sm:$0xff] %vm3111, %v9967
  %10032 = vst.msk [vmem:[%s14 + $0x170] sm:$0xff] %vm3111, %v9968
  %10033 = vst.msk [vmem:[%s14 + $0x178] sm:$0xff] %vm3111, %v9969
  %10034 = vst.msk [vmem:[%s14 + $0x180] sm:$0xff] %vm3111, %v9970
  %10035 = vst.msk [vmem:[%s14 + $0x188] sm:$0xff] %vm3111, %v9971
  %10036 = vst.msk [vmem:[%s14 + $0x190] sm:$0xff] %vm3111, %v9972
  %10037 = vst.msk [vmem:[%s14 + $0x198] sm:$0xff] %vm3111, %v9973
  %10038 = vst.msk [vmem:[%s14 + $0x1a0] sm:$0xff] %vm3111, %v9974
  %10039 = vst.msk [vmem:[%s14 + $0x1a8] sm:$0xff] %vm3111, %v9975
  %10040 = vst.msk [vmem:[%s14 + $0x1b0] sm:$0xff] %vm3111, %v9976
  %10041 = vst.msk [vmem:[%s14 + $0x1b8] sm:$0xff] %vm3111, %v9977
  %10042 = vst.msk [vmem:[%s14 + $0x1c0] sm:$0xff] %vm3111, %v9978
  %10043 = vst.msk [vmem:[%s14 + $0x1c8] sm:$0xff] %vm3111, %v9979
  %10044 = vst.msk [vmem:[%s14 + $0x1d0] sm:$0xff] %vm3111, %v9980
  %10045 = vst.msk [vmem:[%s14 + $0x1d8] sm:$0xff] %vm3111, %v9981
  %10046 = vst.msk [vmem:[%s14 + $0x1e0] sm:$0xff] %vm3111, %v9982
  %10047 = vst.msk [vmem:[%s14 + $0x1e8] sm:$0xff] %vm3111, %v9983
  %10048 = vst.msk [vmem:[%s14 + $0x1f0] sm:$0xff] %vm3111, %v9984
  %10049 = vst.msk [vmem:[%s14 + $0x1f8] sm:$0xff] %vm3111, %v9985
  // Predicated region
  $region58: #{tpu_custom_call.1} parent=0 // pred_check
    _
  $region59: #{tpu_custom_call.1} parent=0 // pred_check_branch
    %10051 = sbr.rel (0) target = $region61
  $region60: #{tpu_custom_call.1} parent=0 // pred_region
    _
  $region61: #{tpu_custom_call.1} parent=0 // pred_fallthru
    _
  // Predicated region
  $region62: #{tpu_custom_call.1} parent=0 // pred_check
    _
  $region63: #{tpu_custom_call.1} parent=0 // pred_check_branch
    %10053 = sbr.rel (0) target = $region65
  $region64: #{tpu_custom_call.1} parent=0 // pred_region
    _
  $region65: #{tpu_custom_call.1} parent=0 // pred_fallthru
    _

</llo_original>
